<compile_context>
chip_gen: v7x
topology: tpu7x:2x2x1
jax: 0.10.0
libtpu: 0.0.40
codegen_flags: <defaults>
</compile_context>

<pallas_src>
import jax
import jax.numpy as jnp
from jax.experimental import pallas as pl
from jax.experimental.pallas import tpu as pltpu

# ---- static problem sizes ---------------------------------------------------
B, H, W, C_IN = 2, 16, 16, 4
K1, C1 = 3, 8                            # conv layer 1: 4 -> 8, 3x3, valid
K2, C2 = 3, 16                           # conv layer 2: 8 -> 16, 3x3, valid
OH1, OW1 = H - K1 + 1, W - K1 + 1        # 14, 14
OH2, OW2 = OH1 - K2 + 1, OW1 - K2 + 1    # 12, 12
PIX2 = OH2 * OW2                         # 144 conv2 output pixels per image
FLAT = C2 * PIX2                         # 2304 = 18 * 128  (lane-dense flat dim)
HID = 32                                 # flat_hid[0]
OUT = 6                                  # out_dim (single head)
OUT_PAD = 128                            # lane-padded head width
BN_EPS = 1e-5


# ---- fused kernel -----------------------------------------------------------
def convnet_kernel(x_ref, w1_ref, w2_ref, wd_ref, wo_ref, vec_ref, out_ref):
    """conv1+relu -> conv2+relu+BN -> CHW flatten -> dense+relu -> output head."""
    x = x_ref[...]                                    # (B, 16, 16, 4) f32
    vec = vec_ref[...]                                # (8, 128) packed small params
    b1, b2 = vec[0:1, :C1], vec[1:2, :C2]
    gamma, beta = vec[2:3, :C2], vec[3:4, :C2]
    bd, bo = vec[4:5, :HID], vec[5:6, :]              # bo already lane-padded to 128

    # conv1 as ONE im2col matmul: (B*14*14, 3*3*4=36) @ (36, 8) on the MXU.
    p1 = jnp.concatenate(
        [x[:, kh:kh + OH1, kw:kw + OW1, :] for kh in range(K1) for kw in range(K1)],
        axis=-1).reshape(B * OH1 * OW1, K1 * K1 * C_IN)
    h1 = jnp.dot(p1, w1_ref[...], preferred_element_type=jnp.float32) + b1
    h1 = jnp.maximum(h1, 0.0).reshape(B, OH1, OW1, C1)        # relu

    # conv2 as ONE im2col matmul: (B*144, 3*3*8=72) @ (72, 16).
    p2 = jnp.concatenate(
        [h1[:, kh:kh + OH2, kw:kw + OW2, :] for kh in range(K2) for kw in range(K2)],
        axis=-1).reshape(B * PIX2, K2 * K2 * C1)
    h2 = jnp.dot(p2, w2_ref[...], preferred_element_type=jnp.float32) + b2
    h2 = jnp.maximum(h2, 0.0)                                 # relu (Conv->ReLU->BN)

    # BatchNorm2d, training-mode batch statistics over (N, H, W) per channel.
    mean = jnp.mean(h2, axis=0, keepdims=True)                # (1, 16)
    var = jnp.mean(jnp.square(h2 - mean), axis=0, keepdims=True)
    h2n = (h2 - mean) * jax.lax.rsqrt(var + BN_EPS) * gamma + beta
    # TODO(synk): running_mean/running_var buffer updates (training-mode side
    # effect) are not materialized; only the forward activations are produced.

    # In-kernel flatten reproducing torch's x.view(-1, flat_dim) on the NCHW
    # tensor: flat[b, c*144 + oh*12 + ow].  Built from well-supported ops only
    # (8-aligned sublane slice -> 2D transpose -> lane concat); the result is
    # lane-dense (2304 = 18 * 128), so the dense matmul input needs no masking.
    rows = []
    for b in range(B):                                 # static unroll, B = 2
        hbT = h2n[b * PIX2:(b + 1) * PIX2, :].T        # (16, 144)
        rows.append(jnp.concatenate([hbT[c:c + 1, :] for c in range(C2)], axis=-1))
    flat = jnp.concatenate(rows, axis=0)               # (B, 2304) f32

    # Dense hidden layer: bf16 weights on the MXU, f32 accumulation, f32 relu.
    hden = jnp.dot(flat.astype(jnp.bfloat16), wd_ref[...],
                   preferred_element_type=jnp.float32) + bd
    hden = jnp.maximum(hden, 0.0)                      # (B, 32)

    # Output head, lane-padded to 128 columns (columns >= OUT are exactly zero).
    out_ref[...] = jnp.dot(hden, wo_ref[...],
                           preferred_element_type=jnp.float32) + bo


# ---- wrapper ----------------------------------------------------------------
_FLOPS = 2 * (B * OH1 * OW1 * (K1 * K1 * C_IN) * C1
              + B * PIX2 * (K2 * K2 * C1) * C2
              + B * FLAT * HID
              + B * HID * OUT_PAD)
_BYTES = (B * H * W * C_IN * 4 + K1 * K1 * C_IN * C1 * 4 + K2 * K2 * C1 * C2 * 4
          + FLAT * HID * 2 + HID * OUT_PAD * 4 + 8 * 128 * 4 + B * OUT_PAD * 4)


def convnet_forward(x_bhwc, params):
    """x_bhwc: (B, H, W, C) exactly as the module's forward receives it."""
    w1, w2, wd, wo, vec = params
    vmem = pl.BlockSpec(memory_space=pltpu.MemorySpace.VMEM)
    out_pad = pl.pallas_call(
        convnet_kernel,
        out_shape=jax.ShapeDtypeStruct((B, OUT_PAD), jnp.float32),
        in_specs=[vmem] * 6,
        out_specs=vmem,
        cost_estimate=pl.CostEstimate(
            flops=_FLOPS, transcendentals=C2, bytes_accessed=_BYTES),
    )(x_bhwc, w1, w2, wd, wo, vec)
    # TODO(synk): for realistic batch sizes, add a batch grid axis marked
    # "parallel" so v7x's two TensorCores both get work; pointless at B=2.
    return out_pad[:, :OUT]                            # (B, 6) single head


# ---- deterministic parameter init (xavier-uniform weights, 0.01 biases) ------
def _xavier(key, shape, fan_in, fan_out):
    lim = (6.0 / (fan_in + fan_out)) ** 0.5
    return jax.random.uniform(key, shape, jnp.float32, -lim, lim)


def init_params(key):
    k1, k2, k3, k4 = jax.random.split(key, 4)
    # Conv weights generated in (KH, KW, Cin, Cout) and reshaped host-side to the
    # (KH*KW*Cin, Cout) im2col layout the kernel consumes (row order kh, kw, cin).
    w1 = _xavier(k1, (K1, K1, C_IN, C1),
                 C_IN * K1 * K1, C1 * K1 * K1).reshape(K1 * K1 * C_IN, C1)
    w2 = _xavier(k2, (K2, K2, C1, C2),
                 C1 * K2 * K2, C2 * K2 * K2).reshape(K2 * K2 * C1, C2)
    # Dense weight: rows in torch's C,H,W flatten order (matches the in-kernel
    # flatten), stored in bf16 for the MXU -> halves its HBM transfer.
    wd = _xavier(k3, (FLAT, HID), FLAT, HID).astype(jnp.bfloat16)
    # Output head, lane-padded to 128 columns (padding columns are zero).
    wo = jnp.zeros((HID, OUT_PAD), jnp.float32).at[:, :OUT].set(
        _xavier(k4, (HID, OUT), HID, OUT))
    # All small per-channel vectors packed into one (8, 128) array -> one DMA.
    vec = jnp.zeros((8, 128), jnp.float32)
    vec = vec.at[0, :C1].set(0.01)      # conv1 bias
    vec = vec.at[1, :C2].set(0.01)      # conv2 bias
    vec = vec.at[2, :C2].set(1.0)       # BatchNorm2d weight (gamma)
    vec = vec.at[3, :C2].set(0.01)      # BatchNorm2d bias (beta)
    vec = vec.at[4, :HID].set(0.01)     # dense bias
    vec = vec.at[5, :OUT].set(0.01)     # head bias (padded columns stay 0)
    return (w1, w2, wd, wo, vec)


if __name__ == "__main__":
    root = jax.random.PRNGKey(0)
    k_params, k_x = jax.random.split(root)
    params = init_params(k_params)
    # Module forward expects (B, H, W, C) and permutes to NCHW itself; the kernel
    # consumes the NHWC layout directly (mathematically equivalent).
    x = jax.random.uniform(k_x, (B, H, W, C_IN), jnp.float32)

    out = jax.jit(convnet_forward)(x, params)
    out = jax.block_until_ready(out)
    assert out.shape == (B, OUT), out.shape
    assert bool(jnp.all(jnp.isfinite(out)))
    print("KERNEL_OK")
</pallas_src>

<mosaic_0001>
module attributes {stable_mosaic.version = 11 : i64} {
  func.func @convnet_kernel(%arg0: memref<2x16x16x4xf32, #tpu.memory_space<vmem>>, %arg1: memref<36x8xf32, #tpu.memory_space<vmem>>, %arg2: memref<72x16xf32, #tpu.memory_space<vmem>>, %arg3: memref<2304x32xbf16, #tpu.memory_space<vmem>>, %arg4: memref<32x128xf32, #tpu.memory_space<vmem>>, %arg5: memref<8x128xf32, #tpu.memory_space<vmem>>, %arg6: memref<2x128xf32, #tpu.memory_space<vmem>>) attributes {dimension_semantics = [], scalar_prefetch = 0 : i64, scratch_operands = 0 : i64, tpu.core_type = #tpu.core_type<tc>} {
    %c0 = arith.constant 0 : index
    %c0_0 = arith.constant 0 : index
    %c0_1 = arith.constant 0 : index
    %c0_2 = arith.constant 0 : index
    %0 = vector.load %arg0[%c0, %c0_0, %c0_1, %c0_2] : memref<2x16x16x4xf32, #tpu.memory_space<vmem>>, vector<2x16x16x4xf32>
    %c0_3 = arith.constant 0 : index
    %c0_4 = arith.constant 0 : index
    %1 = vector.load %arg5[%c0_3, %c0_4] : memref<8x128xf32, #tpu.memory_space<vmem>>, vector<8x128xf32>
    %2 = vector.extract_strided_slice %1 {offsets = [0, 0], sizes = [1, 8], strides = [1, 1]} : vector<8x128xf32> to vector<1x8xf32>
    %3 = vector.extract_strided_slice %1 {offsets = [1, 0], sizes = [1, 16], strides = [1, 1]} : vector<8x128xf32> to vector<1x16xf32>
    %4 = vector.extract_strided_slice %1 {offsets = [2, 0], sizes = [1, 16], strides = [1, 1]} : vector<8x128xf32> to vector<1x16xf32>
    %5 = vector.extract_strided_slice %1 {offsets = [3, 0], sizes = [1, 16], strides = [1, 1]} : vector<8x128xf32> to vector<1x16xf32>
    %6 = vector.extract_strided_slice %1 {offsets = [4, 0], sizes = [1, 32], strides = [1, 1]} : vector<8x128xf32> to vector<1x32xf32>
    %7 = vector.extract_strided_slice %1 {offsets = [5, 0], sizes = [1, 128], strides = [1, 1]} : vector<8x128xf32> to vector<1x128xf32>
    %8 = vector.extract_strided_slice %0 {offsets = [0, 0, 0, 0], sizes = [2, 14, 14, 4], strides = [1, 1, 1, 1]} : vector<2x16x16x4xf32> to vector<2x14x14x4xf32>
    %9 = vector.extract_strided_slice %0 {offsets = [0, 0, 1, 0], sizes = [2, 14, 14, 4], strides = [1, 1, 1, 1]} : vector<2x16x16x4xf32> to vector<2x14x14x4xf32>
    %10 = vector.extract_strided_slice %0 {offsets = [0, 0, 2, 0], sizes = [2, 14, 14, 4], strides = [1, 1, 1, 1]} : vector<2x16x16x4xf32> to vector<2x14x14x4xf32>
    %11 = vector.extract_strided_slice %0 {offsets = [0, 1, 0, 0], sizes = [2, 14, 14, 4], strides = [1, 1, 1, 1]} : vector<2x16x16x4xf32> to vector<2x14x14x4xf32>
    %12 = vector.extract_strided_slice %0 {offsets = [0, 1, 1, 0], sizes = [2, 14, 14, 4], strides = [1, 1, 1, 1]} : vector<2x16x16x4xf32> to vector<2x14x14x4xf32>
    %13 = vector.extract_strided_slice %0 {offsets = [0, 1, 2, 0], sizes = [2, 14, 14, 4], strides = [1, 1, 1, 1]} : vector<2x16x16x4xf32> to vector<2x14x14x4xf32>
    %14 = vector.extract_strided_slice %0 {offsets = [0, 2, 0, 0], sizes = [2, 14, 14, 4], strides = [1, 1, 1, 1]} : vector<2x16x16x4xf32> to vector<2x14x14x4xf32>
    %15 = vector.extract_strided_slice %0 {offsets = [0, 2, 1, 0], sizes = [2, 14, 14, 4], strides = [1, 1, 1, 1]} : vector<2x16x16x4xf32> to vector<2x14x14x4xf32>
    %16 = vector.extract_strided_slice %0 {offsets = [0, 2, 2, 0], sizes = [2, 14, 14, 4], strides = [1, 1, 1, 1]} : vector<2x16x16x4xf32> to vector<2x14x14x4xf32>
    %17 = tpu.concatenate %8, %9, %10, %11, %12, %13, %14, %15, %16 in 3 : vector<2x14x14x4xf32>, vector<2x14x14x4xf32>, vector<2x14x14x4xf32>, vector<2x14x14x4xf32>, vector<2x14x14x4xf32>, vector<2x14x14x4xf32>, vector<2x14x14x4xf32>, vector<2x14x14x4xf32>, vector<2x14x14x4xf32> -> vector<2x14x14x36xf32>
    %18 = vector.shape_cast %17 : vector<2x14x14x36xf32> to vector<392x36xf32>
    %c0_5 = arith.constant 0 : index
    %c0_6 = arith.constant 0 : index
    %19 = vector.load %arg1[%c0_5, %c0_6] : memref<36x8xf32, #tpu.memory_space<vmem>>, vector<36x8xf32>
    %cst = arith.constant dense<0.000000e+00> : vector<392x8xf32>
    %20 = tpu.matmul %18, %19, %cst {dimension_numbers = #tpu.dot_dimension_numbers<[1], [0], [0], [1], [0, 0, 1, 1], [], []>} : vector<392x36xf32>, vector<36x8xf32>, vector<392x8xf32> -> vector<392x8xf32>
    %21 = vector.broadcast %2 : vector<1x8xf32> to vector<392x8xf32>
    %22 = arith.addf %20, %21 : vector<392x8xf32>
    %cst_7 = arith.constant 0.000000e+00 : f32
    %23 = vector.broadcast %cst_7 : f32 to vector<392x8xf32>
    %24 = arith.maximumf %22, %23 : vector<392x8xf32>
    %25 = vector.shape_cast %24 : vector<392x8xf32> to vector<2x14x14x8xf32>
    %26 = vector.extract_strided_slice %25 {offsets = [0, 0, 0, 0], sizes = [2, 12, 12, 8], strides = [1, 1, 1, 1]} : vector<2x14x14x8xf32> to vector<2x12x12x8xf32>
    %27 = vector.extract_strided_slice %25 {offsets = [0, 0, 1, 0], sizes = [2, 12, 12, 8], strides = [1, 1, 1, 1]} : vector<2x14x14x8xf32> to vector<2x12x12x8xf32>
    %28 = vector.extract_strided_slice %25 {offsets = [0, 0, 2, 0], sizes = [2, 12, 12, 8], strides = [1, 1, 1, 1]} : vector<2x14x14x8xf32> to vector<2x12x12x8xf32>
    %29 = vector.extract_strided_slice %25 {offsets = [0, 1, 0, 0], sizes = [2, 12, 12, 8], strides = [1, 1, 1, 1]} : vector<2x14x14x8xf32> to vector<2x12x12x8xf32>
    %30 = vector.extract_strided_slice %25 {offsets = [0, 1, 1, 0], sizes = [2, 12, 12, 8], strides = [1, 1, 1, 1]} : vector<2x14x14x8xf32> to vector<2x12x12x8xf32>
    %31 = vector.extract_strided_slice %25 {offsets = [0, 1, 2, 0], sizes = [2, 12, 12, 8], strides = [1, 1, 1, 1]} : vector<2x14x14x8xf32> to vector<2x12x12x8xf32>
    %32 = vector.extract_strided_slice %25 {offsets = [0, 2, 0, 0], sizes = [2, 12, 12, 8], strides = [1, 1, 1, 1]} : vector<2x14x14x8xf32> to vector<2x12x12x8xf32>
    %33 = vector.extract_strided_slice %25 {offsets = [0, 2, 1, 0], sizes = [2, 12, 12, 8], strides = [1, 1, 1, 1]} : vector<2x14x14x8xf32> to vector<2x12x12x8xf32>
    %34 = vector.extract_strided_slice %25 {offsets = [0, 2, 2, 0], sizes = [2, 12, 12, 8], strides = [1, 1, 1, 1]} : vector<2x14x14x8xf32> to vector<2x12x12x8xf32>
    %35 = tpu.concatenate %26, %27, %28, %29, %30, %31, %32, %33, %34 in 3 : vector<2x12x12x8xf32>, vector<2x12x12x8xf32>, vector<2x12x12x8xf32>, vector<2x12x12x8xf32>, vector<2x12x12x8xf32>, vector<2x12x12x8xf32>, vector<2x12x12x8xf32>, vector<2x12x12x8xf32>, vector<2x12x12x8xf32> -> vector<2x12x12x72xf32>
    %36 = vector.shape_cast %35 : vector<2x12x12x72xf32> to vector<288x72xf32>
    %c0_8 = arith.constant 0 : index
    %c0_9 = arith.constant 0 : index
    %37 = vector.load %arg2[%c0_8, %c0_9] : memref<72x16xf32, #tpu.memory_space<vmem>>, vector<72x16xf32>
    %cst_10 = arith.constant dense<0.000000e+00> : vector<288x16xf32>
    %38 = tpu.matmul %36, %37, %cst_10 {dimension_numbers = #tpu.dot_dimension_numbers<[1], [0], [0], [1], [0, 0, 1, 1], [], []>} : vector<288x72xf32>, vector<72x16xf32>, vector<288x16xf32> -> vector<288x16xf32>
    %39 = vector.broadcast %3 : vector<1x16xf32> to vector<288x16xf32>
    %40 = arith.addf %38, %39 : vector<288x16xf32>
    %cst_11 = arith.constant 0.000000e+00 : f32
    %41 = vector.broadcast %cst_11 : f32 to vector<288x16xf32>
    %42 = arith.maximumf %40, %41 : vector<288x16xf32>
    %cst_12 = arith.constant dense<0.000000e+00> : vector<16xf32>
    %43 = vector.multi_reduction <add>, %42, %cst_12 [0] : vector<288x16xf32> to vector<16xf32>
    %44 = vector.shape_cast %43 : vector<16xf32> to vector<1x16xf32>
    %cst_13 = arith.constant 2.880000e+02 : f32
    %45 = vector.broadcast %cst_13 : f32 to vector<1x16xf32>
    %46 = arith.divf %44, %45 : vector<1x16xf32>
    %47 = vector.broadcast %46 : vector<1x16xf32> to vector<288x16xf32>
    %48 = arith.subf %42, %47 : vector<288x16xf32>
    %49 = arith.mulf %48, %48 : vector<288x16xf32>
    %cst_14 = arith.constant dense<0.000000e+00> : vector<16xf32>
    %50 = vector.multi_reduction <add>, %49, %cst_14 [0] : vector<288x16xf32> to vector<16xf32>
    %51 = vector.shape_cast %50 : vector<16xf32> to vector<1x16xf32>
    %cst_15 = arith.constant 2.880000e+02 : f32
    %52 = vector.broadcast %cst_15 : f32 to vector<1x16xf32>
    %53 = arith.divf %51, %52 : vector<1x16xf32>
    %54 = vector.broadcast %46 : vector<1x16xf32> to vector<288x16xf32>
    %55 = arith.subf %42, %54 : vector<288x16xf32>
    %cst_16 = arith.constant 9.99999974E-6 : f32
    %56 = vector.broadcast %cst_16 : f32 to vector<1x16xf32>
    %57 = arith.addf %53, %56 : vector<1x16xf32>
    %58 = math.rsqrt %57 : vector<1x16xf32>
    %59 = vector.broadcast %58 : vector<1x16xf32> to vector<288x16xf32>
    %60 = arith.mulf %55, %59 : vector<288x16xf32>
    %61 = vector.broadcast %4 : vector<1x16xf32> to vector<288x16xf32>
    %62 = arith.mulf %60, %61 : vector<288x16xf32>
    %63 = vector.broadcast %5 : vector<1x16xf32> to vector<288x16xf32>
    %64 = arith.addf %62, %63 : vector<288x16xf32>
    %65 = vector.extract_strided_slice %64 {offsets = [0, 0], sizes = [144, 16], strides = [1, 1]} : vector<288x16xf32> to vector<144x16xf32>
    %66 = tpu.transpose %65, [1, 0] : vector<144x16xf32> -> vector<16x144xf32>
    %67 = vector.extract_strided_slice %66 {offsets = [0, 0], sizes = [1, 144], strides = [1, 1]} : vector<16x144xf32> to vector<1x144xf32>
    %68 = vector.extract_strided_slice %66 {offsets = [1, 0], sizes = [1, 144], strides = [1, 1]} : vector<16x144xf32> to vector<1x144xf32>
    %69 = vector.extract_strided_slice %66 {offsets = [2, 0], sizes = [1, 144], strides = [1, 1]} : vector<16x144xf32> to vector<1x144xf32>
    %70 = vector.extract_strided_slice %66 {offsets = [3, 0], sizes = [1, 144], strides = [1, 1]} : vector<16x144xf32> to vector<1x144xf32>
    %71 = vector.extract_strided_slice %66 {offsets = [4, 0], sizes = [1, 144], strides = [1, 1]} : vector<16x144xf32> to vector<1x144xf32>
    %72 = vector.extract_strided_slice %66 {offsets = [5, 0], sizes = [1, 144], strides = [1, 1]} : vector<16x144xf32> to vector<1x144xf32>
    %73 = vector.extract_strided_slice %66 {offsets = [6, 0], sizes = [1, 144], strides = [1, 1]} : vector<16x144xf32> to vector<1x144xf32>
    %74 = vector.extract_strided_slice %66 {offsets = [7, 0], sizes = [1, 144], strides = [1, 1]} : vector<16x144xf32> to vector<1x144xf32>
    %75 = vector.extract_strided_slice %66 {offsets = [8, 0], sizes = [1, 144], strides = [1, 1]} : vector<16x144xf32> to vector<1x144xf32>
    %76 = vector.extract_strided_slice %66 {offsets = [9, 0], sizes = [1, 144], strides = [1, 1]} : vector<16x144xf32> to vector<1x144xf32>
    %77 = vector.extract_strided_slice %66 {offsets = [10, 0], sizes = [1, 144], strides = [1, 1]} : vector<16x144xf32> to vector<1x144xf32>
    %78 = vector.extract_strided_slice %66 {offsets = [11, 0], sizes = [1, 144], strides = [1, 1]} : vector<16x144xf32> to vector<1x144xf32>
    %79 = vector.extract_strided_slice %66 {offsets = [12, 0], sizes = [1, 144], strides = [1, 1]} : vector<16x144xf32> to vector<1x144xf32>
    %80 = vector.extract_strided_slice %66 {offsets = [13, 0], sizes = [1, 144], strides = [1, 1]} : vector<16x144xf32> to vector<1x144xf32>
    %81 = vector.extract_strided_slice %66 {offsets = [14, 0], sizes = [1, 144], strides = [1, 1]} : vector<16x144xf32> to vector<1x144xf32>
    %82 = vector.extract_strided_slice %66 {offsets = [15, 0], sizes = [1, 144], strides = [1, 1]} : vector<16x144xf32> to vector<1x144xf32>
    %83 = tpu.concatenate %67, %68, %69, %70, %71, %72, %73, %74, %75, %76, %77, %78, %79, %80, %81, %82 in 1 : vector<1x144xf32>, vector<1x144xf32>, vector<1x144xf32>, vector<1x144xf32>, vector<1x144xf32>, vector<1x144xf32>, vector<1x144xf32>, vector<1x144xf32>, vector<1x144xf32>, vector<1x144xf32>, vector<1x144xf32>, vector<1x144xf32>, vector<1x144xf32>, vector<1x144xf32>, vector<1x144xf32>, vector<1x144xf32> -> vector<1x2304xf32>
    %84 = vector.extract_strided_slice %64 {offsets = [144, 0], sizes = [144, 16], strides = [1, 1]} : vector<288x16xf32> to vector<144x16xf32>
    %85 = tpu.transpose %84, [1, 0] : vector<144x16xf32> -> vector<16x144xf32>
    %86 = vector.extract_strided_slice %85 {offsets = [0, 0], sizes = [1, 144], strides = [1, 1]} : vector<16x144xf32> to vector<1x144xf32>
    %87 = vector.extract_strided_slice %85 {offsets = [1, 0], sizes = [1, 144], strides = [1, 1]} : vector<16x144xf32> to vector<1x144xf32>
    %88 = vector.extract_strided_slice %85 {offsets = [2, 0], sizes = [1, 144], strides = [1, 1]} : vector<16x144xf32> to vector<1x144xf32>
    %89 = vector.extract_strided_slice %85 {offsets = [3, 0], sizes = [1, 144], strides = [1, 1]} : vector<16x144xf32> to vector<1x144xf32>
    %90 = vector.extract_strided_slice %85 {offsets = [4, 0], sizes = [1, 144], strides = [1, 1]} : vector<16x144xf32> to vector<1x144xf32>
    %91 = vector.extract_strided_slice %85 {offsets = [5, 0], sizes = [1, 144], strides = [1, 1]} : vector<16x144xf32> to vector<1x144xf32>
    %92 = vector.extract_strided_slice %85 {offsets = [6, 0], sizes = [1, 144], strides = [1, 1]} : vector<16x144xf32> to vector<1x144xf32>
    %93 = vector.extract_strided_slice %85 {offsets = [7, 0], sizes = [1, 144], strides = [1, 1]} : vector<16x144xf32> to vector<1x144xf32>
    %94 = vector.extract_strided_slice %85 {offsets = [8, 0], sizes = [1, 144], strides = [1, 1]} : vector<16x144xf32> to vector<1x144xf32>
    %95 = vector.extract_strided_slice %85 {offsets = [9, 0], sizes = [1, 144], strides = [1, 1]} : vector<16x144xf32> to vector<1x144xf32>
    %96 = vector.extract_strided_slice %85 {offsets = [10, 0], sizes = [1, 144], strides = [1, 1]} : vector<16x144xf32> to vector<1x144xf32>
    %97 = vector.extract_strided_slice %85 {offsets = [11, 0], sizes = [1, 144], strides = [1, 1]} : vector<16x144xf32> to vector<1x144xf32>
    %98 = vector.extract_strided_slice %85 {offsets = [12, 0], sizes = [1, 144], strides = [1, 1]} : vector<16x144xf32> to vector<1x144xf32>
    %99 = vector.extract_strided_slice %85 {offsets = [13, 0], sizes = [1, 144], strides = [1, 1]} : vector<16x144xf32> to vector<1x144xf32>
    %100 = vector.extract_strided_slice %85 {offsets = [14, 0], sizes = [1, 144], strides = [1, 1]} : vector<16x144xf32> to vector<1x144xf32>
    %101 = vector.extract_strided_slice %85 {offsets = [15, 0], sizes = [1, 144], strides = [1, 1]} : vector<16x144xf32> to vector<1x144xf32>
    %102 = tpu.concatenate %86, %87, %88, %89, %90, %91, %92, %93, %94, %95, %96, %97, %98, %99, %100, %101 in 1 : vector<1x144xf32>, vector<1x144xf32>, vector<1x144xf32>, vector<1x144xf32>, vector<1x144xf32>, vector<1x144xf32>, vector<1x144xf32>, vector<1x144xf32>, vector<1x144xf32>, vector<1x144xf32>, vector<1x144xf32>, vector<1x144xf32>, vector<1x144xf32>, vector<1x144xf32>, vector<1x144xf32>, vector<1x144xf32> -> vector<1x2304xf32>
    %103 = tpu.concatenate %83, %102 in 0 : vector<1x2304xf32>, vector<1x2304xf32> -> vector<2x2304xf32>
    %104 = arith.truncf %103 : vector<2x2304xf32> to vector<2x2304xbf16>
    %c0_17 = arith.constant 0 : index
    %c0_18 = arith.constant 0 : index
    %105 = vector.load %arg3[%c0_17, %c0_18] : memref<2304x32xbf16, #tpu.memory_space<vmem>>, vector<2304x32xbf16>
    %cst_19 = arith.constant dense<0.000000e+00> : vector<2x32xf32>
    %106 = tpu.matmul %104, %105, %cst_19 {dimension_numbers = #tpu.dot_dimension_numbers<[1], [0], [0], [1], [0, 0, 1, 1], [], []>} : vector<2x2304xbf16>, vector<2304x32xbf16>, vector<2x32xf32> -> vector<2x32xf32>
    %107 = vector.broadcast %6 : vector<1x32xf32> to vector<2x32xf32>
    %108 = arith.addf %106, %107 : vector<2x32xf32>
    %cst_20 = arith.constant 0.000000e+00 : f32
    %109 = vector.broadcast %cst_20 : f32 to vector<2x32xf32>
    %110 = arith.maximumf %108, %109 : vector<2x32xf32>
    %c0_21 = arith.constant 0 : index
    %c0_22 = arith.constant 0 : index
    %111 = vector.load %arg4[%c0_21, %c0_22] : memref<32x128xf32, #tpu.memory_space<vmem>>, vector<32x128xf32>
    %cst_23 = arith.constant dense<0.000000e+00> : vector<2x128xf32>
    %112 = tpu.matmul %110, %111, %cst_23 {dimension_numbers = #tpu.dot_dimension_numbers<[1], [0], [0], [1], [0, 0, 1, 1], [], []>} : vector<2x32xf32>, vector<32x128xf32>, vector<2x128xf32> -> vector<2x128xf32>
    %113 = vector.broadcast %7 : vector<1x128xf32> to vector<2x128xf32>
    %114 = arith.addf %112, %113 : vector<2x128xf32>
    %c0_24 = arith.constant 0 : index
    %c0_25 = arith.constant 0 : index
    %115 = vector.load %arg6[%c0_24, %c0_25] : memref<2x128xf32, #tpu.memory_space<vmem>>, vector<2x128xf32>
    tpu.vector_store %arg6[%c0_24, %c0_25], %114 {strides = array<i32>} : memref<2x128xf32, #tpu.memory_space<vmem>>, vector<2x128xf32>,
    return
  }
}

</mosaic_0001>

<llo_original>
// kernel: convnet_forward.1
$region0: #{convnet_forward.1}
  #allocation0 [shape = 'u32[]', space=smem, size = 0x4, offset = 0x4, fixed_abs, tag = 'smem constant byte address 0x4 - core index']
  #allocation1 [shape = 'u32[144,128]{1,0:T(1,128)}', space=vmem, size = 0x12000, scoped, tag = 'internal scratch']
  %s0 = inlined_call_operand.vmem [shape: f32[2,16,16,4], index: 0, kind: input, shape index: {}]
  %s1 = inlined_call_operand.vmem [shape: f32[36,8], index: 1, kind: input, shape index: {}]
  %s2 = inlined_call_operand.vmem [shape: f32[72,16], index: 2, kind: input, shape index: {}]
  %s3 = inlined_call_operand.vmem [shape: bf16[2304,32], index: 3, kind: input, shape index: {}]
  %s4 = inlined_call_operand.vmem [shape: f32[32,128], index: 4, kind: input, shape index: {}]
  %s5 = inlined_call_operand.vmem [shape: f32[8,128], index: 5, kind: input, shape index: {}]
  %s6 = inlined_call_operand.hbm [shape: f32[2,128], index: 6, kind: output, shape index: {}]
  %s7 = sld [smem:[#allocation0]]
  $region34: #{convnet_forward.1} parent=0
    _
  %s9 = ssub.s32 1, %s7
  %s10 = scalar_select 0, %s9, %s7
  $region1: #{convnet_forward.1} parent=0
    #allocation2 [shape = 'u8[1024]{0}', space=vmem, size = 0x400, scoped, tag = 'output window, operand 0, single buffered']
    #allocation3 [shape = 's32[1]{0}', space=sflag, size = 0x4, scoped, tag = 'scoped memory for convnet_forward.1']
    %11 = vsyncpa [#allocation3], 0
    // Predicated region
    $region2: #{convnet_forward.1} parent=1 // pred_check
      _
    $region3: #{convnet_forward.1} parent=1 // pred_check_branch
      %13 = sbr.rel (0) target = $region5
    $region4: #{convnet_forward.1} parent=1 // pred_region
      _
    $region5: #{convnet_forward.1} parent=1 // pred_fallthru
      _
    // Predicated region
    $region6: #{convnet_forward.1} parent=1 // pred_check
      _
    $region7: #{convnet_forward.1} parent=1 // pred_check_branch
      %15 = sbr.rel (0) target = $region9
    $region8: #{convnet_forward.1} parent=1 // pred_region
      _
    $region9: #{convnet_forward.1} parent=1 // pred_fallthru
      _
    // Predicated region
    $region10: #{convnet_forward.1} parent=1 // pred_check
      _
    $region11: #{convnet_forward.1} parent=1 // pred_check_branch
      %17 = sbr.rel (0) target = $region13
    $region12: #{convnet_forward.1} parent=1 // pred_region
      _
    $region13: #{convnet_forward.1} parent=1 // pred_fallthru
      _
    // Predicated region
    $region14: #{convnet_forward.1} parent=1 // pred_check
      _
    $region15: #{convnet_forward.1} parent=1 // pred_check_branch
      %19 = sbr.rel (0) target = $region17
    $region16: #{convnet_forward.1} parent=1 // pred_region
      _
    $region17: #{convnet_forward.1} parent=1 // pred_fallthru
      _
    // Predicated region
    $region18: #{convnet_forward.1} parent=1 // pred_check
      _
    $region19: #{convnet_forward.1} parent=1 // pred_check_branch
      %21 = sbr.rel (0) target = $region21
    $region20: #{convnet_forward.1} parent=1 // pred_region
      _
    $region21: #{convnet_forward.1} parent=1 // pred_fallthru
      _
    // Predicated region
    $region22: #{convnet_forward.1} parent=1 // pred_check
      _
    $region23: #{convnet_forward.1} parent=1 // pred_check_branch
      %23 = sbr.rel (0) target = $region25
    $region24: #{convnet_forward.1} parent=1 // pred_region
      _
    $region25: #{convnet_forward.1} parent=1 // pred_fallthru
      _
    %v25 = vld [vmem:[%s0] sm:$0xff]
    %v26 = vld [vmem:[%s0 + $0x8] sm:$0xff]
    %v27 = vld [vmem:[%s0 + $0x10] sm:$0xff]
    %v28 = vld [vmem:[%s0 + $0x18] sm:$0xff]
    %v29 = vld [vmem:[%s0 + $0x20] sm:$0xff]
    %v30 = vld [vmem:[%s0 + $0x28] sm:$0xff]
    %v31 = vld [vmem:[%s0 + $0x30] sm:$0xff]
    %v32 = vld [vmem:[%s0 + $0x38] sm:$0xff]
    %v33 = vld [vmem:[%s0 + $0x40] sm:$0xff]
    %v34 = vld [vmem:[%s0 + $0x48] sm:$0xff]
    %v35 = vld [vmem:[%s0 + $0x50] sm:$0xff]
    %v36 = vld [vmem:[%s0 + $0x58] sm:$0xff]
    %v37 = vld [vmem:[%s0 + $0x60] sm:$0xff]
    %v38 = vld [vmem:[%s0 + $0x68] sm:$0xff]
    %v39 = vld [vmem:[%s0 + $0x70] sm:$0xff]
    %v40 = vld [vmem:[%s0 + $0x78] sm:$0xff]
    %v41 = vld [vmem:[%s0 + $0x80] sm:$0xff]
    %v42 = vld [vmem:[%s0 + $0x88] sm:$0xff]
    %v43 = vld [vmem:[%s0 + $0x90] sm:$0xff]
    %v44 = vld [vmem:[%s0 + $0x98] sm:$0xff]
    %v45 = vld [vmem:[%s0 + $0xa0] sm:$0xff]
    %v46 = vld [vmem:[%s0 + $0xa8] sm:$0xff]
    %v47 = vld [vmem:[%s0 + $0xb0] sm:$0xff]
    %v48 = vld [vmem:[%s0 + $0xb8] sm:$0xff]
    %v49 = vld [vmem:[%s0 + $0xc0] sm:$0xff]
    %v50 = vld [vmem:[%s0 + $0xc8] sm:$0xff]
    %v51 = vld [vmem:[%s0 + $0xd0] sm:$0xff]
    %v52 = vld [vmem:[%s0 + $0xd8] sm:$0xff]
    %v53 = vld [vmem:[%s0 + $0xe0] sm:$0xff]
    %v54 = vld [vmem:[%s0 + $0xe8] sm:$0xff]
    %v55 = vld [vmem:[%s0 + $0xf0] sm:$0xff]
    %v56 = vld [vmem:[%s0 + $0xf8] sm:$0xff]
    %v57 = vld [vmem:[%s0 + $0x100] sm:$0xff]
    %v58 = vld [vmem:[%s0 + $0x108] sm:$0xff]
    %v59 = vld [vmem:[%s0 + $0x110] sm:$0xff]
    %v60 = vld [vmem:[%s0 + $0x118] sm:$0xff]
    %v61 = vld [vmem:[%s0 + $0x120] sm:$0xff]
    %v62 = vld [vmem:[%s0 + $0x128] sm:$0xff]
    %v63 = vld [vmem:[%s0 + $0x130] sm:$0xff]
    %v64 = vld [vmem:[%s0 + $0x138] sm:$0xff]
    %v65 = vld [vmem:[%s0 + $0x140] sm:$0xff]
    %v66 = vld [vmem:[%s0 + $0x148] sm:$0xff]
    %v67 = vld [vmem:[%s0 + $0x150] sm:$0xff]
    %v68 = vld [vmem:[%s0 + $0x158] sm:$0xff]
    %v69 = vld [vmem:[%s0 + $0x160] sm:$0xff]
    %v70 = vld [vmem:[%s0 + $0x168] sm:$0xff]
    %v71 = vld [vmem:[%s0 + $0x170] sm:$0xff]
    %v72 = vld [vmem:[%s0 + $0x178] sm:$0xff]
    %v73 = vld [vmem:[%s0 + $0x180] sm:$0xff]
    %v74 = vld [vmem:[%s0 + $0x188] sm:$0xff]
    %v75 = vld [vmem:[%s0 + $0x190] sm:$0xff]
    %v76 = vld [vmem:[%s0 + $0x198] sm:$0xff]
    %v77 = vld [vmem:[%s0 + $0x1a0] sm:$0xff]
    %v78 = vld [vmem:[%s0 + $0x1a8] sm:$0xff]
    %v79 = vld [vmem:[%s0 + $0x1b0] sm:$0xff]
    %v80 = vld [vmem:[%s0 + $0x1b8] sm:$0xff]
    %v81 = vld [vmem:[%s0 + $0x1c0] sm:$0xff]
    %v82 = vld [vmem:[%s0 + $0x1c8] sm:$0xff]
    %v83 = vld [vmem:[%s0 + $0x1d0] sm:$0xff]
    %v84 = vld [vmem:[%s0 + $0x1d8] sm:$0xff]
    %v85 = vld [vmem:[%s0 + $0x1e0] sm:$0xff]
    %v86 = vld [vmem:[%s0 + $0x1e8] sm:$0xff]
    %v87 = vld [vmem:[%s0 + $0x1f0] sm:$0xff]
    %v88 = vld [vmem:[%s0 + $0x1f8] sm:$0xff]
    %v89 = vld [vmem:[%s5] sm:$0xff]
    %vm146 = vcmask 1046528
    %v147 = vrot.slane %v25, 1
    %v148 = vrot.slane %v26, 1
    %v149 = vsel %vm146, %v147, %v148
    %v150 = vrot.slane %v27, 1
    %v151 = vrot.slane %v28, 1
    %v152 = vsel %vm146, %v150, %v151
    %v153 = vrot.slane %v29, 1
    %v154 = vrot.slane %v30, 1
    %v155 = vsel %vm146, %v153, %v154
    %v156 = vrot.slane %v31, 1
    %v157 = vrot.slane %v32, 1
    %v158 = vsel %vm146, %v156, %v157
    %v159 = vrot.slane %v33, 1
    %v160 = vrot.slane %v34, 1
    %v161 = vsel %vm146, %v159, %v160
    %v162 = vrot.slane %v35, 1
    %v163 = vrot.slane %v36, 1
    %v164 = vsel %vm146, %v162, %v163
    %v165 = vrot.slane %v37, 1
    %v166 = vrot.slane %v38, 1
    %v167 = vsel %vm146, %v165, %v166
    %v168 = vrot.slane %v39, 1
    %v169 = vrot.slane %v40, 1
    %v170 = vsel %vm146, %v168, %v169
    %v171 = vrot.slane %v41, 1
    %v172 = vrot.slane %v42, 1
    %v173 = vsel %vm146, %v171, %v172
    %v174 = vrot.slane %v43, 1
    %v175 = vrot.slane %v44, 1
    %v176 = vsel %vm146, %v174, %v175
    %v177 = vrot.slane %v45, 1
    %v178 = vrot.slane %v46, 1
    %v179 = vsel %vm146, %v177, %v178
    %v180 = vrot.slane %v47, 1
    %v181 = vrot.slane %v48, 1
    %v182 = vsel %vm146, %v180, %v181
    %v183 = vrot.slane %v49, 1
    %v184 = vrot.slane %v50, 1
    %v185 = vsel %vm146, %v183, %v184
    %v186 = vrot.slane %v51, 1
    %v187 = vrot.slane %v52, 1
    %v188 = vsel %vm146, %v186, %v187
    %v189 = vrot.slane %v57, 1
    %v190 = vrot.slane %v58, 1
    %v191 = vsel %vm146, %v189, %v190
    %v192 = vrot.slane %v59, 1
    %v193 = vrot.slane %v60, 1
    %v194 = vsel %vm146, %v192, %v193
    %v195 = vrot.slane %v61, 1
    %v196 = vrot.slane %v62, 1
    %v197 = vsel %vm146, %v195, %v196
    %v198 = vrot.slane %v63, 1
    %v199 = vrot.slane %v64, 1
    %v200 = vsel %vm146, %v198, %v199
    %v201 = vrot.slane %v65, 1
    %v202 = vrot.slane %v66, 1
    %v203 = vsel %vm146, %v201, %v202
    %v204 = vrot.slane %v67, 1
    %v205 = vrot.slane %v68, 1
    %v206 = vsel %vm146, %v204, %v205
    %v207 = vrot.slane %v69, 1
    %v208 = vrot.slane %v70, 1
    %v209 = vsel %vm146, %v207, %v208
    %v210 = vrot.slane %v71, 1
    %v211 = vrot.slane %v72, 1
    %v212 = vsel %vm146, %v210, %v211
    %v213 = vrot.slane %v73, 1
    %v214 = vrot.slane %v74, 1
    %v215 = vsel %vm146, %v213, %v214
    %v216 = vrot.slane %v75, 1
    %v217 = vrot.slane %v76, 1
    %v218 = vsel %vm146, %v216, %v217
    %v219 = vrot.slane %v77, 1
    %v220 = vrot.slane %v78, 1
    %v221 = vsel %vm146, %v219, %v220
    %v222 = vrot.slane %v79, 1
    %v223 = vrot.slane %v80, 1
    %v224 = vsel %vm146, %v222, %v223
    %v225 = vrot.slane %v81, 1
    %v226 = vrot.slane %v82, 1
    %v227 = vsel %vm146, %v225, %v226
    %v228 = vrot.slane %v83, 1
    %v229 = vrot.slane %v84, 1
    %v230 = vsel %vm146, %v228, %v229
    %231 = vrot.lane.b32.xlu0 %v149, 4
    %v232 = vpop.permute.xlu0 %231
    %233 = vrot.lane.b32.xlu0 %v148, 4
    %v234 = vpop.permute.xlu0 %233
    %235 = vrot.lane.b32.xlu0 %v152, 4
    %v236 = vpop.permute.xlu0 %235
    %237 = vrot.lane.b32.xlu0 %v151, 4
    %v238 = vpop.permute.xlu0 %237
    %239 = vrot.lane.b32.xlu0 %v155, 4
    %v240 = vpop.permute.xlu0 %239
    %241 = vrot.lane.b32.xlu0 %v154, 4
    %v242 = vpop.permute.xlu0 %241
    %243 = vrot.lane.b32.xlu0 %v158, 4
    %v244 = vpop.permute.xlu0 %243
    %245 = vrot.lane.b32.xlu0 %v157, 4
    %v246 = vpop.permute.xlu0 %245
    %247 = vrot.lane.b32.xlu0 %v161, 4
    %v248 = vpop.permute.xlu0 %247
    %249 = vrot.lane.b32.xlu0 %v160, 4
    %v250 = vpop.permute.xlu0 %249
    %251 = vrot.lane.b32.xlu0 %v164, 4
    %v252 = vpop.permute.xlu0 %251
    %253 = vrot.lane.b32.xlu0 %v163, 4
    %v254 = vpop.permute.xlu0 %253
    %255 = vrot.lane.b32.xlu0 %v167, 4
    %v256 = vpop.permute.xlu0 %255
    %257 = vrot.lane.b32.xlu0 %v166, 4
    %v258 = vpop.permute.xlu0 %257
    %259 = vrot.lane.b32.xlu0 %v170, 4
    %v260 = vpop.permute.xlu0 %259
    %261 = vrot.lane.b32.xlu0 %v169, 4
    %v262 = vpop.permute.xlu0 %261
    %263 = vrot.lane.b32.xlu0 %v173, 4
    %v264 = vpop.permute.xlu0 %263
    %265 = vrot.lane.b32.xlu0 %v172, 4
    %v266 = vpop.permute.xlu0 %265
    %267 = vrot.lane.b32.xlu0 %v176, 4
    %v268 = vpop.permute.xlu0 %267
    %269 = vrot.lane.b32.xlu0 %v175, 4
    %v270 = vpop.permute.xlu0 %269
    %271 = vrot.lane.b32.xlu0 %v179, 4
    %v272 = vpop.permute.xlu0 %271
    %273 = vrot.lane.b32.xlu0 %v178, 4
    %v274 = vpop.permute.xlu0 %273
    %275 = vrot.lane.b32.xlu0 %v182, 4
    %v276 = vpop.permute.xlu0 %275
    %277 = vrot.lane.b32.xlu0 %v181, 4
    %v278 = vpop.permute.xlu0 %277
    %279 = vrot.lane.b32.xlu0 %v185, 4
    %v280 = vpop.permute.xlu0 %279
    %281 = vrot.lane.b32.xlu0 %v184, 4
    %v282 = vpop.permute.xlu0 %281
    %283 = vrot.lane.b32.xlu0 %v188, 4
    %v284 = vpop.permute.xlu0 %283
    %285 = vrot.lane.b32.xlu0 %v187, 4
    %v286 = vpop.permute.xlu0 %285
    %287 = vrot.lane.b32.xlu0 %v191, 4
    %v288 = vpop.permute.xlu0 %287
    %289 = vrot.lane.b32.xlu0 %v190, 4
    %v290 = vpop.permute.xlu0 %289
    %291 = vrot.lane.b32.xlu0 %v194, 4
    %v292 = vpop.permute.xlu0 %291
    %293 = vrot.lane.b32.xlu0 %v193, 4
    %v294 = vpop.permute.xlu0 %293
    %295 = vrot.lane.b32.xlu0 %v197, 4
    %v296 = vpop.permute.xlu0 %295
    %297 = vrot.lane.b32.xlu0 %v196, 4
    %v298 = vpop.permute.xlu0 %297
    %299 = vrot.lane.b32.xlu0 %v200, 4
    %v300 = vpop.permute.xlu0 %299
    %301 = vrot.lane.b32.xlu0 %v199, 4
    %v302 = vpop.permute.xlu0 %301
    %303 = vrot.lane.b32.xlu0 %v203, 4
    %v304 = vpop.permute.xlu0 %303
    %305 = vrot.lane.b32.xlu0 %v202, 4
    %v306 = vpop.permute.xlu0 %305
    %307 = vrot.lane.b32.xlu0 %v206, 4
    %v308 = vpop.permute.xlu0 %307
    %309 = vrot.lane.b32.xlu0 %v205, 4
    %v310 = vpop.permute.xlu0 %309
    %311 = vrot.lane.b32.xlu0 %v209, 4
    %v312 = vpop.permute.xlu0 %311
    %313 = vrot.lane.b32.xlu0 %v208, 4
    %v314 = vpop.permute.xlu0 %313
    %315 = vrot.lane.b32.xlu0 %v212, 4
    %v316 = vpop.permute.xlu0 %315
    %317 = vrot.lane.b32.xlu0 %v211, 4
    %v318 = vpop.permute.xlu0 %317
    %319 = vrot.lane.b32.xlu0 %v215, 4
    %v320 = vpop.permute.xlu0 %319
    %321 = vrot.lane.b32.xlu0 %v214, 4
    %v322 = vpop.permute.xlu0 %321
    %323 = vrot.lane.b32.xlu0 %v218, 4
    %v324 = vpop.permute.xlu0 %323
    %325 = vrot.lane.b32.xlu0 %v217, 4
    %v326 = vpop.permute.xlu0 %325
    %327 = vrot.lane.b32.xlu0 %v221, 4
    %v328 = vpop.permute.xlu0 %327
    %329 = vrot.lane.b32.xlu0 %v220, 4
    %v330 = vpop.permute.xlu0 %329
    %331 = vrot.lane.b32.xlu0 %v224, 4
    %v332 = vpop.permute.xlu0 %331
    %333 = vrot.lane.b32.xlu0 %v223, 4
    %v334 = vpop.permute.xlu0 %333
    %335 = vrot.lane.b32.xlu0 %v227, 4
    %v336 = vpop.permute.xlu0 %335
    %337 = vrot.lane.b32.xlu0 %v226, 4
    %v338 = vpop.permute.xlu0 %337
    %339 = vrot.lane.b32.xlu0 %v230, 4
    %v340 = vpop.permute.xlu0 %339
    %341 = vrot.lane.b32.xlu0 %v229, 4
    %v342 = vpop.permute.xlu0 %341
    %vm399 = vcmask 1045504
    %v400 = vrot.slane %v25, 2
    %v401 = vrot.slane %v26, 2
    %v402 = vsel %vm399, %v400, %v401
    %v403 = vrot.slane %v27, 2
    %v404 = vrot.slane %v28, 2
    %v405 = vsel %vm399, %v403, %v404
    %v406 = vrot.slane %v29, 2
    %v407 = vrot.slane %v30, 2
    %v408 = vsel %vm399, %v406, %v407
    %v409 = vrot.slane %v31, 2
    %v410 = vrot.slane %v32, 2
    %v411 = vsel %vm399, %v409, %v410
    %v412 = vrot.slane %v33, 2
    %v413 = vrot.slane %v34, 2
    %v414 = vsel %vm399, %v412, %v413
    %v415 = vrot.slane %v35, 2
    %v416 = vrot.slane %v36, 2
    %v417 = vsel %vm399, %v415, %v416
    %v418 = vrot.slane %v37, 2
    %v419 = vrot.slane %v38, 2
    %v420 = vsel %vm399, %v418, %v419
    %v421 = vrot.slane %v39, 2
    %v422 = vrot.slane %v40, 2
    %v423 = vsel %vm399, %v421, %v422
    %v424 = vrot.slane %v41, 2
    %v425 = vrot.slane %v42, 2
    %v426 = vsel %vm399, %v424, %v425
    %v427 = vrot.slane %v43, 2
    %v428 = vrot.slane %v44, 2
    %v429 = vsel %vm399, %v427, %v428
    %v430 = vrot.slane %v45, 2
    %v431 = vrot.slane %v46, 2
    %v432 = vsel %vm399, %v430, %v431
    %v433 = vrot.slane %v47, 2
    %v434 = vrot.slane %v48, 2
    %v435 = vsel %vm399, %v433, %v434
    %v436 = vrot.slane %v49, 2
    %v437 = vrot.slane %v50, 2
    %v438 = vsel %vm399, %v436, %v437
    %v439 = vrot.slane %v51, 2
    %v440 = vrot.slane %v52, 2
    %v441 = vsel %vm399, %v439, %v440
    %v442 = vrot.slane %v57, 2
    %v443 = vrot.slane %v58, 2
    %v444 = vsel %vm399, %v442, %v443
    %v445 = vrot.slane %v59, 2
    %v446 = vrot.slane %v60, 2
    %v447 = vsel %vm399, %v445, %v446
    %v448 = vrot.slane %v61, 2
    %v449 = vrot.slane %v62, 2
    %v450 = vsel %vm399, %v448, %v449
    %v451 = vrot.slane %v63, 2
    %v452 = vrot.slane %v64, 2
    %v453 = vsel %vm399, %v451, %v452
    %v454 = vrot.slane %v65, 2
    %v455 = vrot.slane %v66, 2
    %v456 = vsel %vm399, %v454, %v455
    %v457 = vrot.slane %v67, 2
    %v458 = vrot.slane %v68, 2
    %v459 = vsel %vm399, %v457, %v458
    %v460 = vrot.slane %v69, 2
    %v461 = vrot.slane %v70, 2
    %v462 = vsel %vm399, %v460, %v461
    %v463 = vrot.slane %v71, 2
    %v464 = vrot.slane %v72, 2
    %v465 = vsel %vm399, %v463, %v464
    %v466 = vrot.slane %v73, 2
    %v467 = vrot.slane %v74, 2
    %v468 = vsel %vm399, %v466, %v467
    %v469 = vrot.slane %v75, 2
    %v470 = vrot.slane %v76, 2
    %v471 = vsel %vm399, %v469, %v470
    %v472 = vrot.slane %v77, 2
    %v473 = vrot.slane %v78, 2
    %v474 = vsel %vm399, %v472, %v473
    %v475 = vrot.slane %v79, 2
    %v476 = vrot.slane %v80, 2
    %v477 = vsel %vm399, %v475, %v476
    %v478 = vrot.slane %v81, 2
    %v479 = vrot.slane %v82, 2
    %v480 = vsel %vm399, %v478, %v479
    %v481 = vrot.slane %v83, 2
    %v482 = vrot.slane %v84, 2
    %v483 = vsel %vm399, %v481, %v482
    %484 = vrot.lane.b32.xlu0 %v402, 8
    %v485 = vpop.permute.xlu0 %484
    %486 = vrot.lane.b32.xlu0 %v401, 8
    %v487 = vpop.permute.xlu0 %486
    %488 = vrot.lane.b32.xlu0 %v405, 8
    %v489 = vpop.permute.xlu0 %488
    %490 = vrot.lane.b32.xlu0 %v404, 8
    %v491 = vpop.permute.xlu0 %490
    %492 = vrot.lane.b32.xlu0 %v408, 8
    %v493 = vpop.permute.xlu0 %492
    %494 = vrot.lane.b32.xlu0 %v407, 8
    %v495 = vpop.permute.xlu0 %494
    %496 = vrot.lane.b32.xlu0 %v411, 8
    %v497 = vpop.permute.xlu0 %496
    %498 = vrot.lane.b32.xlu0 %v410, 8
    %v499 = vpop.permute.xlu0 %498
    %500 = vrot.lane.b32.xlu0 %v414, 8
    %v501 = vpop.permute.xlu0 %500
    %502 = vrot.lane.b32.xlu0 %v413, 8
    %v503 = vpop.permute.xlu0 %502
    %504 = vrot.lane.b32.xlu0 %v417, 8
    %v505 = vpop.permute.xlu0 %504
    %506 = vrot.lane.b32.xlu0 %v416, 8
    %v507 = vpop.permute.xlu0 %506
    %508 = vrot.lane.b32.xlu0 %v420, 8
    %v509 = vpop.permute.xlu0 %508
    %510 = vrot.lane.b32.xlu0 %v419, 8
    %v511 = vpop.permute.xlu0 %510
    %512 = vrot.lane.b32.xlu0 %v423, 8
    %v513 = vpop.permute.xlu0 %512
    %514 = vrot.lane.b32.xlu0 %v422, 8
    %v515 = vpop.permute.xlu0 %514
    %516 = vrot.lane.b32.xlu0 %v426, 8
    %v517 = vpop.permute.xlu0 %516
    %518 = vrot.lane.b32.xlu0 %v425, 8
    %v519 = vpop.permute.xlu0 %518
    %520 = vrot.lane.b32.xlu0 %v429, 8
    %v521 = vpop.permute.xlu0 %520
    %522 = vrot.lane.b32.xlu0 %v428, 8
    %v523 = vpop.permute.xlu0 %522
    %524 = vrot.lane.b32.xlu0 %v432, 8
    %v525 = vpop.permute.xlu0 %524
    %526 = vrot.lane.b32.xlu0 %v431, 8
    %v527 = vpop.permute.xlu0 %526
    %528 = vrot.lane.b32.xlu0 %v435, 8
    %v529 = vpop.permute.xlu0 %528
    %530 = vrot.lane.b32.xlu0 %v434, 8
    %v531 = vpop.permute.xlu0 %530
    %532 = vrot.lane.b32.xlu0 %v438, 8
    %v533 = vpop.permute.xlu0 %532
    %534 = vrot.lane.b32.xlu0 %v437, 8
    %v535 = vpop.permute.xlu0 %534
    %536 = vrot.lane.b32.xlu0 %v441, 8
    %v537 = vpop.permute.xlu0 %536
    %538 = vrot.lane.b32.xlu0 %v440, 8
    %v539 = vpop.permute.xlu0 %538
    %540 = vrot.lane.b32.xlu0 %v444, 8
    %v541 = vpop.permute.xlu0 %540
    %542 = vrot.lane.b32.xlu0 %v443, 8
    %v543 = vpop.permute.xlu0 %542
    %544 = vrot.lane.b32.xlu0 %v447, 8
    %v545 = vpop.permute.xlu0 %544
    %546 = vrot.lane.b32.xlu0 %v446, 8
    %v547 = vpop.permute.xlu0 %546
    %548 = vrot.lane.b32.xlu0 %v450, 8
    %v549 = vpop.permute.xlu0 %548
    %550 = vrot.lane.b32.xlu0 %v449, 8
    %v551 = vpop.permute.xlu0 %550
    %552 = vrot.lane.b32.xlu0 %v453, 8
    %v553 = vpop.permute.xlu0 %552
    %554 = vrot.lane.b32.xlu0 %v452, 8
    %v555 = vpop.permute.xlu0 %554
    %556 = vrot.lane.b32.xlu0 %v456, 8
    %v557 = vpop.permute.xlu0 %556
    %558 = vrot.lane.b32.xlu0 %v455, 8
    %v559 = vpop.permute.xlu0 %558
    %560 = vrot.lane.b32.xlu0 %v459, 8
    %v561 = vpop.permute.xlu0 %560
    %562 = vrot.lane.b32.xlu0 %v458, 8
    %v563 = vpop.permute.xlu0 %562
    %564 = vrot.lane.b32.xlu0 %v462, 8
    %v565 = vpop.permute.xlu0 %564
    %566 = vrot.lane.b32.xlu0 %v461, 8
    %v567 = vpop.permute.xlu0 %566
    %568 = vrot.lane.b32.xlu0 %v465, 8
    %v569 = vpop.permute.xlu0 %568
    %570 = vrot.lane.b32.xlu0 %v464, 8
    %v571 = vpop.permute.xlu0 %570
    %572 = vrot.lane.b32.xlu0 %v468, 8
    %v573 = vpop.permute.xlu0 %572
    %574 = vrot.lane.b32.xlu0 %v467, 8
    %v575 = vpop.permute.xlu0 %574
    %576 = vrot.lane.b32.xlu0 %v471, 8
    %v577 = vpop.permute.xlu0 %576
    %578 = vrot.lane.b32.xlu0 %v470, 8
    %v579 = vpop.permute.xlu0 %578
    %580 = vrot.lane.b32.xlu0 %v474, 8
    %v581 = vpop.permute.xlu0 %580
    %582 = vrot.lane.b32.xlu0 %v473, 8
    %v583 = vpop.permute.xlu0 %582
    %584 = vrot.lane.b32.xlu0 %v477, 8
    %v585 = vpop.permute.xlu0 %584
    %586 = vrot.lane.b32.xlu0 %v476, 8
    %v587 = vpop.permute.xlu0 %586
    %588 = vrot.lane.b32.xlu0 %v480, 8
    %v589 = vpop.permute.xlu0 %588
    %590 = vrot.lane.b32.xlu0 %v479, 8
    %v591 = vpop.permute.xlu0 %590
    %592 = vrot.lane.b32.xlu0 %v483, 8
    %v593 = vpop.permute.xlu0 %592
    %594 = vrot.lane.b32.xlu0 %v482, 8
    %v595 = vpop.permute.xlu0 %594
    %656 = vrot.lane.b32.xlu0 %v27, 12
    %v657 = vpop.permute.xlu0 %656
    %658 = vrot.lane.b32.xlu0 %v28, 12
    %v659 = vpop.permute.xlu0 %658
    %660 = vrot.lane.b32.xlu0 %v29, 12
    %v661 = vpop.permute.xlu0 %660
    %662 = vrot.lane.b32.xlu0 %v30, 12
    %v663 = vpop.permute.xlu0 %662
    %664 = vrot.lane.b32.xlu0 %v31, 12
    %v665 = vpop.permute.xlu0 %664
    %666 = vrot.lane.b32.xlu0 %v32, 12
    %v667 = vpop.permute.xlu0 %666
    %668 = vrot.lane.b32.xlu0 %v33, 12
    %v669 = vpop.permute.xlu0 %668
    %670 = vrot.lane.b32.xlu0 %v34, 12
    %v671 = vpop.permute.xlu0 %670
    %672 = vrot.lane.b32.xlu0 %v35, 12
    %v673 = vpop.permute.xlu0 %672
    %674 = vrot.lane.b32.xlu0 %v36, 12
    %v675 = vpop.permute.xlu0 %674
    %676 = vrot.lane.b32.xlu0 %v37, 12
    %v677 = vpop.permute.xlu0 %676
    %678 = vrot.lane.b32.xlu0 %v38, 12
    %v679 = vpop.permute.xlu0 %678
    %680 = vrot.lane.b32.xlu0 %v39, 12
    %v681 = vpop.permute.xlu0 %680
    %682 = vrot.lane.b32.xlu0 %v40, 12
    %v683 = vpop.permute.xlu0 %682
    %684 = vrot.lane.b32.xlu0 %v41, 12
    %v685 = vpop.permute.xlu0 %684
    %686 = vrot.lane.b32.xlu0 %v42, 12
    %v687 = vpop.permute.xlu0 %686
    %688 = vrot.lane.b32.xlu0 %v43, 12
    %v689 = vpop.permute.xlu0 %688
    %690 = vrot.lane.b32.xlu0 %v44, 12
    %v691 = vpop.permute.xlu0 %690
    %692 = vrot.lane.b32.xlu0 %v45, 12
    %v693 = vpop.permute.xlu0 %692
    %694 = vrot.lane.b32.xlu0 %v46, 12
    %v695 = vpop.permute.xlu0 %694
    %696 = vrot.lane.b32.xlu0 %v47, 12
    %v697 = vpop.permute.xlu0 %696
    %698 = vrot.lane.b32.xlu0 %v48, 12
    %v699 = vpop.permute.xlu0 %698
    %700 = vrot.lane.b32.xlu0 %v49, 12
    %v701 = vpop.permute.xlu0 %700
    %702 = vrot.lane.b32.xlu0 %v50, 12
    %v703 = vpop.permute.xlu0 %702
    %704 = vrot.lane.b32.xlu0 %v51, 12
    %v705 = vpop.permute.xlu0 %704
    %706 = vrot.lane.b32.xlu0 %v52, 12
    %v707 = vpop.permute.xlu0 %706
    %708 = vrot.lane.b32.xlu0 %v53, 12
    %v709 = vpop.permute.xlu0 %708
    %710 = vrot.lane.b32.xlu0 %v54, 12
    %v711 = vpop.permute.xlu0 %710
    %712 = vrot.lane.b32.xlu0 %v59, 12
    %v713 = vpop.permute.xlu0 %712
    %714 = vrot.lane.b32.xlu0 %v60, 12
    %v715 = vpop.permute.xlu0 %714
    %716 = vrot.lane.b32.xlu0 %v61, 12
    %v717 = vpop.permute.xlu0 %716
    %718 = vrot.lane.b32.xlu0 %v62, 12
    %v719 = vpop.permute.xlu0 %718
    %720 = vrot.lane.b32.xlu0 %v63, 12
    %v721 = vpop.permute.xlu0 %720
    %722 = vrot.lane.b32.xlu0 %v64, 12
    %v723 = vpop.permute.xlu0 %722
    %724 = vrot.lane.b32.xlu0 %v65, 12
    %v725 = vpop.permute.xlu0 %724
    %726 = vrot.lane.b32.xlu0 %v66, 12
    %v727 = vpop.permute.xlu0 %726
    %728 = vrot.lane.b32.xlu0 %v67, 12
    %v729 = vpop.permute.xlu0 %728
    %730 = vrot.lane.b32.xlu0 %v68, 12
    %v731 = vpop.permute.xlu0 %730
    %732 = vrot.lane.b32.xlu0 %v69, 12
    %v733 = vpop.permute.xlu0 %732
    %734 = vrot.lane.b32.xlu0 %v70, 12
    %v735 = vpop.permute.xlu0 %734
    %736 = vrot.lane.b32.xlu0 %v71, 12
    %v737 = vpop.permute.xlu0 %736
    %738 = vrot.lane.b32.xlu0 %v72, 12
    %v739 = vpop.permute.xlu0 %738
    %740 = vrot.lane.b32.xlu0 %v73, 12
    %v741 = vpop.permute.xlu0 %740
    %742 = vrot.lane.b32.xlu0 %v74, 12
    %v743 = vpop.permute.xlu0 %742
    %744 = vrot.lane.b32.xlu0 %v75, 12
    %v745 = vpop.permute.xlu0 %744
    %746 = vrot.lane.b32.xlu0 %v76, 12
    %v747 = vpop.permute.xlu0 %746
    %748 = vrot.lane.b32.xlu0 %v77, 12
    %v749 = vpop.permute.xlu0 %748
    %750 = vrot.lane.b32.xlu0 %v78, 12
    %v751 = vpop.permute.xlu0 %750
    %752 = vrot.lane.b32.xlu0 %v79, 12
    %v753 = vpop.permute.xlu0 %752
    %754 = vrot.lane.b32.xlu0 %v80, 12
    %v755 = vpop.permute.xlu0 %754
    %756 = vrot.lane.b32.xlu0 %v81, 12
    %v757 = vpop.permute.xlu0 %756
    %758 = vrot.lane.b32.xlu0 %v82, 12
    %v759 = vpop.permute.xlu0 %758
    %760 = vrot.lane.b32.xlu0 %v83, 12
    %v761 = vpop.permute.xlu0 %760
    %762 = vrot.lane.b32.xlu0 %v84, 12
    %v763 = vpop.permute.xlu0 %762
    %764 = vrot.lane.b32.xlu0 %v85, 12
    %v765 = vpop.permute.xlu0 %764
    %766 = vrot.lane.b32.xlu0 %v86, 12
    %v767 = vpop.permute.xlu0 %766
    %v824 = vrot.slane %v53, 1
    %v825 = vrot.slane %v54, 1
    %v826 = vsel %vm146, %v824, %v825
    %v827 = vrot.slane %v85, 1
    %v828 = vrot.slane %v86, 1
    %v829 = vsel %vm146, %v827, %v828
    %830 = vrot.lane.b32.xlu0 %v152, 16
    %v831 = vpop.permute.xlu0 %830
    %832 = vrot.lane.b32.xlu0 %v151, 16
    %v833 = vpop.permute.xlu0 %832
    %834 = vrot.lane.b32.xlu0 %v155, 16
    %v835 = vpop.permute.xlu0 %834
    %836 = vrot.lane.b32.xlu0 %v154, 16
    %v837 = vpop.permute.xlu0 %836
    %838 = vrot.lane.b32.xlu0 %v158, 16
    %v839 = vpop.permute.xlu0 %838
    %840 = vrot.lane.b32.xlu0 %v157, 16
    %v841 = vpop.permute.xlu0 %840
    %842 = vrot.lane.b32.xlu0 %v161, 16
    %v843 = vpop.permute.xlu0 %842
    %844 = vrot.lane.b32.xlu0 %v160, 16
    %v845 = vpop.permute.xlu0 %844
    %846 = vrot.lane.b32.xlu0 %v164, 16
    %v847 = vpop.permute.xlu0 %846
    %848 = vrot.lane.b32.xlu0 %v163, 16
    %v849 = vpop.permute.xlu0 %848
    %850 = vrot.lane.b32.xlu0 %v167, 16
    %v851 = vpop.permute.xlu0 %850
    %852 = vrot.lane.b32.xlu0 %v166, 16
    %v853 = vpop.permute.xlu0 %852
    %854 = vrot.lane.b32.xlu0 %v170, 16
    %v855 = vpop.permute.xlu0 %854
    %856 = vrot.lane.b32.xlu0 %v169, 16
    %v857 = vpop.permute.xlu0 %856
    %858 = vrot.lane.b32.xlu0 %v173, 16
    %v859 = vpop.permute.xlu0 %858
    %860 = vrot.lane.b32.xlu0 %v172, 16
    %v861 = vpop.permute.xlu0 %860
    %862 = vrot.lane.b32.xlu0 %v176, 16
    %v863 = vpop.permute.xlu0 %862
    %864 = vrot.lane.b32.xlu0 %v175, 16
    %v865 = vpop.permute.xlu0 %864
    %866 = vrot.lane.b32.xlu0 %v179, 16
    %v867 = vpop.permute.xlu0 %866
    %868 = vrot.lane.b32.xlu0 %v178, 16
    %v869 = vpop.permute.xlu0 %868
    %870 = vrot.lane.b32.xlu0 %v182, 16
    %v871 = vpop.permute.xlu0 %870
    %872 = vrot.lane.b32.xlu0 %v181, 16
    %v873 = vpop.permute.xlu0 %872
    %874 = vrot.lane.b32.xlu0 %v185, 16
    %v875 = vpop.permute.xlu0 %874
    %876 = vrot.lane.b32.xlu0 %v184, 16
    %v877 = vpop.permute.xlu0 %876
    %878 = vrot.lane.b32.xlu0 %v188, 16
    %v879 = vpop.permute.xlu0 %878
    %880 = vrot.lane.b32.xlu0 %v187, 16
    %v881 = vpop.permute.xlu0 %880
    %882 = vrot.lane.b32.xlu0 %v826, 16
    %v883 = vpop.permute.xlu0 %882
    %884 = vrot.lane.b32.xlu0 %v825, 16
    %v885 = vpop.permute.xlu0 %884
    %886 = vrot.lane.b32.xlu0 %v194, 16
    %v887 = vpop.permute.xlu0 %886
    %888 = vrot.lane.b32.xlu0 %v193, 16
    %v889 = vpop.permute.xlu0 %888
    %890 = vrot.lane.b32.xlu0 %v197, 16
    %v891 = vpop.permute.xlu0 %890
    %892 = vrot.lane.b32.xlu0 %v196, 16
    %v893 = vpop.permute.xlu0 %892
    %894 = vrot.lane.b32.xlu0 %v200, 16
    %v895 = vpop.permute.xlu0 %894
    %896 = vrot.lane.b32.xlu0 %v199, 16
    %v897 = vpop.permute.xlu0 %896
    %898 = vrot.lane.b32.xlu0 %v203, 16
    %v899 = vpop.permute.xlu0 %898
    %900 = vrot.lane.b32.xlu0 %v202, 16
    %v901 = vpop.permute.xlu0 %900
    %902 = vrot.lane.b32.xlu0 %v206, 16
    %v903 = vpop.permute.xlu0 %902
    %904 = vrot.lane.b32.xlu0 %v205, 16
    %v905 = vpop.permute.xlu0 %904
    %906 = vrot.lane.b32.xlu0 %v209, 16
    %v907 = vpop.permute.xlu0 %906
    %908 = vrot.lane.b32.xlu0 %v208, 16
    %v909 = vpop.permute.xlu0 %908
    %910 = vrot.lane.b32.xlu0 %v212, 16
    %v911 = vpop.permute.xlu0 %910
    %912 = vrot.lane.b32.xlu0 %v211, 16
    %v913 = vpop.permute.xlu0 %912
    %914 = vrot.lane.b32.xlu0 %v215, 16
    %v915 = vpop.permute.xlu0 %914
    %916 = vrot.lane.b32.xlu0 %v214, 16
    %v917 = vpop.permute.xlu0 %916
    %918 = vrot.lane.b32.xlu0 %v218, 16
    %v919 = vpop.permute.xlu0 %918
    %920 = vrot.lane.b32.xlu0 %v217, 16
    %v921 = vpop.permute.xlu0 %920
    %922 = vrot.lane.b32.xlu0 %v221, 16
    %v923 = vpop.permute.xlu0 %922
    %924 = vrot.lane.b32.xlu0 %v220, 16
    %v925 = vpop.permute.xlu0 %924
    %926 = vrot.lane.b32.xlu0 %v224, 16
    %v927 = vpop.permute.xlu0 %926
    %928 = vrot.lane.b32.xlu0 %v223, 16
    %v929 = vpop.permute.xlu0 %928
    %930 = vrot.lane.b32.xlu0 %v227, 16
    %v931 = vpop.permute.xlu0 %930
    %932 = vrot.lane.b32.xlu0 %v226, 16
    %v933 = vpop.permute.xlu0 %932
    %934 = vrot.lane.b32.xlu0 %v230, 16
    %v935 = vpop.permute.xlu0 %934
    %936 = vrot.lane.b32.xlu0 %v229, 16
    %v937 = vpop.permute.xlu0 %936
    %938 = vrot.lane.b32.xlu0 %v829, 16
    %v939 = vpop.permute.xlu0 %938
    %940 = vrot.lane.b32.xlu0 %v828, 16
    %v941 = vpop.permute.xlu0 %940
    %v998 = vrot.slane %v53, 2
    %v999 = vrot.slane %v54, 2
    %v1000 = vsel %vm399, %v998, %v999
    %v1001 = vrot.slane %v85, 2
    %v1002 = vrot.slane %v86, 2
    %v1003 = vsel %vm399, %v1001, %v1002
    %1004 = vrot.lane.b32.xlu0 %v405, 20
    %v1005 = vpop.permute.xlu0 %1004
    %1006 = vrot.lane.b32.xlu0 %v404, 20
    %v1007 = vpop.permute.xlu0 %1006
    %1008 = vrot.lane.b32.xlu0 %v408, 20
    %v1009 = vpop.permute.xlu0 %1008
    %1010 = vrot.lane.b32.xlu0 %v407, 20
    %v1011 = vpop.permute.xlu0 %1010
    %1012 = vrot.lane.b32.xlu0 %v411, 20
    %v1013 = vpop.permute.xlu0 %1012
    %1014 = vrot.lane.b32.xlu0 %v410, 20
    %v1015 = vpop.permute.xlu0 %1014
    %1016 = vrot.lane.b32.xlu0 %v414, 20
    %v1017 = vpop.permute.xlu0 %1016
    %1018 = vrot.lane.b32.xlu0 %v413, 20
    %v1019 = vpop.permute.xlu0 %1018
    %1020 = vrot.lane.b32.xlu0 %v417, 20
    %v1021 = vpop.permute.xlu0 %1020
    %1022 = vrot.lane.b32.xlu0 %v416, 20
    %v1023 = vpop.permute.xlu0 %1022
    %1024 = vrot.lane.b32.xlu0 %v420, 20
    %v1025 = vpop.permute.xlu0 %1024
    %1026 = vrot.lane.b32.xlu0 %v419, 20
    %v1027 = vpop.permute.xlu0 %1026
    %1028 = vrot.lane.b32.xlu0 %v423, 20
    %v1029 = vpop.permute.xlu0 %1028
    %1030 = vrot.lane.b32.xlu0 %v422, 20
    %v1031 = vpop.permute.xlu0 %1030
    %1032 = vrot.lane.b32.xlu0 %v426, 20
    %v1033 = vpop.permute.xlu0 %1032
    %1034 = vrot.lane.b32.xlu0 %v425, 20
    %v1035 = vpop.permute.xlu0 %1034
    %1036 = vrot.lane.b32.xlu0 %v429, 20
    %v1037 = vpop.permute.xlu0 %1036
    %1038 = vrot.lane.b32.xlu0 %v428, 20
    %v1039 = vpop.permute.xlu0 %1038
    %1040 = vrot.lane.b32.xlu0 %v432, 20
    %v1041 = vpop.permute.xlu0 %1040
    %1042 = vrot.lane.b32.xlu0 %v431, 20
    %v1043 = vpop.permute.xlu0 %1042
    %1044 = vrot.lane.b32.xlu0 %v435, 20
    %v1045 = vpop.permute.xlu0 %1044
    %1046 = vrot.lane.b32.xlu0 %v434, 20
    %v1047 = vpop.permute.xlu0 %1046
    %1048 = vrot.lane.b32.xlu0 %v438, 20
    %v1049 = vpop.permute.xlu0 %1048
    %1050 = vrot.lane.b32.xlu0 %v437, 20
    %v1051 = vpop.permute.xlu0 %1050
    %1052 = vrot.lane.b32.xlu0 %v441, 20
    %v1053 = vpop.permute.xlu0 %1052
    %1054 = vrot.lane.b32.xlu0 %v440, 20
    %v1055 = vpop.permute.xlu0 %1054
    %1056 = vrot.lane.b32.xlu0 %v1000, 20
    %v1057 = vpop.permute.xlu0 %1056
    %1058 = vrot.lane.b32.xlu0 %v999, 20
    %v1059 = vpop.permute.xlu0 %1058
    %1060 = vrot.lane.b32.xlu0 %v447, 20
    %v1061 = vpop.permute.xlu0 %1060
    %1062 = vrot.lane.b32.xlu0 %v446, 20
    %v1063 = vpop.permute.xlu0 %1062
    %1064 = vrot.lane.b32.xlu0 %v450, 20
    %v1065 = vpop.permute.xlu0 %1064
    %1066 = vrot.lane.b32.xlu0 %v449, 20
    %v1067 = vpop.permute.xlu0 %1066
    %1068 = vrot.lane.b32.xlu0 %v453, 20
    %v1069 = vpop.permute.xlu0 %1068
    %1070 = vrot.lane.b32.xlu0 %v452, 20
    %v1071 = vpop.permute.xlu0 %1070
    %1072 = vrot.lane.b32.xlu0 %v456, 20
    %v1073 = vpop.permute.xlu0 %1072
    %1074 = vrot.lane.b32.xlu0 %v455, 20
    %v1075 = vpop.permute.xlu0 %1074
    %1076 = vrot.lane.b32.xlu0 %v459, 20
    %v1077 = vpop.permute.xlu0 %1076
    %1078 = vrot.lane.b32.xlu0 %v458, 20
    %v1079 = vpop.permute.xlu0 %1078
    %1080 = vrot.lane.b32.xlu0 %v462, 20
    %v1081 = vpop.permute.xlu0 %1080
    %1082 = vrot.lane.b32.xlu0 %v461, 20
    %v1083 = vpop.permute.xlu0 %1082
    %1084 = vrot.lane.b32.xlu0 %v465, 20
    %v1085 = vpop.permute.xlu0 %1084
    %1086 = vrot.lane.b32.xlu0 %v464, 20
    %v1087 = vpop.permute.xlu0 %1086
    %1088 = vrot.lane.b32.xlu0 %v468, 20
    %v1089 = vpop.permute.xlu0 %1088
    %1090 = vrot.lane.b32.xlu0 %v467, 20
    %v1091 = vpop.permute.xlu0 %1090
    %1092 = vrot.lane.b32.xlu0 %v471, 20
    %v1093 = vpop.permute.xlu0 %1092
    %1094 = vrot.lane.b32.xlu0 %v470, 20
    %v1095 = vpop.permute.xlu0 %1094
    %1096 = vrot.lane.b32.xlu0 %v474, 20
    %v1097 = vpop.permute.xlu0 %1096
    %1098 = vrot.lane.b32.xlu0 %v473, 20
    %v1099 = vpop.permute.xlu0 %1098
    %1100 = vrot.lane.b32.xlu0 %v477, 20
    %v1101 = vpop.permute.xlu0 %1100
    %1102 = vrot.lane.b32.xlu0 %v476, 20
    %v1103 = vpop.permute.xlu0 %1102
    %1104 = vrot.lane.b32.xlu0 %v480, 20
    %v1105 = vpop.permute.xlu0 %1104
    %1106 = vrot.lane.b32.xlu0 %v479, 20
    %v1107 = vpop.permute.xlu0 %1106
    %1108 = vrot.lane.b32.xlu0 %v483, 20
    %v1109 = vpop.permute.xlu0 %1108
    %1110 = vrot.lane.b32.xlu0 %v482, 20
    %v1111 = vpop.permute.xlu0 %1110
    %1112 = vrot.lane.b32.xlu0 %v1003, 20
    %v1113 = vpop.permute.xlu0 %1112
    %1114 = vrot.lane.b32.xlu0 %v1002, 20
    %v1115 = vpop.permute.xlu0 %1114
    %1176 = vrot.lane.b32.xlu0 %v29, 24
    %v1177 = vpop.permute.xlu0 %1176
    %1178 = vrot.lane.b32.xlu0 %v30, 24
    %v1179 = vpop.permute.xlu0 %1178
    %1180 = vrot.lane.b32.xlu0 %v31, 24
    %v1181 = vpop.permute.xlu0 %1180
    %1182 = vrot.lane.b32.xlu0 %v32, 24
    %v1183 = vpop.permute.xlu0 %1182
    %1184 = vrot.lane.b32.xlu0 %v33, 24
    %v1185 = vpop.permute.xlu0 %1184
    %1186 = vrot.lane.b32.xlu0 %v34, 24
    %v1187 = vpop.permute.xlu0 %1186
    %1188 = vrot.lane.b32.xlu0 %v35, 24
    %v1189 = vpop.permute.xlu0 %1188
    %1190 = vrot.lane.b32.xlu0 %v36, 24
    %v1191 = vpop.permute.xlu0 %1190
    %1192 = vrot.lane.b32.xlu0 %v37, 24
    %v1193 = vpop.permute.xlu0 %1192
    %1194 = vrot.lane.b32.xlu0 %v38, 24
    %v1195 = vpop.permute.xlu0 %1194
    %1196 = vrot.lane.b32.xlu0 %v39, 24
    %v1197 = vpop.permute.xlu0 %1196
    %1198 = vrot.lane.b32.xlu0 %v40, 24
    %v1199 = vpop.permute.xlu0 %1198
    %1200 = vrot.lane.b32.xlu0 %v41, 24
    %v1201 = vpop.permute.xlu0 %1200
    %1202 = vrot.lane.b32.xlu0 %v42, 24
    %v1203 = vpop.permute.xlu0 %1202
    %1204 = vrot.lane.b32.xlu0 %v43, 24
    %v1205 = vpop.permute.xlu0 %1204
    %1206 = vrot.lane.b32.xlu0 %v44, 24
    %v1207 = vpop.permute.xlu0 %1206
    %1208 = vrot.lane.b32.xlu0 %v45, 24
    %v1209 = vpop.permute.xlu0 %1208
    %1210 = vrot.lane.b32.xlu0 %v46, 24
    %v1211 = vpop.permute.xlu0 %1210
    %1212 = vrot.lane.b32.xlu0 %v47, 24
    %v1213 = vpop.permute.xlu0 %1212
    %1214 = vrot.lane.b32.xlu0 %v48, 24
    %v1215 = vpop.permute.xlu0 %1214
    %1216 = vrot.lane.b32.xlu0 %v49, 24
    %v1217 = vpop.permute.xlu0 %1216
    %1218 = vrot.lane.b32.xlu0 %v50, 24
    %v1219 = vpop.permute.xlu0 %1218
    %1220 = vrot.lane.b32.xlu0 %v51, 24
    %v1221 = vpop.permute.xlu0 %1220
    %1222 = vrot.lane.b32.xlu0 %v52, 24
    %v1223 = vpop.permute.xlu0 %1222
    %1224 = vrot.lane.b32.xlu0 %v53, 24
    %v1225 = vpop.permute.xlu0 %1224
    %1226 = vrot.lane.b32.xlu0 %v54, 24
    %v1227 = vpop.permute.xlu0 %1226
    %1228 = vrot.lane.b32.xlu0 %v55, 24
    %v1229 = vpop.permute.xlu0 %1228
    %1230 = vrot.lane.b32.xlu0 %v56, 24
    %v1231 = vpop.permute.xlu0 %1230
    %1232 = vrot.lane.b32.xlu0 %v61, 24
    %v1233 = vpop.permute.xlu0 %1232
    %1234 = vrot.lane.b32.xlu0 %v62, 24
    %v1235 = vpop.permute.xlu0 %1234
    %1236 = vrot.lane.b32.xlu0 %v63, 24
    %v1237 = vpop.permute.xlu0 %1236
    %1238 = vrot.lane.b32.xlu0 %v64, 24
    %v1239 = vpop.permute.xlu0 %1238
    %1240 = vrot.lane.b32.xlu0 %v65, 24
    %v1241 = vpop.permute.xlu0 %1240
    %1242 = vrot.lane.b32.xlu0 %v66, 24
    %v1243 = vpop.permute.xlu0 %1242
    %1244 = vrot.lane.b32.xlu0 %v67, 24
    %v1245 = vpop.permute.xlu0 %1244
    %1246 = vrot.lane.b32.xlu0 %v68, 24
    %v1247 = vpop.permute.xlu0 %1246
    %1248 = vrot.lane.b32.xlu0 %v69, 24
    %v1249 = vpop.permute.xlu0 %1248
    %1250 = vrot.lane.b32.xlu0 %v70, 24
    %v1251 = vpop.permute.xlu0 %1250
    %1252 = vrot.lane.b32.xlu0 %v71, 24
    %v1253 = vpop.permute.xlu0 %1252
    %1254 = vrot.lane.b32.xlu0 %v72, 24
    %v1255 = vpop.permute.xlu0 %1254
    %1256 = vrot.lane.b32.xlu0 %v73, 24
    %v1257 = vpop.permute.xlu0 %1256
    %1258 = vrot.lane.b32.xlu0 %v74, 24
    %v1259 = vpop.permute.xlu0 %1258
    %1260 = vrot.lane.b32.xlu0 %v75, 24
    %v1261 = vpop.permute.xlu0 %1260
    %1262 = vrot.lane.b32.xlu0 %v76, 24
    %v1263 = vpop.permute.xlu0 %1262
    %1264 = vrot.lane.b32.xlu0 %v77, 24
    %v1265 = vpop.permute.xlu0 %1264
    %1266 = vrot.lane.b32.xlu0 %v78, 24
    %v1267 = vpop.permute.xlu0 %1266
    %1268 = vrot.lane.b32.xlu0 %v79, 24
    %v1269 = vpop.permute.xlu0 %1268
    %1270 = vrot.lane.b32.xlu0 %v80, 24
    %v1271 = vpop.permute.xlu0 %1270
    %1272 = vrot.lane.b32.xlu0 %v81, 24
    %v1273 = vpop.permute.xlu0 %1272
    %1274 = vrot.lane.b32.xlu0 %v82, 24
    %v1275 = vpop.permute.xlu0 %1274
    %1276 = vrot.lane.b32.xlu0 %v83, 24
    %v1277 = vpop.permute.xlu0 %1276
    %1278 = vrot.lane.b32.xlu0 %v84, 24
    %v1279 = vpop.permute.xlu0 %1278
    %1280 = vrot.lane.b32.xlu0 %v85, 24
    %v1281 = vpop.permute.xlu0 %1280
    %1282 = vrot.lane.b32.xlu0 %v86, 24
    %v1283 = vpop.permute.xlu0 %1282
    %1284 = vrot.lane.b32.xlu0 %v87, 24
    %v1285 = vpop.permute.xlu0 %1284
    %1286 = vrot.lane.b32.xlu0 %v88, 24
    %v1287 = vpop.permute.xlu0 %1286
    %v1344 = vrot.slane %v55, 1
    %v1345 = vrot.slane %v56, 1
    %v1346 = vsel %vm146, %v1344, %v1345
    %v1347 = vrot.slane %v87, 1
    %v1348 = vrot.slane %v88, 1
    %v1349 = vsel %vm146, %v1347, %v1348
    %1350 = vrot.lane.b32.xlu0 %v155, 28
    %v1351 = vpop.permute.xlu0 %1350
    %1352 = vrot.lane.b32.xlu0 %v154, 28
    %v1353 = vpop.permute.xlu0 %1352
    %1354 = vrot.lane.b32.xlu0 %v158, 28
    %v1355 = vpop.permute.xlu0 %1354
    %1356 = vrot.lane.b32.xlu0 %v157, 28
    %v1357 = vpop.permute.xlu0 %1356
    %1358 = vrot.lane.b32.xlu0 %v161, 28
    %v1359 = vpop.permute.xlu0 %1358
    %1360 = vrot.lane.b32.xlu0 %v160, 28
    %v1361 = vpop.permute.xlu0 %1360
    %1362 = vrot.lane.b32.xlu0 %v164, 28
    %v1363 = vpop.permute.xlu0 %1362
    %1364 = vrot.lane.b32.xlu0 %v163, 28
    %v1365 = vpop.permute.xlu0 %1364
    %1366 = vrot.lane.b32.xlu0 %v167, 28
    %v1367 = vpop.permute.xlu0 %1366
    %1368 = vrot.lane.b32.xlu0 %v166, 28
    %v1369 = vpop.permute.xlu0 %1368
    %1370 = vrot.lane.b32.xlu0 %v170, 28
    %v1371 = vpop.permute.xlu0 %1370
    %1372 = vrot.lane.b32.xlu0 %v169, 28
    %v1373 = vpop.permute.xlu0 %1372
    %1374 = vrot.lane.b32.xlu0 %v173, 28
    %v1375 = vpop.permute.xlu0 %1374
    %1376 = vrot.lane.b32.xlu0 %v172, 28
    %v1377 = vpop.permute.xlu0 %1376
    %1378 = vrot.lane.b32.xlu0 %v176, 28
    %v1379 = vpop.permute.xlu0 %1378
    %1380 = vrot.lane.b32.xlu0 %v175, 28
    %v1381 = vpop.permute.xlu0 %1380
    %1382 = vrot.lane.b32.xlu0 %v179, 28
    %v1383 = vpop.permute.xlu0 %1382
    %1384 = vrot.lane.b32.xlu0 %v178, 28
    %v1385 = vpop.permute.xlu0 %1384
    %1386 = vrot.lane.b32.xlu0 %v182, 28
    %v1387 = vpop.permute.xlu0 %1386
    %1388 = vrot.lane.b32.xlu0 %v181, 28
    %v1389 = vpop.permute.xlu0 %1388
    %1390 = vrot.lane.b32.xlu0 %v185, 28
    %v1391 = vpop.permute.xlu0 %1390
    %1392 = vrot.lane.b32.xlu0 %v184, 28
    %v1393 = vpop.permute.xlu0 %1392
    %1394 = vrot.lane.b32.xlu0 %v188, 28
    %v1395 = vpop.permute.xlu0 %1394
    %1396 = vrot.lane.b32.xlu0 %v187, 28
    %v1397 = vpop.permute.xlu0 %1396
    %1398 = vrot.lane.b32.xlu0 %v826, 28
    %v1399 = vpop.permute.xlu0 %1398
    %1400 = vrot.lane.b32.xlu0 %v825, 28
    %v1401 = vpop.permute.xlu0 %1400
    %1402 = vrot.lane.b32.xlu0 %v1346, 28
    %v1403 = vpop.permute.xlu0 %1402
    %1404 = vrot.lane.b32.xlu0 %v1345, 28
    %v1405 = vpop.permute.xlu0 %1404
    %1406 = vrot.lane.b32.xlu0 %v197, 28
    %v1407 = vpop.permute.xlu0 %1406
    %1408 = vrot.lane.b32.xlu0 %v196, 28
    %v1409 = vpop.permute.xlu0 %1408
    %1410 = vrot.lane.b32.xlu0 %v200, 28
    %v1411 = vpop.permute.xlu0 %1410
    %1412 = vrot.lane.b32.xlu0 %v199, 28
    %v1413 = vpop.permute.xlu0 %1412
    %1414 = vrot.lane.b32.xlu0 %v203, 28
    %v1415 = vpop.permute.xlu0 %1414
    %1416 = vrot.lane.b32.xlu0 %v202, 28
    %v1417 = vpop.permute.xlu0 %1416
    %1418 = vrot.lane.b32.xlu0 %v206, 28
    %v1419 = vpop.permute.xlu0 %1418
    %1420 = vrot.lane.b32.xlu0 %v205, 28
    %v1421 = vpop.permute.xlu0 %1420
    %1422 = vrot.lane.b32.xlu0 %v209, 28
    %v1423 = vpop.permute.xlu0 %1422
    %1424 = vrot.lane.b32.xlu0 %v208, 28
    %v1425 = vpop.permute.xlu0 %1424
    %1426 = vrot.lane.b32.xlu0 %v212, 28
    %v1427 = vpop.permute.xlu0 %1426
    %1428 = vrot.lane.b32.xlu0 %v211, 28
    %v1429 = vpop.permute.xlu0 %1428
    %1430 = vrot.lane.b32.xlu0 %v215, 28
    %v1431 = vpop.permute.xlu0 %1430
    %1432 = vrot.lane.b32.xlu0 %v214, 28
    %v1433 = vpop.permute.xlu0 %1432
    %1434 = vrot.lane.b32.xlu0 %v218, 28
    %v1435 = vpop.permute.xlu0 %1434
    %1436 = vrot.lane.b32.xlu0 %v217, 28
    %v1437 = vpop.permute.xlu0 %1436
    %1438 = vrot.lane.b32.xlu0 %v221, 28
    %v1439 = vpop.permute.xlu0 %1438
    %1440 = vrot.lane.b32.xlu0 %v220, 28
    %v1441 = vpop.permute.xlu0 %1440
    %1442 = vrot.lane.b32.xlu0 %v224, 28
    %v1443 = vpop.permute.xlu0 %1442
    %1444 = vrot.lane.b32.xlu0 %v223, 28
    %v1445 = vpop.permute.xlu0 %1444
    %1446 = vrot.lane.b32.xlu0 %v227, 28
    %v1447 = vpop.permute.xlu0 %1446
    %1448 = vrot.lane.b32.xlu0 %v226, 28
    %v1449 = vpop.permute.xlu0 %1448
    %1450 = vrot.lane.b32.xlu0 %v230, 28
    %v1451 = vpop.permute.xlu0 %1450
    %1452 = vrot.lane.b32.xlu0 %v229, 28
    %v1453 = vpop.permute.xlu0 %1452
    %1454 = vrot.lane.b32.xlu0 %v829, 28
    %v1455 = vpop.permute.xlu0 %1454
    %1456 = vrot.lane.b32.xlu0 %v828, 28
    %v1457 = vpop.permute.xlu0 %1456
    %1458 = vrot.lane.b32.xlu0 %v1349, 28
    %v1459 = vpop.permute.xlu0 %1458
    %1460 = vrot.lane.b32.xlu0 %v1348, 28
    %v1461 = vpop.permute.xlu0 %1460
    %v1518 = vrot.slane %v55, 2
    %v1519 = vrot.slane %v56, 2
    %v1520 = vsel %vm399, %v1518, %v1519
    %v1521 = vrot.slane %v87, 2
    %v1522 = vrot.slane %v88, 2
    %v1523 = vsel %vm399, %v1521, %v1522
    %1524 = vrot.lane.b32.xlu0 %v408, 32
    %v1525 = vpop.permute.xlu0 %1524
    %1526 = vrot.lane.b32.xlu0 %v407, 32
    %v1527 = vpop.permute.xlu0 %1526
    %1528 = vrot.lane.b32.xlu0 %v411, 32
    %v1529 = vpop.permute.xlu0 %1528
    %1530 = vrot.lane.b32.xlu0 %v410, 32
    %v1531 = vpop.permute.xlu0 %1530
    %1532 = vrot.lane.b32.xlu0 %v414, 32
    %v1533 = vpop.permute.xlu0 %1532
    %1534 = vrot.lane.b32.xlu0 %v413, 32
    %v1535 = vpop.permute.xlu0 %1534
    %1536 = vrot.lane.b32.xlu0 %v417, 32
    %v1537 = vpop.permute.xlu0 %1536
    %1538 = vrot.lane.b32.xlu0 %v416, 32
    %v1539 = vpop.permute.xlu0 %1538
    %1540 = vrot.lane.b32.xlu0 %v420, 32
    %v1541 = vpop.permute.xlu0 %1540
    %1542 = vrot.lane.b32.xlu0 %v419, 32
    %v1543 = vpop.permute.xlu0 %1542
    %1544 = vrot.lane.b32.xlu0 %v423, 32
    %v1545 = vpop.permute.xlu0 %1544
    %1546 = vrot.lane.b32.xlu0 %v422, 32
    %v1547 = vpop.permute.xlu0 %1546
    %1548 = vrot.lane.b32.xlu0 %v426, 32
    %v1549 = vpop.permute.xlu0 %1548
    %1550 = vrot.lane.b32.xlu0 %v425, 32
    %v1551 = vpop.permute.xlu0 %1550
    %1552 = vrot.lane.b32.xlu0 %v429, 32
    %v1553 = vpop.permute.xlu0 %1552
    %1554 = vrot.lane.b32.xlu0 %v428, 32
    %v1555 = vpop.permute.xlu0 %1554
    %1556 = vrot.lane.b32.xlu0 %v432, 32
    %v1557 = vpop.permute.xlu0 %1556
    %1558 = vrot.lane.b32.xlu0 %v431, 32
    %v1559 = vpop.permute.xlu0 %1558
    %1560 = vrot.lane.b32.xlu0 %v435, 32
    %v1561 = vpop.permute.xlu0 %1560
    %1562 = vrot.lane.b32.xlu0 %v434, 32
    %v1563 = vpop.permute.xlu0 %1562
    %1564 = vrot.lane.b32.xlu0 %v438, 32
    %v1565 = vpop.permute.xlu0 %1564
    %1566 = vrot.lane.b32.xlu0 %v437, 32
    %v1567 = vpop.permute.xlu0 %1566
    %1568 = vrot.lane.b32.xlu0 %v441, 32
    %v1569 = vpop.permute.xlu0 %1568
    %1570 = vrot.lane.b32.xlu0 %v440, 32
    %v1571 = vpop.permute.xlu0 %1570
    %1572 = vrot.lane.b32.xlu0 %v1000, 32
    %v1573 = vpop.permute.xlu0 %1572
    %1574 = vrot.lane.b32.xlu0 %v999, 32
    %v1575 = vpop.permute.xlu0 %1574
    %1576 = vrot.lane.b32.xlu0 %v1520, 32
    %v1577 = vpop.permute.xlu0 %1576
    %1578 = vrot.lane.b32.xlu0 %v1519, 32
    %v1579 = vpop.permute.xlu0 %1578
    %1580 = vrot.lane.b32.xlu0 %v450, 32
    %v1581 = vpop.permute.xlu0 %1580
    %1582 = vrot.lane.b32.xlu0 %v449, 32
    %v1583 = vpop.permute.xlu0 %1582
    %1584 = vrot.lane.b32.xlu0 %v453, 32
    %v1585 = vpop.permute.xlu0 %1584
    %1586 = vrot.lane.b32.xlu0 %v452, 32
    %v1587 = vpop.permute.xlu0 %1586
    %1588 = vrot.lane.b32.xlu0 %v456, 32
    %v1589 = vpop.permute.xlu0 %1588
    %1590 = vrot.lane.b32.xlu0 %v455, 32
    %v1591 = vpop.permute.xlu0 %1590
    %1592 = vrot.lane.b32.xlu0 %v459, 32
    %v1593 = vpop.permute.xlu0 %1592
    %1594 = vrot.lane.b32.xlu0 %v458, 32
    %v1595 = vpop.permute.xlu0 %1594
    %1596 = vrot.lane.b32.xlu0 %v462, 32
    %v1597 = vpop.permute.xlu0 %1596
    %1598 = vrot.lane.b32.xlu0 %v461, 32
    %v1599 = vpop.permute.xlu0 %1598
    %1600 = vrot.lane.b32.xlu0 %v465, 32
    %v1601 = vpop.permute.xlu0 %1600
    %1602 = vrot.lane.b32.xlu0 %v464, 32
    %v1603 = vpop.permute.xlu0 %1602
    %1604 = vrot.lane.b32.xlu0 %v468, 32
    %v1605 = vpop.permute.xlu0 %1604
    %1606 = vrot.lane.b32.xlu0 %v467, 32
    %v1607 = vpop.permute.xlu0 %1606
    %1608 = vrot.lane.b32.xlu0 %v471, 32
    %v1609 = vpop.permute.xlu0 %1608
    %1610 = vrot.lane.b32.xlu0 %v470, 32
    %v1611 = vpop.permute.xlu0 %1610
    %1612 = vrot.lane.b32.xlu0 %v474, 32
    %v1613 = vpop.permute.xlu0 %1612
    %1614 = vrot.lane.b32.xlu0 %v473, 32
    %v1615 = vpop.permute.xlu0 %1614
    %1616 = vrot.lane.b32.xlu0 %v477, 32
    %v1617 = vpop.permute.xlu0 %1616
    %1618 = vrot.lane.b32.xlu0 %v476, 32
    %v1619 = vpop.permute.xlu0 %1618
    %1620 = vrot.lane.b32.xlu0 %v480, 32
    %v1621 = vpop.permute.xlu0 %1620
    %1622 = vrot.lane.b32.xlu0 %v479, 32
    %v1623 = vpop.permute.xlu0 %1622
    %1624 = vrot.lane.b32.xlu0 %v483, 32
    %v1625 = vpop.permute.xlu0 %1624
    %1626 = vrot.lane.b32.xlu0 %v482, 32
    %v1627 = vpop.permute.xlu0 %1626
    %1628 = vrot.lane.b32.xlu0 %v1003, 32
    %v1629 = vpop.permute.xlu0 %1628
    %1630 = vrot.lane.b32.xlu0 %v1002, 32
    %v1631 = vpop.permute.xlu0 %1630
    %1632 = vrot.lane.b32.xlu0 %v1523, 32
    %v1633 = vpop.permute.xlu0 %1632
    %1634 = vrot.lane.b32.xlu0 %v1522, 32
    %v1635 = vpop.permute.xlu0 %1634
    %vm1692 = vcmask 31744
    %v1693 = vsel %vm1692, %v25, %v232
    %v1694 = vsel %vm1692, %v26, %v234
    %v1695 = vsel %vm1692, %v27, %v236
    %v1696 = vsel %vm1692, %v28, %v238
    %v1697 = vsel %vm1692, %v29, %v240
    %v1698 = vsel %vm1692, %v30, %v242
    %v1699 = vsel %vm1692, %v31, %v244
    %v1700 = vsel %vm1692, %v32, %v246
    %v1701 = vsel %vm1692, %v33, %v248
    %v1702 = vsel %vm1692, %v34, %v250
    %v1703 = vsel %vm1692, %v35, %v252
    %v1704 = vsel %vm1692, %v36, %v254
    %v1705 = vsel %vm1692, %v37, %v256
    %v1706 = vsel %vm1692, %v38, %v258
    %v1707 = vsel %vm1692, %v39, %v260
    %v1708 = vsel %vm1692, %v40, %v262
    %v1709 = vsel %vm1692, %v41, %v264
    %v1710 = vsel %vm1692, %v42, %v266
    %v1711 = vsel %vm1692, %v43, %v268
    %v1712 = vsel %vm1692, %v44, %v270
    %v1713 = vsel %vm1692, %v45, %v272
    %v1714 = vsel %vm1692, %v46, %v274
    %v1715 = vsel %vm1692, %v47, %v276
    %v1716 = vsel %vm1692, %v48, %v278
    %v1717 = vsel %vm1692, %v49, %v280
    %v1718 = vsel %vm1692, %v50, %v282
    %v1719 = vsel %vm1692, %v51, %v284
    %v1720 = vsel %vm1692, %v52, %v286
    %v1721 = vsel %vm1692, %v57, %v288
    %v1722 = vsel %vm1692, %v58, %v290
    %v1723 = vsel %vm1692, %v59, %v292
    %v1724 = vsel %vm1692, %v60, %v294
    %v1725 = vsel %vm1692, %v61, %v296
    %v1726 = vsel %vm1692, %v62, %v298
    %v1727 = vsel %vm1692, %v63, %v300
    %v1728 = vsel %vm1692, %v64, %v302
    %v1729 = vsel %vm1692, %v65, %v304
    %v1730 = vsel %vm1692, %v66, %v306
    %v1731 = vsel %vm1692, %v67, %v308
    %v1732 = vsel %vm1692, %v68, %v310
    %v1733 = vsel %vm1692, %v69, %v312
    %v1734 = vsel %vm1692, %v70, %v314
    %v1735 = vsel %vm1692, %v71, %v316
    %v1736 = vsel %vm1692, %v72, %v318
    %v1737 = vsel %vm1692, %v73, %v320
    %v1738 = vsel %vm1692, %v74, %v322
    %v1739 = vsel %vm1692, %v75, %v324
    %v1740 = vsel %vm1692, %v76, %v326
    %v1741 = vsel %vm1692, %v77, %v328
    %v1742 = vsel %vm1692, %v78, %v330
    %v1743 = vsel %vm1692, %v79, %v332
    %v1744 = vsel %vm1692, %v80, %v334
    %v1745 = vsel %vm1692, %v81, %v336
    %v1746 = vsel %vm1692, %v82, %v338
    %v1747 = vsel %vm1692, %v83, %v340
    %v1748 = vsel %vm1692, %v84, %v342
    %vm1749 = vcmask 64512
    %v1750 = vsel %vm1749, %v1693, %v485
    %v1751 = vsel %vm1749, %v1694, %v487
    %v1752 = vsel %vm1749, %v1695, %v489
    %v1753 = vsel %vm1749, %v1696, %v491
    %v1754 = vsel %vm1749, %v1697, %v493
    %v1755 = vsel %vm1749, %v1698, %v495
    %v1756 = vsel %vm1749, %v1699, %v497
    %v1757 = vsel %vm1749, %v1700, %v499
    %v1758 = vsel %vm1749, %v1701, %v501
    %v1759 = vsel %vm1749, %v1702, %v503
    %v1760 = vsel %vm1749, %v1703, %v505
    %v1761 = vsel %vm1749, %v1704, %v507
    %v1762 = vsel %vm1749, %v1705, %v509
    %v1763 = vsel %vm1749, %v1706, %v511
    %v1764 = vsel %vm1749, %v1707, %v513
    %v1765 = vsel %vm1749, %v1708, %v515
    %v1766 = vsel %vm1749, %v1709, %v517
    %v1767 = vsel %vm1749, %v1710, %v519
    %v1768 = vsel %vm1749, %v1711, %v521
    %v1769 = vsel %vm1749, %v1712, %v523
    %v1770 = vsel %vm1749, %v1713, %v525
    %v1771 = vsel %vm1749, %v1714, %v527
    %v1772 = vsel %vm1749, %v1715, %v529
    %v1773 = vsel %vm1749, %v1716, %v531
    %v1774 = vsel %vm1749, %v1717, %v533
    %v1775 = vsel %vm1749, %v1718, %v535
    %v1776 = vsel %vm1749, %v1719, %v537
    %v1777 = vsel %vm1749, %v1720, %v539
    %v1778 = vsel %vm1749, %v1721, %v541
    %v1779 = vsel %vm1749, %v1722, %v543
    %v1780 = vsel %vm1749, %v1723, %v545
    %v1781 = vsel %vm1749, %v1724, %v547
    %v1782 = vsel %vm1749, %v1725, %v549
    %v1783 = vsel %vm1749, %v1726, %v551
    %v1784 = vsel %vm1749, %v1727, %v553
    %v1785 = vsel %vm1749, %v1728, %v555
    %v1786 = vsel %vm1749, %v1729, %v557
    %v1787 = vsel %vm1749, %v1730, %v559
    %v1788 = vsel %vm1749, %v1731, %v561
    %v1789 = vsel %vm1749, %v1732, %v563
    %v1790 = vsel %vm1749, %v1733, %v565
    %v1791 = vsel %vm1749, %v1734, %v567
    %v1792 = vsel %vm1749, %v1735, %v569
    %v1793 = vsel %vm1749, %v1736, %v571
    %v1794 = vsel %vm1749, %v1737, %v573
    %v1795 = vsel %vm1749, %v1738, %v575
    %v1796 = vsel %vm1749, %v1739, %v577
    %v1797 = vsel %vm1749, %v1740, %v579
    %v1798 = vsel %vm1749, %v1741, %v581
    %v1799 = vsel %vm1749, %v1742, %v583
    %v1800 = vsel %vm1749, %v1743, %v585
    %v1801 = vsel %vm1749, %v1744, %v587
    %v1802 = vsel %vm1749, %v1745, %v589
    %v1803 = vsel %vm1749, %v1746, %v591
    %v1804 = vsel %vm1749, %v1747, %v593
    %v1805 = vsel %vm1749, %v1748, %v595
    %vm1806 = vcmask 97280
    %v1807 = vsel %vm1806, %v1750, %v657
    %v1808 = vsel %vm1806, %v1751, %v659
    %v1809 = vsel %vm1806, %v1752, %v661
    %v1810 = vsel %vm1806, %v1753, %v663
    %v1811 = vsel %vm1806, %v1754, %v665
    %v1812 = vsel %vm1806, %v1755, %v667
    %v1813 = vsel %vm1806, %v1756, %v669
    %v1814 = vsel %vm1806, %v1757, %v671
    %v1815 = vsel %vm1806, %v1758, %v673
    %v1816 = vsel %vm1806, %v1759, %v675
    %v1817 = vsel %vm1806, %v1760, %v677
    %v1818 = vsel %vm1806, %v1761, %v679
    %v1819 = vsel %vm1806, %v1762, %v681
    %v1820 = vsel %vm1806, %v1763, %v683
    %v1821 = vsel %vm1806, %v1764, %v685
    %v1822 = vsel %vm1806, %v1765, %v687
    %v1823 = vsel %vm1806, %v1766, %v689
    %v1824 = vsel %vm1806, %v1767, %v691
    %v1825 = vsel %vm1806, %v1768, %v693
    %v1826 = vsel %vm1806, %v1769, %v695
    %v1827 = vsel %vm1806, %v1770, %v697
    %v1828 = vsel %vm1806, %v1771, %v699
    %v1829 = vsel %vm1806, %v1772, %v701
    %v1830 = vsel %vm1806, %v1773, %v703
    %v1831 = vsel %vm1806, %v1774, %v705
    %v1832 = vsel %vm1806, %v1775, %v707
    %v1833 = vsel %vm1806, %v1776, %v709
    %v1834 = vsel %vm1806, %v1777, %v711
    %v1835 = vsel %vm1806, %v1778, %v713
    %v1836 = vsel %vm1806, %v1779, %v715
    %v1837 = vsel %vm1806, %v1780, %v717
    %v1838 = vsel %vm1806, %v1781, %v719
    %v1839 = vsel %vm1806, %v1782, %v721
    %v1840 = vsel %vm1806, %v1783, %v723
    %v1841 = vsel %vm1806, %v1784, %v725
    %v1842 = vsel %vm1806, %v1785, %v727
    %v1843 = vsel %vm1806, %v1786, %v729
    %v1844 = vsel %vm1806, %v1787, %v731
    %v1845 = vsel %vm1806, %v1788, %v733
    %v1846 = vsel %vm1806, %v1789, %v735
    %v1847 = vsel %vm1806, %v1790, %v737
    %v1848 = vsel %vm1806, %v1791, %v739
    %v1849 = vsel %vm1806, %v1792, %v741
    %v1850 = vsel %vm1806, %v1793, %v743
    %v1851 = vsel %vm1806, %v1794, %v745
    %v1852 = vsel %vm1806, %v1795, %v747
    %v1853 = vsel %vm1806, %v1796, %v749
    %v1854 = vsel %vm1806, %v1797, %v751
    %v1855 = vsel %vm1806, %v1798, %v753
    %v1856 = vsel %vm1806, %v1799, %v755
    %v1857 = vsel %vm1806, %v1800, %v757
    %v1858 = vsel %vm1806, %v1801, %v759
    %v1859 = vsel %vm1806, %v1802, %v761
    %v1860 = vsel %vm1806, %v1803, %v763
    %v1861 = vsel %vm1806, %v1804, %v765
    %v1862 = vsel %vm1806, %v1805, %v767
    %vm1863 = vcmask 130048
    %v1864 = vsel %vm1863, %v1807, %v831
    %v1865 = vsel %vm1863, %v1808, %v833
    %v1866 = vsel %vm1863, %v1809, %v835
    %v1867 = vsel %vm1863, %v1810, %v837
    %v1868 = vsel %vm1863, %v1811, %v839
    %v1869 = vsel %vm1863, %v1812, %v841
    %v1870 = vsel %vm1863, %v1813, %v843
    %v1871 = vsel %vm1863, %v1814, %v845
    %v1872 = vsel %vm1863, %v1815, %v847
    %v1873 = vsel %vm1863, %v1816, %v849
    %v1874 = vsel %vm1863, %v1817, %v851
    %v1875 = vsel %vm1863, %v1818, %v853
    %v1876 = vsel %vm1863, %v1819, %v855
    %v1877 = vsel %vm1863, %v1820, %v857
    %v1878 = vsel %vm1863, %v1821, %v859
    %v1879 = vsel %vm1863, %v1822, %v861
    %v1880 = vsel %vm1863, %v1823, %v863
    %v1881 = vsel %vm1863, %v1824, %v865
    %v1882 = vsel %vm1863, %v1825, %v867
    %v1883 = vsel %vm1863, %v1826, %v869
    %v1884 = vsel %vm1863, %v1827, %v871
    %v1885 = vsel %vm1863, %v1828, %v873
    %v1886 = vsel %vm1863, %v1829, %v875
    %v1887 = vsel %vm1863, %v1830, %v877
    %v1888 = vsel %vm1863, %v1831, %v879
    %v1889 = vsel %vm1863, %v1832, %v881
    %v1890 = vsel %vm1863, %v1833, %v883
    %v1891 = vsel %vm1863, %v1834, %v885
    %v1892 = vsel %vm1863, %v1835, %v887
    %v1893 = vsel %vm1863, %v1836, %v889
    %v1894 = vsel %vm1863, %v1837, %v891
    %v1895 = vsel %vm1863, %v1838, %v893
    %v1896 = vsel %vm1863, %v1839, %v895
    %v1897 = vsel %vm1863, %v1840, %v897
    %v1898 = vsel %vm1863, %v1841, %v899
    %v1899 = vsel %vm1863, %v1842, %v901
    %v1900 = vsel %vm1863, %v1843, %v903
    %v1901 = vsel %vm1863, %v1844, %v905
    %v1902 = vsel %vm1863, %v1845, %v907
    %v1903 = vsel %vm1863, %v1846, %v909
    %v1904 = vsel %vm1863, %v1847, %v911
    %v1905 = vsel %vm1863, %v1848, %v913
    %v1906 = vsel %vm1863, %v1849, %v915
    %v1907 = vsel %vm1863, %v1850, %v917
    %v1908 = vsel %vm1863, %v1851, %v919
    %v1909 = vsel %vm1863, %v1852, %v921
    %v1910 = vsel %vm1863, %v1853, %v923
    %v1911 = vsel %vm1863, %v1854, %v925
    %v1912 = vsel %vm1863, %v1855, %v927
    %v1913 = vsel %vm1863, %v1856, %v929
    %v1914 = vsel %vm1863, %v1857, %v931
    %v1915 = vsel %vm1863, %v1858, %v933
    %v1916 = vsel %vm1863, %v1859, %v935
    %v1917 = vsel %vm1863, %v1860, %v937
    %v1918 = vsel %vm1863, %v1861, %v939
    %v1919 = vsel %vm1863, %v1862, %v941
    %vm1920 = vcmask 162816
    %v1921 = vsel %vm1920, %v1864, %v1005
    %v1922 = vsel %vm1920, %v1865, %v1007
    %v1923 = vsel %vm1920, %v1866, %v1009
    %v1924 = vsel %vm1920, %v1867, %v1011
    %v1925 = vsel %vm1920, %v1868, %v1013
    %v1926 = vsel %vm1920, %v1869, %v1015
    %v1927 = vsel %vm1920, %v1870, %v1017
    %v1928 = vsel %vm1920, %v1871, %v1019
    %v1929 = vsel %vm1920, %v1872, %v1021
    %v1930 = vsel %vm1920, %v1873, %v1023
    %v1931 = vsel %vm1920, %v1874, %v1025
    %v1932 = vsel %vm1920, %v1875, %v1027
    %v1933 = vsel %vm1920, %v1876, %v1029
    %v1934 = vsel %vm1920, %v1877, %v1031
    %v1935 = vsel %vm1920, %v1878, %v1033
    %v1936 = vsel %vm1920, %v1879, %v1035
    %v1937 = vsel %vm1920, %v1880, %v1037
    %v1938 = vsel %vm1920, %v1881, %v1039
    %v1939 = vsel %vm1920, %v1882, %v1041
    %v1940 = vsel %vm1920, %v1883, %v1043
    %v1941 = vsel %vm1920, %v1884, %v1045
    %v1942 = vsel %vm1920, %v1885, %v1047
    %v1943 = vsel %vm1920, %v1886, %v1049
    %v1944 = vsel %vm1920, %v1887, %v1051
    %v1945 = vsel %vm1920, %v1888, %v1053
    %v1946 = vsel %vm1920, %v1889, %v1055
    %v1947 = vsel %vm1920, %v1890, %v1057
    %v1948 = vsel %vm1920, %v1891, %v1059
    %v1949 = vsel %vm1920, %v1892, %v1061
    %v1950 = vsel %vm1920, %v1893, %v1063
    %v1951 = vsel %vm1920, %v1894, %v1065
    %v1952 = vsel %vm1920, %v1895, %v1067
    %v1953 = vsel %vm1920, %v1896, %v1069
    %v1954 = vsel %vm1920, %v1897, %v1071
    %v1955 = vsel %vm1920, %v1898, %v1073
    %v1956 = vsel %vm1920, %v1899, %v1075
    %v1957 = vsel %vm1920, %v1900, %v1077
    %v1958 = vsel %vm1920, %v1901, %v1079
    %v1959 = vsel %vm1920, %v1902, %v1081
    %v1960 = vsel %vm1920, %v1903, %v1083
    %v1961 = vsel %vm1920, %v1904, %v1085
    %v1962 = vsel %vm1920, %v1905, %v1087
    %v1963 = vsel %vm1920, %v1906, %v1089
    %v1964 = vsel %vm1920, %v1907, %v1091
    %v1965 = vsel %vm1920, %v1908, %v1093
    %v1966 = vsel %vm1920, %v1909, %v1095
    %v1967 = vsel %vm1920, %v1910, %v1097
    %v1968 = vsel %vm1920, %v1911, %v1099
    %v1969 = vsel %vm1920, %v1912, %v1101
    %v1970 = vsel %vm1920, %v1913, %v1103
    %v1971 = vsel %vm1920, %v1914, %v1105
    %v1972 = vsel %vm1920, %v1915, %v1107
    %v1973 = vsel %vm1920, %v1916, %v1109
    %v1974 = vsel %vm1920, %v1917, %v1111
    %v1975 = vsel %vm1920, %v1918, %v1113
    %v1976 = vsel %vm1920, %v1919, %v1115
    %vm1977 = vcmask 195584
    %v1978 = vsel %vm1977, %v1921, %v1177
    %v1979 = vsel %vm1977, %v1922, %v1179
    %v1980 = vsel %vm1977, %v1923, %v1181
    %v1981 = vsel %vm1977, %v1924, %v1183
    %v1982 = vsel %vm1977, %v1925, %v1185
    %v1983 = vsel %vm1977, %v1926, %v1187
    %v1984 = vsel %vm1977, %v1927, %v1189
    %v1985 = vsel %vm1977, %v1928, %v1191
    %v1986 = vsel %vm1977, %v1929, %v1193
    %v1987 = vsel %vm1977, %v1930, %v1195
    %v1988 = vsel %vm1977, %v1931, %v1197
    %v1989 = vsel %vm1977, %v1932, %v1199
    %v1990 = vsel %vm1977, %v1933, %v1201
    %v1991 = vsel %vm1977, %v1934, %v1203
    %v1992 = vsel %vm1977, %v1935, %v1205
    %v1993 = vsel %vm1977, %v1936, %v1207
    %v1994 = vsel %vm1977, %v1937, %v1209
    %v1995 = vsel %vm1977, %v1938, %v1211
    %v1996 = vsel %vm1977, %v1939, %v1213
    %v1997 = vsel %vm1977, %v1940, %v1215
    %v1998 = vsel %vm1977, %v1941, %v1217
    %v1999 = vsel %vm1977, %v1942, %v1219
    %v2000 = vsel %vm1977, %v1943, %v1221
    %v2001 = vsel %vm1977, %v1944, %v1223
    %v2002 = vsel %vm1977, %v1945, %v1225
    %v2003 = vsel %vm1977, %v1946, %v1227
    %v2004 = vsel %vm1977, %v1947, %v1229
    %v2005 = vsel %vm1977, %v1948, %v1231
    %v2006 = vsel %vm1977, %v1949, %v1233
    %v2007 = vsel %vm1977, %v1950, %v1235
    %v2008 = vsel %vm1977, %v1951, %v1237
    %v2009 = vsel %vm1977, %v1952, %v1239
    %v2010 = vsel %vm1977, %v1953, %v1241
    %v2011 = vsel %vm1977, %v1954, %v1243
    %v2012 = vsel %vm1977, %v1955, %v1245
    %v2013 = vsel %vm1977, %v1956, %v1247
    %v2014 = vsel %vm1977, %v1957, %v1249
    %v2015 = vsel %vm1977, %v1958, %v1251
    %v2016 = vsel %vm1977, %v1959, %v1253
    %v2017 = vsel %vm1977, %v1960, %v1255
    %v2018 = vsel %vm1977, %v1961, %v1257
    %v2019 = vsel %vm1977, %v1962, %v1259
    %v2020 = vsel %vm1977, %v1963, %v1261
    %v2021 = vsel %vm1977, %v1964, %v1263
    %v2022 = vsel %vm1977, %v1965, %v1265
    %v2023 = vsel %vm1977, %v1966, %v1267
    %v2024 = vsel %vm1977, %v1967, %v1269
    %v2025 = vsel %vm1977, %v1968, %v1271
    %v2026 = vsel %vm1977, %v1969, %v1273
    %v2027 = vsel %vm1977, %v1970, %v1275
    %v2028 = vsel %vm1977, %v1971, %v1277
    %v2029 = vsel %vm1977, %v1972, %v1279
    %v2030 = vsel %vm1977, %v1973, %v1281
    %v2031 = vsel %vm1977, %v1974, %v1283
    %v2032 = vsel %vm1977, %v1975, %v1285
    %v2033 = vsel %vm1977, %v1976, %v1287
    %vm2034 = vcmask 228352
    %v2035 = vsel %vm2034, %v1978, %v1351
    %v2036 = vsel %vm2034, %v1979, %v1353
    %v2037 = vsel %vm2034, %v1980, %v1355
    %v2038 = vsel %vm2034, %v1981, %v1357
    %v2039 = vsel %vm2034, %v1982, %v1359
    %v2040 = vsel %vm2034, %v1983, %v1361
    %v2041 = vsel %vm2034, %v1984, %v1363
    %v2042 = vsel %vm2034, %v1985, %v1365
    %v2043 = vsel %vm2034, %v1986, %v1367
    %v2044 = vsel %vm2034, %v1987, %v1369
    %v2045 = vsel %vm2034, %v1988, %v1371
    %v2046 = vsel %vm2034, %v1989, %v1373
    %v2047 = vsel %vm2034, %v1990, %v1375
    %v2048 = vsel %vm2034, %v1991, %v1377
    %v2049 = vsel %vm2034, %v1992, %v1379
    %v2050 = vsel %vm2034, %v1993, %v1381
    %v2051 = vsel %vm2034, %v1994, %v1383
    %v2052 = vsel %vm2034, %v1995, %v1385
    %v2053 = vsel %vm2034, %v1996, %v1387
    %v2054 = vsel %vm2034, %v1997, %v1389
    %v2055 = vsel %vm2034, %v1998, %v1391
    %v2056 = vsel %vm2034, %v1999, %v1393
    %v2057 = vsel %vm2034, %v2000, %v1395
    %v2058 = vsel %vm2034, %v2001, %v1397
    %v2059 = vsel %vm2034, %v2002, %v1399
    %v2060 = vsel %vm2034, %v2003, %v1401
    %v2061 = vsel %vm2034, %v2004, %v1403
    %v2062 = vsel %vm2034, %v2005, %v1405
    %v2063 = vsel %vm2034, %v2006, %v1407
    %v2064 = vsel %vm2034, %v2007, %v1409
    %v2065 = vsel %vm2034, %v2008, %v1411
    %v2066 = vsel %vm2034, %v2009, %v1413
    %v2067 = vsel %vm2034, %v2010, %v1415
    %v2068 = vsel %vm2034, %v2011, %v1417
    %v2069 = vsel %vm2034, %v2012, %v1419
    %v2070 = vsel %vm2034, %v2013, %v1421
    %v2071 = vsel %vm2034, %v2014, %v1423
    %v2072 = vsel %vm2034, %v2015, %v1425
    %v2073 = vsel %vm2034, %v2016, %v1427
    %v2074 = vsel %vm2034, %v2017, %v1429
    %v2075 = vsel %vm2034, %v2018, %v1431
    %v2076 = vsel %vm2034, %v2019, %v1433
    %v2077 = vsel %vm2034, %v2020, %v1435
    %v2078 = vsel %vm2034, %v2021, %v1437
    %v2079 = vsel %vm2034, %v2022, %v1439
    %v2080 = vsel %vm2034, %v2023, %v1441
    %v2081 = vsel %vm2034, %v2024, %v1443
    %v2082 = vsel %vm2034, %v2025, %v1445
    %v2083 = vsel %vm2034, %v2026, %v1447
    %v2084 = vsel %vm2034, %v2027, %v1449
    %v2085 = vsel %vm2034, %v2028, %v1451
    %v2086 = vsel %vm2034, %v2029, %v1453
    %v2087 = vsel %vm2034, %v2030, %v1455
    %v2088 = vsel %vm2034, %v2031, %v1457
    %v2089 = vsel %vm2034, %v2032, %v1459
    %v2090 = vsel %vm2034, %v2033, %v1461
    %vm2091 = vcmask 261120
    %v2092 = vsel %vm2091, %v2035, %v1525
    %v2093 = vsel %vm2091, %v2036, %v1527
    %v2094 = vsel %vm2091, %v2037, %v1529
    %v2095 = vsel %vm2091, %v2038, %v1531
    %v2096 = vsel %vm2091, %v2039, %v1533
    %v2097 = vsel %vm2091, %v2040, %v1535
    %v2098 = vsel %vm2091, %v2041, %v1537
    %v2099 = vsel %vm2091, %v2042, %v1539
    %v2100 = vsel %vm2091, %v2043, %v1541
    %v2101 = vsel %vm2091, %v2044, %v1543
    %v2102 = vsel %vm2091, %v2045, %v1545
    %v2103 = vsel %vm2091, %v2046, %v1547
    %v2104 = vsel %vm2091, %v2047, %v1549
    %v2105 = vsel %vm2091, %v2048, %v1551
    %v2106 = vsel %vm2091, %v2049, %v1553
    %v2107 = vsel %vm2091, %v2050, %v1555
    %v2108 = vsel %vm2091, %v2051, %v1557
    %v2109 = vsel %vm2091, %v2052, %v1559
    %v2110 = vsel %vm2091, %v2053, %v1561
    %v2111 = vsel %vm2091, %v2054, %v1563
    %v2112 = vsel %vm2091, %v2055, %v1565
    %v2113 = vsel %vm2091, %v2056, %v1567
    %v2114 = vsel %vm2091, %v2057, %v1569
    %v2115 = vsel %vm2091, %v2058, %v1571
    %v2116 = vsel %vm2091, %v2059, %v1573
    %v2117 = vsel %vm2091, %v2060, %v1575
    %v2118 = vsel %vm2091, %v2061, %v1577
    %v2119 = vsel %vm2091, %v2062, %v1579
    %v2120 = vsel %vm2091, %v2063, %v1581
    %v2121 = vsel %vm2091, %v2064, %v1583
    %v2122 = vsel %vm2091, %v2065, %v1585
    %v2123 = vsel %vm2091, %v2066, %v1587
    %v2124 = vsel %vm2091, %v2067, %v1589
    %v2125 = vsel %vm2091, %v2068, %v1591
    %v2126 = vsel %vm2091, %v2069, %v1593
    %v2127 = vsel %vm2091, %v2070, %v1595
    %v2128 = vsel %vm2091, %v2071, %v1597
    %v2129 = vsel %vm2091, %v2072, %v1599
    %v2130 = vsel %vm2091, %v2073, %v1601
    %v2131 = vsel %vm2091, %v2074, %v1603
    %v2132 = vsel %vm2091, %v2075, %v1605
    %v2133 = vsel %vm2091, %v2076, %v1607
    %v2134 = vsel %vm2091, %v2077, %v1609
    %v2135 = vsel %vm2091, %v2078, %v1611
    %v2136 = vsel %vm2091, %v2079, %v1613
    %v2137 = vsel %vm2091, %v2080, %v1615
    %v2138 = vsel %vm2091, %v2081, %v1617
    %v2139 = vsel %vm2091, %v2082, %v1619
    %v2140 = vsel %vm2091, %v2083, %v1621
    %v2141 = vsel %vm2091, %v2084, %v1623
    %v2142 = vsel %vm2091, %v2085, %v1625
    %v2143 = vsel %vm2091, %v2086, %v1627
    %v2144 = vsel %vm2091, %v2087, %v1629
    %v2145 = vsel %vm2091, %v2088, %v1631
    %v2146 = vsel %vm2091, %v2089, %v1633
    %v2147 = vsel %vm2091, %v2090, %v1635
    %v2204 = vcombine.high %v2092, %v2092
    %v2206 = vunpack.c.l.s4 1983009808
    %v2207 = vunpack.c.0.s8 %v2206
    %v2208 = vlaneseq
    %v2209 = vshrl.u32 %v2208, 7
    %v2210 = vsub.s32 %v2207, %v2209
    %v2211 = vrot.slane %v2092, %v2210
    %v2213 = vunpack.c.l.s4 1983009808
    %v2214 = vunpack.c.0.s8 %v2213
    %v2215 = vlaneseq
    %v2216 = vshrl.u32 %v2215, 7
    %v2217 = vsub.s32 %v2214, %v2216
    %v2218 = vrot.slane %v2204, %v2217
    %v2219 = vcombine.high %v2211, %v2211
    %v2220 = vcombine.high %v2218, %v2218
    %v2221 = vcombine.high %v2093, %v2093
    %v2223 = vunpack.c.l.s4 1983009808
    %v2224 = vunpack.c.0.s8 %v2223
    %v2225 = vlaneseq
    %v2226 = vshrl.u32 %v2225, 7
    %v2227 = vsub.s32 %v2224, %v2226
    %v2228 = vrot.slane %v2093, %v2227
    %v2230 = vunpack.c.l.s4 1983009808
    %v2231 = vunpack.c.0.s8 %v2230
    %v2232 = vlaneseq
    %v2233 = vshrl.u32 %v2232, 7
    %v2234 = vsub.s32 %v2231, %v2233
    %v2235 = vrot.slane %v2221, %v2234
    %v2236 = vcombine.high %v2228, %v2228
    %v2237 = vcombine.high %v2094, %v2094
    %v2239 = vunpack.c.l.s4 1983009808
    %v2240 = vunpack.c.0.s8 %v2239
    %v2241 = vlaneseq
    %v2242 = vshrl.u32 %v2241, 7
    %v2243 = vsub.s32 %v2240, %v2242
    %v2244 = vrot.slane %v2094, %v2243
    %v2246 = vunpack.c.l.s4 1983009808
    %v2247 = vunpack.c.0.s8 %v2246
    %v2248 = vlaneseq
    %v2249 = vshrl.u32 %v2248, 7
    %v2250 = vsub.s32 %v2247, %v2249
    %v2251 = vrot.slane %v2237, %v2250
    %v2252 = vcombine.high %v2244, %v2244
    %v2253 = vcombine.high %v2251, %v2251
    %v2254 = vcombine.high %v2095, %v2095
    %v2256 = vunpack.c.l.s4 1983009808
    %v2257 = vunpack.c.0.s8 %v2256
    %v2258 = vlaneseq
    %v2259 = vshrl.u32 %v2258, 7
    %v2260 = vsub.s32 %v2257, %v2259
    %v2261 = vrot.slane %v2095, %v2260
    %v2263 = vunpack.c.l.s4 1983009808
    %v2264 = vunpack.c.0.s8 %v2263
    %v2265 = vlaneseq
    %v2266 = vshrl.u32 %v2265, 7
    %v2267 = vsub.s32 %v2264, %v2266
    %v2268 = vrot.slane %v2254, %v2267
    %v2269 = vcombine.high %v2261, %v2261
    %v2270 = vcombine.high %v2096, %v2096
    %v2272 = vunpack.c.l.s4 1983009808
    %v2273 = vunpack.c.0.s8 %v2272
    %v2274 = vlaneseq
    %v2275 = vshrl.u32 %v2274, 7
    %v2276 = vsub.s32 %v2273, %v2275
    %v2277 = vrot.slane %v2096, %v2276
    %v2279 = vunpack.c.l.s4 1983009808
    %v2280 = vunpack.c.0.s8 %v2279
    %v2281 = vlaneseq
    %v2282 = vshrl.u32 %v2281, 7
    %v2283 = vsub.s32 %v2280, %v2282
    %v2284 = vrot.slane %v2270, %v2283
    %v2285 = vcombine.high %v2277, %v2277
    %v2286 = vcombine.high %v2284, %v2284
    %v2287 = vcombine.high %v2097, %v2097
    %v2289 = vunpack.c.l.s4 1983009808
    %v2290 = vunpack.c.0.s8 %v2289
    %v2291 = vlaneseq
    %v2292 = vshrl.u32 %v2291, 7
    %v2293 = vsub.s32 %v2290, %v2292
    %v2294 = vrot.slane %v2097, %v2293
    %v2296 = vunpack.c.l.s4 1983009808
    %v2297 = vunpack.c.0.s8 %v2296
    %v2298 = vlaneseq
    %v2299 = vshrl.u32 %v2298, 7
    %v2300 = vsub.s32 %v2297, %v2299
    %v2301 = vrot.slane %v2287, %v2300
    %v2302 = vcombine.high %v2294, %v2294
    %v2303 = vcombine.high %v2098, %v2098
    %v2305 = vunpack.c.l.s4 1983009808
    %v2306 = vunpack.c.0.s8 %v2305
    %v2307 = vlaneseq
    %v2308 = vshrl.u32 %v2307, 7
    %v2309 = vsub.s32 %v2306, %v2308
    %v2310 = vrot.slane %v2098, %v2309
    %v2312 = vunpack.c.l.s4 1983009808
    %v2313 = vunpack.c.0.s8 %v2312
    %v2314 = vlaneseq
    %v2315 = vshrl.u32 %v2314, 7
    %v2316 = vsub.s32 %v2313, %v2315
    %v2317 = vrot.slane %v2303, %v2316
    %v2318 = vcombine.high %v2310, %v2310
    %v2319 = vcombine.high %v2317, %v2317
    %v2320 = vcombine.high %v2099, %v2099
    %v2322 = vunpack.c.l.s4 1983009808
    %v2323 = vunpack.c.0.s8 %v2322
    %v2324 = vlaneseq
    %v2325 = vshrl.u32 %v2324, 7
    %v2326 = vsub.s32 %v2323, %v2325
    %v2327 = vrot.slane %v2099, %v2326
    %v2329 = vunpack.c.l.s4 1983009808
    %v2330 = vunpack.c.0.s8 %v2329
    %v2331 = vlaneseq
    %v2332 = vshrl.u32 %v2331, 7
    %v2333 = vsub.s32 %v2330, %v2332
    %v2334 = vrot.slane %v2320, %v2333
    %v2335 = vcombine.high %v2327, %v2327
    %v2336 = vcombine.high %v2100, %v2100
    %v2338 = vunpack.c.l.s4 1983009808
    %v2339 = vunpack.c.0.s8 %v2338
    %v2340 = vlaneseq
    %v2341 = vshrl.u32 %v2340, 7
    %v2342 = vsub.s32 %v2339, %v2341
    %v2343 = vrot.slane %v2100, %v2342
    %v2345 = vunpack.c.l.s4 1983009808
    %v2346 = vunpack.c.0.s8 %v2345
    %v2347 = vlaneseq
    %v2348 = vshrl.u32 %v2347, 7
    %v2349 = vsub.s32 %v2346, %v2348
    %v2350 = vrot.slane %v2336, %v2349
    %v2351 = vcombine.high %v2343, %v2343
    %v2352 = vcombine.high %v2350, %v2350
    %v2353 = vcombine.high %v2101, %v2101
    %v2355 = vunpack.c.l.s4 1983009808
    %v2356 = vunpack.c.0.s8 %v2355
    %v2357 = vlaneseq
    %v2358 = vshrl.u32 %v2357, 7
    %v2359 = vsub.s32 %v2356, %v2358
    %v2360 = vrot.slane %v2101, %v2359
    %v2362 = vunpack.c.l.s4 1983009808
    %v2363 = vunpack.c.0.s8 %v2362
    %v2364 = vlaneseq
    %v2365 = vshrl.u32 %v2364, 7
    %v2366 = vsub.s32 %v2363, %v2365
    %v2367 = vrot.slane %v2353, %v2366
    %v2368 = vcombine.high %v2360, %v2360
    %v2369 = vcombine.high %v2102, %v2102
    %v2371 = vunpack.c.l.s4 1983009808
    %v2372 = vunpack.c.0.s8 %v2371
    %v2373 = vlaneseq
    %v2374 = vshrl.u32 %v2373, 7
    %v2375 = vsub.s32 %v2372, %v2374
    %v2376 = vrot.slane %v2102, %v2375
    %v2378 = vunpack.c.l.s4 1983009808
    %v2379 = vunpack.c.0.s8 %v2378
    %v2380 = vlaneseq
    %v2381 = vshrl.u32 %v2380, 7
    %v2382 = vsub.s32 %v2379, %v2381
    %v2383 = vrot.slane %v2369, %v2382
    %v2384 = vcombine.high %v2376, %v2376
    %v2385 = vcombine.high %v2383, %v2383
    %v2386 = vcombine.high %v2103, %v2103
    %v2388 = vunpack.c.l.s4 1983009808
    %v2389 = vunpack.c.0.s8 %v2388
    %v2390 = vlaneseq
    %v2391 = vshrl.u32 %v2390, 7
    %v2392 = vsub.s32 %v2389, %v2391
    %v2393 = vrot.slane %v2103, %v2392
    %v2395 = vunpack.c.l.s4 1983009808
    %v2396 = vunpack.c.0.s8 %v2395
    %v2397 = vlaneseq
    %v2398 = vshrl.u32 %v2397, 7
    %v2399 = vsub.s32 %v2396, %v2398
    %v2400 = vrot.slane %v2386, %v2399
    %v2401 = vcombine.high %v2393, %v2393
    %v2402 = vcombine.high %v2104, %v2104
    %v2404 = vunpack.c.l.s4 1983009808
    %v2405 = vunpack.c.0.s8 %v2404
    %v2406 = vlaneseq
    %v2407 = vshrl.u32 %v2406, 7
    %v2408 = vsub.s32 %v2405, %v2407
    %v2409 = vrot.slane %v2104, %v2408
    %v2411 = vunpack.c.l.s4 1983009808
    %v2412 = vunpack.c.0.s8 %v2411
    %v2413 = vlaneseq
    %v2414 = vshrl.u32 %v2413, 7
    %v2415 = vsub.s32 %v2412, %v2414
    %v2416 = vrot.slane %v2402, %v2415
    %v2417 = vcombine.high %v2409, %v2409
    %v2418 = vcombine.high %v2416, %v2416
    %v2419 = vcombine.high %v2105, %v2105
    %v2421 = vunpack.c.l.s4 1983009808
    %v2422 = vunpack.c.0.s8 %v2421
    %v2423 = vlaneseq
    %v2424 = vshrl.u32 %v2423, 7
    %v2425 = vsub.s32 %v2422, %v2424
    %v2426 = vrot.slane %v2105, %v2425
    %v2428 = vunpack.c.l.s4 1983009808
    %v2429 = vunpack.c.0.s8 %v2428
    %v2430 = vlaneseq
    %v2431 = vshrl.u32 %v2430, 7
    %v2432 = vsub.s32 %v2429, %v2431
    %v2433 = vrot.slane %v2419, %v2432
    %v2434 = vcombine.high %v2426, %v2426
    %v2435 = vcombine.high %v2106, %v2106
    %v2437 = vunpack.c.l.s4 1983009808
    %v2438 = vunpack.c.0.s8 %v2437
    %v2439 = vlaneseq
    %v2440 = vshrl.u32 %v2439, 7
    %v2441 = vsub.s32 %v2438, %v2440
    %v2442 = vrot.slane %v2106, %v2441
    %v2444 = vunpack.c.l.s4 1983009808
    %v2445 = vunpack.c.0.s8 %v2444
    %v2446 = vlaneseq
    %v2447 = vshrl.u32 %v2446, 7
    %v2448 = vsub.s32 %v2445, %v2447
    %v2449 = vrot.slane %v2435, %v2448
    %v2450 = vcombine.high %v2442, %v2442
    %v2451 = vcombine.high %v2449, %v2449
    %v2452 = vcombine.high %v2107, %v2107
    %v2454 = vunpack.c.l.s4 1983009808
    %v2455 = vunpack.c.0.s8 %v2454
    %v2456 = vlaneseq
    %v2457 = vshrl.u32 %v2456, 7
    %v2458 = vsub.s32 %v2455, %v2457
    %v2459 = vrot.slane %v2107, %v2458
    %v2461 = vunpack.c.l.s4 1983009808
    %v2462 = vunpack.c.0.s8 %v2461
    %v2463 = vlaneseq
    %v2464 = vshrl.u32 %v2463, 7
    %v2465 = vsub.s32 %v2462, %v2464
    %v2466 = vrot.slane %v2452, %v2465
    %v2467 = vcombine.high %v2459, %v2459
    %v2468 = vcombine.high %v2108, %v2108
    %v2470 = vunpack.c.l.s4 1983009808
    %v2471 = vunpack.c.0.s8 %v2470
    %v2472 = vlaneseq
    %v2473 = vshrl.u32 %v2472, 7
    %v2474 = vsub.s32 %v2471, %v2473
    %v2475 = vrot.slane %v2108, %v2474
    %v2477 = vunpack.c.l.s4 1983009808
    %v2478 = vunpack.c.0.s8 %v2477
    %v2479 = vlaneseq
    %v2480 = vshrl.u32 %v2479, 7
    %v2481 = vsub.s32 %v2478, %v2480
    %v2482 = vrot.slane %v2468, %v2481
    %v2483 = vcombine.high %v2475, %v2475
    %v2484 = vcombine.high %v2482, %v2482
    %v2485 = vcombine.high %v2109, %v2109
    %v2487 = vunpack.c.l.s4 1983009808
    %v2488 = vunpack.c.0.s8 %v2487
    %v2489 = vlaneseq
    %v2490 = vshrl.u32 %v2489, 7
    %v2491 = vsub.s32 %v2488, %v2490
    %v2492 = vrot.slane %v2109, %v2491
    %v2494 = vunpack.c.l.s4 1983009808
    %v2495 = vunpack.c.0.s8 %v2494
    %v2496 = vlaneseq
    %v2497 = vshrl.u32 %v2496, 7
    %v2498 = vsub.s32 %v2495, %v2497
    %v2499 = vrot.slane %v2485, %v2498
    %v2500 = vcombine.high %v2492, %v2492
    %v2501 = vcombine.high %v2110, %v2110
    %v2503 = vunpack.c.l.s4 1983009808
    %v2504 = vunpack.c.0.s8 %v2503
    %v2505 = vlaneseq
    %v2506 = vshrl.u32 %v2505, 7
    %v2507 = vsub.s32 %v2504, %v2506
    %v2508 = vrot.slane %v2110, %v2507
    %v2510 = vunpack.c.l.s4 1983009808
    %v2511 = vunpack.c.0.s8 %v2510
    %v2512 = vlaneseq
    %v2513 = vshrl.u32 %v2512, 7
    %v2514 = vsub.s32 %v2511, %v2513
    %v2515 = vrot.slane %v2501, %v2514
    %v2516 = vcombine.high %v2508, %v2508
    %v2517 = vcombine.high %v2515, %v2515
    %v2518 = vcombine.high %v2111, %v2111
    %v2520 = vunpack.c.l.s4 1983009808
    %v2521 = vunpack.c.0.s8 %v2520
    %v2522 = vlaneseq
    %v2523 = vshrl.u32 %v2522, 7
    %v2524 = vsub.s32 %v2521, %v2523
    %v2525 = vrot.slane %v2111, %v2524
    %v2527 = vunpack.c.l.s4 1983009808
    %v2528 = vunpack.c.0.s8 %v2527
    %v2529 = vlaneseq
    %v2530 = vshrl.u32 %v2529, 7
    %v2531 = vsub.s32 %v2528, %v2530
    %v2532 = vrot.slane %v2518, %v2531
    %v2533 = vcombine.high %v2525, %v2525
    %v2534 = vcombine.high %v2112, %v2112
    %v2536 = vunpack.c.l.s4 1983009808
    %v2537 = vunpack.c.0.s8 %v2536
    %v2538 = vlaneseq
    %v2539 = vshrl.u32 %v2538, 7
    %v2540 = vsub.s32 %v2537, %v2539
    %v2541 = vrot.slane %v2112, %v2540
    %v2543 = vunpack.c.l.s4 1983009808
    %v2544 = vunpack.c.0.s8 %v2543
    %v2545 = vlaneseq
    %v2546 = vshrl.u32 %v2545, 7
    %v2547 = vsub.s32 %v2544, %v2546
    %v2548 = vrot.slane %v2534, %v2547
    %v2549 = vcombine.high %v2541, %v2541
    %v2550 = vcombine.high %v2548, %v2548
    %v2551 = vcombine.high %v2113, %v2113
    %v2553 = vunpack.c.l.s4 1983009808
    %v2554 = vunpack.c.0.s8 %v2553
    %v2555 = vlaneseq
    %v2556 = vshrl.u32 %v2555, 7
    %v2557 = vsub.s32 %v2554, %v2556
    %v2558 = vrot.slane %v2113, %v2557
    %v2560 = vunpack.c.l.s4 1983009808
    %v2561 = vunpack.c.0.s8 %v2560
    %v2562 = vlaneseq
    %v2563 = vshrl.u32 %v2562, 7
    %v2564 = vsub.s32 %v2561, %v2563
    %v2565 = vrot.slane %v2551, %v2564
    %v2566 = vcombine.high %v2558, %v2558
    %v2567 = vcombine.high %v2114, %v2114
    %v2569 = vunpack.c.l.s4 1983009808
    %v2570 = vunpack.c.0.s8 %v2569
    %v2571 = vlaneseq
    %v2572 = vshrl.u32 %v2571, 7
    %v2573 = vsub.s32 %v2570, %v2572
    %v2574 = vrot.slane %v2114, %v2573
    %v2576 = vunpack.c.l.s4 1983009808
    %v2577 = vunpack.c.0.s8 %v2576
    %v2578 = vlaneseq
    %v2579 = vshrl.u32 %v2578, 7
    %v2580 = vsub.s32 %v2577, %v2579
    %v2581 = vrot.slane %v2567, %v2580
    %v2582 = vcombine.high %v2574, %v2574
    %v2583 = vcombine.high %v2581, %v2581
    %v2584 = vcombine.high %v2115, %v2115
    %v2586 = vunpack.c.l.s4 1983009808
    %v2587 = vunpack.c.0.s8 %v2586
    %v2588 = vlaneseq
    %v2589 = vshrl.u32 %v2588, 7
    %v2590 = vsub.s32 %v2587, %v2589
    %v2591 = vrot.slane %v2115, %v2590
    %v2593 = vunpack.c.l.s4 1983009808
    %v2594 = vunpack.c.0.s8 %v2593
    %v2595 = vlaneseq
    %v2596 = vshrl.u32 %v2595, 7
    %v2597 = vsub.s32 %v2594, %v2596
    %v2598 = vrot.slane %v2584, %v2597
    %v2599 = vcombine.high %v2591, %v2591
    %v2600 = vcombine.high %v2116, %v2116
    %v2602 = vunpack.c.l.s4 1983009808
    %v2603 = vunpack.c.0.s8 %v2602
    %v2604 = vlaneseq
    %v2605 = vshrl.u32 %v2604, 7
    %v2606 = vsub.s32 %v2603, %v2605
    %v2607 = vrot.slane %v2116, %v2606
    %v2609 = vunpack.c.l.s4 1983009808
    %v2610 = vunpack.c.0.s8 %v2609
    %v2611 = vlaneseq
    %v2612 = vshrl.u32 %v2611, 7
    %v2613 = vsub.s32 %v2610, %v2612
    %v2614 = vrot.slane %v2600, %v2613
    %v2615 = vcombine.high %v2607, %v2607
    %v2616 = vcombine.high %v2614, %v2614
    %v2617 = vcombine.high %v2117, %v2117
    %v2619 = vunpack.c.l.s4 1983009808
    %v2620 = vunpack.c.0.s8 %v2619
    %v2621 = vlaneseq
    %v2622 = vshrl.u32 %v2621, 7
    %v2623 = vsub.s32 %v2620, %v2622
    %v2624 = vrot.slane %v2117, %v2623
    %v2626 = vunpack.c.l.s4 1983009808
    %v2627 = vunpack.c.0.s8 %v2626
    %v2628 = vlaneseq
    %v2629 = vshrl.u32 %v2628, 7
    %v2630 = vsub.s32 %v2627, %v2629
    %v2631 = vrot.slane %v2617, %v2630
    %v2632 = vcombine.high %v2624, %v2624
    %v2633 = vcombine.high %v2118, %v2118
    %v2635 = vunpack.c.l.s4 1983009808
    %v2636 = vunpack.c.0.s8 %v2635
    %v2637 = vlaneseq
    %v2638 = vshrl.u32 %v2637, 7
    %v2639 = vsub.s32 %v2636, %v2638
    %v2640 = vrot.slane %v2118, %v2639
    %v2642 = vunpack.c.l.s4 1983009808
    %v2643 = vunpack.c.0.s8 %v2642
    %v2644 = vlaneseq
    %v2645 = vshrl.u32 %v2644, 7
    %v2646 = vsub.s32 %v2643, %v2645
    %v2647 = vrot.slane %v2633, %v2646
    %v2648 = vcombine.high %v2640, %v2640
    %v2649 = vcombine.high %v2647, %v2647
    %v2650 = vcombine.high %v2119, %v2119
    %v2652 = vunpack.c.l.s4 1983009808
    %v2653 = vunpack.c.0.s8 %v2652
    %v2654 = vlaneseq
    %v2655 = vshrl.u32 %v2654, 7
    %v2656 = vsub.s32 %v2653, %v2655
    %v2657 = vrot.slane %v2119, %v2656
    %v2659 = vunpack.c.l.s4 1983009808
    %v2660 = vunpack.c.0.s8 %v2659
    %v2661 = vlaneseq
    %v2662 = vshrl.u32 %v2661, 7
    %v2663 = vsub.s32 %v2660, %v2662
    %v2664 = vrot.slane %v2650, %v2663
    %v2665 = vcombine.high %v2657, %v2657
    %v2666 = vcombine.high %v2120, %v2120
    %v2668 = vunpack.c.l.s4 1983009808
    %v2669 = vunpack.c.0.s8 %v2668
    %v2670 = vlaneseq
    %v2671 = vshrl.u32 %v2670, 7
    %v2672 = vsub.s32 %v2669, %v2671
    %v2673 = vrot.slane %v2120, %v2672
    %v2675 = vunpack.c.l.s4 1983009808
    %v2676 = vunpack.c.0.s8 %v2675
    %v2677 = vlaneseq
    %v2678 = vshrl.u32 %v2677, 7
    %v2679 = vsub.s32 %v2676, %v2678
    %v2680 = vrot.slane %v2666, %v2679
    %v2681 = vcombine.high %v2673, %v2673
    %v2682 = vcombine.high %v2680, %v2680
    %v2683 = vcombine.high %v2121, %v2121
    %v2685 = vunpack.c.l.s4 1983009808
    %v2686 = vunpack.c.0.s8 %v2685
    %v2687 = vlaneseq
    %v2688 = vshrl.u32 %v2687, 7
    %v2689 = vsub.s32 %v2686, %v2688
    %v2690 = vrot.slane %v2121, %v2689
    %v2692 = vunpack.c.l.s4 1983009808
    %v2693 = vunpack.c.0.s8 %v2692
    %v2694 = vlaneseq
    %v2695 = vshrl.u32 %v2694, 7
    %v2696 = vsub.s32 %v2693, %v2695
    %v2697 = vrot.slane %v2683, %v2696
    %v2698 = vcombine.high %v2690, %v2690
    %v2699 = vcombine.high %v2122, %v2122
    %v2701 = vunpack.c.l.s4 1983009808
    %v2702 = vunpack.c.0.s8 %v2701
    %v2703 = vlaneseq
    %v2704 = vshrl.u32 %v2703, 7
    %v2705 = vsub.s32 %v2702, %v2704
    %v2706 = vrot.slane %v2122, %v2705
    %v2708 = vunpack.c.l.s4 1983009808
    %v2709 = vunpack.c.0.s8 %v2708
    %v2710 = vlaneseq
    %v2711 = vshrl.u32 %v2710, 7
    %v2712 = vsub.s32 %v2709, %v2711
    %v2713 = vrot.slane %v2699, %v2712
    %v2714 = vcombine.high %v2706, %v2706
    %v2715 = vcombine.high %v2713, %v2713
    %v2716 = vcombine.high %v2123, %v2123
    %v2718 = vunpack.c.l.s4 1983009808
    %v2719 = vunpack.c.0.s8 %v2718
    %v2720 = vlaneseq
    %v2721 = vshrl.u32 %v2720, 7
    %v2722 = vsub.s32 %v2719, %v2721
    %v2723 = vrot.slane %v2123, %v2722
    %v2725 = vunpack.c.l.s4 1983009808
    %v2726 = vunpack.c.0.s8 %v2725
    %v2727 = vlaneseq
    %v2728 = vshrl.u32 %v2727, 7
    %v2729 = vsub.s32 %v2726, %v2728
    %v2730 = vrot.slane %v2716, %v2729
    %v2731 = vcombine.high %v2723, %v2723
    %v2732 = vcombine.high %v2124, %v2124
    %v2734 = vunpack.c.l.s4 1983009808
    %v2735 = vunpack.c.0.s8 %v2734
    %v2736 = vlaneseq
    %v2737 = vshrl.u32 %v2736, 7
    %v2738 = vsub.s32 %v2735, %v2737
    %v2739 = vrot.slane %v2124, %v2738
    %v2741 = vunpack.c.l.s4 1983009808
    %v2742 = vunpack.c.0.s8 %v2741
    %v2743 = vlaneseq
    %v2744 = vshrl.u32 %v2743, 7
    %v2745 = vsub.s32 %v2742, %v2744
    %v2746 = vrot.slane %v2732, %v2745
    %v2747 = vcombine.high %v2739, %v2739
    %v2748 = vcombine.high %v2746, %v2746
    %v2749 = vcombine.high %v2125, %v2125
    %v2751 = vunpack.c.l.s4 1983009808
    %v2752 = vunpack.c.0.s8 %v2751
    %v2753 = vlaneseq
    %v2754 = vshrl.u32 %v2753, 7
    %v2755 = vsub.s32 %v2752, %v2754
    %v2756 = vrot.slane %v2125, %v2755
    %v2758 = vunpack.c.l.s4 1983009808
    %v2759 = vunpack.c.0.s8 %v2758
    %v2760 = vlaneseq
    %v2761 = vshrl.u32 %v2760, 7
    %v2762 = vsub.s32 %v2759, %v2761
    %v2763 = vrot.slane %v2749, %v2762
    %v2764 = vcombine.high %v2756, %v2756
    %v2765 = vcombine.high %v2126, %v2126
    %v2767 = vunpack.c.l.s4 1983009808
    %v2768 = vunpack.c.0.s8 %v2767
    %v2769 = vlaneseq
    %v2770 = vshrl.u32 %v2769, 7
    %v2771 = vsub.s32 %v2768, %v2770
    %v2772 = vrot.slane %v2126, %v2771
    %v2774 = vunpack.c.l.s4 1983009808
    %v2775 = vunpack.c.0.s8 %v2774
    %v2776 = vlaneseq
    %v2777 = vshrl.u32 %v2776, 7
    %v2778 = vsub.s32 %v2775, %v2777
    %v2779 = vrot.slane %v2765, %v2778
    %v2780 = vcombine.high %v2772, %v2772
    %v2781 = vcombine.high %v2779, %v2779
    %v2782 = vcombine.high %v2127, %v2127
    %v2784 = vunpack.c.l.s4 1983009808
    %v2785 = vunpack.c.0.s8 %v2784
    %v2786 = vlaneseq
    %v2787 = vshrl.u32 %v2786, 7
    %v2788 = vsub.s32 %v2785, %v2787
    %v2789 = vrot.slane %v2127, %v2788
    %v2791 = vunpack.c.l.s4 1983009808
    %v2792 = vunpack.c.0.s8 %v2791
    %v2793 = vlaneseq
    %v2794 = vshrl.u32 %v2793, 7
    %v2795 = vsub.s32 %v2792, %v2794
    %v2796 = vrot.slane %v2782, %v2795
    %v2797 = vcombine.high %v2789, %v2789
    %v2798 = vcombine.high %v2128, %v2128
    %v2800 = vunpack.c.l.s4 1983009808
    %v2801 = vunpack.c.0.s8 %v2800
    %v2802 = vlaneseq
    %v2803 = vshrl.u32 %v2802, 7
    %v2804 = vsub.s32 %v2801, %v2803
    %v2805 = vrot.slane %v2128, %v2804
    %v2807 = vunpack.c.l.s4 1983009808
    %v2808 = vunpack.c.0.s8 %v2807
    %v2809 = vlaneseq
    %v2810 = vshrl.u32 %v2809, 7
    %v2811 = vsub.s32 %v2808, %v2810
    %v2812 = vrot.slane %v2798, %v2811
    %v2813 = vcombine.high %v2805, %v2805
    %v2814 = vcombine.high %v2812, %v2812
    %v2815 = vcombine.high %v2129, %v2129
    %v2817 = vunpack.c.l.s4 1983009808
    %v2818 = vunpack.c.0.s8 %v2817
    %v2819 = vlaneseq
    %v2820 = vshrl.u32 %v2819, 7
    %v2821 = vsub.s32 %v2818, %v2820
    %v2822 = vrot.slane %v2129, %v2821
    %v2824 = vunpack.c.l.s4 1983009808
    %v2825 = vunpack.c.0.s8 %v2824
    %v2826 = vlaneseq
    %v2827 = vshrl.u32 %v2826, 7
    %v2828 = vsub.s32 %v2825, %v2827
    %v2829 = vrot.slane %v2815, %v2828
    %v2830 = vcombine.high %v2822, %v2822
    %v2831 = vcombine.high %v2130, %v2130
    %v2833 = vunpack.c.l.s4 1983009808
    %v2834 = vunpack.c.0.s8 %v2833
    %v2835 = vlaneseq
    %v2836 = vshrl.u32 %v2835, 7
    %v2837 = vsub.s32 %v2834, %v2836
    %v2838 = vrot.slane %v2130, %v2837
    %v2840 = vunpack.c.l.s4 1983009808
    %v2841 = vunpack.c.0.s8 %v2840
    %v2842 = vlaneseq
    %v2843 = vshrl.u32 %v2842, 7
    %v2844 = vsub.s32 %v2841, %v2843
    %v2845 = vrot.slane %v2831, %v2844
    %v2846 = vcombine.high %v2838, %v2838
    %v2847 = vcombine.high %v2845, %v2845
    %v2848 = vcombine.high %v2131, %v2131
    %v2850 = vunpack.c.l.s4 1983009808
    %v2851 = vunpack.c.0.s8 %v2850
    %v2852 = vlaneseq
    %v2853 = vshrl.u32 %v2852, 7
    %v2854 = vsub.s32 %v2851, %v2853
    %v2855 = vrot.slane %v2131, %v2854
    %v2857 = vunpack.c.l.s4 1983009808
    %v2858 = vunpack.c.0.s8 %v2857
    %v2859 = vlaneseq
    %v2860 = vshrl.u32 %v2859, 7
    %v2861 = vsub.s32 %v2858, %v2860
    %v2862 = vrot.slane %v2848, %v2861
    %v2863 = vcombine.high %v2855, %v2855
    %v2864 = vcombine.high %v2132, %v2132
    %v2866 = vunpack.c.l.s4 1983009808
    %v2867 = vunpack.c.0.s8 %v2866
    %v2868 = vlaneseq
    %v2869 = vshrl.u32 %v2868, 7
    %v2870 = vsub.s32 %v2867, %v2869
    %v2871 = vrot.slane %v2132, %v2870
    %v2873 = vunpack.c.l.s4 1983009808
    %v2874 = vunpack.c.0.s8 %v2873
    %v2875 = vlaneseq
    %v2876 = vshrl.u32 %v2875, 7
    %v2877 = vsub.s32 %v2874, %v2876
    %v2878 = vrot.slane %v2864, %v2877
    %v2879 = vcombine.high %v2871, %v2871
    %v2880 = vcombine.high %v2878, %v2878
    %v2881 = vcombine.high %v2133, %v2133
    %v2883 = vunpack.c.l.s4 1983009808
    %v2884 = vunpack.c.0.s8 %v2883
    %v2885 = vlaneseq
    %v2886 = vshrl.u32 %v2885, 7
    %v2887 = vsub.s32 %v2884, %v2886
    %v2888 = vrot.slane %v2133, %v2887
    %v2890 = vunpack.c.l.s4 1983009808
    %v2891 = vunpack.c.0.s8 %v2890
    %v2892 = vlaneseq
    %v2893 = vshrl.u32 %v2892, 7
    %v2894 = vsub.s32 %v2891, %v2893
    %v2895 = vrot.slane %v2881, %v2894
    %v2896 = vcombine.high %v2888, %v2888
    %v2897 = vcombine.high %v2134, %v2134
    %v2899 = vunpack.c.l.s4 1983009808
    %v2900 = vunpack.c.0.s8 %v2899
    %v2901 = vlaneseq
    %v2902 = vshrl.u32 %v2901, 7
    %v2903 = vsub.s32 %v2900, %v2902
    %v2904 = vrot.slane %v2134, %v2903
    %v2906 = vunpack.c.l.s4 1983009808
    %v2907 = vunpack.c.0.s8 %v2906
    %v2908 = vlaneseq
    %v2909 = vshrl.u32 %v2908, 7
    %v2910 = vsub.s32 %v2907, %v2909
    %v2911 = vrot.slane %v2897, %v2910
    %v2912 = vcombine.high %v2904, %v2904
    %v2913 = vcombine.high %v2911, %v2911
    %v2914 = vcombine.high %v2135, %v2135
    %v2916 = vunpack.c.l.s4 1983009808
    %v2917 = vunpack.c.0.s8 %v2916
    %v2918 = vlaneseq
    %v2919 = vshrl.u32 %v2918, 7
    %v2920 = vsub.s32 %v2917, %v2919
    %v2921 = vrot.slane %v2135, %v2920
    %v2923 = vunpack.c.l.s4 1983009808
    %v2924 = vunpack.c.0.s8 %v2923
    %v2925 = vlaneseq
    %v2926 = vshrl.u32 %v2925, 7
    %v2927 = vsub.s32 %v2924, %v2926
    %v2928 = vrot.slane %v2914, %v2927
    %v2929 = vcombine.high %v2921, %v2921
    %v2930 = vcombine.high %v2136, %v2136
    %v2932 = vunpack.c.l.s4 1983009808
    %v2933 = vunpack.c.0.s8 %v2932
    %v2934 = vlaneseq
    %v2935 = vshrl.u32 %v2934, 7
    %v2936 = vsub.s32 %v2933, %v2935
    %v2937 = vrot.slane %v2136, %v2936
    %v2939 = vunpack.c.l.s4 1983009808
    %v2940 = vunpack.c.0.s8 %v2939
    %v2941 = vlaneseq
    %v2942 = vshrl.u32 %v2941, 7
    %v2943 = vsub.s32 %v2940, %v2942
    %v2944 = vrot.slane %v2930, %v2943
    %v2945 = vcombine.high %v2937, %v2937
    %v2946 = vcombine.high %v2944, %v2944
    %v2947 = vcombine.high %v2137, %v2137
    %v2949 = vunpack.c.l.s4 1983009808
    %v2950 = vunpack.c.0.s8 %v2949
    %v2951 = vlaneseq
    %v2952 = vshrl.u32 %v2951, 7
    %v2953 = vsub.s32 %v2950, %v2952
    %v2954 = vrot.slane %v2137, %v2953
    %v2956 = vunpack.c.l.s4 1983009808
    %v2957 = vunpack.c.0.s8 %v2956
    %v2958 = vlaneseq
    %v2959 = vshrl.u32 %v2958, 7
    %v2960 = vsub.s32 %v2957, %v2959
    %v2961 = vrot.slane %v2947, %v2960
    %v2962 = vcombine.high %v2954, %v2954
    %v2963 = vcombine.high %v2138, %v2138
    %v2965 = vunpack.c.l.s4 1983009808
    %v2966 = vunpack.c.0.s8 %v2965
    %v2967 = vlaneseq
    %v2968 = vshrl.u32 %v2967, 7
    %v2969 = vsub.s32 %v2966, %v2968
    %v2970 = vrot.slane %v2138, %v2969
    %v2972 = vunpack.c.l.s4 1983009808
    %v2973 = vunpack.c.0.s8 %v2972
    %v2974 = vlaneseq
    %v2975 = vshrl.u32 %v2974, 7
    %v2976 = vsub.s32 %v2973, %v2975
    %v2977 = vrot.slane %v2963, %v2976
    %v2978 = vcombine.high %v2970, %v2970
    %v2979 = vcombine.high %v2977, %v2977
    %v2980 = vcombine.high %v2139, %v2139
    %v2982 = vunpack.c.l.s4 1983009808
    %v2983 = vunpack.c.0.s8 %v2982
    %v2984 = vlaneseq
    %v2985 = vshrl.u32 %v2984, 7
    %v2986 = vsub.s32 %v2983, %v2985
    %v2987 = vrot.slane %v2139, %v2986
    %v2989 = vunpack.c.l.s4 1983009808
    %v2990 = vunpack.c.0.s8 %v2989
    %v2991 = vlaneseq
    %v2992 = vshrl.u32 %v2991, 7
    %v2993 = vsub.s32 %v2990, %v2992
    %v2994 = vrot.slane %v2980, %v2993
    %v2995 = vcombine.high %v2987, %v2987
    %v2996 = vcombine.high %v2140, %v2140
    %v2998 = vunpack.c.l.s4 1983009808
    %v2999 = vunpack.c.0.s8 %v2998
    %v3000 = vlaneseq
    %v3001 = vshrl.u32 %v3000, 7
    %v3002 = vsub.s32 %v2999, %v3001
    %v3003 = vrot.slane %v2140, %v3002
    %v3005 = vunpack.c.l.s4 1983009808
    %v3006 = vunpack.c.0.s8 %v3005
    %v3007 = vlaneseq
    %v3008 = vshrl.u32 %v3007, 7
    %v3009 = vsub.s32 %v3006, %v3008
    %v3010 = vrot.slane %v2996, %v3009
    %v3011 = vcombine.high %v3003, %v3003
    %v3012 = vcombine.high %v3010, %v3010
    %v3013 = vcombine.high %v2141, %v2141
    %v3015 = vunpack.c.l.s4 1983009808
    %v3016 = vunpack.c.0.s8 %v3015
    %v3017 = vlaneseq
    %v3018 = vshrl.u32 %v3017, 7
    %v3019 = vsub.s32 %v3016, %v3018
    %v3020 = vrot.slane %v2141, %v3019
    %v3022 = vunpack.c.l.s4 1983009808
    %v3023 = vunpack.c.0.s8 %v3022
    %v3024 = vlaneseq
    %v3025 = vshrl.u32 %v3024, 7
    %v3026 = vsub.s32 %v3023, %v3025
    %v3027 = vrot.slane %v3013, %v3026
    %v3028 = vcombine.high %v3020, %v3020
    %v3029 = vcombine.high %v2142, %v2142
    %v3031 = vunpack.c.l.s4 1983009808
    %v3032 = vunpack.c.0.s8 %v3031
    %v3033 = vlaneseq
    %v3034 = vshrl.u32 %v3033, 7
    %v3035 = vsub.s32 %v3032, %v3034
    %v3036 = vrot.slane %v2142, %v3035
    %v3038 = vunpack.c.l.s4 1983009808
    %v3039 = vunpack.c.0.s8 %v3038
    %v3040 = vlaneseq
    %v3041 = vshrl.u32 %v3040, 7
    %v3042 = vsub.s32 %v3039, %v3041
    %v3043 = vrot.slane %v3029, %v3042
    %v3044 = vcombine.high %v3036, %v3036
    %v3045 = vcombine.high %v3043, %v3043
    %v3046 = vcombine.high %v2143, %v2143
    %v3048 = vunpack.c.l.s4 1983009808
    %v3049 = vunpack.c.0.s8 %v3048
    %v3050 = vlaneseq
    %v3051 = vshrl.u32 %v3050, 7
    %v3052 = vsub.s32 %v3049, %v3051
    %v3053 = vrot.slane %v2143, %v3052
    %v3055 = vunpack.c.l.s4 1983009808
    %v3056 = vunpack.c.0.s8 %v3055
    %v3057 = vlaneseq
    %v3058 = vshrl.u32 %v3057, 7
    %v3059 = vsub.s32 %v3056, %v3058
    %v3060 = vrot.slane %v3046, %v3059
    %v3061 = vcombine.high %v3053, %v3053
    %v3062 = vcombine.high %v2144, %v2144
    %v3064 = vunpack.c.l.s4 1983009808
    %v3065 = vunpack.c.0.s8 %v3064
    %v3066 = vlaneseq
    %v3067 = vshrl.u32 %v3066, 7
    %v3068 = vsub.s32 %v3065, %v3067
    %v3069 = vrot.slane %v2144, %v3068
    %v3071 = vunpack.c.l.s4 1983009808
    %v3072 = vunpack.c.0.s8 %v3071
    %v3073 = vlaneseq
    %v3074 = vshrl.u32 %v3073, 7
    %v3075 = vsub.s32 %v3072, %v3074
    %v3076 = vrot.slane %v3062, %v3075
    %v3077 = vcombine.high %v3069, %v3069
    %v3078 = vcombine.high %v3076, %v3076
    %v3079 = vcombine.high %v2145, %v2145
    %v3081 = vunpack.c.l.s4 1983009808
    %v3082 = vunpack.c.0.s8 %v3081
    %v3083 = vlaneseq
    %v3084 = vshrl.u32 %v3083, 7
    %v3085 = vsub.s32 %v3082, %v3084
    %v3086 = vrot.slane %v2145, %v3085
    %v3088 = vunpack.c.l.s4 1983009808
    %v3089 = vunpack.c.0.s8 %v3088
    %v3090 = vlaneseq
    %v3091 = vshrl.u32 %v3090, 7
    %v3092 = vsub.s32 %v3089, %v3091
    %v3093 = vrot.slane %v3079, %v3092
    %v3094 = vcombine.high %v3086, %v3086
    %v3095 = vcombine.high %v2146, %v2146
    %v3097 = vunpack.c.l.s4 1983009808
    %v3098 = vunpack.c.0.s8 %v3097
    %v3099 = vlaneseq
    %v3100 = vshrl.u32 %v3099, 7
    %v3101 = vsub.s32 %v3098, %v3100
    %v3102 = vrot.slane %v2146, %v3101
    %v3104 = vunpack.c.l.s4 1983009808
    %v3105 = vunpack.c.0.s8 %v3104
    %v3106 = vlaneseq
    %v3107 = vshrl.u32 %v3106, 7
    %v3108 = vsub.s32 %v3105, %v3107
    %v3109 = vrot.slane %v3095, %v3108
    %v3110 = vcombine.high %v3102, %v3102
    %v3111 = vcombine.high %v3109, %v3109
    %v3112 = vcombine.high %v2147, %v2147
    %v3114 = vunpack.c.l.s4 1983009808
    %v3115 = vunpack.c.0.s8 %v3114
    %v3116 = vlaneseq
    %v3117 = vshrl.u32 %v3116, 7
    %v3118 = vsub.s32 %v3115, %v3117
    %v3119 = vrot.slane %v2147, %v3118
    %v3121 = vunpack.c.l.s4 1983009808
    %v3122 = vunpack.c.0.s8 %v3121
    %v3123 = vlaneseq
    %v3124 = vshrl.u32 %v3123, 7
    %v3125 = vsub.s32 %v3122, %v3124
    %v3126 = vrot.slane %v3112, %v3125
    %v3127 = vcombine.high %v3119, %v3119
    %v3128 = vld [vmem:[%s1] sm:$0xff]
    %v3129 = vld [vmem:[%s1 + $0x8] sm:$0xff]
    %v3130 = vld [vmem:[%s1 + $0x10] sm:$0xff]
    %v3131 = vld [vmem:[%s1 + $0x18] sm:$0xff]
    %v3132 = vld [vmem:[%s1 + $0x20] sm:$0xf]
    %v3133 = vlaneseq
    %v3134 = vshrl.u32 %v3133, 7
    %v3135 = vsub.s32 0, %v3134
    %v3136 = vrot.slane %v89, %v3135
    %v3137 = vcombine.low %v2211, %v2219
    %v3138 = vcombine.low %v2218, %v2220
    %v3140 = vunpack.c.l.s4 1983009808
    %v3141 = vunpack.c.0.s8 %v3140
    %v3142 = vlaneseq
    %v3143 = vshrl.u32 %v3142, 7
    %v3144 = vsub.s32 %v3141, %v3143
    %v3145 = vrot.slane %v3137, %v3144
    %v3147 = vunpack.c.l.s4 1983009808
    %v3148 = vunpack.c.0.s8 %v3147
    %v3149 = vlaneseq
    %v3150 = vshrl.u32 %v3149, 7
    %v3151 = vsub.s32 %v3148, %v3150
    %v3152 = vrot.slane %v3138, %v3151
    %v3153 = vcombine.low %v3145, %v3152
    %v3154 = vcombine.low %v2228, %v2236
    %v3155 = vcombine.low %v2235, %v2244
    %v3157 = vunpack.c.l.s4 1983009808
    %v3158 = vunpack.c.0.s8 %v3157
    %v3159 = vlaneseq
    %v3160 = vshrl.u32 %v3159, 7
    %v3161 = vsub.s32 %v3158, %v3160
    %v3162 = vrot.slane %v3154, %v3161
    %v3164 = vunpack.c.l.s4 1983009808
    %v3165 = vunpack.c.0.s8 %v3164
    %v3166 = vlaneseq
    %v3167 = vshrl.u32 %v3166, 7
    %v3168 = vsub.s32 %v3165, %v3167
    %v3169 = vrot.slane %v3155, %v3168
    %v3170 = vcombine.low %v3162, %v3169
    %v3171 = vcombine.low %v2252, %v2251
    %v3172 = vcombine.low %v2253, %v2261
    %v3174 = vunpack.c.l.s4 1983009808
    %v3175 = vunpack.c.0.s8 %v3174
    %v3176 = vlaneseq
    %v3177 = vshrl.u32 %v3176, 7
    %v3178 = vsub.s32 %v3175, %v3177
    %v3179 = vrot.slane %v3171, %v3178
    %v3181 = vunpack.c.l.s4 1983009808
    %v3182 = vunpack.c.0.s8 %v3181
    %v3183 = vlaneseq
    %v3184 = vshrl.u32 %v3183, 7
    %v3185 = vsub.s32 %v3182, %v3184
    %v3186 = vrot.slane %v3172, %v3185
    %v3187 = vcombine.low %v3179, %v3186
    %v3188 = vcombine.low %v2269, %v2268
    %v3189 = vcombine.low %v2277, %v2285
    %v3191 = vunpack.c.l.s4 1983009808
    %v3192 = vunpack.c.0.s8 %v3191
    %v3193 = vlaneseq
    %v3194 = vshrl.u32 %v3193, 7
    %v3195 = vsub.s32 %v3192, %v3194
    %v3196 = vrot.slane %v3188, %v3195
    %v3198 = vunpack.c.l.s4 1983009808
    %v3199 = vunpack.c.0.s8 %v3198
    %v3200 = vlaneseq
    %v3201 = vshrl.u32 %v3200, 7
    %v3202 = vsub.s32 %v3199, %v3201
    %v3203 = vrot.slane %v3189, %v3202
    %v3204 = vcombine.low %v3196, %v3203
    %v3205 = vcombine.low %v2284, %v2286
    %v3206 = vcombine.low %v2294, %v2302
    %v3208 = vunpack.c.l.s4 1983009808
    %v3209 = vunpack.c.0.s8 %v3208
    %v3210 = vlaneseq
    %v3211 = vshrl.u32 %v3210, 7
    %v3212 = vsub.s32 %v3209, %v3211
    %v3213 = vrot.slane %v3205, %v3212
    %v3215 = vunpack.c.l.s4 1983009808
    %v3216 = vunpack.c.0.s8 %v3215
    %v3217 = vlaneseq
    %v3218 = vshrl.u32 %v3217, 7
    %v3219 = vsub.s32 %v3216, %v3218
    %v3220 = vrot.slane %v3206, %v3219
    %v3221 = vcombine.low %v3213, %v3220
    %v3222 = vcombine.low %v2301, %v2310
    %v3223 = vcombine.low %v2318, %v2317
    %v3225 = vunpack.c.l.s4 1983009808
    %v3226 = vunpack.c.0.s8 %v3225
    %v3227 = vlaneseq
    %v3228 = vshrl.u32 %v3227, 7
    %v3229 = vsub.s32 %v3226, %v3228
    %v3230 = vrot.slane %v3222, %v3229
    %v3232 = vunpack.c.l.s4 1983009808
    %v3233 = vunpack.c.0.s8 %v3232
    %v3234 = vlaneseq
    %v3235 = vshrl.u32 %v3234, 7
    %v3236 = vsub.s32 %v3233, %v3235
    %v3237 = vrot.slane %v3223, %v3236
    %v3238 = vcombine.low %v3230, %v3237
    %v3239 = vcombine.low %v2319, %v2327
    %v3240 = vcombine.low %v2335, %v2334
    %v3242 = vunpack.c.l.s4 1983009808
    %v3243 = vunpack.c.0.s8 %v3242
    %v3244 = vlaneseq
    %v3245 = vshrl.u32 %v3244, 7
    %v3246 = vsub.s32 %v3243, %v3245
    %v3247 = vrot.slane %v3239, %v3246
    %v3249 = vunpack.c.l.s4 1983009808
    %v3250 = vunpack.c.0.s8 %v3249
    %v3251 = vlaneseq
    %v3252 = vshrl.u32 %v3251, 7
    %v3253 = vsub.s32 %v3250, %v3252
    %v3254 = vrot.slane %v3240, %v3253
    %v3255 = vcombine.low %v3247, %v3254
    %v3256 = vcombine.low %v2343, %v2351
    %v3257 = vcombine.low %v2350, %v2352
    %v3259 = vunpack.c.l.s4 1983009808
    %v3260 = vunpack.c.0.s8 %v3259
    %v3261 = vlaneseq
    %v3262 = vshrl.u32 %v3261, 7
    %v3263 = vsub.s32 %v3260, %v3262
    %v3264 = vrot.slane %v3256, %v3263
    %v3266 = vunpack.c.l.s4 1983009808
    %v3267 = vunpack.c.0.s8 %v3266
    %v3268 = vlaneseq
    %v3269 = vshrl.u32 %v3268, 7
    %v3270 = vsub.s32 %v3267, %v3269
    %v3271 = vrot.slane %v3257, %v3270
    %v3272 = vcombine.low %v3264, %v3271
    %v3273 = vcombine.low %v2360, %v2368
    %v3274 = vcombine.low %v2367, %v2376
    %v3276 = vunpack.c.l.s4 1983009808
    %v3277 = vunpack.c.0.s8 %v3276
    %v3278 = vlaneseq
    %v3279 = vshrl.u32 %v3278, 7
    %v3280 = vsub.s32 %v3277, %v3279
    %v3281 = vrot.slane %v3273, %v3280
    %v3283 = vunpack.c.l.s4 1983009808
    %v3284 = vunpack.c.0.s8 %v3283
    %v3285 = vlaneseq
    %v3286 = vshrl.u32 %v3285, 7
    %v3287 = vsub.s32 %v3284, %v3286
    %v3288 = vrot.slane %v3274, %v3287
    %v3289 = vcombine.low %v3281, %v3288
    %v3290 = vcombine.low %v2384, %v2383
    %v3291 = vcombine.low %v2385, %v2393
    %v3293 = vunpack.c.l.s4 1983009808
    %v3294 = vunpack.c.0.s8 %v3293
    %v3295 = vlaneseq
    %v3296 = vshrl.u32 %v3295, 7
    %v3297 = vsub.s32 %v3294, %v3296
    %v3298 = vrot.slane %v3290, %v3297
    %v3300 = vunpack.c.l.s4 1983009808
    %v3301 = vunpack.c.0.s8 %v3300
    %v3302 = vlaneseq
    %v3303 = vshrl.u32 %v3302, 7
    %v3304 = vsub.s32 %v3301, %v3303
    %v3305 = vrot.slane %v3291, %v3304
    %v3306 = vcombine.low %v3298, %v3305
    %v3307 = vcombine.low %v2401, %v2400
    %v3308 = vcombine.low %v2409, %v2417
    %v3310 = vunpack.c.l.s4 1983009808
    %v3311 = vunpack.c.0.s8 %v3310
    %v3312 = vlaneseq
    %v3313 = vshrl.u32 %v3312, 7
    %v3314 = vsub.s32 %v3311, %v3313
    %v3315 = vrot.slane %v3307, %v3314
    %v3317 = vunpack.c.l.s4 1983009808
    %v3318 = vunpack.c.0.s8 %v3317
    %v3319 = vlaneseq
    %v3320 = vshrl.u32 %v3319, 7
    %v3321 = vsub.s32 %v3318, %v3320
    %v3322 = vrot.slane %v3308, %v3321
    %v3323 = vcombine.low %v3315, %v3322
    %v3324 = vcombine.low %v2416, %v2418
    %v3325 = vcombine.low %v2426, %v2434
    %v3327 = vunpack.c.l.s4 1983009808
    %v3328 = vunpack.c.0.s8 %v3327
    %v3329 = vlaneseq
    %v3330 = vshrl.u32 %v3329, 7
    %v3331 = vsub.s32 %v3328, %v3330
    %v3332 = vrot.slane %v3324, %v3331
    %v3334 = vunpack.c.l.s4 1983009808
    %v3335 = vunpack.c.0.s8 %v3334
    %v3336 = vlaneseq
    %v3337 = vshrl.u32 %v3336, 7
    %v3338 = vsub.s32 %v3335, %v3337
    %v3339 = vrot.slane %v3325, %v3338
    %v3340 = vcombine.low %v3332, %v3339
    %v3341 = vcombine.low %v2433, %v2442
    %v3342 = vcombine.low %v2450, %v2449
    %v3344 = vunpack.c.l.s4 1983009808
    %v3345 = vunpack.c.0.s8 %v3344
    %v3346 = vlaneseq
    %v3347 = vshrl.u32 %v3346, 7
    %v3348 = vsub.s32 %v3345, %v3347
    %v3349 = vrot.slane %v3341, %v3348
    %v3351 = vunpack.c.l.s4 1983009808
    %v3352 = vunpack.c.0.s8 %v3351
    %v3353 = vlaneseq
    %v3354 = vshrl.u32 %v3353, 7
    %v3355 = vsub.s32 %v3352, %v3354
    %v3356 = vrot.slane %v3342, %v3355
    %v3357 = vcombine.low %v3349, %v3356
    %v3358 = vcombine.low %v2451, %v2459
    %v3359 = vcombine.low %v2467, %v2466
    %v3361 = vunpack.c.l.s4 1983009808
    %v3362 = vunpack.c.0.s8 %v3361
    %v3363 = vlaneseq
    %v3364 = vshrl.u32 %v3363, 7
    %v3365 = vsub.s32 %v3362, %v3364
    %v3366 = vrot.slane %v3358, %v3365
    %v3368 = vunpack.c.l.s4 1983009808
    %v3369 = vunpack.c.0.s8 %v3368
    %v3370 = vlaneseq
    %v3371 = vshrl.u32 %v3370, 7
    %v3372 = vsub.s32 %v3369, %v3371
    %v3373 = vrot.slane %v3359, %v3372
    %v3374 = vcombine.low %v3366, %v3373
    %v3375 = vcombine.low %v2475, %v2483
    %v3376 = vcombine.low %v2482, %v2484
    %v3378 = vunpack.c.l.s4 1983009808
    %v3379 = vunpack.c.0.s8 %v3378
    %v3380 = vlaneseq
    %v3381 = vshrl.u32 %v3380, 7
    %v3382 = vsub.s32 %v3379, %v3381
    %v3383 = vrot.slane %v3375, %v3382
    %v3385 = vunpack.c.l.s4 1983009808
    %v3386 = vunpack.c.0.s8 %v3385
    %v3387 = vlaneseq
    %v3388 = vshrl.u32 %v3387, 7
    %v3389 = vsub.s32 %v3386, %v3388
    %v3390 = vrot.slane %v3376, %v3389
    %v3391 = vcombine.low %v3383, %v3390
    %v3392 = vcombine.low %v2492, %v2500
    %v3393 = vcombine.low %v2499, %v2508
    %v3395 = vunpack.c.l.s4 1983009808
    %v3396 = vunpack.c.0.s8 %v3395
    %v3397 = vlaneseq
    %v3398 = vshrl.u32 %v3397, 7
    %v3399 = vsub.s32 %v3396, %v3398
    %v3400 = vrot.slane %v3392, %v3399
    %v3402 = vunpack.c.l.s4 1983009808
    %v3403 = vunpack.c.0.s8 %v3402
    %v3404 = vlaneseq
    %v3405 = vshrl.u32 %v3404, 7
    %v3406 = vsub.s32 %v3403, %v3405
    %v3407 = vrot.slane %v3393, %v3406
    %v3408 = vcombine.low %v3400, %v3407
    %v3409 = vcombine.low %v2516, %v2515
    %v3410 = vcombine.low %v2517, %v2525
    %v3412 = vunpack.c.l.s4 1983009808
    %v3413 = vunpack.c.0.s8 %v3412
    %v3414 = vlaneseq
    %v3415 = vshrl.u32 %v3414, 7
    %v3416 = vsub.s32 %v3413, %v3415
    %v3417 = vrot.slane %v3409, %v3416
    %v3419 = vunpack.c.l.s4 1983009808
    %v3420 = vunpack.c.0.s8 %v3419
    %v3421 = vlaneseq
    %v3422 = vshrl.u32 %v3421, 7
    %v3423 = vsub.s32 %v3420, %v3422
    %v3424 = vrot.slane %v3410, %v3423
    %v3425 = vcombine.low %v3417, %v3424
    %v3426 = vcombine.low %v2533, %v2532
    %v3427 = vcombine.low %v2541, %v2549
    %v3429 = vunpack.c.l.s4 1983009808
    %v3430 = vunpack.c.0.s8 %v3429
    %v3431 = vlaneseq
    %v3432 = vshrl.u32 %v3431, 7
    %v3433 = vsub.s32 %v3430, %v3432
    %v3434 = vrot.slane %v3426, %v3433
    %v3436 = vunpack.c.l.s4 1983009808
    %v3437 = vunpack.c.0.s8 %v3436
    %v3438 = vlaneseq
    %v3439 = vshrl.u32 %v3438, 7
    %v3440 = vsub.s32 %v3437, %v3439
    %v3441 = vrot.slane %v3427, %v3440
    %v3442 = vcombine.low %v3434, %v3441
    %v3443 = vcombine.low %v2548, %v2550
    %v3444 = vcombine.low %v2558, %v2566
    %v3446 = vunpack.c.l.s4 1983009808
    %v3447 = vunpack.c.0.s8 %v3446
    %v3448 = vlaneseq
    %v3449 = vshrl.u32 %v3448, 7
    %v3450 = vsub.s32 %v3447, %v3449
    %v3451 = vrot.slane %v3443, %v3450
    %v3453 = vunpack.c.l.s4 1983009808
    %v3454 = vunpack.c.0.s8 %v3453
    %v3455 = vlaneseq
    %v3456 = vshrl.u32 %v3455, 7
    %v3457 = vsub.s32 %v3454, %v3456
    %v3458 = vrot.slane %v3444, %v3457
    %v3459 = vcombine.low %v3451, %v3458
    %v3460 = vcombine.low %v2565, %v2574
    %v3461 = vcombine.low %v2582, %v2581
    %v3463 = vunpack.c.l.s4 1983009808
    %v3464 = vunpack.c.0.s8 %v3463
    %v3465 = vlaneseq
    %v3466 = vshrl.u32 %v3465, 7
    %v3467 = vsub.s32 %v3464, %v3466
    %v3468 = vrot.slane %v3460, %v3467
    %v3470 = vunpack.c.l.s4 1983009808
    %v3471 = vunpack.c.0.s8 %v3470
    %v3472 = vlaneseq
    %v3473 = vshrl.u32 %v3472, 7
    %v3474 = vsub.s32 %v3471, %v3473
    %v3475 = vrot.slane %v3461, %v3474
    %v3476 = vcombine.low %v3468, %v3475
    %v3477 = vcombine.low %v2583, %v2591
    %v3478 = vcombine.low %v2599, %v2598
    %v3480 = vunpack.c.l.s4 1983009808
    %v3481 = vunpack.c.0.s8 %v3480
    %v3482 = vlaneseq
    %v3483 = vshrl.u32 %v3482, 7
    %v3484 = vsub.s32 %v3481, %v3483
    %v3485 = vrot.slane %v3477, %v3484
    %v3487 = vunpack.c.l.s4 1983009808
    %v3488 = vunpack.c.0.s8 %v3487
    %v3489 = vlaneseq
    %v3490 = vshrl.u32 %v3489, 7
    %v3491 = vsub.s32 %v3488, %v3490
    %v3492 = vrot.slane %v3478, %v3491
    %v3493 = vcombine.low %v3485, %v3492
    %v3494 = vcombine.low %v2607, %v2615
    %v3495 = vcombine.low %v2614, %v2616
    %v3497 = vunpack.c.l.s4 1983009808
    %v3498 = vunpack.c.0.s8 %v3497
    %v3499 = vlaneseq
    %v3500 = vshrl.u32 %v3499, 7
    %v3501 = vsub.s32 %v3498, %v3500
    %v3502 = vrot.slane %v3494, %v3501
    %v3504 = vunpack.c.l.s4 1983009808
    %v3505 = vunpack.c.0.s8 %v3504
    %v3506 = vlaneseq
    %v3507 = vshrl.u32 %v3506, 7
    %v3508 = vsub.s32 %v3505, %v3507
    %v3509 = vrot.slane %v3495, %v3508
    %v3510 = vcombine.low %v3502, %v3509
    %v3511 = vcombine.low %v2624, %v2632
    %v3512 = vcombine.low %v2631, %v2640
    %v3514 = vunpack.c.l.s4 1983009808
    %v3515 = vunpack.c.0.s8 %v3514
    %v3516 = vlaneseq
    %v3517 = vshrl.u32 %v3516, 7
    %v3518 = vsub.s32 %v3515, %v3517
    %v3519 = vrot.slane %v3511, %v3518
    %v3521 = vunpack.c.l.s4 1983009808
    %v3522 = vunpack.c.0.s8 %v3521
    %v3523 = vlaneseq
    %v3524 = vshrl.u32 %v3523, 7
    %v3525 = vsub.s32 %v3522, %v3524
    %v3526 = vrot.slane %v3512, %v3525
    %v3527 = vcombine.low %v3519, %v3526
    %v3528 = vcombine.low %v2648, %v2647
    %v3529 = vcombine.low %v2649, %v2657
    %v3531 = vunpack.c.l.s4 1983009808
    %v3532 = vunpack.c.0.s8 %v3531
    %v3533 = vlaneseq
    %v3534 = vshrl.u32 %v3533, 7
    %v3535 = vsub.s32 %v3532, %v3534
    %v3536 = vrot.slane %v3528, %v3535
    %v3538 = vunpack.c.l.s4 1983009808
    %v3539 = vunpack.c.0.s8 %v3538
    %v3540 = vlaneseq
    %v3541 = vshrl.u32 %v3540, 7
    %v3542 = vsub.s32 %v3539, %v3541
    %v3543 = vrot.slane %v3529, %v3542
    %v3544 = vcombine.low %v3536, %v3543
    %v3545 = vcombine.low %v2665, %v2664
    %v3546 = vcombine.low %v2673, %v2681
    %v3548 = vunpack.c.l.s4 1983009808
    %v3549 = vunpack.c.0.s8 %v3548
    %v3550 = vlaneseq
    %v3551 = vshrl.u32 %v3550, 7
    %v3552 = vsub.s32 %v3549, %v3551
    %v3553 = vrot.slane %v3545, %v3552
    %v3555 = vunpack.c.l.s4 1983009808
    %v3556 = vunpack.c.0.s8 %v3555
    %v3557 = vlaneseq
    %v3558 = vshrl.u32 %v3557, 7
    %v3559 = vsub.s32 %v3556, %v3558
    %v3560 = vrot.slane %v3546, %v3559
    %v3561 = vcombine.low %v3553, %v3560
    %v3562 = vcombine.low %v2680, %v2682
    %v3563 = vcombine.low %v2690, %v2698
    %v3565 = vunpack.c.l.s4 1983009808
    %v3566 = vunpack.c.0.s8 %v3565
    %v3567 = vlaneseq
    %v3568 = vshrl.u32 %v3567, 7
    %v3569 = vsub.s32 %v3566, %v3568
    %v3570 = vrot.slane %v3562, %v3569
    %v3572 = vunpack.c.l.s4 1983009808
    %v3573 = vunpack.c.0.s8 %v3572
    %v3574 = vlaneseq
    %v3575 = vshrl.u32 %v3574, 7
    %v3576 = vsub.s32 %v3573, %v3575
    %v3577 = vrot.slane %v3563, %v3576
    %v3578 = vcombine.low %v3570, %v3577
    %v3579 = vcombine.low %v2697, %v2706
    %v3580 = vcombine.low %v2714, %v2713
    %v3582 = vunpack.c.l.s4 1983009808
    %v3583 = vunpack.c.0.s8 %v3582
    %v3584 = vlaneseq
    %v3585 = vshrl.u32 %v3584, 7
    %v3586 = vsub.s32 %v3583, %v3585
    %v3587 = vrot.slane %v3579, %v3586
    %v3589 = vunpack.c.l.s4 1983009808
    %v3590 = vunpack.c.0.s8 %v3589
    %v3591 = vlaneseq
    %v3592 = vshrl.u32 %v3591, 7
    %v3593 = vsub.s32 %v3590, %v3592
    %v3594 = vrot.slane %v3580, %v3593
    %v3595 = vcombine.low %v3587, %v3594
    %v3596 = vcombine.low %v2715, %v2723
    %v3597 = vcombine.low %v2731, %v2730
    %v3599 = vunpack.c.l.s4 1983009808
    %v3600 = vunpack.c.0.s8 %v3599
    %v3601 = vlaneseq
    %v3602 = vshrl.u32 %v3601, 7
    %v3603 = vsub.s32 %v3600, %v3602
    %v3604 = vrot.slane %v3596, %v3603
    %v3606 = vunpack.c.l.s4 1983009808
    %v3607 = vunpack.c.0.s8 %v3606
    %v3608 = vlaneseq
    %v3609 = vshrl.u32 %v3608, 7
    %v3610 = vsub.s32 %v3607, %v3609
    %v3611 = vrot.slane %v3597, %v3610
    %v3612 = vcombine.low %v3604, %v3611
    %v3613 = vcombine.low %v2739, %v2747
    %v3614 = vcombine.low %v2746, %v2748
    %v3616 = vunpack.c.l.s4 1983009808
    %v3617 = vunpack.c.0.s8 %v3616
    %v3618 = vlaneseq
    %v3619 = vshrl.u32 %v3618, 7
    %v3620 = vsub.s32 %v3617, %v3619
    %v3621 = vrot.slane %v3613, %v3620
    %v3623 = vunpack.c.l.s4 1983009808
    %v3624 = vunpack.c.0.s8 %v3623
    %v3625 = vlaneseq
    %v3626 = vshrl.u32 %v3625, 7
    %v3627 = vsub.s32 %v3624, %v3626
    %v3628 = vrot.slane %v3614, %v3627
    %v3629 = vcombine.low %v3621, %v3628
    %v3630 = vcombine.low %v2756, %v2764
    %v3631 = vcombine.low %v2763, %v2772
    %v3633 = vunpack.c.l.s4 1983009808
    %v3634 = vunpack.c.0.s8 %v3633
    %v3635 = vlaneseq
    %v3636 = vshrl.u32 %v3635, 7
    %v3637 = vsub.s32 %v3634, %v3636
    %v3638 = vrot.slane %v3630, %v3637
    %v3640 = vunpack.c.l.s4 1983009808
    %v3641 = vunpack.c.0.s8 %v3640
    %v3642 = vlaneseq
    %v3643 = vshrl.u32 %v3642, 7
    %v3644 = vsub.s32 %v3641, %v3643
    %v3645 = vrot.slane %v3631, %v3644
    %v3646 = vcombine.low %v3638, %v3645
    %v3647 = vcombine.low %v2780, %v2779
    %v3648 = vcombine.low %v2781, %v2789
    %v3650 = vunpack.c.l.s4 1983009808
    %v3651 = vunpack.c.0.s8 %v3650
    %v3652 = vlaneseq
    %v3653 = vshrl.u32 %v3652, 7
    %v3654 = vsub.s32 %v3651, %v3653
    %v3655 = vrot.slane %v3647, %v3654
    %v3657 = vunpack.c.l.s4 1983009808
    %v3658 = vunpack.c.0.s8 %v3657
    %v3659 = vlaneseq
    %v3660 = vshrl.u32 %v3659, 7
    %v3661 = vsub.s32 %v3658, %v3660
    %v3662 = vrot.slane %v3648, %v3661
    %v3663 = vcombine.low %v3655, %v3662
    %v3664 = vcombine.low %v2797, %v2796
    %v3665 = vcombine.low %v2805, %v2813
    %v3667 = vunpack.c.l.s4 1983009808
    %v3668 = vunpack.c.0.s8 %v3667
    %v3669 = vlaneseq
    %v3670 = vshrl.u32 %v3669, 7
    %v3671 = vsub.s32 %v3668, %v3670
    %v3672 = vrot.slane %v3664, %v3671
    %v3674 = vunpack.c.l.s4 1983009808
    %v3675 = vunpack.c.0.s8 %v3674
    %v3676 = vlaneseq
    %v3677 = vshrl.u32 %v3676, 7
    %v3678 = vsub.s32 %v3675, %v3677
    %v3679 = vrot.slane %v3665, %v3678
    %v3680 = vcombine.low %v3672, %v3679
    %v3681 = vcombine.low %v2812, %v2814
    %v3682 = vcombine.low %v2822, %v2830
    %v3684 = vunpack.c.l.s4 1983009808
    %v3685 = vunpack.c.0.s8 %v3684
    %v3686 = vlaneseq
    %v3687 = vshrl.u32 %v3686, 7
    %v3688 = vsub.s32 %v3685, %v3687
    %v3689 = vrot.slane %v3681, %v3688
    %v3691 = vunpack.c.l.s4 1983009808
    %v3692 = vunpack.c.0.s8 %v3691
    %v3693 = vlaneseq
    %v3694 = vshrl.u32 %v3693, 7
    %v3695 = vsub.s32 %v3692, %v3694
    %v3696 = vrot.slane %v3682, %v3695
    %v3697 = vcombine.low %v3689, %v3696
    %v3698 = vcombine.low %v2829, %v2838
    %v3699 = vcombine.low %v2846, %v2845
    %v3701 = vunpack.c.l.s4 1983009808
    %v3702 = vunpack.c.0.s8 %v3701
    %v3703 = vlaneseq
    %v3704 = vshrl.u32 %v3703, 7
    %v3705 = vsub.s32 %v3702, %v3704
    %v3706 = vrot.slane %v3698, %v3705
    %v3708 = vunpack.c.l.s4 1983009808
    %v3709 = vunpack.c.0.s8 %v3708
    %v3710 = vlaneseq
    %v3711 = vshrl.u32 %v3710, 7
    %v3712 = vsub.s32 %v3709, %v3711
    %v3713 = vrot.slane %v3699, %v3712
    %v3714 = vcombine.low %v3706, %v3713
    %v3715 = vcombine.low %v2847, %v2855
    %v3716 = vcombine.low %v2863, %v2862
    %v3718 = vunpack.c.l.s4 1983009808
    %v3719 = vunpack.c.0.s8 %v3718
    %v3720 = vlaneseq
    %v3721 = vshrl.u32 %v3720, 7
    %v3722 = vsub.s32 %v3719, %v3721
    %v3723 = vrot.slane %v3715, %v3722
    %v3725 = vunpack.c.l.s4 1983009808
    %v3726 = vunpack.c.0.s8 %v3725
    %v3727 = vlaneseq
    %v3728 = vshrl.u32 %v3727, 7
    %v3729 = vsub.s32 %v3726, %v3728
    %v3730 = vrot.slane %v3716, %v3729
    %v3731 = vcombine.low %v3723, %v3730
    %v3732 = vcombine.low %v2871, %v2879
    %v3733 = vcombine.low %v2878, %v2880
    %v3735 = vunpack.c.l.s4 1983009808
    %v3736 = vunpack.c.0.s8 %v3735
    %v3737 = vlaneseq
    %v3738 = vshrl.u32 %v3737, 7
    %v3739 = vsub.s32 %v3736, %v3738
    %v3740 = vrot.slane %v3732, %v3739
    %v3742 = vunpack.c.l.s4 1983009808
    %v3743 = vunpack.c.0.s8 %v3742
    %v3744 = vlaneseq
    %v3745 = vshrl.u32 %v3744, 7
    %v3746 = vsub.s32 %v3743, %v3745
    %v3747 = vrot.slane %v3733, %v3746
    %v3748 = vcombine.low %v3740, %v3747
    %v3749 = vcombine.low %v2888, %v2896
    %v3750 = vcombine.low %v2895, %v2904
    %v3752 = vunpack.c.l.s4 1983009808
    %v3753 = vunpack.c.0.s8 %v3752
    %v3754 = vlaneseq
    %v3755 = vshrl.u32 %v3754, 7
    %v3756 = vsub.s32 %v3753, %v3755
    %v3757 = vrot.slane %v3749, %v3756
    %v3759 = vunpack.c.l.s4 1983009808
    %v3760 = vunpack.c.0.s8 %v3759
    %v3761 = vlaneseq
    %v3762 = vshrl.u32 %v3761, 7
    %v3763 = vsub.s32 %v3760, %v3762
    %v3764 = vrot.slane %v3750, %v3763
    %v3765 = vcombine.low %v3757, %v3764
    %v3766 = vcombine.low %v2912, %v2911
    %v3767 = vcombine.low %v2913, %v2921
    %v3769 = vunpack.c.l.s4 1983009808
    %v3770 = vunpack.c.0.s8 %v3769
    %v3771 = vlaneseq
    %v3772 = vshrl.u32 %v3771, 7
    %v3773 = vsub.s32 %v3770, %v3772
    %v3774 = vrot.slane %v3766, %v3773
    %v3776 = vunpack.c.l.s4 1983009808
    %v3777 = vunpack.c.0.s8 %v3776
    %v3778 = vlaneseq
    %v3779 = vshrl.u32 %v3778, 7
    %v3780 = vsub.s32 %v3777, %v3779
    %v3781 = vrot.slane %v3767, %v3780
    %v3782 = vcombine.low %v3774, %v3781
    %v3783 = vcombine.low %v2929, %v2928
    %v3784 = vcombine.low %v2937, %v2945
    %v3786 = vunpack.c.l.s4 1983009808
    %v3787 = vunpack.c.0.s8 %v3786
    %v3788 = vlaneseq
    %v3789 = vshrl.u32 %v3788, 7
    %v3790 = vsub.s32 %v3787, %v3789
    %v3791 = vrot.slane %v3783, %v3790
    %v3793 = vunpack.c.l.s4 1983009808
    %v3794 = vunpack.c.0.s8 %v3793
    %v3795 = vlaneseq
    %v3796 = vshrl.u32 %v3795, 7
    %v3797 = vsub.s32 %v3794, %v3796
    %v3798 = vrot.slane %v3784, %v3797
    %v3799 = vcombine.low %v3791, %v3798
    %v3800 = vcombine.low %v2944, %v2946
    %v3801 = vcombine.low %v2954, %v2962
    %v3803 = vunpack.c.l.s4 1983009808
    %v3804 = vunpack.c.0.s8 %v3803
    %v3805 = vlaneseq
    %v3806 = vshrl.u32 %v3805, 7
    %v3807 = vsub.s32 %v3804, %v3806
    %v3808 = vrot.slane %v3800, %v3807
    %v3810 = vunpack.c.l.s4 1983009808
    %v3811 = vunpack.c.0.s8 %v3810
    %v3812 = vlaneseq
    %v3813 = vshrl.u32 %v3812, 7
    %v3814 = vsub.s32 %v3811, %v3813
    %v3815 = vrot.slane %v3801, %v3814
    %v3816 = vcombine.low %v3808, %v3815
    %v3817 = vcombine.low %v2961, %v2970
    %v3818 = vcombine.low %v2978, %v2977
    %v3820 = vunpack.c.l.s4 1983009808
    %v3821 = vunpack.c.0.s8 %v3820
    %v3822 = vlaneseq
    %v3823 = vshrl.u32 %v3822, 7
    %v3824 = vsub.s32 %v3821, %v3823
    %v3825 = vrot.slane %v3817, %v3824
    %v3827 = vunpack.c.l.s4 1983009808
    %v3828 = vunpack.c.0.s8 %v3827
    %v3829 = vlaneseq
    %v3830 = vshrl.u32 %v3829, 7
    %v3831 = vsub.s32 %v3828, %v3830
    %v3832 = vrot.slane %v3818, %v3831
    %v3833 = vcombine.low %v3825, %v3832
    %v3834 = vcombine.low %v2979, %v2987
    %v3835 = vcombine.low %v2995, %v2994
    %v3837 = vunpack.c.l.s4 1983009808
    %v3838 = vunpack.c.0.s8 %v3837
    %v3839 = vlaneseq
    %v3840 = vshrl.u32 %v3839, 7
    %v3841 = vsub.s32 %v3838, %v3840
    %v3842 = vrot.slane %v3834, %v3841
    %v3844 = vunpack.c.l.s4 1983009808
    %v3845 = vunpack.c.0.s8 %v3844
    %v3846 = vlaneseq
    %v3847 = vshrl.u32 %v3846, 7
    %v3848 = vsub.s32 %v3845, %v3847
    %v3849 = vrot.slane %v3835, %v3848
    %v3850 = vcombine.low %v3842, %v3849
    %v3851 = vcombine.low %v3003, %v3011
    %v3852 = vcombine.low %v3010, %v3012
    %v3854 = vunpack.c.l.s4 1983009808
    %v3855 = vunpack.c.0.s8 %v3854
    %v3856 = vlaneseq
    %v3857 = vshrl.u32 %v3856, 7
    %v3858 = vsub.s32 %v3855, %v3857
    %v3859 = vrot.slane %v3851, %v3858
    %v3861 = vunpack.c.l.s4 1983009808
    %v3862 = vunpack.c.0.s8 %v3861
    %v3863 = vlaneseq
    %v3864 = vshrl.u32 %v3863, 7
    %v3865 = vsub.s32 %v3862, %v3864
    %v3866 = vrot.slane %v3852, %v3865
    %v3867 = vcombine.low %v3859, %v3866
    %v3868 = vcombine.low %v3020, %v3028
    %v3869 = vcombine.low %v3027, %v3036
    %v3871 = vunpack.c.l.s4 1983009808
    %v3872 = vunpack.c.0.s8 %v3871
    %v3873 = vlaneseq
    %v3874 = vshrl.u32 %v3873, 7
    %v3875 = vsub.s32 %v3872, %v3874
    %v3876 = vrot.slane %v3868, %v3875
    %v3878 = vunpack.c.l.s4 1983009808
    %v3879 = vunpack.c.0.s8 %v3878
    %v3880 = vlaneseq
    %v3881 = vshrl.u32 %v3880, 7
    %v3882 = vsub.s32 %v3879, %v3881
    %v3883 = vrot.slane %v3869, %v3882
    %v3884 = vcombine.low %v3876, %v3883
    %v3885 = vcombine.low %v3044, %v3043
    %v3886 = vcombine.low %v3045, %v3053
    %v3888 = vunpack.c.l.s4 1983009808
    %v3889 = vunpack.c.0.s8 %v3888
    %v3890 = vlaneseq
    %v3891 = vshrl.u32 %v3890, 7
    %v3892 = vsub.s32 %v3889, %v3891
    %v3893 = vrot.slane %v3885, %v3892
    %v3895 = vunpack.c.l.s4 1983009808
    %v3896 = vunpack.c.0.s8 %v3895
    %v3897 = vlaneseq
    %v3898 = vshrl.u32 %v3897, 7
    %v3899 = vsub.s32 %v3896, %v3898
    %v3900 = vrot.slane %v3886, %v3899
    %v3901 = vcombine.low %v3893, %v3900
    %v3902 = vcombine.low %v3061, %v3060
    %v3903 = vcombine.low %v3069, %v3077
    %v3905 = vunpack.c.l.s4 1983009808
    %v3906 = vunpack.c.0.s8 %v3905
    %v3907 = vlaneseq
    %v3908 = vshrl.u32 %v3907, 7
    %v3909 = vsub.s32 %v3906, %v3908
    %v3910 = vrot.slane %v3902, %v3909
    %v3912 = vunpack.c.l.s4 1983009808
    %v3913 = vunpack.c.0.s8 %v3912
    %v3914 = vlaneseq
    %v3915 = vshrl.u32 %v3914, 7
    %v3916 = vsub.s32 %v3913, %v3915
    %v3917 = vrot.slane %v3903, %v3916
    %v3918 = vcombine.low %v3910, %v3917
    %v3919 = vcombine.low %v3076, %v3078
    %v3920 = vcombine.low %v3086, %v3094
    %v3922 = vunpack.c.l.s4 1983009808
    %v3923 = vunpack.c.0.s8 %v3922
    %v3924 = vlaneseq
    %v3925 = vshrl.u32 %v3924, 7
    %v3926 = vsub.s32 %v3923, %v3925
    %v3927 = vrot.slane %v3919, %v3926
    %v3929 = vunpack.c.l.s4 1983009808
    %v3930 = vunpack.c.0.s8 %v3929
    %v3931 = vlaneseq
    %v3932 = vshrl.u32 %v3931, 7
    %v3933 = vsub.s32 %v3930, %v3932
    %v3934 = vrot.slane %v3920, %v3933
    %v3935 = vcombine.low %v3927, %v3934
    %v3936 = vcombine.low %v3093, %v3102
    %v3937 = vcombine.low %v3110, %v3109
    %v3939 = vunpack.c.l.s4 1983009808
    %v3940 = vunpack.c.0.s8 %v3939
    %v3941 = vlaneseq
    %v3942 = vshrl.u32 %v3941, 7
    %v3943 = vsub.s32 %v3940, %v3942
    %v3944 = vrot.slane %v3936, %v3943
    %v3946 = vunpack.c.l.s4 1983009808
    %v3947 = vunpack.c.0.s8 %v3946
    %v3948 = vlaneseq
    %v3949 = vshrl.u32 %v3948, 7
    %v3950 = vsub.s32 %v3947, %v3949
    %v3951 = vrot.slane %v3937, %v3950
    %v3952 = vcombine.low %v3944, %v3951
    %v3953 = vcombine.low %v3111, %v3119
    %v3954 = vcombine.low %v3127, %v3126
    %v3956 = vunpack.c.l.s4 1983009808
    %v3957 = vunpack.c.0.s8 %v3956
    %v3958 = vlaneseq
    %v3959 = vshrl.u32 %v3958, 7
    %v3960 = vsub.s32 %v3957, %v3959
    %v3961 = vrot.slane %v3953, %v3960
    %v3963 = vunpack.c.l.s4 1983009808
    %v3964 = vunpack.c.0.s8 %v3963
    %v3965 = vlaneseq
    %v3966 = vshrl.u32 %v3965, 7
    %v3967 = vsub.s32 %v3964, %v3966
    %v3968 = vrot.slane %v3954, %v3967
    %v3969 = vcombine.low %v3961, %v3968
    %vm3970 = vcmask 293888
    %v3971 = vsel %vm3970, %v3153, 0
    %v3973 = vsel %vm3970, %v3170, 0
    %v3975 = vsel %vm3970, %v3187, 0
    %v3977 = vsel %vm3970, %v3204, 0
    %v3979 = vsel %vm3970, %v3221, 0
    %v3981 = vsel %vm3970, %v3238, 0
    %v3983 = vsel %vm3970, %v3255, 0
    %v3985 = vsel %vm3970, %v3272, 0
    %v3987 = vsel %vm3970, %v3289, 0
    %v3989 = vsel %vm3970, %v3306, 0
    %v3991 = vsel %vm3970, %v3323, 0
    %v3993 = vsel %vm3970, %v3340, 0
    %v3995 = vsel %vm3970, %v3357, 0
    %v3997 = vsel %vm3970, %v3374, 0
    %v3999 = vsel %vm3970, %v3391, 0
    %v4001 = vsel %vm3970, %v3408, 0
    %v4003 = vsel %vm3970, %v3425, 0
    %v4005 = vsel %vm3970, %v3442, 0
    %v4007 = vsel %vm3970, %v3459, 0
    %v4009 = vsel %vm3970, %v3476, 0
    %v4011 = vsel %vm3970, %v3493, 0
    %v4013 = vsel %vm3970, %v3510, 0
    %v4015 = vsel %vm3970, %v3527, 0
    %v4017 = vsel %vm3970, %v3544, 0
    %v4019 = vsel %vm3970, %v3561, 0
    %v4021 = vsel %vm3970, %v3578, 0
    %v4023 = vsel %vm3970, %v3595, 0
    %v4025 = vsel %vm3970, %v3612, 0
    %v4027 = vsel %vm3970, %v3629, 0
    %v4029 = vsel %vm3970, %v3646, 0
    %v4031 = vsel %vm3970, %v3663, 0
    %v4033 = vsel %vm3970, %v3680, 0
    %v4035 = vsel %vm3970, %v3697, 0
    %v4037 = vsel %vm3970, %v3714, 0
    %v4039 = vsel %vm3970, %v3731, 0
    %v4041 = vsel %vm3970, %v3748, 0
    %v4043 = vsel %vm3970, %v3765, 0
    %v4045 = vsel %vm3970, %v3782, 0
    %v4047 = vsel %vm3970, %v3799, 0
    %v4049 = vsel %vm3970, %v3816, 0
    %v4051 = vsel %vm3970, %v3833, 0
    %v4053 = vsel %vm3970, %v3850, 0
    %v4055 = vsel %vm3970, %v3867, 0
    %v4057 = vsel %vm3970, %v3884, 0
    %v4059 = vsel %vm3970, %v3901, 0
    %v4061 = vsel %vm3970, %v3918, 0
    %v4063 = vsel %vm3970, %v3935, 0
    %v4065 = vsel %vm3970, %v3952, 0
    %v4067 = vsel %vm3970, %v3969, 0
    %vm4069 = vcmask 1043456
    %v4071 = vsel %vm4069, %v3132, 0
    %4073 = vmatprep.subr.mxu0 0.0
    %4074 = vmatpush1.msra.mxu0 %v3128
    %4075 = vmatprep.subr.mxu0 0.0
    %4076 = vmatpush1.msra.mxu0 %v3129
    %4077 = vmatprep.subr.mxu0 0.0
    %4078 = vmatpush1.msra.mxu0 %v3130
    %4079 = vmatprep.subr.mxu0 0.0
    %4080 = vmatpush1.msra.mxu0 %v3131
    %4081 = vmatprep.subr.mxu0 0.0
    %4082 = vmatpush1.msra.mxu0 %v4071
    %4083 = vmatprep.subr.mxu0 0.0
    %4084 = vmatpush1.msra.mxu0 0.0
    %4085 = vmatprep.subr.mxu0 0.0
    %4086 = vmatpush1.msra.mxu0 0.0
    %4087 = vmatprep.subr.mxu0 0.0
    %4088 = vmatpush1.msra.mxu0 0.0
    %4089 = vmatprep.subr.mxu0 0.0
    %4090 = vmatpush1.msra.mxu0 0.0
    %4091 = vmatprep.subr.mxu0 0.0
    %4092 = vmatpush1.msra.mxu0 0.0
    %4093 = vmatprep.subr.mxu0 0.0
    %4094 = vmatpush1.msra.mxu0 0.0
    %4095 = vmatprep.subr.mxu0 0.0
    %4096 = vmatpush1.msra.mxu0 0.0
    %4097 = vmatprep.subr.mxu0 0.0
    %4098 = vmatpush1.msra.mxu0 0.0
    %4099 = vmatprep.subr.mxu0 0.0
    %4100 = vmatpush1.msra.mxu0 0.0
    %4101 = vmatprep.subr.mxu0 0.0
    %4102 = vmatpush1.msra.mxu0 0.0
    %4103 = vmatprep.subr.mxu0 0.0
    %4104 = vmatpush1.msra.mxu0 0.0
    %4105 = vmatprep.subr.mxu0 0.0
    %4106 = vmatpush1.msra.mxu0 0.0
    %4107 = vmatprep.subr.mxu0 0.0
    %4108 = vmatpush1.msra.mxu0 0.0
    %4109 = vmatprep.subr.mxu0 0.0
    %4110 = vmatpush1.msra.mxu0 0.0
    %4111 = vmatprep.subr.mxu0 0.0
    %4112 = vmatpush1.msra.mxu0 0.0
    %4113 = vmatprep.subr.mxu0 0.0
    %4114 = vmatpush1.msra.mxu0 0.0
    %4115 = vmatprep.subr.mxu0 0.0
    %4116 = vmatpush1.msra.mxu0 0.0
    %4117 = vmatprep.subr.mxu0 0.0
    %4118 = vmatpush1.msra.mxu0 0.0
    %4119 = vmatprep.subr.mxu0 0.0
    %4120 = vmatpush1.msra.mxu0 0.0
    %4121 = vmatprep.subr.mxu0 0.0
    %4122 = vmatpush1.msra.mxu0 0.0
    %4123 = vmatprep.subr.mxu0 0.0
    %4124 = vmatpush1.msra.mxu0 0.0
    %4125 = vmatprep.subr.mxu0 0.0
    %4126 = vmatpush1.msra.mxu0 0.0
    %4127 = vmatprep.subr.mxu0 0.0
    %4128 = vmatpush1.msra.mxu0 0.0
    %4129 = vmatprep.subr.mxu0 0.0
    %4130 = vmatpush1.msra.mxu0 0.0
    %4131 = vmatprep.subr.mxu0 0.0
    %4132 = vmatpush1.msra.mxu0 0.0
    %4133 = vmatprep.subr.mxu0 0.0
    %4134 = vmatpush1.msra.mxu0 0.0
    %4135 = vmatprep.subr.mxu0 0.0
    %4136 = vmatpush1.msra.mxu0 0.0
    %4137 = vmatprep.mubr.f32.mxu0 0.0
    %4138 = vmatmul.mubr.f32.gmra.mrb[0].mxu0 %v3971
    %v4139 = vpop.f32.mrb[0].mxu0
    %v4140 = vadd.f32 %v3136, %v4139
    %v4141 = vpop.f32.mrb[0].mxu0
    %4142 = vmatprep.mubr.f32.mxu0 0.0
    %4143 = vmatmul.mubr.f32.gmra.mrb[0].mxu0 %v3973
    %v4144 = vpop.f32.mrb[0].mxu0
    %v4145 = vadd.f32 %v3136, %v4144
    %v4146 = vpop.f32.mrb[0].mxu0
    %4147 = vmatprep.mubr.f32.mxu0 0.0
    %4148 = vmatmul.mubr.f32.gmra.mrb[0].mxu0 %v3975
    %v4149 = vpop.f32.mrb[0].mxu0
    %v4150 = vadd.f32 %v3136, %v4149
    %v4151 = vpop.f32.mrb[0].mxu0
    %4152 = vmatprep.mubr.f32.mxu0 0.0
    %4153 = vmatmul.mubr.f32.gmra.mrb[0].mxu0 %v3977
    %v4154 = vpop.f32.mrb[0].mxu0
    %v4155 = vadd.f32 %v3136, %v4154
    %v4156 = vpop.f32.mrb[0].mxu0
    %4157 = vmatprep.mubr.f32.mxu0 0.0
    %4158 = vmatmul.mubr.f32.gmra.mrb[0].mxu0 %v3979
    %v4159 = vpop.f32.mrb[0].mxu0
    %v4160 = vadd.f32 %v3136, %v4159
    %v4161 = vpop.f32.mrb[0].mxu0
    %4162 = vmatprep.mubr.f32.mxu0 0.0
    %4163 = vmatmul.mubr.f32.gmra.mrb[0].mxu0 %v3981
    %v4164 = vpop.f32.mrb[0].mxu0
    %v4165 = vadd.f32 %v3136, %v4164
    %v4166 = vpop.f32.mrb[0].mxu0
    %4167 = vmatprep.mubr.f32.mxu0 0.0
    %4168 = vmatmul.mubr.f32.gmra.mrb[0].mxu0 %v3983
    %v4169 = vpop.f32.mrb[0].mxu0
    %v4170 = vadd.f32 %v3136, %v4169
    %v4171 = vpop.f32.mrb[0].mxu0
    %4172 = vmatprep.mubr.f32.mxu0 0.0
    %4173 = vmatmul.mubr.f32.gmra.mrb[0].mxu0 %v3985
    %v4174 = vpop.f32.mrb[0].mxu0
    %v4175 = vadd.f32 %v3136, %v4174
    %v4176 = vpop.f32.mrb[0].mxu0
    %4177 = vmatprep.mubr.f32.mxu0 0.0
    %4178 = vmatmul.mubr.f32.gmra.mrb[0].mxu0 %v3987
    %v4179 = vpop.f32.mrb[0].mxu0
    %v4180 = vadd.f32 %v3136, %v4179
    %v4181 = vpop.f32.mrb[0].mxu0
    %4182 = vmatprep.mubr.f32.mxu0 0.0
    %4183 = vmatmul.mubr.f32.gmra.mrb[0].mxu0 %v3989
    %v4184 = vpop.f32.mrb[0].mxu0
    %v4185 = vadd.f32 %v3136, %v4184
    %v4186 = vpop.f32.mrb[0].mxu0
    %4187 = vmatprep.mubr.f32.mxu0 0.0
    %4188 = vmatmul.mubr.f32.gmra.mrb[0].mxu0 %v3991
    %v4189 = vpop.f32.mrb[0].mxu0
    %v4190 = vadd.f32 %v3136, %v4189
    %v4191 = vpop.f32.mrb[0].mxu0
    %4192 = vmatprep.mubr.f32.mxu0 0.0
    %4193 = vmatmul.mubr.f32.gmra.mrb[0].mxu0 %v3993
    %v4194 = vpop.f32.mrb[0].mxu0
    %v4195 = vadd.f32 %v3136, %v4194
    %v4196 = vpop.f32.mrb[0].mxu0
    %4197 = vmatprep.mubr.f32.mxu0 0.0
    %4198 = vmatmul.mubr.f32.gmra.mrb[0].mxu0 %v3995
    %v4199 = vpop.f32.mrb[0].mxu0
    %v4200 = vadd.f32 %v3136, %v4199
    %v4201 = vpop.f32.mrb[0].mxu0
    %4202 = vmatprep.mubr.f32.mxu0 0.0
    %4203 = vmatmul.mubr.f32.gmra.mrb[0].mxu0 %v3997
    %v4204 = vpop.f32.mrb[0].mxu0
    %v4205 = vadd.f32 %v3136, %v4204
    %v4206 = vpop.f32.mrb[0].mxu0
    %4207 = vmatprep.mubr.f32.mxu0 0.0
    %4208 = vmatmul.mubr.f32.gmra.mrb[0].mxu0 %v3999
    %v4209 = vpop.f32.mrb[0].mxu0
    %v4210 = vadd.f32 %v3136, %v4209
    %v4211 = vpop.f32.mrb[0].mxu0
    %4212 = vmatprep.mubr.f32.mxu0 0.0
    %4213 = vmatmul.mubr.f32.gmra.mrb[0].mxu0 %v4001
    %v4214 = vpop.f32.mrb[0].mxu0
    %v4215 = vadd.f32 %v3136, %v4214
    %v4216 = vpop.f32.mrb[0].mxu0
    %4217 = vmatprep.mubr.f32.mxu0 0.0
    %4218 = vmatmul.mubr.f32.gmra.mrb[0].mxu0 %v4003
    %v4219 = vpop.f32.mrb[0].mxu0
    %v4220 = vadd.f32 %v3136, %v4219
    %v4221 = vpop.f32.mrb[0].mxu0
    %4222 = vmatprep.mubr.f32.mxu0 0.0
    %4223 = vmatmul.mubr.f32.gmra.mrb[0].mxu0 %v4005
    %v4224 = vpop.f32.mrb[0].mxu0
    %v4225 = vadd.f32 %v3136, %v4224
    %v4226 = vpop.f32.mrb[0].mxu0
    %4227 = vmatprep.mubr.f32.mxu0 0.0
    %4228 = vmatmul.mubr.f32.gmra.mrb[0].mxu0 %v4007
    %v4229 = vpop.f32.mrb[0].mxu0
    %v4230 = vadd.f32 %v3136, %v4229
    %v4231 = vpop.f32.mrb[0].mxu0
    %4232 = vmatprep.mubr.f32.mxu0 0.0
    %4233 = vmatmul.mubr.f32.gmra.mrb[0].mxu0 %v4009
    %v4234 = vpop.f32.mrb[0].mxu0
    %v4235 = vadd.f32 %v3136, %v4234
    %v4236 = vpop.f32.mrb[0].mxu0
    %4237 = vmatprep.mubr.f32.mxu0 0.0
    %4238 = vmatmul.mubr.f32.gmra.mrb[0].mxu0 %v4011
    %v4239 = vpop.f32.mrb[0].mxu0
    %v4240 = vadd.f32 %v3136, %v4239
    %v4241 = vpop.f32.mrb[0].mxu0
    %4242 = vmatprep.mubr.f32.mxu0 0.0
    %4243 = vmatmul.mubr.f32.gmra.mrb[0].mxu0 %v4013
    %v4244 = vpop.f32.mrb[0].mxu0
    %v4245 = vadd.f32 %v3136, %v4244
    %v4246 = vpop.f32.mrb[0].mxu0
    %4247 = vmatprep.mubr.f32.mxu0 0.0
    %4248 = vmatmul.mubr.f32.gmra.mrb[0].mxu0 %v4015
    %v4249 = vpop.f32.mrb[0].mxu0
    %v4250 = vadd.f32 %v3136, %v4249
    %v4251 = vpop.f32.mrb[0].mxu0
    %4252 = vmatprep.mubr.f32.mxu0 0.0
    %4253 = vmatmul.mubr.f32.gmra.mrb[0].mxu0 %v4017
    %v4254 = vpop.f32.mrb[0].mxu0
    %v4255 = vadd.f32 %v3136, %v4254
    %v4256 = vpop.f32.mrb[0].mxu0
    %4257 = vmatprep.mubr.f32.mxu0 0.0
    %4258 = vmatmul.mubr.f32.gmra.mrb[0].mxu0 %v4019
    %v4259 = vpop.f32.mrb[0].mxu0
    %v4260 = vadd.f32 %v3136, %v4259
    %v4261 = vpop.f32.mrb[0].mxu0
    %4262 = vmatprep.mubr.f32.mxu0 0.0
    %4263 = vmatmul.mubr.f32.gmra.mrb[0].mxu0 %v4021
    %v4264 = vpop.f32.mrb[0].mxu0
    %v4265 = vadd.f32 %v3136, %v4264
    %v4266 = vpop.f32.mrb[0].mxu0
    %4267 = vmatprep.mubr.f32.mxu0 0.0
    %4268 = vmatmul.mubr.f32.gmra.mrb[0].mxu0 %v4023
    %v4269 = vpop.f32.mrb[0].mxu0
    %v4270 = vadd.f32 %v3136, %v4269
    %v4271 = vpop.f32.mrb[0].mxu0
    %4272 = vmatprep.mubr.f32.mxu0 0.0
    %4273 = vmatmul.mubr.f32.gmra.mrb[0].mxu0 %v4025
    %v4274 = vpop.f32.mrb[0].mxu0
    %v4275 = vadd.f32 %v3136, %v4274
    %v4276 = vpop.f32.mrb[0].mxu0
    %4277 = vmatprep.mubr.f32.mxu0 0.0
    %4278 = vmatmul.mubr.f32.gmra.mrb[0].mxu0 %v4027
    %v4279 = vpop.f32.mrb[0].mxu0
    %v4280 = vadd.f32 %v3136, %v4279
    %v4281 = vpop.f32.mrb[0].mxu0
    %4282 = vmatprep.mubr.f32.mxu0 0.0
    %4283 = vmatmul.mubr.f32.gmra.mrb[0].mxu0 %v4029
    %v4284 = vpop.f32.mrb[0].mxu0
    %v4285 = vadd.f32 %v3136, %v4284
    %v4286 = vpop.f32.mrb[0].mxu0
    %4287 = vmatprep.mubr.f32.mxu0 0.0
    %4288 = vmatmul.mubr.f32.gmra.mrb[0].mxu0 %v4031
    %v4289 = vpop.f32.mrb[0].mxu0
    %v4290 = vadd.f32 %v3136, %v4289
    %v4291 = vpop.f32.mrb[0].mxu0
    %4292 = vmatprep.mubr.f32.mxu0 0.0
    %4293 = vmatmul.mubr.f32.gmra.mrb[0].mxu0 %v4033
    %v4294 = vpop.f32.mrb[0].mxu0
    %v4295 = vadd.f32 %v3136, %v4294
    %v4296 = vpop.f32.mrb[0].mxu0
    %4297 = vmatprep.mubr.f32.mxu0 0.0
    %4298 = vmatmul.mubr.f32.gmra.mrb[0].mxu0 %v4035
    %v4299 = vpop.f32.mrb[0].mxu0
    %v4300 = vadd.f32 %v3136, %v4299
    %v4301 = vpop.f32.mrb[0].mxu0
    %4302 = vmatprep.mubr.f32.mxu0 0.0
    %4303 = vmatmul.mubr.f32.gmra.mrb[0].mxu0 %v4037
    %v4304 = vpop.f32.mrb[0].mxu0
    %v4305 = vadd.f32 %v3136, %v4304
    %v4306 = vpop.f32.mrb[0].mxu0
    %4307 = vmatprep.mubr.f32.mxu0 0.0
    %4308 = vmatmul.mubr.f32.gmra.mrb[0].mxu0 %v4039
    %v4309 = vpop.f32.mrb[0].mxu0
    %v4310 = vadd.f32 %v3136, %v4309
    %v4311 = vpop.f32.mrb[0].mxu0
    %4312 = vmatprep.mubr.f32.mxu0 0.0
    %4313 = vmatmul.mubr.f32.gmra.mrb[0].mxu0 %v4041
    %v4314 = vpop.f32.mrb[0].mxu0
    %v4315 = vadd.f32 %v3136, %v4314
    %v4316 = vpop.f32.mrb[0].mxu0
    %4317 = vmatprep.mubr.f32.mxu0 0.0
    %4318 = vmatmul.mubr.f32.gmra.mrb[0].mxu0 %v4043
    %v4319 = vpop.f32.mrb[0].mxu0
    %v4320 = vadd.f32 %v3136, %v4319
    %v4321 = vpop.f32.mrb[0].mxu0
    %4322 = vmatprep.mubr.f32.mxu0 0.0
    %4323 = vmatmul.mubr.f32.gmra.mrb[0].mxu0 %v4045
    %v4324 = vpop.f32.mrb[0].mxu0
    %v4325 = vadd.f32 %v3136, %v4324
    %v4326 = vpop.f32.mrb[0].mxu0
    %4327 = vmatprep.mubr.f32.mxu0 0.0
    %4328 = vmatmul.mubr.f32.gmra.mrb[0].mxu0 %v4047
    %v4329 = vpop.f32.mrb[0].mxu0
    %v4330 = vadd.f32 %v3136, %v4329
    %v4331 = vpop.f32.mrb[0].mxu0
    %4332 = vmatprep.mubr.f32.mxu0 0.0
    %4333 = vmatmul.mubr.f32.gmra.mrb[0].mxu0 %v4049
    %v4334 = vpop.f32.mrb[0].mxu0
    %v4335 = vadd.f32 %v3136, %v4334
    %v4336 = vpop.f32.mrb[0].mxu0
    %4337 = vmatprep.mubr.f32.mxu0 0.0
    %4338 = vmatmul.mubr.f32.gmra.mrb[0].mxu0 %v4051
    %v4339 = vpop.f32.mrb[0].mxu0
    %v4340 = vadd.f32 %v3136, %v4339
    %v4341 = vpop.f32.mrb[0].mxu0
    %4342 = vmatprep.mubr.f32.mxu0 0.0
    %4343 = vmatmul.mubr.f32.gmra.mrb[0].mxu0 %v4053
    %v4344 = vpop.f32.mrb[0].mxu0
    %v4345 = vadd.f32 %v3136, %v4344
    %v4346 = vpop.f32.mrb[0].mxu0
    %4347 = vmatprep.mubr.f32.mxu0 0.0
    %4348 = vmatmul.mubr.f32.gmra.mrb[0].mxu0 %v4055
    %v4349 = vpop.f32.mrb[0].mxu0
    %v4350 = vadd.f32 %v3136, %v4349
    %v4351 = vpop.f32.mrb[0].mxu0
    %4352 = vmatprep.mubr.f32.mxu0 0.0
    %4353 = vmatmul.mubr.f32.gmra.mrb[0].mxu0 %v4057
    %v4354 = vpop.f32.mrb[0].mxu0
    %v4355 = vadd.f32 %v3136, %v4354
    %v4356 = vpop.f32.mrb[0].mxu0
    %4357 = vmatprep.mubr.f32.mxu0 0.0
    %4358 = vmatmul.mubr.f32.gmra.mrb[0].mxu0 %v4059
    %v4359 = vpop.f32.mrb[0].mxu0
    %v4360 = vadd.f32 %v3136, %v4359
    %v4361 = vpop.f32.mrb[0].mxu0
    %4362 = vmatprep.mubr.f32.mxu0 0.0
    %4363 = vmatmul.mubr.f32.gmra.mrb[0].mxu0 %v4061
    %v4364 = vpop.f32.mrb[0].mxu0
    %v4365 = vadd.f32 %v3136, %v4364
    %v4366 = vpop.f32.mrb[0].mxu0
    %4367 = vmatprep.mubr.f32.mxu0 0.0
    %4368 = vmatmul.mubr.f32.gmra.mrb[0].mxu0 %v4063
    %v4369 = vpop.f32.mrb[0].mxu0
    %v4370 = vadd.f32 %v3136, %v4369
    %v4371 = vpop.f32.mrb[0].mxu0
    %4372 = vmatprep.mubr.f32.mxu0 0.0
    %4373 = vmatmul.mubr.f32.gmra.mrb[0].mxu0 %v4065
    %v4374 = vpop.f32.mrb[0].mxu0
    %v4375 = vadd.f32 %v3136, %v4374
    %v4376 = vpop.f32.mrb[0].mxu0
    %4377 = vmatprep.mubr.f32.mxu0 0.0
    %4378 = vmatmul.mubr.f32.gmra.mrb[0].mxu0 %v4067
    %v4379 = vpop.f32.mrb[0].mxu0
    %v4380 = vadd.f32 %v3136, %v4379
    %v4381 = vpop.f32.mrb[0].mxu0
    %4382 = vdwg.mxu0
    %v4383 = vmax.f32 %v4140, 0.0
    %v4384 = vmax.f32 %v4145, 0.0
    %v4385 = vmax.f32 %v4150, 0.0
    %v4386 = vmax.f32 %v4155, 0.0
    %v4387 = vmax.f32 %v4160, 0.0
    %v4388 = vmax.f32 %v4165, 0.0
    %v4389 = vmax.f32 %v4170, 0.0
    %v4390 = vmax.f32 %v4175, 0.0
    %v4391 = vmax.f32 %v4180, 0.0
    %v4392 = vmax.f32 %v4185, 0.0
    %v4393 = vmax.f32 %v4190, 0.0
    %v4394 = vmax.f32 %v4195, 0.0
    %v4395 = vmax.f32 %v4200, 0.0
    %v4396 = vmax.f32 %v4205, 0.0
    %v4397 = vmax.f32 %v4210, 0.0
    %v4398 = vmax.f32 %v4215, 0.0
    %v4399 = vmax.f32 %v4220, 0.0
    %v4400 = vmax.f32 %v4225, 0.0
    %v4401 = vmax.f32 %v4230, 0.0
    %v4402 = vmax.f32 %v4235, 0.0
    %v4403 = vmax.f32 %v4240, 0.0
    %v4404 = vmax.f32 %v4245, 0.0
    %v4405 = vmax.f32 %v4250, 0.0
    %v4406 = vmax.f32 %v4255, 0.0
    %v4407 = vmax.f32 %v4260, 0.0
    %v4408 = vmax.f32 %v4265, 0.0
    %v4409 = vmax.f32 %v4270, 0.0
    %v4410 = vmax.f32 %v4275, 0.0
    %v4411 = vmax.f32 %v4280, 0.0
    %v4412 = vmax.f32 %v4285, 0.0
    %v4413 = vmax.f32 %v4290, 0.0
    %v4414 = vmax.f32 %v4295, 0.0
    %v4415 = vmax.f32 %v4300, 0.0
    %v4416 = vmax.f32 %v4305, 0.0
    %v4417 = vmax.f32 %v4310, 0.0
    %v4418 = vmax.f32 %v4315, 0.0
    %v4419 = vmax.f32 %v4320, 0.0
    %v4420 = vmax.f32 %v4325, 0.0
    %v4421 = vmax.f32 %v4330, 0.0
    %v4422 = vmax.f32 %v4335, 0.0
    %v4423 = vmax.f32 %v4340, 0.0
    %v4424 = vmax.f32 %v4345, 0.0
    %v4425 = vmax.f32 %v4350, 0.0
    %v4426 = vmax.f32 %v4355, 0.0
    %v4427 = vmax.f32 %v4360, 0.0
    %v4428 = vmax.f32 %v4365, 0.0
    %v4429 = vmax.f32 %v4370, 0.0
    %v4430 = vmax.f32 %v4375, 0.0
    %v4431 = vmax.f32 %v4380, 0.0
    %v4481 = vcombine.high %v4383, %v4383
    %v4483 = vunpack.c.l.s4 1983009808
    %v4484 = vunpack.c.0.s8 %v4483
    %v4485 = vlaneseq
    %v4486 = vshrl.u32 %v4485, 7
    %v4487 = vsub.s32 %v4484, %v4486
    %v4488 = vrot.slane %v4383, %v4487
    %v4490 = vunpack.c.l.s4 1983009808
    %v4491 = vunpack.c.0.s8 %v4490
    %v4492 = vlaneseq
    %v4493 = vshrl.u32 %v4492, 7
    %v4494 = vsub.s32 %v4491, %v4493
    %v4495 = vrot.slane %v4481, %v4494
    %v4496 = vcombine.high %v4488, %v4488
    %v4497 = vcombine.high %v4495, %v4495
    %v4498 = vcombine.high %v4384, %v4384
    %v4500 = vunpack.c.l.s4 1983009808
    %v4501 = vunpack.c.0.s8 %v4500
    %v4502 = vlaneseq
    %v4503 = vshrl.u32 %v4502, 7
    %v4504 = vsub.s32 %v4501, %v4503
    %v4505 = vrot.slane %v4384, %v4504
    %v4507 = vunpack.c.l.s4 1983009808
    %v4508 = vunpack.c.0.s8 %v4507
    %v4509 = vlaneseq
    %v4510 = vshrl.u32 %v4509, 7
    %v4511 = vsub.s32 %v4508, %v4510
    %v4512 = vrot.slane %v4498, %v4511
    %v4513 = vcombine.high %v4505, %v4505
    %v4514 = vcombine.high %v4512, %v4512
    %v4515 = vcombine.high %v4385, %v4385
    %v4517 = vunpack.c.l.s4 1983009808
    %v4518 = vunpack.c.0.s8 %v4517
    %v4519 = vlaneseq
    %v4520 = vshrl.u32 %v4519, 7
    %v4521 = vsub.s32 %v4518, %v4520
    %v4522 = vrot.slane %v4385, %v4521
    %v4524 = vunpack.c.l.s4 1983009808
    %v4525 = vunpack.c.0.s8 %v4524
    %v4526 = vlaneseq
    %v4527 = vshrl.u32 %v4526, 7
    %v4528 = vsub.s32 %v4525, %v4527
    %v4529 = vrot.slane %v4515, %v4528
    %v4530 = vcombine.high %v4522, %v4522
    %v4531 = vcombine.high %v4529, %v4529
    %v4532 = vcombine.high %v4386, %v4386
    %v4534 = vunpack.c.l.s4 1983009808
    %v4535 = vunpack.c.0.s8 %v4534
    %v4536 = vlaneseq
    %v4537 = vshrl.u32 %v4536, 7
    %v4538 = vsub.s32 %v4535, %v4537
    %v4539 = vrot.slane %v4386, %v4538
    %v4541 = vunpack.c.l.s4 1983009808
    %v4542 = vunpack.c.0.s8 %v4541
    %v4543 = vlaneseq
    %v4544 = vshrl.u32 %v4543, 7
    %v4545 = vsub.s32 %v4542, %v4544
    %v4546 = vrot.slane %v4532, %v4545
    %v4547 = vcombine.high %v4539, %v4539
    %v4548 = vcombine.high %v4546, %v4546
    %v4549 = vcombine.high %v4387, %v4387
    %v4551 = vunpack.c.l.s4 1983009808
    %v4552 = vunpack.c.0.s8 %v4551
    %v4553 = vlaneseq
    %v4554 = vshrl.u32 %v4553, 7
    %v4555 = vsub.s32 %v4552, %v4554
    %v4556 = vrot.slane %v4387, %v4555
    %v4558 = vunpack.c.l.s4 1983009808
    %v4559 = vunpack.c.0.s8 %v4558
    %v4560 = vlaneseq
    %v4561 = vshrl.u32 %v4560, 7
    %v4562 = vsub.s32 %v4559, %v4561
    %v4563 = vrot.slane %v4549, %v4562
    %v4564 = vcombine.high %v4556, %v4556
    %v4565 = vcombine.high %v4563, %v4563
    %v4566 = vcombine.high %v4388, %v4388
    %v4568 = vunpack.c.l.s4 1983009808
    %v4569 = vunpack.c.0.s8 %v4568
    %v4570 = vlaneseq
    %v4571 = vshrl.u32 %v4570, 7
    %v4572 = vsub.s32 %v4569, %v4571
    %v4573 = vrot.slane %v4388, %v4572
    %v4575 = vunpack.c.l.s4 1983009808
    %v4576 = vunpack.c.0.s8 %v4575
    %v4577 = vlaneseq
    %v4578 = vshrl.u32 %v4577, 7
    %v4579 = vsub.s32 %v4576, %v4578
    %v4580 = vrot.slane %v4566, %v4579
    %v4581 = vcombine.high %v4573, %v4573
    %v4582 = vcombine.high %v4580, %v4580
    %v4583 = vcombine.high %v4389, %v4389
    %v4585 = vunpack.c.l.s4 1983009808
    %v4586 = vunpack.c.0.s8 %v4585
    %v4587 = vlaneseq
    %v4588 = vshrl.u32 %v4587, 7
    %v4589 = vsub.s32 %v4586, %v4588
    %v4590 = vrot.slane %v4389, %v4589
    %v4592 = vunpack.c.l.s4 1983009808
    %v4593 = vunpack.c.0.s8 %v4592
    %v4594 = vlaneseq
    %v4595 = vshrl.u32 %v4594, 7
    %v4596 = vsub.s32 %v4593, %v4595
    %v4597 = vrot.slane %v4583, %v4596
    %v4598 = vcombine.high %v4590, %v4590
    %v4599 = vcombine.high %v4597, %v4597
    %v4600 = vcombine.high %v4390, %v4390
    %v4602 = vunpack.c.l.s4 1983009808
    %v4603 = vunpack.c.0.s8 %v4602
    %v4604 = vlaneseq
    %v4605 = vshrl.u32 %v4604, 7
    %v4606 = vsub.s32 %v4603, %v4605
    %v4607 = vrot.slane %v4390, %v4606
    %v4609 = vunpack.c.l.s4 1983009808
    %v4610 = vunpack.c.0.s8 %v4609
    %v4611 = vlaneseq
    %v4612 = vshrl.u32 %v4611, 7
    %v4613 = vsub.s32 %v4610, %v4612
    %v4614 = vrot.slane %v4600, %v4613
    %v4615 = vcombine.high %v4607, %v4607
    %v4616 = vcombine.high %v4614, %v4614
    %v4617 = vcombine.high %v4391, %v4391
    %v4619 = vunpack.c.l.s4 1983009808
    %v4620 = vunpack.c.0.s8 %v4619
    %v4621 = vlaneseq
    %v4622 = vshrl.u32 %v4621, 7
    %v4623 = vsub.s32 %v4620, %v4622
    %v4624 = vrot.slane %v4391, %v4623
    %v4626 = vunpack.c.l.s4 1983009808
    %v4627 = vunpack.c.0.s8 %v4626
    %v4628 = vlaneseq
    %v4629 = vshrl.u32 %v4628, 7
    %v4630 = vsub.s32 %v4627, %v4629
    %v4631 = vrot.slane %v4617, %v4630
    %v4632 = vcombine.high %v4624, %v4624
    %v4633 = vcombine.high %v4631, %v4631
    %v4634 = vcombine.high %v4392, %v4392
    %v4636 = vunpack.c.l.s4 1983009808
    %v4637 = vunpack.c.0.s8 %v4636
    %v4638 = vlaneseq
    %v4639 = vshrl.u32 %v4638, 7
    %v4640 = vsub.s32 %v4637, %v4639
    %v4641 = vrot.slane %v4392, %v4640
    %v4643 = vunpack.c.l.s4 1983009808
    %v4644 = vunpack.c.0.s8 %v4643
    %v4645 = vlaneseq
    %v4646 = vshrl.u32 %v4645, 7
    %v4647 = vsub.s32 %v4644, %v4646
    %v4648 = vrot.slane %v4634, %v4647
    %v4649 = vcombine.high %v4641, %v4641
    %v4650 = vcombine.high %v4648, %v4648
    %v4651 = vcombine.high %v4393, %v4393
    %v4653 = vunpack.c.l.s4 1983009808
    %v4654 = vunpack.c.0.s8 %v4653
    %v4655 = vlaneseq
    %v4656 = vshrl.u32 %v4655, 7
    %v4657 = vsub.s32 %v4654, %v4656
    %v4658 = vrot.slane %v4393, %v4657
    %v4660 = vunpack.c.l.s4 1983009808
    %v4661 = vunpack.c.0.s8 %v4660
    %v4662 = vlaneseq
    %v4663 = vshrl.u32 %v4662, 7
    %v4664 = vsub.s32 %v4661, %v4663
    %v4665 = vrot.slane %v4651, %v4664
    %v4666 = vcombine.high %v4658, %v4658
    %v4667 = vcombine.high %v4665, %v4665
    %v4668 = vcombine.high %v4394, %v4394
    %v4670 = vunpack.c.l.s4 1983009808
    %v4671 = vunpack.c.0.s8 %v4670
    %v4672 = vlaneseq
    %v4673 = vshrl.u32 %v4672, 7
    %v4674 = vsub.s32 %v4671, %v4673
    %v4675 = vrot.slane %v4394, %v4674
    %v4677 = vunpack.c.l.s4 1983009808
    %v4678 = vunpack.c.0.s8 %v4677
    %v4679 = vlaneseq
    %v4680 = vshrl.u32 %v4679, 7
    %v4681 = vsub.s32 %v4678, %v4680
    %v4682 = vrot.slane %v4668, %v4681
    %v4683 = vcombine.high %v4675, %v4675
    %v4684 = vcombine.high %v4682, %v4682
    %v4685 = vcombine.high %v4395, %v4395
    %v4687 = vunpack.c.l.s4 1983009808
    %v4688 = vunpack.c.0.s8 %v4687
    %v4689 = vlaneseq
    %v4690 = vshrl.u32 %v4689, 7
    %v4691 = vsub.s32 %v4688, %v4690
    %v4692 = vrot.slane %v4395, %v4691
    %v4694 = vunpack.c.l.s4 1983009808
    %v4695 = vunpack.c.0.s8 %v4694
    %v4696 = vlaneseq
    %v4697 = vshrl.u32 %v4696, 7
    %v4698 = vsub.s32 %v4695, %v4697
    %v4699 = vrot.slane %v4685, %v4698
    %v4700 = vcombine.high %v4692, %v4692
    %v4701 = vcombine.high %v4699, %v4699
    %v4702 = vcombine.high %v4396, %v4396
    %v4704 = vunpack.c.l.s4 1983009808
    %v4705 = vunpack.c.0.s8 %v4704
    %v4706 = vlaneseq
    %v4707 = vshrl.u32 %v4706, 7
    %v4708 = vsub.s32 %v4705, %v4707
    %v4709 = vrot.slane %v4396, %v4708
    %v4711 = vunpack.c.l.s4 1983009808
    %v4712 = vunpack.c.0.s8 %v4711
    %v4713 = vlaneseq
    %v4714 = vshrl.u32 %v4713, 7
    %v4715 = vsub.s32 %v4712, %v4714
    %v4716 = vrot.slane %v4702, %v4715
    %v4717 = vcombine.high %v4709, %v4709
    %v4718 = vcombine.high %v4716, %v4716
    %v4719 = vcombine.high %v4397, %v4397
    %v4721 = vunpack.c.l.s4 1983009808
    %v4722 = vunpack.c.0.s8 %v4721
    %v4723 = vlaneseq
    %v4724 = vshrl.u32 %v4723, 7
    %v4725 = vsub.s32 %v4722, %v4724
    %v4726 = vrot.slane %v4397, %v4725
    %v4728 = vunpack.c.l.s4 1983009808
    %v4729 = vunpack.c.0.s8 %v4728
    %v4730 = vlaneseq
    %v4731 = vshrl.u32 %v4730, 7
    %v4732 = vsub.s32 %v4729, %v4731
    %v4733 = vrot.slane %v4719, %v4732
    %v4734 = vcombine.high %v4726, %v4726
    %v4735 = vcombine.high %v4733, %v4733
    %v4736 = vcombine.high %v4398, %v4398
    %v4738 = vunpack.c.l.s4 1983009808
    %v4739 = vunpack.c.0.s8 %v4738
    %v4740 = vlaneseq
    %v4741 = vshrl.u32 %v4740, 7
    %v4742 = vsub.s32 %v4739, %v4741
    %v4743 = vrot.slane %v4398, %v4742
    %v4745 = vunpack.c.l.s4 1983009808
    %v4746 = vunpack.c.0.s8 %v4745
    %v4747 = vlaneseq
    %v4748 = vshrl.u32 %v4747, 7
    %v4749 = vsub.s32 %v4746, %v4748
    %v4750 = vrot.slane %v4736, %v4749
    %v4751 = vcombine.high %v4743, %v4743
    %v4752 = vcombine.high %v4750, %v4750
    %v4753 = vcombine.high %v4399, %v4399
    %v4755 = vunpack.c.l.s4 1983009808
    %v4756 = vunpack.c.0.s8 %v4755
    %v4757 = vlaneseq
    %v4758 = vshrl.u32 %v4757, 7
    %v4759 = vsub.s32 %v4756, %v4758
    %v4760 = vrot.slane %v4399, %v4759
    %v4762 = vunpack.c.l.s4 1983009808
    %v4763 = vunpack.c.0.s8 %v4762
    %v4764 = vlaneseq
    %v4765 = vshrl.u32 %v4764, 7
    %v4766 = vsub.s32 %v4763, %v4765
    %v4767 = vrot.slane %v4753, %v4766
    %v4768 = vcombine.high %v4760, %v4760
    %v4769 = vcombine.high %v4767, %v4767
    %v4770 = vcombine.high %v4400, %v4400
    %v4772 = vunpack.c.l.s4 1983009808
    %v4773 = vunpack.c.0.s8 %v4772
    %v4774 = vlaneseq
    %v4775 = vshrl.u32 %v4774, 7
    %v4776 = vsub.s32 %v4773, %v4775
    %v4777 = vrot.slane %v4400, %v4776
    %v4779 = vunpack.c.l.s4 1983009808
    %v4780 = vunpack.c.0.s8 %v4779
    %v4781 = vlaneseq
    %v4782 = vshrl.u32 %v4781, 7
    %v4783 = vsub.s32 %v4780, %v4782
    %v4784 = vrot.slane %v4770, %v4783
    %v4785 = vcombine.high %v4777, %v4777
    %v4786 = vcombine.high %v4784, %v4784
    %v4787 = vcombine.high %v4401, %v4401
    %v4789 = vunpack.c.l.s4 1983009808
    %v4790 = vunpack.c.0.s8 %v4789
    %v4791 = vlaneseq
    %v4792 = vshrl.u32 %v4791, 7
    %v4793 = vsub.s32 %v4790, %v4792
    %v4794 = vrot.slane %v4401, %v4793
    %v4796 = vunpack.c.l.s4 1983009808
    %v4797 = vunpack.c.0.s8 %v4796
    %v4798 = vlaneseq
    %v4799 = vshrl.u32 %v4798, 7
    %v4800 = vsub.s32 %v4797, %v4799
    %v4801 = vrot.slane %v4787, %v4800
    %v4802 = vcombine.high %v4794, %v4794
    %v4803 = vcombine.high %v4801, %v4801
    %v4804 = vcombine.high %v4402, %v4402
    %v4806 = vunpack.c.l.s4 1983009808
    %v4807 = vunpack.c.0.s8 %v4806
    %v4808 = vlaneseq
    %v4809 = vshrl.u32 %v4808, 7
    %v4810 = vsub.s32 %v4807, %v4809
    %v4811 = vrot.slane %v4402, %v4810
    %v4813 = vunpack.c.l.s4 1983009808
    %v4814 = vunpack.c.0.s8 %v4813
    %v4815 = vlaneseq
    %v4816 = vshrl.u32 %v4815, 7
    %v4817 = vsub.s32 %v4814, %v4816
    %v4818 = vrot.slane %v4804, %v4817
    %v4819 = vcombine.high %v4811, %v4811
    %v4820 = vcombine.high %v4818, %v4818
    %v4821 = vcombine.high %v4403, %v4403
    %v4823 = vunpack.c.l.s4 1983009808
    %v4824 = vunpack.c.0.s8 %v4823
    %v4825 = vlaneseq
    %v4826 = vshrl.u32 %v4825, 7
    %v4827 = vsub.s32 %v4824, %v4826
    %v4828 = vrot.slane %v4403, %v4827
    %v4830 = vunpack.c.l.s4 1983009808
    %v4831 = vunpack.c.0.s8 %v4830
    %v4832 = vlaneseq
    %v4833 = vshrl.u32 %v4832, 7
    %v4834 = vsub.s32 %v4831, %v4833
    %v4835 = vrot.slane %v4821, %v4834
    %v4836 = vcombine.high %v4828, %v4828
    %v4837 = vcombine.high %v4835, %v4835
    %v4838 = vcombine.high %v4404, %v4404
    %v4840 = vunpack.c.l.s4 1983009808
    %v4841 = vunpack.c.0.s8 %v4840
    %v4842 = vlaneseq
    %v4843 = vshrl.u32 %v4842, 7
    %v4844 = vsub.s32 %v4841, %v4843
    %v4845 = vrot.slane %v4404, %v4844
    %v4847 = vunpack.c.l.s4 1983009808
    %v4848 = vunpack.c.0.s8 %v4847
    %v4849 = vlaneseq
    %v4850 = vshrl.u32 %v4849, 7
    %v4851 = vsub.s32 %v4848, %v4850
    %v4852 = vrot.slane %v4838, %v4851
    %v4853 = vcombine.high %v4845, %v4845
    %v4854 = vcombine.high %v4852, %v4852
    %v4855 = vcombine.high %v4405, %v4405
    %v4857 = vunpack.c.l.s4 1983009808
    %v4858 = vunpack.c.0.s8 %v4857
    %v4859 = vlaneseq
    %v4860 = vshrl.u32 %v4859, 7
    %v4861 = vsub.s32 %v4858, %v4860
    %v4862 = vrot.slane %v4405, %v4861
    %v4864 = vunpack.c.l.s4 1983009808
    %v4865 = vunpack.c.0.s8 %v4864
    %v4866 = vlaneseq
    %v4867 = vshrl.u32 %v4866, 7
    %v4868 = vsub.s32 %v4865, %v4867
    %v4869 = vrot.slane %v4855, %v4868
    %v4870 = vcombine.high %v4862, %v4862
    %v4871 = vcombine.high %v4869, %v4869
    %v4872 = vcombine.high %v4406, %v4406
    %v4874 = vunpack.c.l.s4 1983009808
    %v4875 = vunpack.c.0.s8 %v4874
    %v4876 = vlaneseq
    %v4877 = vshrl.u32 %v4876, 7
    %v4878 = vsub.s32 %v4875, %v4877
    %v4879 = vrot.slane %v4406, %v4878
    %v4881 = vunpack.c.l.s4 1983009808
    %v4882 = vunpack.c.0.s8 %v4881
    %v4883 = vlaneseq
    %v4884 = vshrl.u32 %v4883, 7
    %v4885 = vsub.s32 %v4882, %v4884
    %v4886 = vrot.slane %v4872, %v4885
    %v4887 = vcombine.high %v4879, %v4879
    %v4888 = vcombine.high %v4886, %v4886
    %v4889 = vcombine.high %v4407, %v4407
    %v4891 = vunpack.c.l.s4 1983009808
    %v4892 = vunpack.c.0.s8 %v4891
    %v4893 = vlaneseq
    %v4894 = vshrl.u32 %v4893, 7
    %v4895 = vsub.s32 %v4892, %v4894
    %v4896 = vrot.slane %v4407, %v4895
    %v4898 = vunpack.c.l.s4 1983009808
    %v4899 = vunpack.c.0.s8 %v4898
    %v4900 = vlaneseq
    %v4901 = vshrl.u32 %v4900, 7
    %v4902 = vsub.s32 %v4899, %v4901
    %v4903 = vrot.slane %v4889, %v4902
    %v4904 = vcombine.high %v4896, %v4896
    %v4905 = vcombine.high %v4903, %v4903
    %v4906 = vcombine.high %v4408, %v4408
    %v4908 = vunpack.c.l.s4 1983009808
    %v4909 = vunpack.c.0.s8 %v4908
    %v4910 = vlaneseq
    %v4911 = vshrl.u32 %v4910, 7
    %v4912 = vsub.s32 %v4909, %v4911
    %v4913 = vrot.slane %v4408, %v4912
    %v4915 = vunpack.c.l.s4 1983009808
    %v4916 = vunpack.c.0.s8 %v4915
    %v4917 = vlaneseq
    %v4918 = vshrl.u32 %v4917, 7
    %v4919 = vsub.s32 %v4916, %v4918
    %v4920 = vrot.slane %v4906, %v4919
    %v4921 = vcombine.high %v4913, %v4913
    %v4922 = vcombine.high %v4920, %v4920
    %v4923 = vcombine.high %v4409, %v4409
    %v4925 = vunpack.c.l.s4 1983009808
    %v4926 = vunpack.c.0.s8 %v4925
    %v4927 = vlaneseq
    %v4928 = vshrl.u32 %v4927, 7
    %v4929 = vsub.s32 %v4926, %v4928
    %v4930 = vrot.slane %v4409, %v4929
    %v4932 = vunpack.c.l.s4 1983009808
    %v4933 = vunpack.c.0.s8 %v4932
    %v4934 = vlaneseq
    %v4935 = vshrl.u32 %v4934, 7
    %v4936 = vsub.s32 %v4933, %v4935
    %v4937 = vrot.slane %v4923, %v4936
    %v4938 = vcombine.high %v4930, %v4930
    %v4939 = vcombine.high %v4937, %v4937
    %v4940 = vcombine.high %v4410, %v4410
    %v4942 = vunpack.c.l.s4 1983009808
    %v4943 = vunpack.c.0.s8 %v4942
    %v4944 = vlaneseq
    %v4945 = vshrl.u32 %v4944, 7
    %v4946 = vsub.s32 %v4943, %v4945
    %v4947 = vrot.slane %v4410, %v4946
    %v4949 = vunpack.c.l.s4 1983009808
    %v4950 = vunpack.c.0.s8 %v4949
    %v4951 = vlaneseq
    %v4952 = vshrl.u32 %v4951, 7
    %v4953 = vsub.s32 %v4950, %v4952
    %v4954 = vrot.slane %v4940, %v4953
    %v4955 = vcombine.high %v4947, %v4947
    %v4956 = vcombine.high %v4954, %v4954
    %v4957 = vcombine.high %v4411, %v4411
    %v4959 = vunpack.c.l.s4 1983009808
    %v4960 = vunpack.c.0.s8 %v4959
    %v4961 = vlaneseq
    %v4962 = vshrl.u32 %v4961, 7
    %v4963 = vsub.s32 %v4960, %v4962
    %v4964 = vrot.slane %v4411, %v4963
    %v4966 = vunpack.c.l.s4 1983009808
    %v4967 = vunpack.c.0.s8 %v4966
    %v4968 = vlaneseq
    %v4969 = vshrl.u32 %v4968, 7
    %v4970 = vsub.s32 %v4967, %v4969
    %v4971 = vrot.slane %v4957, %v4970
    %v4972 = vcombine.high %v4964, %v4964
    %v4973 = vcombine.high %v4971, %v4971
    %v4974 = vcombine.high %v4412, %v4412
    %v4976 = vunpack.c.l.s4 1983009808
    %v4977 = vunpack.c.0.s8 %v4976
    %v4978 = vlaneseq
    %v4979 = vshrl.u32 %v4978, 7
    %v4980 = vsub.s32 %v4977, %v4979
    %v4981 = vrot.slane %v4412, %v4980
    %v4983 = vunpack.c.l.s4 1983009808
    %v4984 = vunpack.c.0.s8 %v4983
    %v4985 = vlaneseq
    %v4986 = vshrl.u32 %v4985, 7
    %v4987 = vsub.s32 %v4984, %v4986
    %v4988 = vrot.slane %v4974, %v4987
    %v4989 = vcombine.high %v4981, %v4981
    %v4990 = vcombine.high %v4988, %v4988
    %v4991 = vcombine.high %v4413, %v4413
    %v4993 = vunpack.c.l.s4 1983009808
    %v4994 = vunpack.c.0.s8 %v4993
    %v4995 = vlaneseq
    %v4996 = vshrl.u32 %v4995, 7
    %v4997 = vsub.s32 %v4994, %v4996
    %v4998 = vrot.slane %v4413, %v4997
    %v5000 = vunpack.c.l.s4 1983009808
    %v5001 = vunpack.c.0.s8 %v5000
    %v5002 = vlaneseq
    %v5003 = vshrl.u32 %v5002, 7
    %v5004 = vsub.s32 %v5001, %v5003
    %v5005 = vrot.slane %v4991, %v5004
    %v5006 = vcombine.high %v4998, %v4998
    %v5007 = vcombine.high %v5005, %v5005
    %v5008 = vcombine.high %v4414, %v4414
    %v5010 = vunpack.c.l.s4 1983009808
    %v5011 = vunpack.c.0.s8 %v5010
    %v5012 = vlaneseq
    %v5013 = vshrl.u32 %v5012, 7
    %v5014 = vsub.s32 %v5011, %v5013
    %v5015 = vrot.slane %v4414, %v5014
    %v5017 = vunpack.c.l.s4 1983009808
    %v5018 = vunpack.c.0.s8 %v5017
    %v5019 = vlaneseq
    %v5020 = vshrl.u32 %v5019, 7
    %v5021 = vsub.s32 %v5018, %v5020
    %v5022 = vrot.slane %v5008, %v5021
    %v5023 = vcombine.high %v5015, %v5015
    %v5024 = vcombine.high %v5022, %v5022
    %v5025 = vcombine.high %v4415, %v4415
    %v5027 = vunpack.c.l.s4 1983009808
    %v5028 = vunpack.c.0.s8 %v5027
    %v5029 = vlaneseq
    %v5030 = vshrl.u32 %v5029, 7
    %v5031 = vsub.s32 %v5028, %v5030
    %v5032 = vrot.slane %v4415, %v5031
    %v5034 = vunpack.c.l.s4 1983009808
    %v5035 = vunpack.c.0.s8 %v5034
    %v5036 = vlaneseq
    %v5037 = vshrl.u32 %v5036, 7
    %v5038 = vsub.s32 %v5035, %v5037
    %v5039 = vrot.slane %v5025, %v5038
    %v5040 = vcombine.high %v5032, %v5032
    %v5041 = vcombine.high %v5039, %v5039
    %v5042 = vcombine.high %v4416, %v4416
    %v5044 = vunpack.c.l.s4 1983009808
    %v5045 = vunpack.c.0.s8 %v5044
    %v5046 = vlaneseq
    %v5047 = vshrl.u32 %v5046, 7
    %v5048 = vsub.s32 %v5045, %v5047
    %v5049 = vrot.slane %v4416, %v5048
    %v5051 = vunpack.c.l.s4 1983009808
    %v5052 = vunpack.c.0.s8 %v5051
    %v5053 = vlaneseq
    %v5054 = vshrl.u32 %v5053, 7
    %v5055 = vsub.s32 %v5052, %v5054
    %v5056 = vrot.slane %v5042, %v5055
    %v5057 = vcombine.high %v5049, %v5049
    %v5058 = vcombine.high %v5056, %v5056
    %v5059 = vcombine.high %v4417, %v4417
    %v5061 = vunpack.c.l.s4 1983009808
    %v5062 = vunpack.c.0.s8 %v5061
    %v5063 = vlaneseq
    %v5064 = vshrl.u32 %v5063, 7
    %v5065 = vsub.s32 %v5062, %v5064
    %v5066 = vrot.slane %v4417, %v5065
    %v5068 = vunpack.c.l.s4 1983009808
    %v5069 = vunpack.c.0.s8 %v5068
    %v5070 = vlaneseq
    %v5071 = vshrl.u32 %v5070, 7
    %v5072 = vsub.s32 %v5069, %v5071
    %v5073 = vrot.slane %v5059, %v5072
    %v5074 = vcombine.high %v5066, %v5066
    %v5075 = vcombine.high %v5073, %v5073
    %v5076 = vcombine.high %v4418, %v4418
    %v5078 = vunpack.c.l.s4 1983009808
    %v5079 = vunpack.c.0.s8 %v5078
    %v5080 = vlaneseq
    %v5081 = vshrl.u32 %v5080, 7
    %v5082 = vsub.s32 %v5079, %v5081
    %v5083 = vrot.slane %v4418, %v5082
    %v5085 = vunpack.c.l.s4 1983009808
    %v5086 = vunpack.c.0.s8 %v5085
    %v5087 = vlaneseq
    %v5088 = vshrl.u32 %v5087, 7
    %v5089 = vsub.s32 %v5086, %v5088
    %v5090 = vrot.slane %v5076, %v5089
    %v5091 = vcombine.high %v5083, %v5083
    %v5092 = vcombine.high %v5090, %v5090
    %v5093 = vcombine.high %v4419, %v4419
    %v5095 = vunpack.c.l.s4 1983009808
    %v5096 = vunpack.c.0.s8 %v5095
    %v5097 = vlaneseq
    %v5098 = vshrl.u32 %v5097, 7
    %v5099 = vsub.s32 %v5096, %v5098
    %v5100 = vrot.slane %v4419, %v5099
    %v5102 = vunpack.c.l.s4 1983009808
    %v5103 = vunpack.c.0.s8 %v5102
    %v5104 = vlaneseq
    %v5105 = vshrl.u32 %v5104, 7
    %v5106 = vsub.s32 %v5103, %v5105
    %v5107 = vrot.slane %v5093, %v5106
    %v5108 = vcombine.high %v5100, %v5100
    %v5109 = vcombine.high %v5107, %v5107
    %v5110 = vcombine.high %v4420, %v4420
    %v5112 = vunpack.c.l.s4 1983009808
    %v5113 = vunpack.c.0.s8 %v5112
    %v5114 = vlaneseq
    %v5115 = vshrl.u32 %v5114, 7
    %v5116 = vsub.s32 %v5113, %v5115
    %v5117 = vrot.slane %v4420, %v5116
    %v5119 = vunpack.c.l.s4 1983009808
    %v5120 = vunpack.c.0.s8 %v5119
    %v5121 = vlaneseq
    %v5122 = vshrl.u32 %v5121, 7
    %v5123 = vsub.s32 %v5120, %v5122
    %v5124 = vrot.slane %v5110, %v5123
    %v5125 = vcombine.high %v5117, %v5117
    %v5126 = vcombine.high %v5124, %v5124
    %v5127 = vcombine.high %v4421, %v4421
    %v5129 = vunpack.c.l.s4 1983009808
    %v5130 = vunpack.c.0.s8 %v5129
    %v5131 = vlaneseq
    %v5132 = vshrl.u32 %v5131, 7
    %v5133 = vsub.s32 %v5130, %v5132
    %v5134 = vrot.slane %v4421, %v5133
    %v5136 = vunpack.c.l.s4 1983009808
    %v5137 = vunpack.c.0.s8 %v5136
    %v5138 = vlaneseq
    %v5139 = vshrl.u32 %v5138, 7
    %v5140 = vsub.s32 %v5137, %v5139
    %v5141 = vrot.slane %v5127, %v5140
    %v5142 = vcombine.high %v5134, %v5134
    %v5143 = vcombine.high %v5141, %v5141
    %v5144 = vcombine.high %v4422, %v4422
    %v5146 = vunpack.c.l.s4 1983009808
    %v5147 = vunpack.c.0.s8 %v5146
    %v5148 = vlaneseq
    %v5149 = vshrl.u32 %v5148, 7
    %v5150 = vsub.s32 %v5147, %v5149
    %v5151 = vrot.slane %v4422, %v5150
    %v5153 = vunpack.c.l.s4 1983009808
    %v5154 = vunpack.c.0.s8 %v5153
    %v5155 = vlaneseq
    %v5156 = vshrl.u32 %v5155, 7
    %v5157 = vsub.s32 %v5154, %v5156
    %v5158 = vrot.slane %v5144, %v5157
    %v5159 = vcombine.high %v5151, %v5151
    %v5160 = vcombine.high %v5158, %v5158
    %v5161 = vcombine.high %v4423, %v4423
    %v5163 = vunpack.c.l.s4 1983009808
    %v5164 = vunpack.c.0.s8 %v5163
    %v5165 = vlaneseq
    %v5166 = vshrl.u32 %v5165, 7
    %v5167 = vsub.s32 %v5164, %v5166
    %v5168 = vrot.slane %v4423, %v5167
    %v5170 = vunpack.c.l.s4 1983009808
    %v5171 = vunpack.c.0.s8 %v5170
    %v5172 = vlaneseq
    %v5173 = vshrl.u32 %v5172, 7
    %v5174 = vsub.s32 %v5171, %v5173
    %v5175 = vrot.slane %v5161, %v5174
    %v5176 = vcombine.high %v5168, %v5168
    %v5177 = vcombine.high %v5175, %v5175
    %v5178 = vcombine.high %v4424, %v4424
    %v5180 = vunpack.c.l.s4 1983009808
    %v5181 = vunpack.c.0.s8 %v5180
    %v5182 = vlaneseq
    %v5183 = vshrl.u32 %v5182, 7
    %v5184 = vsub.s32 %v5181, %v5183
    %v5185 = vrot.slane %v4424, %v5184
    %v5187 = vunpack.c.l.s4 1983009808
    %v5188 = vunpack.c.0.s8 %v5187
    %v5189 = vlaneseq
    %v5190 = vshrl.u32 %v5189, 7
    %v5191 = vsub.s32 %v5188, %v5190
    %v5192 = vrot.slane %v5178, %v5191
    %v5193 = vcombine.high %v5185, %v5185
    %v5194 = vcombine.high %v5192, %v5192
    %v5195 = vcombine.high %v4425, %v4425
    %v5197 = vunpack.c.l.s4 1983009808
    %v5198 = vunpack.c.0.s8 %v5197
    %v5199 = vlaneseq
    %v5200 = vshrl.u32 %v5199, 7
    %v5201 = vsub.s32 %v5198, %v5200
    %v5202 = vrot.slane %v4425, %v5201
    %v5204 = vunpack.c.l.s4 1983009808
    %v5205 = vunpack.c.0.s8 %v5204
    %v5206 = vlaneseq
    %v5207 = vshrl.u32 %v5206, 7
    %v5208 = vsub.s32 %v5205, %v5207
    %v5209 = vrot.slane %v5195, %v5208
    %v5210 = vcombine.high %v5202, %v5202
    %v5211 = vcombine.high %v5209, %v5209
    %v5212 = vcombine.high %v4426, %v4426
    %v5214 = vunpack.c.l.s4 1983009808
    %v5215 = vunpack.c.0.s8 %v5214
    %v5216 = vlaneseq
    %v5217 = vshrl.u32 %v5216, 7
    %v5218 = vsub.s32 %v5215, %v5217
    %v5219 = vrot.slane %v4426, %v5218
    %v5221 = vunpack.c.l.s4 1983009808
    %v5222 = vunpack.c.0.s8 %v5221
    %v5223 = vlaneseq
    %v5224 = vshrl.u32 %v5223, 7
    %v5225 = vsub.s32 %v5222, %v5224
    %v5226 = vrot.slane %v5212, %v5225
    %v5227 = vcombine.high %v5219, %v5219
    %v5228 = vcombine.high %v5226, %v5226
    %v5229 = vcombine.high %v4427, %v4427
    %v5231 = vunpack.c.l.s4 1983009808
    %v5232 = vunpack.c.0.s8 %v5231
    %v5233 = vlaneseq
    %v5234 = vshrl.u32 %v5233, 7
    %v5235 = vsub.s32 %v5232, %v5234
    %v5236 = vrot.slane %v4427, %v5235
    %v5238 = vunpack.c.l.s4 1983009808
    %v5239 = vunpack.c.0.s8 %v5238
    %v5240 = vlaneseq
    %v5241 = vshrl.u32 %v5240, 7
    %v5242 = vsub.s32 %v5239, %v5241
    %v5243 = vrot.slane %v5229, %v5242
    %v5244 = vcombine.high %v5236, %v5236
    %v5245 = vcombine.high %v5243, %v5243
    %v5246 = vcombine.high %v4428, %v4428
    %v5248 = vunpack.c.l.s4 1983009808
    %v5249 = vunpack.c.0.s8 %v5248
    %v5250 = vlaneseq
    %v5251 = vshrl.u32 %v5250, 7
    %v5252 = vsub.s32 %v5249, %v5251
    %v5253 = vrot.slane %v4428, %v5252
    %v5255 = vunpack.c.l.s4 1983009808
    %v5256 = vunpack.c.0.s8 %v5255
    %v5257 = vlaneseq
    %v5258 = vshrl.u32 %v5257, 7
    %v5259 = vsub.s32 %v5256, %v5258
    %v5260 = vrot.slane %v5246, %v5259
    %v5261 = vcombine.high %v5253, %v5253
    %v5262 = vcombine.high %v5260, %v5260
    %v5263 = vcombine.high %v4429, %v4429
    %v5265 = vunpack.c.l.s4 1983009808
    %v5266 = vunpack.c.0.s8 %v5265
    %v5267 = vlaneseq
    %v5268 = vshrl.u32 %v5267, 7
    %v5269 = vsub.s32 %v5266, %v5268
    %v5270 = vrot.slane %v4429, %v5269
    %v5272 = vunpack.c.l.s4 1983009808
    %v5273 = vunpack.c.0.s8 %v5272
    %v5274 = vlaneseq
    %v5275 = vshrl.u32 %v5274, 7
    %v5276 = vsub.s32 %v5273, %v5275
    %v5277 = vrot.slane %v5263, %v5276
    %v5278 = vcombine.high %v5270, %v5270
    %v5279 = vcombine.high %v5277, %v5277
    %v5280 = vcombine.high %v4430, %v4430
    %v5282 = vunpack.c.l.s4 1983009808
    %v5283 = vunpack.c.0.s8 %v5282
    %v5284 = vlaneseq
    %v5285 = vshrl.u32 %v5284, 7
    %v5286 = vsub.s32 %v5283, %v5285
    %v5287 = vrot.slane %v4430, %v5286
    %v5289 = vunpack.c.l.s4 1983009808
    %v5290 = vunpack.c.0.s8 %v5289
    %v5291 = vlaneseq
    %v5292 = vshrl.u32 %v5291, 7
    %v5293 = vsub.s32 %v5290, %v5292
    %v5294 = vrot.slane %v5280, %v5293
    %v5295 = vcombine.high %v5287, %v5287
    %v5296 = vcombine.high %v5294, %v5294
    %v5297 = vcombine.high %v4431, %v4431
    %v5299 = vunpack.c.l.s4 1983009808
    %v5300 = vunpack.c.0.s8 %v5299
    %v5301 = vlaneseq
    %v5302 = vshrl.u32 %v5301, 7
    %v5303 = vsub.s32 %v5300, %v5302
    %v5304 = vrot.slane %v4431, %v5303
    %v5306 = vunpack.c.l.s4 1983009808
    %v5307 = vunpack.c.0.s8 %v5306
    %v5308 = vlaneseq
    %v5309 = vshrl.u32 %v5308, 7
    %v5310 = vsub.s32 %v5307, %v5309
    %v5311 = vrot.slane %v5297, %v5310
    %v5312 = vcombine.high %v5304, %v5304
    %v5313 = vcombine.high %v5311, %v5311
    %v5314 = vcombine.low %v4488, %v4496
    %v5315 = vcombine.low %v4495, %v4497
    %v5317 = vunpack.c.l.s4 1983009808
    %v5318 = vunpack.c.0.s8 %v5317
    %v5319 = vlaneseq
    %v5320 = vshrl.u32 %v5319, 7
    %v5321 = vsub.s32 %v5318, %v5320
    %v5322 = vrot.slane %v5314, %v5321
    %v5324 = vunpack.c.l.s4 1983009808
    %v5325 = vunpack.c.0.s8 %v5324
    %v5326 = vlaneseq
    %v5327 = vshrl.u32 %v5326, 7
    %v5328 = vsub.s32 %v5325, %v5327
    %v5329 = vrot.slane %v5315, %v5328
    %v5330 = vcombine.low %v5322, %v5329
    %v5331 = vcombine.low %v4505, %v4513
    %v5333 = vunpack.c.l.s4 1983009808
    %v5334 = vunpack.c.0.s8 %v5333
    %v5335 = vlaneseq
    %v5336 = vshrl.u32 %v5335, 7
    %v5337 = vsub.s32 %v5334, %v5336
    %v5338 = vrot.slane %v5331, %v5337
    %v5339 = vcombine.low %v4514, %v4522
    %v5340 = vcombine.low %v4530, %v4529
    %v5342 = vunpack.c.l.s4 1983009808
    %v5343 = vunpack.c.0.s8 %v5342
    %v5344 = vlaneseq
    %v5345 = vshrl.u32 %v5344, 7
    %v5346 = vsub.s32 %v5343, %v5345
    %v5347 = vrot.slane %v5339, %v5346
    %v5349 = vunpack.c.l.s4 1983009808
    %v5350 = vunpack.c.0.s8 %v5349
    %v5351 = vlaneseq
    %v5352 = vshrl.u32 %v5351, 7
    %v5353 = vsub.s32 %v5350, %v5352
    %v5354 = vrot.slane %v5340, %v5353
    %v5355 = vcombine.low %v5347, %v5354
    %v5356 = vcombine.low %v4531, %v4539
    %v5358 = vunpack.c.l.s4 1983009808
    %v5359 = vunpack.c.0.s8 %v5358
    %v5360 = vlaneseq
    %v5361 = vshrl.u32 %v5360, 7
    %v5362 = vsub.s32 %v5359, %v5361
    %v5363 = vrot.slane %v5356, %v5362
    %v5364 = vcombine.low %v4546, %v4548
    %v5365 = vcombine.low %v4556, %v4564
    %v5367 = vunpack.c.l.s4 1983009808
    %v5368 = vunpack.c.0.s8 %v5367
    %v5369 = vlaneseq
    %v5370 = vshrl.u32 %v5369, 7
    %v5371 = vsub.s32 %v5368, %v5370
    %v5372 = vrot.slane %v5364, %v5371
    %v5374 = vunpack.c.l.s4 1983009808
    %v5375 = vunpack.c.0.s8 %v5374
    %v5376 = vlaneseq
    %v5377 = vshrl.u32 %v5376, 7
    %v5378 = vsub.s32 %v5375, %v5377
    %v5379 = vrot.slane %v5365, %v5378
    %v5380 = vcombine.low %v5372, %v5379
    %v5381 = vcombine.low %v4563, %v4565
    %v5383 = vunpack.c.l.s4 1983009808
    %v5384 = vunpack.c.0.s8 %v5383
    %v5385 = vlaneseq
    %v5386 = vshrl.u32 %v5385, 7
    %v5387 = vsub.s32 %v5384, %v5386
    %v5388 = vrot.slane %v5381, %v5387
    %v5389 = vcombine.low %v4581, %v4580
    %v5390 = vcombine.low %v4582, %v4590
    %v5392 = vunpack.c.l.s4 1983009808
    %v5393 = vunpack.c.0.s8 %v5392
    %v5394 = vlaneseq
    %v5395 = vshrl.u32 %v5394, 7
    %v5396 = vsub.s32 %v5393, %v5395
    %v5397 = vrot.slane %v5389, %v5396
    %v5399 = vunpack.c.l.s4 1983009808
    %v5400 = vunpack.c.0.s8 %v5399
    %v5401 = vlaneseq
    %v5402 = vshrl.u32 %v5401, 7
    %v5403 = vsub.s32 %v5400, %v5402
    %v5404 = vrot.slane %v5390, %v5403
    %v5405 = vcombine.low %v5397, %v5404
    %v5406 = vcombine.low %v4598, %v4597
    %v5408 = vunpack.c.l.s4 1983009808
    %v5409 = vunpack.c.0.s8 %v5408
    %v5410 = vlaneseq
    %v5411 = vshrl.u32 %v5410, 7
    %v5412 = vsub.s32 %v5409, %v5411
    %v5413 = vrot.slane %v5406, %v5412
    %v5414 = vcombine.low %v4607, %v4615
    %v5415 = vcombine.low %v4614, %v4616
    %v5417 = vunpack.c.l.s4 1983009808
    %v5418 = vunpack.c.0.s8 %v5417
    %v5419 = vlaneseq
    %v5420 = vshrl.u32 %v5419, 7
    %v5421 = vsub.s32 %v5418, %v5420
    %v5422 = vrot.slane %v5414, %v5421
    %v5424 = vunpack.c.l.s4 1983009808
    %v5425 = vunpack.c.0.s8 %v5424
    %v5426 = vlaneseq
    %v5427 = vshrl.u32 %v5426, 7
    %v5428 = vsub.s32 %v5425, %v5427
    %v5429 = vrot.slane %v5415, %v5428
    %v5430 = vcombine.low %v5422, %v5429
    %v5431 = vcombine.low %v4624, %v4632
    %v5433 = vunpack.c.l.s4 1983009808
    %v5434 = vunpack.c.0.s8 %v5433
    %v5435 = vlaneseq
    %v5436 = vshrl.u32 %v5435, 7
    %v5437 = vsub.s32 %v5434, %v5436
    %v5438 = vrot.slane %v5431, %v5437
    %v5439 = vcombine.low %v4633, %v4641
    %v5440 = vcombine.low %v4649, %v4648
    %v5442 = vunpack.c.l.s4 1983009808
    %v5443 = vunpack.c.0.s8 %v5442
    %v5444 = vlaneseq
    %v5445 = vshrl.u32 %v5444, 7
    %v5446 = vsub.s32 %v5443, %v5445
    %v5447 = vrot.slane %v5439, %v5446
    %v5449 = vunpack.c.l.s4 1983009808
    %v5450 = vunpack.c.0.s8 %v5449
    %v5451 = vlaneseq
    %v5452 = vshrl.u32 %v5451, 7
    %v5453 = vsub.s32 %v5450, %v5452
    %v5454 = vrot.slane %v5440, %v5453
    %v5455 = vcombine.low %v5447, %v5454
    %v5456 = vcombine.low %v4650, %v4658
    %v5458 = vunpack.c.l.s4 1983009808
    %v5459 = vunpack.c.0.s8 %v5458
    %v5460 = vlaneseq
    %v5461 = vshrl.u32 %v5460, 7
    %v5462 = vsub.s32 %v5459, %v5461
    %v5463 = vrot.slane %v5456, %v5462
    %v5464 = vcombine.low %v4665, %v4667
    %v5465 = vcombine.low %v4675, %v4683
    %v5467 = vunpack.c.l.s4 1983009808
    %v5468 = vunpack.c.0.s8 %v5467
    %v5469 = vlaneseq
    %v5470 = vshrl.u32 %v5469, 7
    %v5471 = vsub.s32 %v5468, %v5470
    %v5472 = vrot.slane %v5464, %v5471
    %v5474 = vunpack.c.l.s4 1983009808
    %v5475 = vunpack.c.0.s8 %v5474
    %v5476 = vlaneseq
    %v5477 = vshrl.u32 %v5476, 7
    %v5478 = vsub.s32 %v5475, %v5477
    %v5479 = vrot.slane %v5465, %v5478
    %v5480 = vcombine.low %v5472, %v5479
    %v5481 = vcombine.low %v4682, %v4684
    %v5483 = vunpack.c.l.s4 1983009808
    %v5484 = vunpack.c.0.s8 %v5483
    %v5485 = vlaneseq
    %v5486 = vshrl.u32 %v5485, 7
    %v5487 = vsub.s32 %v5484, %v5486
    %v5488 = vrot.slane %v5481, %v5487
    %v5489 = vcombine.low %v4700, %v4699
    %v5490 = vcombine.low %v4701, %v4709
    %v5492 = vunpack.c.l.s4 1983009808
    %v5493 = vunpack.c.0.s8 %v5492
    %v5494 = vlaneseq
    %v5495 = vshrl.u32 %v5494, 7
    %v5496 = vsub.s32 %v5493, %v5495
    %v5497 = vrot.slane %v5489, %v5496
    %v5499 = vunpack.c.l.s4 1983009808
    %v5500 = vunpack.c.0.s8 %v5499
    %v5501 = vlaneseq
    %v5502 = vshrl.u32 %v5501, 7
    %v5503 = vsub.s32 %v5500, %v5502
    %v5504 = vrot.slane %v5490, %v5503
    %v5505 = vcombine.low %v5497, %v5504
    %v5506 = vcombine.low %v4717, %v4716
    %v5508 = vunpack.c.l.s4 1983009808
    %v5509 = vunpack.c.0.s8 %v5508
    %v5510 = vlaneseq
    %v5511 = vshrl.u32 %v5510, 7
    %v5512 = vsub.s32 %v5509, %v5511
    %v5513 = vrot.slane %v5506, %v5512
    %v5514 = vcombine.low %v4726, %v4734
    %v5515 = vcombine.low %v4733, %v4735
    %v5517 = vunpack.c.l.s4 1983009808
    %v5518 = vunpack.c.0.s8 %v5517
    %v5519 = vlaneseq
    %v5520 = vshrl.u32 %v5519, 7
    %v5521 = vsub.s32 %v5518, %v5520
    %v5522 = vrot.slane %v5514, %v5521
    %v5524 = vunpack.c.l.s4 1983009808
    %v5525 = vunpack.c.0.s8 %v5524
    %v5526 = vlaneseq
    %v5527 = vshrl.u32 %v5526, 7
    %v5528 = vsub.s32 %v5525, %v5527
    %v5529 = vrot.slane %v5515, %v5528
    %v5530 = vcombine.low %v5522, %v5529
    %v5531 = vcombine.low %v4743, %v4751
    %v5533 = vunpack.c.l.s4 1983009808
    %v5534 = vunpack.c.0.s8 %v5533
    %v5535 = vlaneseq
    %v5536 = vshrl.u32 %v5535, 7
    %v5537 = vsub.s32 %v5534, %v5536
    %v5538 = vrot.slane %v5531, %v5537
    %v5539 = vcombine.low %v4752, %v4760
    %v5540 = vcombine.low %v4768, %v4767
    %v5542 = vunpack.c.l.s4 1983009808
    %v5543 = vunpack.c.0.s8 %v5542
    %v5544 = vlaneseq
    %v5545 = vshrl.u32 %v5544, 7
    %v5546 = vsub.s32 %v5543, %v5545
    %v5547 = vrot.slane %v5539, %v5546
    %v5549 = vunpack.c.l.s4 1983009808
    %v5550 = vunpack.c.0.s8 %v5549
    %v5551 = vlaneseq
    %v5552 = vshrl.u32 %v5551, 7
    %v5553 = vsub.s32 %v5550, %v5552
    %v5554 = vrot.slane %v5540, %v5553
    %v5555 = vcombine.low %v5547, %v5554
    %v5556 = vcombine.low %v4769, %v4777
    %v5558 = vunpack.c.l.s4 1983009808
    %v5559 = vunpack.c.0.s8 %v5558
    %v5560 = vlaneseq
    %v5561 = vshrl.u32 %v5560, 7
    %v5562 = vsub.s32 %v5559, %v5561
    %v5563 = vrot.slane %v5556, %v5562
    %v5564 = vcombine.low %v4784, %v4786
    %v5565 = vcombine.low %v4794, %v4802
    %v5567 = vunpack.c.l.s4 1983009808
    %v5568 = vunpack.c.0.s8 %v5567
    %v5569 = vlaneseq
    %v5570 = vshrl.u32 %v5569, 7
    %v5571 = vsub.s32 %v5568, %v5570
    %v5572 = vrot.slane %v5564, %v5571
    %v5574 = vunpack.c.l.s4 1983009808
    %v5575 = vunpack.c.0.s8 %v5574
    %v5576 = vlaneseq
    %v5577 = vshrl.u32 %v5576, 7
    %v5578 = vsub.s32 %v5575, %v5577
    %v5579 = vrot.slane %v5565, %v5578
    %v5580 = vcombine.low %v5572, %v5579
    %v5581 = vcombine.low %v4801, %v4803
    %v5583 = vunpack.c.l.s4 1983009808
    %v5584 = vunpack.c.0.s8 %v5583
    %v5585 = vlaneseq
    %v5586 = vshrl.u32 %v5585, 7
    %v5587 = vsub.s32 %v5584, %v5586
    %v5588 = vrot.slane %v5581, %v5587
    %v5589 = vcombine.low %v4819, %v4818
    %v5590 = vcombine.low %v4820, %v4828
    %v5592 = vunpack.c.l.s4 1983009808
    %v5593 = vunpack.c.0.s8 %v5592
    %v5594 = vlaneseq
    %v5595 = vshrl.u32 %v5594, 7
    %v5596 = vsub.s32 %v5593, %v5595
    %v5597 = vrot.slane %v5589, %v5596
    %v5599 = vunpack.c.l.s4 1983009808
    %v5600 = vunpack.c.0.s8 %v5599
    %v5601 = vlaneseq
    %v5602 = vshrl.u32 %v5601, 7
    %v5603 = vsub.s32 %v5600, %v5602
    %v5604 = vrot.slane %v5590, %v5603
    %v5605 = vcombine.low %v5597, %v5604
    %v5606 = vcombine.low %v4836, %v4835
    %v5608 = vunpack.c.l.s4 1983009808
    %v5609 = vunpack.c.0.s8 %v5608
    %v5610 = vlaneseq
    %v5611 = vshrl.u32 %v5610, 7
    %v5612 = vsub.s32 %v5609, %v5611
    %v5613 = vrot.slane %v5606, %v5612
    %v5614 = vcombine.low %v4903, %v4905
    %v5615 = vcombine.low %v4913, %v4921
    %v5617 = vunpack.c.l.s4 1983009808
    %v5618 = vunpack.c.0.s8 %v5617
    %v5619 = vlaneseq
    %v5620 = vshrl.u32 %v5619, 7
    %v5621 = vsub.s32 %v5618, %v5620
    %v5622 = vrot.slane %v5614, %v5621
    %v5624 = vunpack.c.l.s4 1983009808
    %v5625 = vunpack.c.0.s8 %v5624
    %v5626 = vlaneseq
    %v5627 = vshrl.u32 %v5626, 7
    %v5628 = vsub.s32 %v5625, %v5627
    %v5629 = vrot.slane %v5615, %v5628
    %v5630 = vcombine.low %v5622, %v5629
    %v5631 = vcombine.low %v4920, %v4922
    %v5633 = vunpack.c.l.s4 1983009808
    %v5634 = vunpack.c.0.s8 %v5633
    %v5635 = vlaneseq
    %v5636 = vshrl.u32 %v5635, 7
    %v5637 = vsub.s32 %v5634, %v5636
    %v5638 = vrot.slane %v5631, %v5637
    %v5639 = vcombine.low %v4938, %v4937
    %v5640 = vcombine.low %v4939, %v4947
    %v5642 = vunpack.c.l.s4 1983009808
    %v5643 = vunpack.c.0.s8 %v5642
    %v5644 = vlaneseq
    %v5645 = vshrl.u32 %v5644, 7
    %v5646 = vsub.s32 %v5643, %v5645
    %v5647 = vrot.slane %v5639, %v5646
    %v5649 = vunpack.c.l.s4 1983009808
    %v5650 = vunpack.c.0.s8 %v5649
    %v5651 = vlaneseq
    %v5652 = vshrl.u32 %v5651, 7
    %v5653 = vsub.s32 %v5650, %v5652
    %v5654 = vrot.slane %v5640, %v5653
    %v5655 = vcombine.low %v5647, %v5654
    %v5656 = vcombine.low %v4955, %v4954
    %v5658 = vunpack.c.l.s4 1983009808
    %v5659 = vunpack.c.0.s8 %v5658
    %v5660 = vlaneseq
    %v5661 = vshrl.u32 %v5660, 7
    %v5662 = vsub.s32 %v5659, %v5661
    %v5663 = vrot.slane %v5656, %v5662
    %v5664 = vcombine.low %v4964, %v4972
    %v5665 = vcombine.low %v4971, %v4973
    %v5667 = vunpack.c.l.s4 1983009808
    %v5668 = vunpack.c.0.s8 %v5667
    %v5669 = vlaneseq
    %v5670 = vshrl.u32 %v5669, 7
    %v5671 = vsub.s32 %v5668, %v5670
    %v5672 = vrot.slane %v5664, %v5671
    %v5674 = vunpack.c.l.s4 1983009808
    %v5675 = vunpack.c.0.s8 %v5674
    %v5676 = vlaneseq
    %v5677 = vshrl.u32 %v5676, 7
    %v5678 = vsub.s32 %v5675, %v5677
    %v5679 = vrot.slane %v5665, %v5678
    %v5680 = vcombine.low %v5672, %v5679
    %v5681 = vcombine.low %v4981, %v4989
    %v5683 = vunpack.c.l.s4 1983009808
    %v5684 = vunpack.c.0.s8 %v5683
    %v5685 = vlaneseq
    %v5686 = vshrl.u32 %v5685, 7
    %v5687 = vsub.s32 %v5684, %v5686
    %v5688 = vrot.slane %v5681, %v5687
    %v5689 = vcombine.low %v4990, %v4998
    %v5690 = vcombine.low %v5006, %v5005
    %v5692 = vunpack.c.l.s4 1983009808
    %v5693 = vunpack.c.0.s8 %v5692
    %v5694 = vlaneseq
    %v5695 = vshrl.u32 %v5694, 7
    %v5696 = vsub.s32 %v5693, %v5695
    %v5697 = vrot.slane %v5689, %v5696
    %v5699 = vunpack.c.l.s4 1983009808
    %v5700 = vunpack.c.0.s8 %v5699
    %v5701 = vlaneseq
    %v5702 = vshrl.u32 %v5701, 7
    %v5703 = vsub.s32 %v5700, %v5702
    %v5704 = vrot.slane %v5690, %v5703
    %v5705 = vcombine.low %v5697, %v5704
    %v5706 = vcombine.low %v5007, %v5015
    %v5708 = vunpack.c.l.s4 1983009808
    %v5709 = vunpack.c.0.s8 %v5708
    %v5710 = vlaneseq
    %v5711 = vshrl.u32 %v5710, 7
    %v5712 = vsub.s32 %v5709, %v5711
    %v5713 = vrot.slane %v5706, %v5712
    %v5714 = vcombine.low %v5022, %v5024
    %v5715 = vcombine.low %v5032, %v5040
    %v5717 = vunpack.c.l.s4 1983009808
    %v5718 = vunpack.c.0.s8 %v5717
    %v5719 = vlaneseq
    %v5720 = vshrl.u32 %v5719, 7
    %v5721 = vsub.s32 %v5718, %v5720
    %v5722 = vrot.slane %v5714, %v5721
    %v5724 = vunpack.c.l.s4 1983009808
    %v5725 = vunpack.c.0.s8 %v5724
    %v5726 = vlaneseq
    %v5727 = vshrl.u32 %v5726, 7
    %v5728 = vsub.s32 %v5725, %v5727
    %v5729 = vrot.slane %v5715, %v5728
    %v5730 = vcombine.low %v5722, %v5729
    %v5731 = vcombine.low %v5039, %v5041
    %v5733 = vunpack.c.l.s4 1983009808
    %v5734 = vunpack.c.0.s8 %v5733
    %v5735 = vlaneseq
    %v5736 = vshrl.u32 %v5735, 7
    %v5737 = vsub.s32 %v5734, %v5736
    %v5738 = vrot.slane %v5731, %v5737
    %v5739 = vcombine.low %v5057, %v5056
    %v5740 = vcombine.low %v5058, %v5066
    %v5742 = vunpack.c.l.s4 1983009808
    %v5743 = vunpack.c.0.s8 %v5742
    %v5744 = vlaneseq
    %v5745 = vshrl.u32 %v5744, 7
    %v5746 = vsub.s32 %v5743, %v5745
    %v5747 = vrot.slane %v5739, %v5746
    %v5749 = vunpack.c.l.s4 1983009808
    %v5750 = vunpack.c.0.s8 %v5749
    %v5751 = vlaneseq
    %v5752 = vshrl.u32 %v5751, 7
    %v5753 = vsub.s32 %v5750, %v5752
    %v5754 = vrot.slane %v5740, %v5753
    %v5755 = vcombine.low %v5747, %v5754
    %v5756 = vcombine.low %v5074, %v5073
    %v5758 = vunpack.c.l.s4 1983009808
    %v5759 = vunpack.c.0.s8 %v5758
    %v5760 = vlaneseq
    %v5761 = vshrl.u32 %v5760, 7
    %v5762 = vsub.s32 %v5759, %v5761
    %v5763 = vrot.slane %v5756, %v5762
    %v5764 = vcombine.low %v5083, %v5091
    %v5765 = vcombine.low %v5090, %v5092
    %v5767 = vunpack.c.l.s4 1983009808
    %v5768 = vunpack.c.0.s8 %v5767
    %v5769 = vlaneseq
    %v5770 = vshrl.u32 %v5769, 7
    %v5771 = vsub.s32 %v5768, %v5770
    %v5772 = vrot.slane %v5764, %v5771
    %v5774 = vunpack.c.l.s4 1983009808
    %v5775 = vunpack.c.0.s8 %v5774
    %v5776 = vlaneseq
    %v5777 = vshrl.u32 %v5776, 7
    %v5778 = vsub.s32 %v5775, %v5777
    %v5779 = vrot.slane %v5765, %v5778
    %v5780 = vcombine.low %v5772, %v5779
    %v5781 = vcombine.low %v5100, %v5108
    %v5783 = vunpack.c.l.s4 1983009808
    %v5784 = vunpack.c.0.s8 %v5783
    %v5785 = vlaneseq
    %v5786 = vshrl.u32 %v5785, 7
    %v5787 = vsub.s32 %v5784, %v5786
    %v5788 = vrot.slane %v5781, %v5787
    %v5789 = vcombine.low %v5109, %v5117
    %v5790 = vcombine.low %v5125, %v5124
    %v5792 = vunpack.c.l.s4 1983009808
    %v5793 = vunpack.c.0.s8 %v5792
    %v5794 = vlaneseq
    %v5795 = vshrl.u32 %v5794, 7
    %v5796 = vsub.s32 %v5793, %v5795
    %v5797 = vrot.slane %v5789, %v5796
    %v5799 = vunpack.c.l.s4 1983009808
    %v5800 = vunpack.c.0.s8 %v5799
    %v5801 = vlaneseq
    %v5802 = vshrl.u32 %v5801, 7
    %v5803 = vsub.s32 %v5800, %v5802
    %v5804 = vrot.slane %v5790, %v5803
    %v5805 = vcombine.low %v5797, %v5804
    %v5806 = vcombine.low %v5126, %v5134
    %v5808 = vunpack.c.l.s4 1983009808
    %v5809 = vunpack.c.0.s8 %v5808
    %v5810 = vlaneseq
    %v5811 = vshrl.u32 %v5810, 7
    %v5812 = vsub.s32 %v5809, %v5811
    %v5813 = vrot.slane %v5806, %v5812
    %v5814 = vcombine.low %v5141, %v5143
    %v5815 = vcombine.low %v5151, %v5159
    %v5817 = vunpack.c.l.s4 1983009808
    %v5818 = vunpack.c.0.s8 %v5817
    %v5819 = vlaneseq
    %v5820 = vshrl.u32 %v5819, 7
    %v5821 = vsub.s32 %v5818, %v5820
    %v5822 = vrot.slane %v5814, %v5821
    %v5824 = vunpack.c.l.s4 1983009808
    %v5825 = vunpack.c.0.s8 %v5824
    %v5826 = vlaneseq
    %v5827 = vshrl.u32 %v5826, 7
    %v5828 = vsub.s32 %v5825, %v5827
    %v5829 = vrot.slane %v5815, %v5828
    %v5830 = vcombine.low %v5822, %v5829
    %v5831 = vcombine.low %v5158, %v5160
    %v5833 = vunpack.c.l.s4 1983009808
    %v5834 = vunpack.c.0.s8 %v5833
    %v5835 = vlaneseq
    %v5836 = vshrl.u32 %v5835, 7
    %v5837 = vsub.s32 %v5834, %v5836
    %v5838 = vrot.slane %v5831, %v5837
    %v5839 = vcombine.low %v5176, %v5175
    %v5840 = vcombine.low %v5177, %v5185
    %v5842 = vunpack.c.l.s4 1983009808
    %v5843 = vunpack.c.0.s8 %v5842
    %v5844 = vlaneseq
    %v5845 = vshrl.u32 %v5844, 7
    %v5846 = vsub.s32 %v5843, %v5845
    %v5847 = vrot.slane %v5839, %v5846
    %v5849 = vunpack.c.l.s4 1983009808
    %v5850 = vunpack.c.0.s8 %v5849
    %v5851 = vlaneseq
    %v5852 = vshrl.u32 %v5851, 7
    %v5853 = vsub.s32 %v5850, %v5852
    %v5854 = vrot.slane %v5840, %v5853
    %v5855 = vcombine.low %v5847, %v5854
    %v5856 = vcombine.low %v5193, %v5192
    %v5858 = vunpack.c.l.s4 1983009808
    %v5859 = vunpack.c.0.s8 %v5858
    %v5860 = vlaneseq
    %v5861 = vshrl.u32 %v5860, 7
    %v5862 = vsub.s32 %v5859, %v5861
    %v5863 = vrot.slane %v5856, %v5862
    %v5864 = vcombine.low %v5202, %v5210
    %v5865 = vcombine.low %v5209, %v5211
    %v5867 = vunpack.c.l.s4 1983009808
    %v5868 = vunpack.c.0.s8 %v5867
    %v5869 = vlaneseq
    %v5870 = vshrl.u32 %v5869, 7
    %v5871 = vsub.s32 %v5868, %v5870
    %v5872 = vrot.slane %v5864, %v5871
    %v5874 = vunpack.c.l.s4 1983009808
    %v5875 = vunpack.c.0.s8 %v5874
    %v5876 = vlaneseq
    %v5877 = vshrl.u32 %v5876, 7
    %v5878 = vsub.s32 %v5875, %v5877
    %v5879 = vrot.slane %v5865, %v5878
    %v5880 = vcombine.low %v5872, %v5879
    %v5881 = vcombine.low %v5219, %v5227
    %v5883 = vunpack.c.l.s4 1983009808
    %v5884 = vunpack.c.0.s8 %v5883
    %v5885 = vlaneseq
    %v5886 = vshrl.u32 %v5885, 7
    %v5887 = vsub.s32 %v5884, %v5886
    %v5888 = vrot.slane %v5881, %v5887
    %v5889 = vcombine.low %v5228, %v5236
    %v5890 = vcombine.low %v5244, %v5243
    %v5892 = vunpack.c.l.s4 1983009808
    %v5893 = vunpack.c.0.s8 %v5892
    %v5894 = vlaneseq
    %v5895 = vshrl.u32 %v5894, 7
    %v5896 = vsub.s32 %v5893, %v5895
    %v5897 = vrot.slane %v5889, %v5896
    %v5899 = vunpack.c.l.s4 1983009808
    %v5900 = vunpack.c.0.s8 %v5899
    %v5901 = vlaneseq
    %v5902 = vshrl.u32 %v5901, 7
    %v5903 = vsub.s32 %v5900, %v5902
    %v5904 = vrot.slane %v5890, %v5903
    %v5905 = vcombine.low %v5897, %v5904
    %v5906 = vcombine.low %v5245, %v5253
    %v5908 = vunpack.c.l.s4 1983009808
    %v5909 = vunpack.c.0.s8 %v5908
    %v5910 = vlaneseq
    %v5911 = vshrl.u32 %v5910, 7
    %v5912 = vsub.s32 %v5909, %v5911
    %v5913 = vrot.slane %v5906, %v5912
    %v5963 = vunpack.c.l.s4 1983009808
    %v5964 = vunpack.c.0.s8 %v5963
    %v5965 = vlaneseq
    %v5966 = vshrl.u32 %v5965, 7
    %v5967 = vsub.s32 %v5964, %v5966
    %v5968 = vrot.slane %v4512, %v5967
    %v5969 = vcombine.low %v5338, %v5968
    %v5971 = vunpack.c.l.s4 1983009808
    %v5972 = vunpack.c.0.s8 %v5971
    %v5973 = vlaneseq
    %v5974 = vshrl.u32 %v5973, 7
    %v5975 = vsub.s32 %v5972, %v5974
    %v5976 = vrot.slane %v4547, %v5975
    %v5977 = vcombine.low %v5363, %v5976
    %v5979 = vunpack.c.l.s4 1983009808
    %v5980 = vunpack.c.0.s8 %v5979
    %v5981 = vlaneseq
    %v5982 = vshrl.u32 %v5981, 7
    %v5983 = vsub.s32 %v5980, %v5982
    %v5984 = vrot.slane %v4573, %v5983
    %v5985 = vcombine.low %v5388, %v5984
    %v5987 = vunpack.c.l.s4 1983009808
    %v5988 = vunpack.c.0.s8 %v5987
    %v5989 = vlaneseq
    %v5990 = vshrl.u32 %v5989, 7
    %v5991 = vsub.s32 %v5988, %v5990
    %v5992 = vrot.slane %v4599, %v5991
    %v5993 = vcombine.low %v5413, %v5992
    %v5995 = vunpack.c.l.s4 1983009808
    %v5996 = vunpack.c.0.s8 %v5995
    %v5997 = vlaneseq
    %v5998 = vshrl.u32 %v5997, 7
    %v5999 = vsub.s32 %v5996, %v5998
    %v6000 = vrot.slane %v4631, %v5999
    %v6001 = vcombine.low %v5438, %v6000
    %v6003 = vunpack.c.l.s4 1983009808
    %v6004 = vunpack.c.0.s8 %v6003
    %v6005 = vlaneseq
    %v6006 = vshrl.u32 %v6005, 7
    %v6007 = vsub.s32 %v6004, %v6006
    %v6008 = vrot.slane %v4666, %v6007
    %v6009 = vcombine.low %v5463, %v6008
    %v6011 = vunpack.c.l.s4 1983009808
    %v6012 = vunpack.c.0.s8 %v6011
    %v6013 = vlaneseq
    %v6014 = vshrl.u32 %v6013, 7
    %v6015 = vsub.s32 %v6012, %v6014
    %v6016 = vrot.slane %v4692, %v6015
    %v6017 = vcombine.low %v5488, %v6016
    %v6019 = vunpack.c.l.s4 1983009808
    %v6020 = vunpack.c.0.s8 %v6019
    %v6021 = vlaneseq
    %v6022 = vshrl.u32 %v6021, 7
    %v6023 = vsub.s32 %v6020, %v6022
    %v6024 = vrot.slane %v4718, %v6023
    %v6025 = vcombine.low %v5513, %v6024
    %v6027 = vunpack.c.l.s4 1983009808
    %v6028 = vunpack.c.0.s8 %v6027
    %v6029 = vlaneseq
    %v6030 = vshrl.u32 %v6029, 7
    %v6031 = vsub.s32 %v6028, %v6030
    %v6032 = vrot.slane %v4750, %v6031
    %v6033 = vcombine.low %v5538, %v6032
    %v6035 = vunpack.c.l.s4 1983009808
    %v6036 = vunpack.c.0.s8 %v6035
    %v6037 = vlaneseq
    %v6038 = vshrl.u32 %v6037, 7
    %v6039 = vsub.s32 %v6036, %v6038
    %v6040 = vrot.slane %v4785, %v6039
    %v6041 = vcombine.low %v5563, %v6040
    %v6043 = vunpack.c.l.s4 1983009808
    %v6044 = vunpack.c.0.s8 %v6043
    %v6045 = vlaneseq
    %v6046 = vshrl.u32 %v6045, 7
    %v6047 = vsub.s32 %v6044, %v6046
    %v6048 = vrot.slane %v4811, %v6047
    %v6049 = vcombine.low %v5588, %v6048
    %v6051 = vunpack.c.l.s4 1983009808
    %v6052 = vunpack.c.0.s8 %v6051
    %v6053 = vlaneseq
    %v6054 = vshrl.u32 %v6053, 7
    %v6055 = vsub.s32 %v6052, %v6054
    %v6056 = vrot.slane %v4837, %v6055
    %v6057 = vcombine.low %v5613, %v6056
    %v6059 = vunpack.c.l.s4 1983009808
    %v6060 = vunpack.c.0.s8 %v6059
    %v6061 = vlaneseq
    %v6062 = vshrl.u32 %v6061, 7
    %v6063 = vsub.s32 %v6060, %v6062
    %v6064 = vrot.slane %v4930, %v6063
    %v6065 = vcombine.low %v5638, %v6064
    %v6067 = vunpack.c.l.s4 1983009808
    %v6068 = vunpack.c.0.s8 %v6067
    %v6069 = vlaneseq
    %v6070 = vshrl.u32 %v6069, 7
    %v6071 = vsub.s32 %v6068, %v6070
    %v6072 = vrot.slane %v4956, %v6071
    %v6073 = vcombine.low %v5663, %v6072
    %v6075 = vunpack.c.l.s4 1983009808
    %v6076 = vunpack.c.0.s8 %v6075
    %v6077 = vlaneseq
    %v6078 = vshrl.u32 %v6077, 7
    %v6079 = vsub.s32 %v6076, %v6078
    %v6080 = vrot.slane %v4988, %v6079
    %v6081 = vcombine.low %v5688, %v6080
    %v6083 = vunpack.c.l.s4 1983009808
    %v6084 = vunpack.c.0.s8 %v6083
    %v6085 = vlaneseq
    %v6086 = vshrl.u32 %v6085, 7
    %v6087 = vsub.s32 %v6084, %v6086
    %v6088 = vrot.slane %v5023, %v6087
    %v6089 = vcombine.low %v5713, %v6088
    %v6091 = vunpack.c.l.s4 1983009808
    %v6092 = vunpack.c.0.s8 %v6091
    %v6093 = vlaneseq
    %v6094 = vshrl.u32 %v6093, 7
    %v6095 = vsub.s32 %v6092, %v6094
    %v6096 = vrot.slane %v5049, %v6095
    %v6097 = vcombine.low %v5738, %v6096
    %v6099 = vunpack.c.l.s4 1983009808
    %v6100 = vunpack.c.0.s8 %v6099
    %v6101 = vlaneseq
    %v6102 = vshrl.u32 %v6101, 7
    %v6103 = vsub.s32 %v6100, %v6102
    %v6104 = vrot.slane %v5075, %v6103
    %v6105 = vcombine.low %v5763, %v6104
    %v6107 = vunpack.c.l.s4 1983009808
    %v6108 = vunpack.c.0.s8 %v6107
    %v6109 = vlaneseq
    %v6110 = vshrl.u32 %v6109, 7
    %v6111 = vsub.s32 %v6108, %v6110
    %v6112 = vrot.slane %v5107, %v6111
    %v6113 = vcombine.low %v5788, %v6112
    %v6115 = vunpack.c.l.s4 1983009808
    %v6116 = vunpack.c.0.s8 %v6115
    %v6117 = vlaneseq
    %v6118 = vshrl.u32 %v6117, 7
    %v6119 = vsub.s32 %v6116, %v6118
    %v6120 = vrot.slane %v5142, %v6119
    %v6121 = vcombine.low %v5813, %v6120
    %v6123 = vunpack.c.l.s4 1983009808
    %v6124 = vunpack.c.0.s8 %v6123
    %v6125 = vlaneseq
    %v6126 = vshrl.u32 %v6125, 7
    %v6127 = vsub.s32 %v6124, %v6126
    %v6128 = vrot.slane %v5168, %v6127
    %v6129 = vcombine.low %v5838, %v6128
    %v6131 = vunpack.c.l.s4 1983009808
    %v6132 = vunpack.c.0.s8 %v6131
    %v6133 = vlaneseq
    %v6134 = vshrl.u32 %v6133, 7
    %v6135 = vsub.s32 %v6132, %v6134
    %v6136 = vrot.slane %v5194, %v6135
    %v6137 = vcombine.low %v5863, %v6136
    %v6139 = vunpack.c.l.s4 1983009808
    %v6140 = vunpack.c.0.s8 %v6139
    %v6141 = vlaneseq
    %v6142 = vshrl.u32 %v6141, 7
    %v6143 = vsub.s32 %v6140, %v6142
    %v6144 = vrot.slane %v5226, %v6143
    %v6145 = vcombine.low %v5888, %v6144
    %v6147 = vunpack.c.l.s4 1983009808
    %v6148 = vunpack.c.0.s8 %v6147
    %v6149 = vlaneseq
    %v6150 = vshrl.u32 %v6149, 7
    %v6151 = vsub.s32 %v6148, %v6150
    %v6152 = vrot.slane %v5261, %v6151
    %v6153 = vcombine.low %v5913, %v6152
    %v6154 = vrot.slane %v5330, 1
    %v6155 = vrot.slane %v5969, 1
    %v6156 = vsel %vm146, %v6154, %v6155
    %v6157 = vrot.slane %v5355, 1
    %v6158 = vrot.slane %v5977, 1
    %v6159 = vsel %vm146, %v6157, %v6158
    %v6160 = vrot.slane %v5380, 1
    %v6161 = vrot.slane %v5985, 1
    %v6162 = vsel %vm146, %v6160, %v6161
    %v6163 = vrot.slane %v5405, 1
    %v6164 = vrot.slane %v5993, 1
    %v6165 = vsel %vm146, %v6163, %v6164
    %v6166 = vrot.slane %v5430, 1
    %v6167 = vrot.slane %v6001, 1
    %v6168 = vsel %vm146, %v6166, %v6167
    %v6169 = vrot.slane %v5455, 1
    %v6170 = vrot.slane %v6009, 1
    %v6171 = vsel %vm146, %v6169, %v6170
    %v6172 = vrot.slane %v5480, 1
    %v6173 = vrot.slane %v6017, 1
    %v6174 = vsel %vm146, %v6172, %v6173
    %v6175 = vrot.slane %v5505, 1
    %v6176 = vrot.slane %v6025, 1
    %v6177 = vsel %vm146, %v6175, %v6176
    %v6178 = vrot.slane %v5530, 1
    %v6179 = vrot.slane %v6033, 1
    %v6180 = vsel %vm146, %v6178, %v6179
    %v6181 = vrot.slane %v5555, 1
    %v6182 = vrot.slane %v6041, 1
    %v6183 = vsel %vm146, %v6181, %v6182
    %v6184 = vrot.slane %v5580, 1
    %v6185 = vrot.slane %v6049, 1
    %v6186 = vsel %vm146, %v6184, %v6185
    %v6187 = vrot.slane %v5605, 1
    %v6188 = vrot.slane %v6057, 1
    %v6189 = vsel %vm146, %v6187, %v6188
    %v6190 = vrot.slane %v5630, 1
    %v6191 = vrot.slane %v6065, 1
    %v6192 = vsel %vm146, %v6190, %v6191
    %v6193 = vrot.slane %v5655, 1
    %v6194 = vrot.slane %v6073, 1
    %v6195 = vsel %vm146, %v6193, %v6194
    %v6196 = vrot.slane %v5680, 1
    %v6197 = vrot.slane %v6081, 1
    %v6198 = vsel %vm146, %v6196, %v6197
    %v6199 = vrot.slane %v5705, 1
    %v6200 = vrot.slane %v6089, 1
    %v6201 = vsel %vm146, %v6199, %v6200
    %v6202 = vrot.slane %v5730, 1
    %v6203 = vrot.slane %v6097, 1
    %v6204 = vsel %vm146, %v6202, %v6203
    %v6205 = vrot.slane %v5755, 1
    %v6206 = vrot.slane %v6105, 1
    %v6207 = vsel %vm146, %v6205, %v6206
    %v6208 = vrot.slane %v5780, 1
    %v6209 = vrot.slane %v6113, 1
    %v6210 = vsel %vm146, %v6208, %v6209
    %v6211 = vrot.slane %v5805, 1
    %v6212 = vrot.slane %v6121, 1
    %v6213 = vsel %vm146, %v6211, %v6212
    %v6214 = vrot.slane %v5830, 1
    %v6215 = vrot.slane %v6129, 1
    %v6216 = vsel %vm146, %v6214, %v6215
    %v6217 = vrot.slane %v5855, 1
    %v6218 = vrot.slane %v6137, 1
    %v6219 = vsel %vm146, %v6217, %v6218
    %v6220 = vrot.slane %v5880, 1
    %v6221 = vrot.slane %v6145, 1
    %v6222 = vsel %vm146, %v6220, %v6221
    %v6223 = vrot.slane %v5905, 1
    %v6224 = vrot.slane %v6153, 1
    %v6225 = vsel %vm146, %v6223, %v6224
    %6226 = vrot.lane.b32.xlu0 %v6156, 8
    %v6227 = vpop.permute.xlu0 %6226
    %6228 = vrot.lane.b32.xlu0 %v6155, 8
    %v6229 = vpop.permute.xlu0 %6228
    %6230 = vrot.lane.b32.xlu0 %v6159, 8
    %v6231 = vpop.permute.xlu0 %6230
    %6232 = vrot.lane.b32.xlu0 %v6158, 8
    %v6233 = vpop.permute.xlu0 %6232
    %6234 = vrot.lane.b32.xlu0 %v6162, 8
    %v6235 = vpop.permute.xlu0 %6234
    %6236 = vrot.lane.b32.xlu0 %v6161, 8
    %v6237 = vpop.permute.xlu0 %6236
    %6238 = vrot.lane.b32.xlu0 %v6165, 8
    %v6239 = vpop.permute.xlu0 %6238
    %6240 = vrot.lane.b32.xlu0 %v6164, 8
    %v6241 = vpop.permute.xlu0 %6240
    %6242 = vrot.lane.b32.xlu0 %v6168, 8
    %v6243 = vpop.permute.xlu0 %6242
    %6244 = vrot.lane.b32.xlu0 %v6167, 8
    %v6245 = vpop.permute.xlu0 %6244
    %6246 = vrot.lane.b32.xlu0 %v6171, 8
    %v6247 = vpop.permute.xlu0 %6246
    %6248 = vrot.lane.b32.xlu0 %v6170, 8
    %v6249 = vpop.permute.xlu0 %6248
    %6250 = vrot.lane.b32.xlu0 %v6174, 8
    %v6251 = vpop.permute.xlu0 %6250
    %6252 = vrot.lane.b32.xlu0 %v6173, 8
    %v6253 = vpop.permute.xlu0 %6252
    %6254 = vrot.lane.b32.xlu0 %v6177, 8
    %v6255 = vpop.permute.xlu0 %6254
    %6256 = vrot.lane.b32.xlu0 %v6176, 8
    %v6257 = vpop.permute.xlu0 %6256
    %6258 = vrot.lane.b32.xlu0 %v6180, 8
    %v6259 = vpop.permute.xlu0 %6258
    %6260 = vrot.lane.b32.xlu0 %v6179, 8
    %v6261 = vpop.permute.xlu0 %6260
    %6262 = vrot.lane.b32.xlu0 %v6183, 8
    %v6263 = vpop.permute.xlu0 %6262
    %6264 = vrot.lane.b32.xlu0 %v6182, 8
    %v6265 = vpop.permute.xlu0 %6264
    %6266 = vrot.lane.b32.xlu0 %v6186, 8
    %v6267 = vpop.permute.xlu0 %6266
    %6268 = vrot.lane.b32.xlu0 %v6185, 8
    %v6269 = vpop.permute.xlu0 %6268
    %6270 = vrot.lane.b32.xlu0 %v6189, 8
    %v6271 = vpop.permute.xlu0 %6270
    %6272 = vrot.lane.b32.xlu0 %v6188, 8
    %v6273 = vpop.permute.xlu0 %6272
    %6274 = vrot.lane.b32.xlu0 %v6192, 8
    %v6275 = vpop.permute.xlu0 %6274
    %6276 = vrot.lane.b32.xlu0 %v6191, 8
    %v6277 = vpop.permute.xlu0 %6276
    %6278 = vrot.lane.b32.xlu0 %v6195, 8
    %v6279 = vpop.permute.xlu0 %6278
    %6280 = vrot.lane.b32.xlu0 %v6194, 8
    %v6281 = vpop.permute.xlu0 %6280
    %6282 = vrot.lane.b32.xlu0 %v6198, 8
    %v6283 = vpop.permute.xlu0 %6282
    %6284 = vrot.lane.b32.xlu0 %v6197, 8
    %v6285 = vpop.permute.xlu0 %6284
    %6286 = vrot.lane.b32.xlu0 %v6201, 8
    %v6287 = vpop.permute.xlu0 %6286
    %6288 = vrot.lane.b32.xlu0 %v6200, 8
    %v6289 = vpop.permute.xlu0 %6288
    %6290 = vrot.lane.b32.xlu0 %v6204, 8
    %v6291 = vpop.permute.xlu0 %6290
    %6292 = vrot.lane.b32.xlu0 %v6203, 8
    %v6293 = vpop.permute.xlu0 %6292
    %6294 = vrot.lane.b32.xlu0 %v6207, 8
    %v6295 = vpop.permute.xlu0 %6294
    %6296 = vrot.lane.b32.xlu0 %v6206, 8
    %v6297 = vpop.permute.xlu0 %6296
    %6298 = vrot.lane.b32.xlu0 %v6210, 8
    %v6299 = vpop.permute.xlu0 %6298
    %6300 = vrot.lane.b32.xlu0 %v6209, 8
    %v6301 = vpop.permute.xlu0 %6300
    %6302 = vrot.lane.b32.xlu0 %v6213, 8
    %v6303 = vpop.permute.xlu0 %6302
    %6304 = vrot.lane.b32.xlu0 %v6212, 8
    %v6305 = vpop.permute.xlu0 %6304
    %6306 = vrot.lane.b32.xlu0 %v6216, 8
    %v6307 = vpop.permute.xlu0 %6306
    %6308 = vrot.lane.b32.xlu0 %v6215, 8
    %v6309 = vpop.permute.xlu0 %6308
    %6310 = vrot.lane.b32.xlu0 %v6219, 8
    %v6311 = vpop.permute.xlu0 %6310
    %6312 = vrot.lane.b32.xlu0 %v6218, 8
    %v6313 = vpop.permute.xlu0 %6312
    %6314 = vrot.lane.b32.xlu0 %v6222, 8
    %v6315 = vpop.permute.xlu0 %6314
    %6316 = vrot.lane.b32.xlu0 %v6221, 8
    %v6317 = vpop.permute.xlu0 %6316
    %6318 = vrot.lane.b32.xlu0 %v6225, 8
    %v6319 = vpop.permute.xlu0 %6318
    %6320 = vrot.lane.b32.xlu0 %v6224, 8
    %v6321 = vpop.permute.xlu0 %6320
    %v6370 = vcombine.low %v4496, %v4495
    %v6371 = vcombine.low %v4497, %v4505
    %v6373 = vunpack.c.l.s4 1983009808
    %v6374 = vunpack.c.0.s8 %v6373
    %v6375 = vlaneseq
    %v6376 = vshrl.u32 %v6375, 7
    %v6377 = vsub.s32 %v6374, %v6376
    %v6378 = vrot.slane %v6370, %v6377
    %v6380 = vunpack.c.l.s4 1983009808
    %v6381 = vunpack.c.0.s8 %v6380
    %v6382 = vlaneseq
    %v6383 = vshrl.u32 %v6382, 7
    %v6384 = vsub.s32 %v6381, %v6383
    %v6385 = vrot.slane %v6371, %v6384
    %v6386 = vcombine.low %v6378, %v6385
    %v6387 = vcombine.low %v4513, %v4512
    %v6389 = vunpack.c.l.s4 1983009808
    %v6390 = vunpack.c.0.s8 %v6389
    %v6391 = vlaneseq
    %v6392 = vshrl.u32 %v6391, 7
    %v6393 = vsub.s32 %v6390, %v6392
    %v6394 = vrot.slane %v6387, %v6393
    %v6395 = vcombine.low %v4522, %v4530
    %v6396 = vcombine.low %v4529, %v4531
    %v6398 = vunpack.c.l.s4 1983009808
    %v6399 = vunpack.c.0.s8 %v6398
    %v6400 = vlaneseq
    %v6401 = vshrl.u32 %v6400, 7
    %v6402 = vsub.s32 %v6399, %v6401
    %v6403 = vrot.slane %v6395, %v6402
    %v6405 = vunpack.c.l.s4 1983009808
    %v6406 = vunpack.c.0.s8 %v6405
    %v6407 = vlaneseq
    %v6408 = vshrl.u32 %v6407, 7
    %v6409 = vsub.s32 %v6406, %v6408
    %v6410 = vrot.slane %v6396, %v6409
    %v6411 = vcombine.low %v6403, %v6410
    %v6412 = vcombine.low %v4539, %v4547
    %v6414 = vunpack.c.l.s4 1983009808
    %v6415 = vunpack.c.0.s8 %v6414
    %v6416 = vlaneseq
    %v6417 = vshrl.u32 %v6416, 7
    %v6418 = vsub.s32 %v6415, %v6417
    %v6419 = vrot.slane %v6412, %v6418
    %v6420 = vcombine.low %v4548, %v4556
    %v6421 = vcombine.low %v4564, %v4563
    %v6423 = vunpack.c.l.s4 1983009808
    %v6424 = vunpack.c.0.s8 %v6423
    %v6425 = vlaneseq
    %v6426 = vshrl.u32 %v6425, 7
    %v6427 = vsub.s32 %v6424, %v6426
    %v6428 = vrot.slane %v6420, %v6427
    %v6430 = vunpack.c.l.s4 1983009808
    %v6431 = vunpack.c.0.s8 %v6430
    %v6432 = vlaneseq
    %v6433 = vshrl.u32 %v6432, 7
    %v6434 = vsub.s32 %v6431, %v6433
    %v6435 = vrot.slane %v6421, %v6434
    %v6436 = vcombine.low %v6428, %v6435
    %v6437 = vcombine.low %v4565, %v4573
    %v6439 = vunpack.c.l.s4 1983009808
    %v6440 = vunpack.c.0.s8 %v6439
    %v6441 = vlaneseq
    %v6442 = vshrl.u32 %v6441, 7
    %v6443 = vsub.s32 %v6440, %v6442
    %v6444 = vrot.slane %v6437, %v6443
    %v6445 = vcombine.low %v4580, %v4582
    %v6446 = vcombine.low %v4590, %v4598
    %v6448 = vunpack.c.l.s4 1983009808
    %v6449 = vunpack.c.0.s8 %v6448
    %v6450 = vlaneseq
    %v6451 = vshrl.u32 %v6450, 7
    %v6452 = vsub.s32 %v6449, %v6451
    %v6453 = vrot.slane %v6445, %v6452
    %v6455 = vunpack.c.l.s4 1983009808
    %v6456 = vunpack.c.0.s8 %v6455
    %v6457 = vlaneseq
    %v6458 = vshrl.u32 %v6457, 7
    %v6459 = vsub.s32 %v6456, %v6458
    %v6460 = vrot.slane %v6446, %v6459
    %v6461 = vcombine.low %v6453, %v6460
    %v6462 = vcombine.low %v4597, %v4599
    %v6464 = vunpack.c.l.s4 1983009808
    %v6465 = vunpack.c.0.s8 %v6464
    %v6466 = vlaneseq
    %v6467 = vshrl.u32 %v6466, 7
    %v6468 = vsub.s32 %v6465, %v6467
    %v6469 = vrot.slane %v6462, %v6468
    %v6470 = vcombine.low %v4615, %v4614
    %v6471 = vcombine.low %v4616, %v4624
    %v6473 = vunpack.c.l.s4 1983009808
    %v6474 = vunpack.c.0.s8 %v6473
    %v6475 = vlaneseq
    %v6476 = vshrl.u32 %v6475, 7
    %v6477 = vsub.s32 %v6474, %v6476
    %v6478 = vrot.slane %v6470, %v6477
    %v6480 = vunpack.c.l.s4 1983009808
    %v6481 = vunpack.c.0.s8 %v6480
    %v6482 = vlaneseq
    %v6483 = vshrl.u32 %v6482, 7
    %v6484 = vsub.s32 %v6481, %v6483
    %v6485 = vrot.slane %v6471, %v6484
    %v6486 = vcombine.low %v6478, %v6485
    %v6487 = vcombine.low %v4632, %v4631
    %v6489 = vunpack.c.l.s4 1983009808
    %v6490 = vunpack.c.0.s8 %v6489
    %v6491 = vlaneseq
    %v6492 = vshrl.u32 %v6491, 7
    %v6493 = vsub.s32 %v6490, %v6492
    %v6494 = vrot.slane %v6487, %v6493
    %v6495 = vcombine.low %v4641, %v4649
    %v6496 = vcombine.low %v4648, %v4650
    %v6498 = vunpack.c.l.s4 1983009808
    %v6499 = vunpack.c.0.s8 %v6498
    %v6500 = vlaneseq
    %v6501 = vshrl.u32 %v6500, 7
    %v6502 = vsub.s32 %v6499, %v6501
    %v6503 = vrot.slane %v6495, %v6502
    %v6505 = vunpack.c.l.s4 1983009808
    %v6506 = vunpack.c.0.s8 %v6505
    %v6507 = vlaneseq
    %v6508 = vshrl.u32 %v6507, 7
    %v6509 = vsub.s32 %v6506, %v6508
    %v6510 = vrot.slane %v6496, %v6509
    %v6511 = vcombine.low %v6503, %v6510
    %v6512 = vcombine.low %v4658, %v4666
    %v6514 = vunpack.c.l.s4 1983009808
    %v6515 = vunpack.c.0.s8 %v6514
    %v6516 = vlaneseq
    %v6517 = vshrl.u32 %v6516, 7
    %v6518 = vsub.s32 %v6515, %v6517
    %v6519 = vrot.slane %v6512, %v6518
    %v6520 = vcombine.low %v4667, %v4675
    %v6521 = vcombine.low %v4683, %v4682
    %v6523 = vunpack.c.l.s4 1983009808
    %v6524 = vunpack.c.0.s8 %v6523
    %v6525 = vlaneseq
    %v6526 = vshrl.u32 %v6525, 7
    %v6527 = vsub.s32 %v6524, %v6526
    %v6528 = vrot.slane %v6520, %v6527
    %v6530 = vunpack.c.l.s4 1983009808
    %v6531 = vunpack.c.0.s8 %v6530
    %v6532 = vlaneseq
    %v6533 = vshrl.u32 %v6532, 7
    %v6534 = vsub.s32 %v6531, %v6533
    %v6535 = vrot.slane %v6521, %v6534
    %v6536 = vcombine.low %v6528, %v6535
    %v6537 = vcombine.low %v4684, %v4692
    %v6539 = vunpack.c.l.s4 1983009808
    %v6540 = vunpack.c.0.s8 %v6539
    %v6541 = vlaneseq
    %v6542 = vshrl.u32 %v6541, 7
    %v6543 = vsub.s32 %v6540, %v6542
    %v6544 = vrot.slane %v6537, %v6543
    %v6545 = vcombine.low %v4699, %v4701
    %v6546 = vcombine.low %v4709, %v4717
    %v6548 = vunpack.c.l.s4 1983009808
    %v6549 = vunpack.c.0.s8 %v6548
    %v6550 = vlaneseq
    %v6551 = vshrl.u32 %v6550, 7
    %v6552 = vsub.s32 %v6549, %v6551
    %v6553 = vrot.slane %v6545, %v6552
    %v6555 = vunpack.c.l.s4 1983009808
    %v6556 = vunpack.c.0.s8 %v6555
    %v6557 = vlaneseq
    %v6558 = vshrl.u32 %v6557, 7
    %v6559 = vsub.s32 %v6556, %v6558
    %v6560 = vrot.slane %v6546, %v6559
    %v6561 = vcombine.low %v6553, %v6560
    %v6562 = vcombine.low %v4716, %v4718
    %v6564 = vunpack.c.l.s4 1983009808
    %v6565 = vunpack.c.0.s8 %v6564
    %v6566 = vlaneseq
    %v6567 = vshrl.u32 %v6566, 7
    %v6568 = vsub.s32 %v6565, %v6567
    %v6569 = vrot.slane %v6562, %v6568
    %v6570 = vcombine.low %v4734, %v4733
    %v6571 = vcombine.low %v4735, %v4743
    %v6573 = vunpack.c.l.s4 1983009808
    %v6574 = vunpack.c.0.s8 %v6573
    %v6575 = vlaneseq
    %v6576 = vshrl.u32 %v6575, 7
    %v6577 = vsub.s32 %v6574, %v6576
    %v6578 = vrot.slane %v6570, %v6577
    %v6580 = vunpack.c.l.s4 1983009808
    %v6581 = vunpack.c.0.s8 %v6580
    %v6582 = vlaneseq
    %v6583 = vshrl.u32 %v6582, 7
    %v6584 = vsub.s32 %v6581, %v6583
    %v6585 = vrot.slane %v6571, %v6584
    %v6586 = vcombine.low %v6578, %v6585
    %v6587 = vcombine.low %v4751, %v4750
    %v6589 = vunpack.c.l.s4 1983009808
    %v6590 = vunpack.c.0.s8 %v6589
    %v6591 = vlaneseq
    %v6592 = vshrl.u32 %v6591, 7
    %v6593 = vsub.s32 %v6590, %v6592
    %v6594 = vrot.slane %v6587, %v6593
    %v6595 = vcombine.low %v4760, %v4768
    %v6596 = vcombine.low %v4767, %v4769
    %v6598 = vunpack.c.l.s4 1983009808
    %v6599 = vunpack.c.0.s8 %v6598
    %v6600 = vlaneseq
    %v6601 = vshrl.u32 %v6600, 7
    %v6602 = vsub.s32 %v6599, %v6601
    %v6603 = vrot.slane %v6595, %v6602
    %v6605 = vunpack.c.l.s4 1983009808
    %v6606 = vunpack.c.0.s8 %v6605
    %v6607 = vlaneseq
    %v6608 = vshrl.u32 %v6607, 7
    %v6609 = vsub.s32 %v6606, %v6608
    %v6610 = vrot.slane %v6596, %v6609
    %v6611 = vcombine.low %v6603, %v6610
    %v6612 = vcombine.low %v4777, %v4785
    %v6614 = vunpack.c.l.s4 1983009808
    %v6615 = vunpack.c.0.s8 %v6614
    %v6616 = vlaneseq
    %v6617 = vshrl.u32 %v6616, 7
    %v6618 = vsub.s32 %v6615, %v6617
    %v6619 = vrot.slane %v6612, %v6618
    %v6620 = vcombine.low %v4786, %v4794
    %v6621 = vcombine.low %v4802, %v4801
    %v6623 = vunpack.c.l.s4 1983009808
    %v6624 = vunpack.c.0.s8 %v6623
    %v6625 = vlaneseq
    %v6626 = vshrl.u32 %v6625, 7
    %v6627 = vsub.s32 %v6624, %v6626
    %v6628 = vrot.slane %v6620, %v6627
    %v6630 = vunpack.c.l.s4 1983009808
    %v6631 = vunpack.c.0.s8 %v6630
    %v6632 = vlaneseq
    %v6633 = vshrl.u32 %v6632, 7
    %v6634 = vsub.s32 %v6631, %v6633
    %v6635 = vrot.slane %v6621, %v6634
    %v6636 = vcombine.low %v6628, %v6635
    %v6637 = vcombine.low %v4803, %v4811
    %v6639 = vunpack.c.l.s4 1983009808
    %v6640 = vunpack.c.0.s8 %v6639
    %v6641 = vlaneseq
    %v6642 = vshrl.u32 %v6641, 7
    %v6643 = vsub.s32 %v6640, %v6642
    %v6644 = vrot.slane %v6637, %v6643
    %v6645 = vcombine.low %v4818, %v4820
    %v6646 = vcombine.low %v4828, %v4836
    %v6648 = vunpack.c.l.s4 1983009808
    %v6649 = vunpack.c.0.s8 %v6648
    %v6650 = vlaneseq
    %v6651 = vshrl.u32 %v6650, 7
    %v6652 = vsub.s32 %v6649, %v6651
    %v6653 = vrot.slane %v6645, %v6652
    %v6655 = vunpack.c.l.s4 1983009808
    %v6656 = vunpack.c.0.s8 %v6655
    %v6657 = vlaneseq
    %v6658 = vshrl.u32 %v6657, 7
    %v6659 = vsub.s32 %v6656, %v6658
    %v6660 = vrot.slane %v6646, %v6659
    %v6661 = vcombine.low %v6653, %v6660
    %v6662 = vcombine.low %v4835, %v4837
    %v6664 = vunpack.c.l.s4 1983009808
    %v6665 = vunpack.c.0.s8 %v6664
    %v6666 = vlaneseq
    %v6667 = vshrl.u32 %v6666, 7
    %v6668 = vsub.s32 %v6665, %v6667
    %v6669 = vrot.slane %v6662, %v6668
    %v6670 = vcombine.low %v4905, %v4913
    %v6671 = vcombine.low %v4921, %v4920
    %v6673 = vunpack.c.l.s4 1983009808
    %v6674 = vunpack.c.0.s8 %v6673
    %v6675 = vlaneseq
    %v6676 = vshrl.u32 %v6675, 7
    %v6677 = vsub.s32 %v6674, %v6676
    %v6678 = vrot.slane %v6670, %v6677
    %v6680 = vunpack.c.l.s4 1983009808
    %v6681 = vunpack.c.0.s8 %v6680
    %v6682 = vlaneseq
    %v6683 = vshrl.u32 %v6682, 7
    %v6684 = vsub.s32 %v6681, %v6683
    %v6685 = vrot.slane %v6671, %v6684
    %v6686 = vcombine.low %v6678, %v6685
    %v6687 = vcombine.low %v4922, %v4930
    %v6689 = vunpack.c.l.s4 1983009808
    %v6690 = vunpack.c.0.s8 %v6689
    %v6691 = vlaneseq
    %v6692 = vshrl.u32 %v6691, 7
    %v6693 = vsub.s32 %v6690, %v6692
    %v6694 = vrot.slane %v6687, %v6693
    %v6695 = vcombine.low %v4937, %v4939
    %v6696 = vcombine.low %v4947, %v4955
    %v6698 = vunpack.c.l.s4 1983009808
    %v6699 = vunpack.c.0.s8 %v6698
    %v6700 = vlaneseq
    %v6701 = vshrl.u32 %v6700, 7
    %v6702 = vsub.s32 %v6699, %v6701
    %v6703 = vrot.slane %v6695, %v6702
    %v6705 = vunpack.c.l.s4 1983009808
    %v6706 = vunpack.c.0.s8 %v6705
    %v6707 = vlaneseq
    %v6708 = vshrl.u32 %v6707, 7
    %v6709 = vsub.s32 %v6706, %v6708
    %v6710 = vrot.slane %v6696, %v6709
    %v6711 = vcombine.low %v6703, %v6710
    %v6712 = vcombine.low %v4954, %v4956
    %v6714 = vunpack.c.l.s4 1983009808
    %v6715 = vunpack.c.0.s8 %v6714
    %v6716 = vlaneseq
    %v6717 = vshrl.u32 %v6716, 7
    %v6718 = vsub.s32 %v6715, %v6717
    %v6719 = vrot.slane %v6712, %v6718
    %v6720 = vcombine.low %v4972, %v4971
    %v6721 = vcombine.low %v4973, %v4981
    %v6723 = vunpack.c.l.s4 1983009808
    %v6724 = vunpack.c.0.s8 %v6723
    %v6725 = vlaneseq
    %v6726 = vshrl.u32 %v6725, 7
    %v6727 = vsub.s32 %v6724, %v6726
    %v6728 = vrot.slane %v6720, %v6727
    %v6730 = vunpack.c.l.s4 1983009808
    %v6731 = vunpack.c.0.s8 %v6730
    %v6732 = vlaneseq
    %v6733 = vshrl.u32 %v6732, 7
    %v6734 = vsub.s32 %v6731, %v6733
    %v6735 = vrot.slane %v6721, %v6734
    %v6736 = vcombine.low %v6728, %v6735
    %v6737 = vcombine.low %v4989, %v4988
    %v6739 = vunpack.c.l.s4 1983009808
    %v6740 = vunpack.c.0.s8 %v6739
    %v6741 = vlaneseq
    %v6742 = vshrl.u32 %v6741, 7
    %v6743 = vsub.s32 %v6740, %v6742
    %v6744 = vrot.slane %v6737, %v6743
    %v6745 = vcombine.low %v4998, %v5006
    %v6746 = vcombine.low %v5005, %v5007
    %v6748 = vunpack.c.l.s4 1983009808
    %v6749 = vunpack.c.0.s8 %v6748
    %v6750 = vlaneseq
    %v6751 = vshrl.u32 %v6750, 7
    %v6752 = vsub.s32 %v6749, %v6751
    %v6753 = vrot.slane %v6745, %v6752
    %v6755 = vunpack.c.l.s4 1983009808
    %v6756 = vunpack.c.0.s8 %v6755
    %v6757 = vlaneseq
    %v6758 = vshrl.u32 %v6757, 7
    %v6759 = vsub.s32 %v6756, %v6758
    %v6760 = vrot.slane %v6746, %v6759
    %v6761 = vcombine.low %v6753, %v6760
    %v6762 = vcombine.low %v5015, %v5023
    %v6764 = vunpack.c.l.s4 1983009808
    %v6765 = vunpack.c.0.s8 %v6764
    %v6766 = vlaneseq
    %v6767 = vshrl.u32 %v6766, 7
    %v6768 = vsub.s32 %v6765, %v6767
    %v6769 = vrot.slane %v6762, %v6768
    %v6770 = vcombine.low %v5024, %v5032
    %v6771 = vcombine.low %v5040, %v5039
    %v6773 = vunpack.c.l.s4 1983009808
    %v6774 = vunpack.c.0.s8 %v6773
    %v6775 = vlaneseq
    %v6776 = vshrl.u32 %v6775, 7
    %v6777 = vsub.s32 %v6774, %v6776
    %v6778 = vrot.slane %v6770, %v6777
    %v6780 = vunpack.c.l.s4 1983009808
    %v6781 = vunpack.c.0.s8 %v6780
    %v6782 = vlaneseq
    %v6783 = vshrl.u32 %v6782, 7
    %v6784 = vsub.s32 %v6781, %v6783
    %v6785 = vrot.slane %v6771, %v6784
    %v6786 = vcombine.low %v6778, %v6785
    %v6787 = vcombine.low %v5041, %v5049
    %v6789 = vunpack.c.l.s4 1983009808
    %v6790 = vunpack.c.0.s8 %v6789
    %v6791 = vlaneseq
    %v6792 = vshrl.u32 %v6791, 7
    %v6793 = vsub.s32 %v6790, %v6792
    %v6794 = vrot.slane %v6787, %v6793
    %v6795 = vcombine.low %v5056, %v5058
    %v6796 = vcombine.low %v5066, %v5074
    %v6798 = vunpack.c.l.s4 1983009808
    %v6799 = vunpack.c.0.s8 %v6798
    %v6800 = vlaneseq
    %v6801 = vshrl.u32 %v6800, 7
    %v6802 = vsub.s32 %v6799, %v6801
    %v6803 = vrot.slane %v6795, %v6802
    %v6805 = vunpack.c.l.s4 1983009808
    %v6806 = vunpack.c.0.s8 %v6805
    %v6807 = vlaneseq
    %v6808 = vshrl.u32 %v6807, 7
    %v6809 = vsub.s32 %v6806, %v6808
    %v6810 = vrot.slane %v6796, %v6809
    %v6811 = vcombine.low %v6803, %v6810
    %v6812 = vcombine.low %v5073, %v5075
    %v6814 = vunpack.c.l.s4 1983009808
    %v6815 = vunpack.c.0.s8 %v6814
    %v6816 = vlaneseq
    %v6817 = vshrl.u32 %v6816, 7
    %v6818 = vsub.s32 %v6815, %v6817
    %v6819 = vrot.slane %v6812, %v6818
    %v6820 = vcombine.low %v5091, %v5090
    %v6821 = vcombine.low %v5092, %v5100
    %v6823 = vunpack.c.l.s4 1983009808
    %v6824 = vunpack.c.0.s8 %v6823
    %v6825 = vlaneseq
    %v6826 = vshrl.u32 %v6825, 7
    %v6827 = vsub.s32 %v6824, %v6826
    %v6828 = vrot.slane %v6820, %v6827
    %v6830 = vunpack.c.l.s4 1983009808
    %v6831 = vunpack.c.0.s8 %v6830
    %v6832 = vlaneseq
    %v6833 = vshrl.u32 %v6832, 7
    %v6834 = vsub.s32 %v6831, %v6833
    %v6835 = vrot.slane %v6821, %v6834
    %v6836 = vcombine.low %v6828, %v6835
    %v6837 = vcombine.low %v5108, %v5107
    %v6839 = vunpack.c.l.s4 1983009808
    %v6840 = vunpack.c.0.s8 %v6839
    %v6841 = vlaneseq
    %v6842 = vshrl.u32 %v6841, 7
    %v6843 = vsub.s32 %v6840, %v6842
    %v6844 = vrot.slane %v6837, %v6843
    %v6845 = vcombine.low %v5117, %v5125
    %v6846 = vcombine.low %v5124, %v5126
    %v6848 = vunpack.c.l.s4 1983009808
    %v6849 = vunpack.c.0.s8 %v6848
    %v6850 = vlaneseq
    %v6851 = vshrl.u32 %v6850, 7
    %v6852 = vsub.s32 %v6849, %v6851
    %v6853 = vrot.slane %v6845, %v6852
    %v6855 = vunpack.c.l.s4 1983009808
    %v6856 = vunpack.c.0.s8 %v6855
    %v6857 = vlaneseq
    %v6858 = vshrl.u32 %v6857, 7
    %v6859 = vsub.s32 %v6856, %v6858
    %v6860 = vrot.slane %v6846, %v6859
    %v6861 = vcombine.low %v6853, %v6860
    %v6862 = vcombine.low %v5134, %v5142
    %v6864 = vunpack.c.l.s4 1983009808
    %v6865 = vunpack.c.0.s8 %v6864
    %v6866 = vlaneseq
    %v6867 = vshrl.u32 %v6866, 7
    %v6868 = vsub.s32 %v6865, %v6867
    %v6869 = vrot.slane %v6862, %v6868
    %v6870 = vcombine.low %v5143, %v5151
    %v6871 = vcombine.low %v5159, %v5158
    %v6873 = vunpack.c.l.s4 1983009808
    %v6874 = vunpack.c.0.s8 %v6873
    %v6875 = vlaneseq
    %v6876 = vshrl.u32 %v6875, 7
    %v6877 = vsub.s32 %v6874, %v6876
    %v6878 = vrot.slane %v6870, %v6877
    %v6880 = vunpack.c.l.s4 1983009808
    %v6881 = vunpack.c.0.s8 %v6880
    %v6882 = vlaneseq
    %v6883 = vshrl.u32 %v6882, 7
    %v6884 = vsub.s32 %v6881, %v6883
    %v6885 = vrot.slane %v6871, %v6884
    %v6886 = vcombine.low %v6878, %v6885
    %v6887 = vcombine.low %v5160, %v5168
    %v6889 = vunpack.c.l.s4 1983009808
    %v6890 = vunpack.c.0.s8 %v6889
    %v6891 = vlaneseq
    %v6892 = vshrl.u32 %v6891, 7
    %v6893 = vsub.s32 %v6890, %v6892
    %v6894 = vrot.slane %v6887, %v6893
    %v6895 = vcombine.low %v5175, %v5177
    %v6896 = vcombine.low %v5185, %v5193
    %v6898 = vunpack.c.l.s4 1983009808
    %v6899 = vunpack.c.0.s8 %v6898
    %v6900 = vlaneseq
    %v6901 = vshrl.u32 %v6900, 7
    %v6902 = vsub.s32 %v6899, %v6901
    %v6903 = vrot.slane %v6895, %v6902
    %v6905 = vunpack.c.l.s4 1983009808
    %v6906 = vunpack.c.0.s8 %v6905
    %v6907 = vlaneseq
    %v6908 = vshrl.u32 %v6907, 7
    %v6909 = vsub.s32 %v6906, %v6908
    %v6910 = vrot.slane %v6896, %v6909
    %v6911 = vcombine.low %v6903, %v6910
    %v6912 = vcombine.low %v5192, %v5194
    %v6914 = vunpack.c.l.s4 1983009808
    %v6915 = vunpack.c.0.s8 %v6914
    %v6916 = vlaneseq
    %v6917 = vshrl.u32 %v6916, 7
    %v6918 = vsub.s32 %v6915, %v6917
    %v6919 = vrot.slane %v6912, %v6918
    %v6920 = vcombine.low %v5210, %v5209
    %v6921 = vcombine.low %v5211, %v5219
    %v6923 = vunpack.c.l.s4 1983009808
    %v6924 = vunpack.c.0.s8 %v6923
    %v6925 = vlaneseq
    %v6926 = vshrl.u32 %v6925, 7
    %v6927 = vsub.s32 %v6924, %v6926
    %v6928 = vrot.slane %v6920, %v6927
    %v6930 = vunpack.c.l.s4 1983009808
    %v6931 = vunpack.c.0.s8 %v6930
    %v6932 = vlaneseq
    %v6933 = vshrl.u32 %v6932, 7
    %v6934 = vsub.s32 %v6931, %v6933
    %v6935 = vrot.slane %v6921, %v6934
    %v6936 = vcombine.low %v6928, %v6935
    %v6937 = vcombine.low %v5227, %v5226
    %v6939 = vunpack.c.l.s4 1983009808
    %v6940 = vunpack.c.0.s8 %v6939
    %v6941 = vlaneseq
    %v6942 = vshrl.u32 %v6941, 7
    %v6943 = vsub.s32 %v6940, %v6942
    %v6944 = vrot.slane %v6937, %v6943
    %v6945 = vcombine.low %v5236, %v5244
    %v6946 = vcombine.low %v5243, %v5245
    %v6948 = vunpack.c.l.s4 1983009808
    %v6949 = vunpack.c.0.s8 %v6948
    %v6950 = vlaneseq
    %v6951 = vshrl.u32 %v6950, 7
    %v6952 = vsub.s32 %v6949, %v6951
    %v6953 = vrot.slane %v6945, %v6952
    %v6955 = vunpack.c.l.s4 1983009808
    %v6956 = vunpack.c.0.s8 %v6955
    %v6957 = vlaneseq
    %v6958 = vshrl.u32 %v6957, 7
    %v6959 = vsub.s32 %v6956, %v6958
    %v6960 = vrot.slane %v6946, %v6959
    %v6961 = vcombine.low %v6953, %v6960
    %v6962 = vcombine.low %v5253, %v5261
    %v6964 = vunpack.c.l.s4 1983009808
    %v6965 = vunpack.c.0.s8 %v6964
    %v6966 = vlaneseq
    %v6967 = vshrl.u32 %v6966, 7
    %v6968 = vsub.s32 %v6965, %v6967
    %v6969 = vrot.slane %v6962, %v6968
    %6970 = vrot.lane.b32.xlu0 %v6386, 16
    %v6971 = vpop.permute.xlu0 %6970
    %6972 = vrot.lane.b32.xlu0 %v6394, 16
    %v6973 = vpop.permute.xlu0 %6972
    %6974 = vrot.lane.b32.xlu0 %v6411, 16
    %v6975 = vpop.permute.xlu0 %6974
    %6976 = vrot.lane.b32.xlu0 %v6419, 16
    %v6977 = vpop.permute.xlu0 %6976
    %6978 = vrot.lane.b32.xlu0 %v6436, 16
    %v6979 = vpop.permute.xlu0 %6978
    %6980 = vrot.lane.b32.xlu0 %v6444, 16
    %v6981 = vpop.permute.xlu0 %6980
    %6982 = vrot.lane.b32.xlu0 %v6461, 16
    %v6983 = vpop.permute.xlu0 %6982
    %6984 = vrot.lane.b32.xlu0 %v6469, 16
    %v6985 = vpop.permute.xlu0 %6984
    %6986 = vrot.lane.b32.xlu0 %v6486, 16
    %v6987 = vpop.permute.xlu0 %6986
    %6988 = vrot.lane.b32.xlu0 %v6494, 16
    %v6989 = vpop.permute.xlu0 %6988
    %6990 = vrot.lane.b32.xlu0 %v6511, 16
    %v6991 = vpop.permute.xlu0 %6990
    %6992 = vrot.lane.b32.xlu0 %v6519, 16
    %v6993 = vpop.permute.xlu0 %6992
    %6994 = vrot.lane.b32.xlu0 %v6536, 16
    %v6995 = vpop.permute.xlu0 %6994
    %6996 = vrot.lane.b32.xlu0 %v6544, 16
    %v6997 = vpop.permute.xlu0 %6996
    %6998 = vrot.lane.b32.xlu0 %v6561, 16
    %v6999 = vpop.permute.xlu0 %6998
    %7000 = vrot.lane.b32.xlu0 %v6569, 16
    %v7001 = vpop.permute.xlu0 %7000
    %7002 = vrot.lane.b32.xlu0 %v6586, 16
    %v7003 = vpop.permute.xlu0 %7002
    %7004 = vrot.lane.b32.xlu0 %v6594, 16
    %v7005 = vpop.permute.xlu0 %7004
    %7006 = vrot.lane.b32.xlu0 %v6611, 16
    %v7007 = vpop.permute.xlu0 %7006
    %7008 = vrot.lane.b32.xlu0 %v6619, 16
    %v7009 = vpop.permute.xlu0 %7008
    %7010 = vrot.lane.b32.xlu0 %v6636, 16
    %v7011 = vpop.permute.xlu0 %7010
    %7012 = vrot.lane.b32.xlu0 %v6644, 16
    %v7013 = vpop.permute.xlu0 %7012
    %7014 = vrot.lane.b32.xlu0 %v6661, 16
    %v7015 = vpop.permute.xlu0 %7014
    %7016 = vrot.lane.b32.xlu0 %v6669, 16
    %v7017 = vpop.permute.xlu0 %7016
    %7018 = vrot.lane.b32.xlu0 %v6686, 16
    %v7019 = vpop.permute.xlu0 %7018
    %7020 = vrot.lane.b32.xlu0 %v6694, 16
    %v7021 = vpop.permute.xlu0 %7020
    %7022 = vrot.lane.b32.xlu0 %v6711, 16
    %v7023 = vpop.permute.xlu0 %7022
    %7024 = vrot.lane.b32.xlu0 %v6719, 16
    %v7025 = vpop.permute.xlu0 %7024
    %7026 = vrot.lane.b32.xlu0 %v6736, 16
    %v7027 = vpop.permute.xlu0 %7026
    %7028 = vrot.lane.b32.xlu0 %v6744, 16
    %v7029 = vpop.permute.xlu0 %7028
    %7030 = vrot.lane.b32.xlu0 %v6761, 16
    %v7031 = vpop.permute.xlu0 %7030
    %7032 = vrot.lane.b32.xlu0 %v6769, 16
    %v7033 = vpop.permute.xlu0 %7032
    %7034 = vrot.lane.b32.xlu0 %v6786, 16
    %v7035 = vpop.permute.xlu0 %7034
    %7036 = vrot.lane.b32.xlu0 %v6794, 16
    %v7037 = vpop.permute.xlu0 %7036
    %7038 = vrot.lane.b32.xlu0 %v6811, 16
    %v7039 = vpop.permute.xlu0 %7038
    %7040 = vrot.lane.b32.xlu0 %v6819, 16
    %v7041 = vpop.permute.xlu0 %7040
    %7042 = vrot.lane.b32.xlu0 %v6836, 16
    %v7043 = vpop.permute.xlu0 %7042
    %7044 = vrot.lane.b32.xlu0 %v6844, 16
    %v7045 = vpop.permute.xlu0 %7044
    %7046 = vrot.lane.b32.xlu0 %v6861, 16
    %v7047 = vpop.permute.xlu0 %7046
    %7048 = vrot.lane.b32.xlu0 %v6869, 16
    %v7049 = vpop.permute.xlu0 %7048
    %7050 = vrot.lane.b32.xlu0 %v6886, 16
    %v7051 = vpop.permute.xlu0 %7050
    %7052 = vrot.lane.b32.xlu0 %v6894, 16
    %v7053 = vpop.permute.xlu0 %7052
    %7054 = vrot.lane.b32.xlu0 %v6911, 16
    %v7055 = vpop.permute.xlu0 %7054
    %7056 = vrot.lane.b32.xlu0 %v6919, 16
    %v7057 = vpop.permute.xlu0 %7056
    %7058 = vrot.lane.b32.xlu0 %v6936, 16
    %v7059 = vpop.permute.xlu0 %7058
    %7060 = vrot.lane.b32.xlu0 %v6944, 16
    %v7061 = vpop.permute.xlu0 %7060
    %7062 = vrot.lane.b32.xlu0 %v6961, 16
    %v7063 = vpop.permute.xlu0 %7062
    %7064 = vrot.lane.b32.xlu0 %v6969, 16
    %v7065 = vpop.permute.xlu0 %7064
    %v7114 = vcombine.low %v4845, %v4853
    %v7115 = vcombine.low %v4852, %v4854
    %v7117 = vunpack.c.l.s4 1983009808
    %v7118 = vunpack.c.0.s8 %v7117
    %v7119 = vlaneseq
    %v7120 = vshrl.u32 %v7119, 7
    %v7121 = vsub.s32 %v7118, %v7120
    %v7122 = vrot.slane %v7114, %v7121
    %v7124 = vunpack.c.l.s4 1983009808
    %v7125 = vunpack.c.0.s8 %v7124
    %v7126 = vlaneseq
    %v7127 = vshrl.u32 %v7126, 7
    %v7128 = vsub.s32 %v7125, %v7127
    %v7129 = vrot.slane %v7115, %v7128
    %v7130 = vcombine.low %v7122, %v7129
    %v7131 = vcombine.low %v4862, %v4870
    %v7133 = vunpack.c.l.s4 1983009808
    %v7134 = vunpack.c.0.s8 %v7133
    %v7135 = vlaneseq
    %v7136 = vshrl.u32 %v7135, 7
    %v7137 = vsub.s32 %v7134, %v7136
    %v7138 = vrot.slane %v7131, %v7137
    %v7139 = vcombine.low %v5260, %v5262
    %v7140 = vcombine.low %v5270, %v5278
    %v7142 = vunpack.c.l.s4 1983009808
    %v7143 = vunpack.c.0.s8 %v7142
    %v7144 = vlaneseq
    %v7145 = vshrl.u32 %v7144, 7
    %v7146 = vsub.s32 %v7143, %v7145
    %v7147 = vrot.slane %v7139, %v7146
    %v7149 = vunpack.c.l.s4 1983009808
    %v7150 = vunpack.c.0.s8 %v7149
    %v7151 = vlaneseq
    %v7152 = vshrl.u32 %v7151, 7
    %v7153 = vsub.s32 %v7150, %v7152
    %v7154 = vrot.slane %v7140, %v7153
    %v7155 = vcombine.low %v7147, %v7154
    %v7156 = vcombine.low %v5277, %v5279
    %v7158 = vunpack.c.l.s4 1983009808
    %v7159 = vunpack.c.0.s8 %v7158
    %v7160 = vlaneseq
    %v7161 = vshrl.u32 %v7160, 7
    %v7162 = vsub.s32 %v7159, %v7161
    %v7163 = vrot.slane %v7156, %v7162
    %7164 = vrot.lane.b32.xlu0 %v5355, 24
    %v7165 = vpop.permute.xlu0 %7164
    %7166 = vrot.lane.b32.xlu0 %v5363, 24
    %v7167 = vpop.permute.xlu0 %7166
    %7168 = vrot.lane.b32.xlu0 %v5380, 24
    %v7169 = vpop.permute.xlu0 %7168
    %7170 = vrot.lane.b32.xlu0 %v5388, 24
    %v7171 = vpop.permute.xlu0 %7170
    %7172 = vrot.lane.b32.xlu0 %v5405, 24
    %v7173 = vpop.permute.xlu0 %7172
    %7174 = vrot.lane.b32.xlu0 %v5413, 24
    %v7175 = vpop.permute.xlu0 %7174
    %7176 = vrot.lane.b32.xlu0 %v5430, 24
    %v7177 = vpop.permute.xlu0 %7176
    %7178 = vrot.lane.b32.xlu0 %v5438, 24
    %v7179 = vpop.permute.xlu0 %7178
    %7180 = vrot.lane.b32.xlu0 %v5455, 24
    %v7181 = vpop.permute.xlu0 %7180
    %7182 = vrot.lane.b32.xlu0 %v5463, 24
    %v7183 = vpop.permute.xlu0 %7182
    %7184 = vrot.lane.b32.xlu0 %v5480, 24
    %v7185 = vpop.permute.xlu0 %7184
    %7186 = vrot.lane.b32.xlu0 %v5488, 24
    %v7187 = vpop.permute.xlu0 %7186
    %7188 = vrot.lane.b32.xlu0 %v5505, 24
    %v7189 = vpop.permute.xlu0 %7188
    %7190 = vrot.lane.b32.xlu0 %v5513, 24
    %v7191 = vpop.permute.xlu0 %7190
    %7192 = vrot.lane.b32.xlu0 %v5530, 24
    %v7193 = vpop.permute.xlu0 %7192
    %7194 = vrot.lane.b32.xlu0 %v5538, 24
    %v7195 = vpop.permute.xlu0 %7194
    %7196 = vrot.lane.b32.xlu0 %v5555, 24
    %v7197 = vpop.permute.xlu0 %7196
    %7198 = vrot.lane.b32.xlu0 %v5563, 24
    %v7199 = vpop.permute.xlu0 %7198
    %7200 = vrot.lane.b32.xlu0 %v5580, 24
    %v7201 = vpop.permute.xlu0 %7200
    %7202 = vrot.lane.b32.xlu0 %v5588, 24
    %v7203 = vpop.permute.xlu0 %7202
    %7204 = vrot.lane.b32.xlu0 %v5605, 24
    %v7205 = vpop.permute.xlu0 %7204
    %7206 = vrot.lane.b32.xlu0 %v5613, 24
    %v7207 = vpop.permute.xlu0 %7206
    %7208 = vrot.lane.b32.xlu0 %v7130, 24
    %v7209 = vpop.permute.xlu0 %7208
    %7210 = vrot.lane.b32.xlu0 %v7138, 24
    %v7211 = vpop.permute.xlu0 %7210
    %7212 = vrot.lane.b32.xlu0 %v5655, 24
    %v7213 = vpop.permute.xlu0 %7212
    %7214 = vrot.lane.b32.xlu0 %v5663, 24
    %v7215 = vpop.permute.xlu0 %7214
    %7216 = vrot.lane.b32.xlu0 %v5680, 24
    %v7217 = vpop.permute.xlu0 %7216
    %7218 = vrot.lane.b32.xlu0 %v5688, 24
    %v7219 = vpop.permute.xlu0 %7218
    %7220 = vrot.lane.b32.xlu0 %v5705, 24
    %v7221 = vpop.permute.xlu0 %7220
    %7222 = vrot.lane.b32.xlu0 %v5713, 24
    %v7223 = vpop.permute.xlu0 %7222
    %7224 = vrot.lane.b32.xlu0 %v5730, 24
    %v7225 = vpop.permute.xlu0 %7224
    %7226 = vrot.lane.b32.xlu0 %v5738, 24
    %v7227 = vpop.permute.xlu0 %7226
    %7228 = vrot.lane.b32.xlu0 %v5755, 24
    %v7229 = vpop.permute.xlu0 %7228
    %7230 = vrot.lane.b32.xlu0 %v5763, 24
    %v7231 = vpop.permute.xlu0 %7230
    %7232 = vrot.lane.b32.xlu0 %v5780, 24
    %v7233 = vpop.permute.xlu0 %7232
    %7234 = vrot.lane.b32.xlu0 %v5788, 24
    %v7235 = vpop.permute.xlu0 %7234
    %7236 = vrot.lane.b32.xlu0 %v5805, 24
    %v7237 = vpop.permute.xlu0 %7236
    %7238 = vrot.lane.b32.xlu0 %v5813, 24
    %v7239 = vpop.permute.xlu0 %7238
    %7240 = vrot.lane.b32.xlu0 %v5830, 24
    %v7241 = vpop.permute.xlu0 %7240
    %7242 = vrot.lane.b32.xlu0 %v5838, 24
    %v7243 = vpop.permute.xlu0 %7242
    %7244 = vrot.lane.b32.xlu0 %v5855, 24
    %v7245 = vpop.permute.xlu0 %7244
    %7246 = vrot.lane.b32.xlu0 %v5863, 24
    %v7247 = vpop.permute.xlu0 %7246
    %7248 = vrot.lane.b32.xlu0 %v5880, 24
    %v7249 = vpop.permute.xlu0 %7248
    %7250 = vrot.lane.b32.xlu0 %v5888, 24
    %v7251 = vpop.permute.xlu0 %7250
    %7252 = vrot.lane.b32.xlu0 %v5905, 24
    %v7253 = vpop.permute.xlu0 %7252
    %7254 = vrot.lane.b32.xlu0 %v5913, 24
    %v7255 = vpop.permute.xlu0 %7254
    %7256 = vrot.lane.b32.xlu0 %v7155, 24
    %v7257 = vpop.permute.xlu0 %7256
    %7258 = vrot.lane.b32.xlu0 %v7163, 24
    %v7259 = vpop.permute.xlu0 %7258
    %v7309 = vunpack.c.l.s4 1983009808
    %v7310 = vunpack.c.0.s8 %v7309
    %v7311 = vlaneseq
    %v7312 = vshrl.u32 %v7311, 7
    %v7313 = vsub.s32 %v7310, %v7312
    %v7314 = vrot.slane %v4869, %v7313
    %v7315 = vcombine.low %v7138, %v7314
    %v7317 = vunpack.c.l.s4 1983009808
    %v7318 = vunpack.c.0.s8 %v7317
    %v7319 = vlaneseq
    %v7320 = vshrl.u32 %v7319, 7
    %v7321 = vsub.s32 %v7318, %v7320
    %v7322 = vrot.slane %v5287, %v7321
    %v7323 = vcombine.low %v7163, %v7322
    %v7324 = vrot.slane %v7130, 1
    %v7325 = vrot.slane %v7315, 1
    %v7326 = vsel %vm146, %v7324, %v7325
    %v7327 = vrot.slane %v7155, 1
    %v7328 = vrot.slane %v7323, 1
    %v7329 = vsel %vm146, %v7327, %v7328
    %7330 = vrot.lane.b32.xlu0 %v6159, 32
    %v7331 = vpop.permute.xlu0 %7330
    %7332 = vrot.lane.b32.xlu0 %v6158, 32
    %v7333 = vpop.permute.xlu0 %7332
    %7334 = vrot.lane.b32.xlu0 %v6162, 32
    %v7335 = vpop.permute.xlu0 %7334
    %7336 = vrot.lane.b32.xlu0 %v6161, 32
    %v7337 = vpop.permute.xlu0 %7336
    %7338 = vrot.lane.b32.xlu0 %v6165, 32
    %v7339 = vpop.permute.xlu0 %7338
    %7340 = vrot.lane.b32.xlu0 %v6164, 32
    %v7341 = vpop.permute.xlu0 %7340
    %7342 = vrot.lane.b32.xlu0 %v6168, 32
    %v7343 = vpop.permute.xlu0 %7342
    %7344 = vrot.lane.b32.xlu0 %v6167, 32
    %v7345 = vpop.permute.xlu0 %7344
    %7346 = vrot.lane.b32.xlu0 %v6171, 32
    %v7347 = vpop.permute.xlu0 %7346
    %7348 = vrot.lane.b32.xlu0 %v6170, 32
    %v7349 = vpop.permute.xlu0 %7348
    %7350 = vrot.lane.b32.xlu0 %v6174, 32
    %v7351 = vpop.permute.xlu0 %7350
    %7352 = vrot.lane.b32.xlu0 %v6173, 32
    %v7353 = vpop.permute.xlu0 %7352
    %7354 = vrot.lane.b32.xlu0 %v6177, 32
    %v7355 = vpop.permute.xlu0 %7354
    %7356 = vrot.lane.b32.xlu0 %v6176, 32
    %v7357 = vpop.permute.xlu0 %7356
    %7358 = vrot.lane.b32.xlu0 %v6180, 32
    %v7359 = vpop.permute.xlu0 %7358
    %7360 = vrot.lane.b32.xlu0 %v6179, 32
    %v7361 = vpop.permute.xlu0 %7360
    %7362 = vrot.lane.b32.xlu0 %v6183, 32
    %v7363 = vpop.permute.xlu0 %7362
    %7364 = vrot.lane.b32.xlu0 %v6182, 32
    %v7365 = vpop.permute.xlu0 %7364
    %7366 = vrot.lane.b32.xlu0 %v6186, 32
    %v7367 = vpop.permute.xlu0 %7366
    %7368 = vrot.lane.b32.xlu0 %v6185, 32
    %v7369 = vpop.permute.xlu0 %7368
    %7370 = vrot.lane.b32.xlu0 %v6189, 32
    %v7371 = vpop.permute.xlu0 %7370
    %7372 = vrot.lane.b32.xlu0 %v6188, 32
    %v7373 = vpop.permute.xlu0 %7372
    %7374 = vrot.lane.b32.xlu0 %v7326, 32
    %v7375 = vpop.permute.xlu0 %7374
    %7376 = vrot.lane.b32.xlu0 %v7325, 32
    %v7377 = vpop.permute.xlu0 %7376
    %7378 = vrot.lane.b32.xlu0 %v6195, 32
    %v7379 = vpop.permute.xlu0 %7378
    %7380 = vrot.lane.b32.xlu0 %v6194, 32
    %v7381 = vpop.permute.xlu0 %7380
    %7382 = vrot.lane.b32.xlu0 %v6198, 32
    %v7383 = vpop.permute.xlu0 %7382
    %7384 = vrot.lane.b32.xlu0 %v6197, 32
    %v7385 = vpop.permute.xlu0 %7384
    %7386 = vrot.lane.b32.xlu0 %v6201, 32
    %v7387 = vpop.permute.xlu0 %7386
    %7388 = vrot.lane.b32.xlu0 %v6200, 32
    %v7389 = vpop.permute.xlu0 %7388
    %7390 = vrot.lane.b32.xlu0 %v6204, 32
    %v7391 = vpop.permute.xlu0 %7390
    %7392 = vrot.lane.b32.xlu0 %v6203, 32
    %v7393 = vpop.permute.xlu0 %7392
    %7394 = vrot.lane.b32.xlu0 %v6207, 32
    %v7395 = vpop.permute.xlu0 %7394
    %7396 = vrot.lane.b32.xlu0 %v6206, 32
    %v7397 = vpop.permute.xlu0 %7396
    %7398 = vrot.lane.b32.xlu0 %v6210, 32
    %v7399 = vpop.permute.xlu0 %7398
    %7400 = vrot.lane.b32.xlu0 %v6209, 32
    %v7401 = vpop.permute.xlu0 %7400
    %7402 = vrot.lane.b32.xlu0 %v6213, 32
    %v7403 = vpop.permute.xlu0 %7402
    %7404 = vrot.lane.b32.xlu0 %v6212, 32
    %v7405 = vpop.permute.xlu0 %7404
    %7406 = vrot.lane.b32.xlu0 %v6216, 32
    %v7407 = vpop.permute.xlu0 %7406
    %7408 = vrot.lane.b32.xlu0 %v6215, 32
    %v7409 = vpop.permute.xlu0 %7408
    %7410 = vrot.lane.b32.xlu0 %v6219, 32
    %v7411 = vpop.permute.xlu0 %7410
    %7412 = vrot.lane.b32.xlu0 %v6218, 32
    %v7413 = vpop.permute.xlu0 %7412
    %7414 = vrot.lane.b32.xlu0 %v6222, 32
    %v7415 = vpop.permute.xlu0 %7414
    %7416 = vrot.lane.b32.xlu0 %v6221, 32
    %v7417 = vpop.permute.xlu0 %7416
    %7418 = vrot.lane.b32.xlu0 %v6225, 32
    %v7419 = vpop.permute.xlu0 %7418
    %7420 = vrot.lane.b32.xlu0 %v6224, 32
    %v7421 = vpop.permute.xlu0 %7420
    %7422 = vrot.lane.b32.xlu0 %v7329, 32
    %v7423 = vpop.permute.xlu0 %7422
    %7424 = vrot.lane.b32.xlu0 %v7328, 32
    %v7425 = vpop.permute.xlu0 %7424
    %v7474 = vcombine.low %v4853, %v4852
    %v7475 = vcombine.low %v4854, %v4862
    %v7477 = vunpack.c.l.s4 1983009808
    %v7478 = vunpack.c.0.s8 %v7477
    %v7479 = vlaneseq
    %v7480 = vshrl.u32 %v7479, 7
    %v7481 = vsub.s32 %v7478, %v7480
    %v7482 = vrot.slane %v7474, %v7481
    %v7484 = vunpack.c.l.s4 1983009808
    %v7485 = vunpack.c.0.s8 %v7484
    %v7486 = vlaneseq
    %v7487 = vshrl.u32 %v7486, 7
    %v7488 = vsub.s32 %v7485, %v7487
    %v7489 = vrot.slane %v7475, %v7488
    %v7490 = vcombine.low %v7482, %v7489
    %v7491 = vcombine.low %v4870, %v4869
    %v7493 = vunpack.c.l.s4 1983009808
    %v7494 = vunpack.c.0.s8 %v7493
    %v7495 = vlaneseq
    %v7496 = vshrl.u32 %v7495, 7
    %v7497 = vsub.s32 %v7494, %v7496
    %v7498 = vrot.slane %v7491, %v7497
    %v7499 = vcombine.low %v5262, %v5270
    %v7500 = vcombine.low %v5278, %v5277
    %v7502 = vunpack.c.l.s4 1983009808
    %v7503 = vunpack.c.0.s8 %v7502
    %v7504 = vlaneseq
    %v7505 = vshrl.u32 %v7504, 7
    %v7506 = vsub.s32 %v7503, %v7505
    %v7507 = vrot.slane %v7499, %v7506
    %v7509 = vunpack.c.l.s4 1983009808
    %v7510 = vunpack.c.0.s8 %v7509
    %v7511 = vlaneseq
    %v7512 = vshrl.u32 %v7511, 7
    %v7513 = vsub.s32 %v7510, %v7512
    %v7514 = vrot.slane %v7500, %v7513
    %v7515 = vcombine.low %v7507, %v7514
    %v7516 = vcombine.low %v5279, %v5287
    %v7518 = vunpack.c.l.s4 1983009808
    %v7519 = vunpack.c.0.s8 %v7518
    %v7520 = vlaneseq
    %v7521 = vshrl.u32 %v7520, 7
    %v7522 = vsub.s32 %v7519, %v7521
    %v7523 = vrot.slane %v7516, %v7522
    %7524 = vrot.lane.b32.xlu0 %v6411, 40
    %v7525 = vpop.permute.xlu0 %7524
    %7526 = vrot.lane.b32.xlu0 %v6419, 40
    %v7527 = vpop.permute.xlu0 %7526
    %7528 = vrot.lane.b32.xlu0 %v6436, 40
    %v7529 = vpop.permute.xlu0 %7528
    %7530 = vrot.lane.b32.xlu0 %v6444, 40
    %v7531 = vpop.permute.xlu0 %7530
    %7532 = vrot.lane.b32.xlu0 %v6461, 40
    %v7533 = vpop.permute.xlu0 %7532
    %7534 = vrot.lane.b32.xlu0 %v6469, 40
    %v7535 = vpop.permute.xlu0 %7534
    %7536 = vrot.lane.b32.xlu0 %v6486, 40
    %v7537 = vpop.permute.xlu0 %7536
    %7538 = vrot.lane.b32.xlu0 %v6494, 40
    %v7539 = vpop.permute.xlu0 %7538
    %7540 = vrot.lane.b32.xlu0 %v6511, 40
    %v7541 = vpop.permute.xlu0 %7540
    %7542 = vrot.lane.b32.xlu0 %v6519, 40
    %v7543 = vpop.permute.xlu0 %7542
    %7544 = vrot.lane.b32.xlu0 %v6536, 40
    %v7545 = vpop.permute.xlu0 %7544
    %7546 = vrot.lane.b32.xlu0 %v6544, 40
    %v7547 = vpop.permute.xlu0 %7546
    %7548 = vrot.lane.b32.xlu0 %v6561, 40
    %v7549 = vpop.permute.xlu0 %7548
    %7550 = vrot.lane.b32.xlu0 %v6569, 40
    %v7551 = vpop.permute.xlu0 %7550
    %7552 = vrot.lane.b32.xlu0 %v6586, 40
    %v7553 = vpop.permute.xlu0 %7552
    %7554 = vrot.lane.b32.xlu0 %v6594, 40
    %v7555 = vpop.permute.xlu0 %7554
    %7556 = vrot.lane.b32.xlu0 %v6611, 40
    %v7557 = vpop.permute.xlu0 %7556
    %7558 = vrot.lane.b32.xlu0 %v6619, 40
    %v7559 = vpop.permute.xlu0 %7558
    %7560 = vrot.lane.b32.xlu0 %v6636, 40
    %v7561 = vpop.permute.xlu0 %7560
    %7562 = vrot.lane.b32.xlu0 %v6644, 40
    %v7563 = vpop.permute.xlu0 %7562
    %7564 = vrot.lane.b32.xlu0 %v6661, 40
    %v7565 = vpop.permute.xlu0 %7564
    %7566 = vrot.lane.b32.xlu0 %v6669, 40
    %v7567 = vpop.permute.xlu0 %7566
    %7568 = vrot.lane.b32.xlu0 %v7490, 40
    %v7569 = vpop.permute.xlu0 %7568
    %7570 = vrot.lane.b32.xlu0 %v7498, 40
    %v7571 = vpop.permute.xlu0 %7570
    %7572 = vrot.lane.b32.xlu0 %v6711, 40
    %v7573 = vpop.permute.xlu0 %7572
    %7574 = vrot.lane.b32.xlu0 %v6719, 40
    %v7575 = vpop.permute.xlu0 %7574
    %7576 = vrot.lane.b32.xlu0 %v6736, 40
    %v7577 = vpop.permute.xlu0 %7576
    %7578 = vrot.lane.b32.xlu0 %v6744, 40
    %v7579 = vpop.permute.xlu0 %7578
    %7580 = vrot.lane.b32.xlu0 %v6761, 40
    %v7581 = vpop.permute.xlu0 %7580
    %7582 = vrot.lane.b32.xlu0 %v6769, 40
    %v7583 = vpop.permute.xlu0 %7582
    %7584 = vrot.lane.b32.xlu0 %v6786, 40
    %v7585 = vpop.permute.xlu0 %7584
    %7586 = vrot.lane.b32.xlu0 %v6794, 40
    %v7587 = vpop.permute.xlu0 %7586
    %7588 = vrot.lane.b32.xlu0 %v6811, 40
    %v7589 = vpop.permute.xlu0 %7588
    %7590 = vrot.lane.b32.xlu0 %v6819, 40
    %v7591 = vpop.permute.xlu0 %7590
    %7592 = vrot.lane.b32.xlu0 %v6836, 40
    %v7593 = vpop.permute.xlu0 %7592
    %7594 = vrot.lane.b32.xlu0 %v6844, 40
    %v7595 = vpop.permute.xlu0 %7594
    %7596 = vrot.lane.b32.xlu0 %v6861, 40
    %v7597 = vpop.permute.xlu0 %7596
    %7598 = vrot.lane.b32.xlu0 %v6869, 40
    %v7599 = vpop.permute.xlu0 %7598
    %7600 = vrot.lane.b32.xlu0 %v6886, 40
    %v7601 = vpop.permute.xlu0 %7600
    %7602 = vrot.lane.b32.xlu0 %v6894, 40
    %v7603 = vpop.permute.xlu0 %7602
    %7604 = vrot.lane.b32.xlu0 %v6911, 40
    %v7605 = vpop.permute.xlu0 %7604
    %7606 = vrot.lane.b32.xlu0 %v6919, 40
    %v7607 = vpop.permute.xlu0 %7606
    %7608 = vrot.lane.b32.xlu0 %v6936, 40
    %v7609 = vpop.permute.xlu0 %7608
    %7610 = vrot.lane.b32.xlu0 %v6944, 40
    %v7611 = vpop.permute.xlu0 %7610
    %7612 = vrot.lane.b32.xlu0 %v6961, 40
    %v7613 = vpop.permute.xlu0 %7612
    %7614 = vrot.lane.b32.xlu0 %v6969, 40
    %v7615 = vpop.permute.xlu0 %7614
    %7616 = vrot.lane.b32.xlu0 %v7515, 40
    %v7617 = vpop.permute.xlu0 %7616
    %7618 = vrot.lane.b32.xlu0 %v7523, 40
    %v7619 = vpop.permute.xlu0 %7618
    %v7668 = vcombine.low %v4871, %v4879
    %v7669 = vcombine.low %v4887, %v4886
    %v7671 = vunpack.c.l.s4 1983009808
    %v7672 = vunpack.c.0.s8 %v7671
    %v7673 = vlaneseq
    %v7674 = vshrl.u32 %v7673, 7
    %v7675 = vsub.s32 %v7672, %v7674
    %v7676 = vrot.slane %v7668, %v7675
    %v7678 = vunpack.c.l.s4 1983009808
    %v7679 = vunpack.c.0.s8 %v7678
    %v7680 = vlaneseq
    %v7681 = vshrl.u32 %v7680, 7
    %v7682 = vsub.s32 %v7679, %v7681
    %v7683 = vrot.slane %v7669, %v7682
    %v7684 = vcombine.low %v7676, %v7683
    %v7685 = vcombine.low %v4888, %v4896
    %v7687 = vunpack.c.l.s4 1983009808
    %v7688 = vunpack.c.0.s8 %v7687
    %v7689 = vlaneseq
    %v7690 = vshrl.u32 %v7689, 7
    %v7691 = vsub.s32 %v7688, %v7690
    %v7692 = vrot.slane %v7685, %v7691
    %v7693 = vcombine.low %v5295, %v5294
    %v7694 = vcombine.low %v5296, %v5304
    %v7696 = vunpack.c.l.s4 1983009808
    %v7697 = vunpack.c.0.s8 %v7696
    %v7698 = vlaneseq
    %v7699 = vshrl.u32 %v7698, 7
    %v7700 = vsub.s32 %v7697, %v7699
    %v7701 = vrot.slane %v7693, %v7700
    %v7703 = vunpack.c.l.s4 1983009808
    %v7704 = vunpack.c.0.s8 %v7703
    %v7705 = vlaneseq
    %v7706 = vshrl.u32 %v7705, 7
    %v7707 = vsub.s32 %v7704, %v7706
    %v7708 = vrot.slane %v7694, %v7707
    %v7709 = vcombine.low %v7701, %v7708
    %v7710 = vcombine.low %v5312, %v5311
    %v7712 = vunpack.c.l.s4 1983009808
    %v7713 = vunpack.c.0.s8 %v7712
    %v7714 = vlaneseq
    %v7715 = vshrl.u32 %v7714, 7
    %v7716 = vsub.s32 %v7713, %v7715
    %v7717 = vrot.slane %v7710, %v7716
    %7718 = vrot.lane.b32.xlu0 %v5380, 48
    %v7719 = vpop.permute.xlu0 %7718
    %7720 = vrot.lane.b32.xlu0 %v5388, 48
    %v7721 = vpop.permute.xlu0 %7720
    %7722 = vrot.lane.b32.xlu0 %v5405, 48
    %v7723 = vpop.permute.xlu0 %7722
    %7724 = vrot.lane.b32.xlu0 %v5413, 48
    %v7725 = vpop.permute.xlu0 %7724
    %7726 = vrot.lane.b32.xlu0 %v5430, 48
    %v7727 = vpop.permute.xlu0 %7726
    %7728 = vrot.lane.b32.xlu0 %v5438, 48
    %v7729 = vpop.permute.xlu0 %7728
    %7730 = vrot.lane.b32.xlu0 %v5455, 48
    %v7731 = vpop.permute.xlu0 %7730
    %7732 = vrot.lane.b32.xlu0 %v5463, 48
    %v7733 = vpop.permute.xlu0 %7732
    %7734 = vrot.lane.b32.xlu0 %v5480, 48
    %v7735 = vpop.permute.xlu0 %7734
    %7736 = vrot.lane.b32.xlu0 %v5488, 48
    %v7737 = vpop.permute.xlu0 %7736
    %7738 = vrot.lane.b32.xlu0 %v5505, 48
    %v7739 = vpop.permute.xlu0 %7738
    %7740 = vrot.lane.b32.xlu0 %v5513, 48
    %v7741 = vpop.permute.xlu0 %7740
    %7742 = vrot.lane.b32.xlu0 %v5530, 48
    %v7743 = vpop.permute.xlu0 %7742
    %7744 = vrot.lane.b32.xlu0 %v5538, 48
    %v7745 = vpop.permute.xlu0 %7744
    %7746 = vrot.lane.b32.xlu0 %v5555, 48
    %v7747 = vpop.permute.xlu0 %7746
    %7748 = vrot.lane.b32.xlu0 %v5563, 48
    %v7749 = vpop.permute.xlu0 %7748
    %7750 = vrot.lane.b32.xlu0 %v5580, 48
    %v7751 = vpop.permute.xlu0 %7750
    %7752 = vrot.lane.b32.xlu0 %v5588, 48
    %v7753 = vpop.permute.xlu0 %7752
    %7754 = vrot.lane.b32.xlu0 %v5605, 48
    %v7755 = vpop.permute.xlu0 %7754
    %7756 = vrot.lane.b32.xlu0 %v5613, 48
    %v7757 = vpop.permute.xlu0 %7756
    %7758 = vrot.lane.b32.xlu0 %v7130, 48
    %v7759 = vpop.permute.xlu0 %7758
    %7760 = vrot.lane.b32.xlu0 %v7138, 48
    %v7761 = vpop.permute.xlu0 %7760
    %7762 = vrot.lane.b32.xlu0 %v7684, 48
    %v7763 = vpop.permute.xlu0 %7762
    %7764 = vrot.lane.b32.xlu0 %v7692, 48
    %v7765 = vpop.permute.xlu0 %7764
    %7766 = vrot.lane.b32.xlu0 %v5680, 48
    %v7767 = vpop.permute.xlu0 %7766
    %7768 = vrot.lane.b32.xlu0 %v5688, 48
    %v7769 = vpop.permute.xlu0 %7768
    %7770 = vrot.lane.b32.xlu0 %v5705, 48
    %v7771 = vpop.permute.xlu0 %7770
    %7772 = vrot.lane.b32.xlu0 %v5713, 48
    %v7773 = vpop.permute.xlu0 %7772
    %7774 = vrot.lane.b32.xlu0 %v5730, 48
    %v7775 = vpop.permute.xlu0 %7774
    %7776 = vrot.lane.b32.xlu0 %v5738, 48
    %v7777 = vpop.permute.xlu0 %7776
    %7778 = vrot.lane.b32.xlu0 %v5755, 48
    %v7779 = vpop.permute.xlu0 %7778
    %7780 = vrot.lane.b32.xlu0 %v5763, 48
    %v7781 = vpop.permute.xlu0 %7780
    %7782 = vrot.lane.b32.xlu0 %v5780, 48
    %v7783 = vpop.permute.xlu0 %7782
    %7784 = vrot.lane.b32.xlu0 %v5788, 48
    %v7785 = vpop.permute.xlu0 %7784
    %7786 = vrot.lane.b32.xlu0 %v5805, 48
    %v7787 = vpop.permute.xlu0 %7786
    %7788 = vrot.lane.b32.xlu0 %v5813, 48
    %v7789 = vpop.permute.xlu0 %7788
    %7790 = vrot.lane.b32.xlu0 %v5830, 48
    %v7791 = vpop.permute.xlu0 %7790
    %7792 = vrot.lane.b32.xlu0 %v5838, 48
    %v7793 = vpop.permute.xlu0 %7792
    %7794 = vrot.lane.b32.xlu0 %v5855, 48
    %v7795 = vpop.permute.xlu0 %7794
    %7796 = vrot.lane.b32.xlu0 %v5863, 48
    %v7797 = vpop.permute.xlu0 %7796
    %7798 = vrot.lane.b32.xlu0 %v5880, 48
    %v7799 = vpop.permute.xlu0 %7798
    %7800 = vrot.lane.b32.xlu0 %v5888, 48
    %v7801 = vpop.permute.xlu0 %7800
    %7802 = vrot.lane.b32.xlu0 %v5905, 48
    %v7803 = vpop.permute.xlu0 %7802
    %7804 = vrot.lane.b32.xlu0 %v5913, 48
    %v7805 = vpop.permute.xlu0 %7804
    %7806 = vrot.lane.b32.xlu0 %v7155, 48
    %v7807 = vpop.permute.xlu0 %7806
    %7808 = vrot.lane.b32.xlu0 %v7163, 48
    %v7809 = vpop.permute.xlu0 %7808
    %7810 = vrot.lane.b32.xlu0 %v7709, 48
    %v7811 = vpop.permute.xlu0 %7810
    %7812 = vrot.lane.b32.xlu0 %v7717, 48
    %v7813 = vpop.permute.xlu0 %7812
    %v7863 = vunpack.c.l.s4 1983009808
    %v7864 = vunpack.c.0.s8 %v7863
    %v7865 = vlaneseq
    %v7866 = vshrl.u32 %v7865, 7
    %v7867 = vsub.s32 %v7864, %v7866
    %v7868 = vrot.slane %v4904, %v7867
    %v7869 = vcombine.low %v7692, %v7868
    %v7871 = vunpack.c.l.s4 1983009808
    %v7872 = vunpack.c.0.s8 %v7871
    %v7873 = vlaneseq
    %v7874 = vshrl.u32 %v7873, 7
    %v7875 = vsub.s32 %v7872, %v7874
    %v7876 = vrot.slane %v5313, %v7875
    %v7877 = vcombine.low %v7717, %v7876
    %v7878 = vrot.slane %v7684, 1
    %v7879 = vrot.slane %v7869, 1
    %v7880 = vsel %vm146, %v7878, %v7879
    %v7881 = vrot.slane %v7709, 1
    %v7882 = vrot.slane %v7877, 1
    %v7883 = vsel %vm146, %v7881, %v7882
    %7884 = vrot.lane.b32.xlu0 %v6162, 56
    %v7885 = vpop.permute.xlu0 %7884
    %7886 = vrot.lane.b32.xlu0 %v6161, 56
    %v7887 = vpop.permute.xlu0 %7886
    %7888 = vrot.lane.b32.xlu0 %v6165, 56
    %v7889 = vpop.permute.xlu0 %7888
    %7890 = vrot.lane.b32.xlu0 %v6164, 56
    %v7891 = vpop.permute.xlu0 %7890
    %7892 = vrot.lane.b32.xlu0 %v6168, 56
    %v7893 = vpop.permute.xlu0 %7892
    %7894 = vrot.lane.b32.xlu0 %v6167, 56
    %v7895 = vpop.permute.xlu0 %7894
    %7896 = vrot.lane.b32.xlu0 %v6171, 56
    %v7897 = vpop.permute.xlu0 %7896
    %7898 = vrot.lane.b32.xlu0 %v6170, 56
    %v7899 = vpop.permute.xlu0 %7898
    %7900 = vrot.lane.b32.xlu0 %v6174, 56
    %v7901 = vpop.permute.xlu0 %7900
    %7902 = vrot.lane.b32.xlu0 %v6173, 56
    %v7903 = vpop.permute.xlu0 %7902
    %7904 = vrot.lane.b32.xlu0 %v6177, 56
    %v7905 = vpop.permute.xlu0 %7904
    %7906 = vrot.lane.b32.xlu0 %v6176, 56
    %v7907 = vpop.permute.xlu0 %7906
    %7908 = vrot.lane.b32.xlu0 %v6180, 56
    %v7909 = vpop.permute.xlu0 %7908
    %7910 = vrot.lane.b32.xlu0 %v6179, 56
    %v7911 = vpop.permute.xlu0 %7910
    %7912 = vrot.lane.b32.xlu0 %v6183, 56
    %v7913 = vpop.permute.xlu0 %7912
    %7914 = vrot.lane.b32.xlu0 %v6182, 56
    %v7915 = vpop.permute.xlu0 %7914
    %7916 = vrot.lane.b32.xlu0 %v6186, 56
    %v7917 = vpop.permute.xlu0 %7916
    %7918 = vrot.lane.b32.xlu0 %v6185, 56
    %v7919 = vpop.permute.xlu0 %7918
    %7920 = vrot.lane.b32.xlu0 %v6189, 56
    %v7921 = vpop.permute.xlu0 %7920
    %7922 = vrot.lane.b32.xlu0 %v6188, 56
    %v7923 = vpop.permute.xlu0 %7922
    %7924 = vrot.lane.b32.xlu0 %v7326, 56
    %v7925 = vpop.permute.xlu0 %7924
    %7926 = vrot.lane.b32.xlu0 %v7325, 56
    %v7927 = vpop.permute.xlu0 %7926
    %7928 = vrot.lane.b32.xlu0 %v7880, 56
    %v7929 = vpop.permute.xlu0 %7928
    %7930 = vrot.lane.b32.xlu0 %v7879, 56
    %v7931 = vpop.permute.xlu0 %7930
    %7932 = vrot.lane.b32.xlu0 %v6198, 56
    %v7933 = vpop.permute.xlu0 %7932
    %7934 = vrot.lane.b32.xlu0 %v6197, 56
    %v7935 = vpop.permute.xlu0 %7934
    %7936 = vrot.lane.b32.xlu0 %v6201, 56
    %v7937 = vpop.permute.xlu0 %7936
    %7938 = vrot.lane.b32.xlu0 %v6200, 56
    %v7939 = vpop.permute.xlu0 %7938
    %7940 = vrot.lane.b32.xlu0 %v6204, 56
    %v7941 = vpop.permute.xlu0 %7940
    %7942 = vrot.lane.b32.xlu0 %v6203, 56
    %v7943 = vpop.permute.xlu0 %7942
    %7944 = vrot.lane.b32.xlu0 %v6207, 56
    %v7945 = vpop.permute.xlu0 %7944
    %7946 = vrot.lane.b32.xlu0 %v6206, 56
    %v7947 = vpop.permute.xlu0 %7946
    %7948 = vrot.lane.b32.xlu0 %v6210, 56
    %v7949 = vpop.permute.xlu0 %7948
    %7950 = vrot.lane.b32.xlu0 %v6209, 56
    %v7951 = vpop.permute.xlu0 %7950
    %7952 = vrot.lane.b32.xlu0 %v6213, 56
    %v7953 = vpop.permute.xlu0 %7952
    %7954 = vrot.lane.b32.xlu0 %v6212, 56
    %v7955 = vpop.permute.xlu0 %7954
    %7956 = vrot.lane.b32.xlu0 %v6216, 56
    %v7957 = vpop.permute.xlu0 %7956
    %7958 = vrot.lane.b32.xlu0 %v6215, 56
    %v7959 = vpop.permute.xlu0 %7958
    %7960 = vrot.lane.b32.xlu0 %v6219, 56
    %v7961 = vpop.permute.xlu0 %7960
    %7962 = vrot.lane.b32.xlu0 %v6218, 56
    %v7963 = vpop.permute.xlu0 %7962
    %7964 = vrot.lane.b32.xlu0 %v6222, 56
    %v7965 = vpop.permute.xlu0 %7964
    %7966 = vrot.lane.b32.xlu0 %v6221, 56
    %v7967 = vpop.permute.xlu0 %7966
    %7968 = vrot.lane.b32.xlu0 %v6225, 56
    %v7969 = vpop.permute.xlu0 %7968
    %7970 = vrot.lane.b32.xlu0 %v6224, 56
    %v7971 = vpop.permute.xlu0 %7970
    %7972 = vrot.lane.b32.xlu0 %v7329, 56
    %v7973 = vpop.permute.xlu0 %7972
    %7974 = vrot.lane.b32.xlu0 %v7328, 56
    %v7975 = vpop.permute.xlu0 %7974
    %7976 = vrot.lane.b32.xlu0 %v7883, 56
    %v7977 = vpop.permute.xlu0 %7976
    %7978 = vrot.lane.b32.xlu0 %v7882, 56
    %v7979 = vpop.permute.xlu0 %7978
    %v8028 = vcombine.low %v4879, %v4887
    %v8029 = vcombine.low %v4886, %v4888
    %v8031 = vunpack.c.l.s4 1983009808
    %v8032 = vunpack.c.0.s8 %v8031
    %v8033 = vlaneseq
    %v8034 = vshrl.u32 %v8033, 7
    %v8035 = vsub.s32 %v8032, %v8034
    %v8036 = vrot.slane %v8028, %v8035
    %v8038 = vunpack.c.l.s4 1983009808
    %v8039 = vunpack.c.0.s8 %v8038
    %v8040 = vlaneseq
    %v8041 = vshrl.u32 %v8040, 7
    %v8042 = vsub.s32 %v8039, %v8041
    %v8043 = vrot.slane %v8029, %v8042
    %v8044 = vcombine.low %v8036, %v8043
    %v8045 = vcombine.low %v4896, %v4904
    %v8047 = vunpack.c.l.s4 1983009808
    %v8048 = vunpack.c.0.s8 %v8047
    %v8049 = vlaneseq
    %v8050 = vshrl.u32 %v8049, 7
    %v8051 = vsub.s32 %v8048, %v8050
    %v8052 = vrot.slane %v8045, %v8051
    %v8053 = vcombine.low %v5294, %v5296
    %v8054 = vcombine.low %v5304, %v5312
    %v8056 = vunpack.c.l.s4 1983009808
    %v8057 = vunpack.c.0.s8 %v8056
    %v8058 = vlaneseq
    %v8059 = vshrl.u32 %v8058, 7
    %v8060 = vsub.s32 %v8057, %v8059
    %v8061 = vrot.slane %v8053, %v8060
    %v8063 = vunpack.c.l.s4 1983009808
    %v8064 = vunpack.c.0.s8 %v8063
    %v8065 = vlaneseq
    %v8066 = vshrl.u32 %v8065, 7
    %v8067 = vsub.s32 %v8064, %v8066
    %v8068 = vrot.slane %v8054, %v8067
    %v8069 = vcombine.low %v8061, %v8068
    %v8070 = vcombine.low %v5311, %v5313
    %v8072 = vunpack.c.l.s4 1983009808
    %v8073 = vunpack.c.0.s8 %v8072
    %v8074 = vlaneseq
    %v8075 = vshrl.u32 %v8074, 7
    %v8076 = vsub.s32 %v8073, %v8075
    %v8077 = vrot.slane %v8070, %v8076
    %8078 = vrot.lane.b32.xlu0 %v6436, 64
    %v8079 = vpop.permute.xlu0 %8078
    %8080 = vrot.lane.b32.xlu0 %v6444, 64
    %v8081 = vpop.permute.xlu0 %8080
    %8082 = vrot.lane.b32.xlu0 %v6461, 64
    %v8083 = vpop.permute.xlu0 %8082
    %8084 = vrot.lane.b32.xlu0 %v6469, 64
    %v8085 = vpop.permute.xlu0 %8084
    %8086 = vrot.lane.b32.xlu0 %v6486, 64
    %v8087 = vpop.permute.xlu0 %8086
    %8088 = vrot.lane.b32.xlu0 %v6494, 64
    %v8089 = vpop.permute.xlu0 %8088
    %8090 = vrot.lane.b32.xlu0 %v6511, 64
    %v8091 = vpop.permute.xlu0 %8090
    %8092 = vrot.lane.b32.xlu0 %v6519, 64
    %v8093 = vpop.permute.xlu0 %8092
    %8094 = vrot.lane.b32.xlu0 %v6536, 64
    %v8095 = vpop.permute.xlu0 %8094
    %8096 = vrot.lane.b32.xlu0 %v6544, 64
    %v8097 = vpop.permute.xlu0 %8096
    %8098 = vrot.lane.b32.xlu0 %v6561, 64
    %v8099 = vpop.permute.xlu0 %8098
    %8100 = vrot.lane.b32.xlu0 %v6569, 64
    %v8101 = vpop.permute.xlu0 %8100
    %8102 = vrot.lane.b32.xlu0 %v6586, 64
    %v8103 = vpop.permute.xlu0 %8102
    %8104 = vrot.lane.b32.xlu0 %v6594, 64
    %v8105 = vpop.permute.xlu0 %8104
    %8106 = vrot.lane.b32.xlu0 %v6611, 64
    %v8107 = vpop.permute.xlu0 %8106
    %8108 = vrot.lane.b32.xlu0 %v6619, 64
    %v8109 = vpop.permute.xlu0 %8108
    %8110 = vrot.lane.b32.xlu0 %v6636, 64
    %v8111 = vpop.permute.xlu0 %8110
    %8112 = vrot.lane.b32.xlu0 %v6644, 64
    %v8113 = vpop.permute.xlu0 %8112
    %8114 = vrot.lane.b32.xlu0 %v6661, 64
    %v8115 = vpop.permute.xlu0 %8114
    %8116 = vrot.lane.b32.xlu0 %v6669, 64
    %v8117 = vpop.permute.xlu0 %8116
    %8118 = vrot.lane.b32.xlu0 %v7490, 64
    %v8119 = vpop.permute.xlu0 %8118
    %8120 = vrot.lane.b32.xlu0 %v7498, 64
    %v8121 = vpop.permute.xlu0 %8120
    %8122 = vrot.lane.b32.xlu0 %v8044, 64
    %v8123 = vpop.permute.xlu0 %8122
    %8124 = vrot.lane.b32.xlu0 %v8052, 64
    %v8125 = vpop.permute.xlu0 %8124
    %8126 = vrot.lane.b32.xlu0 %v6736, 64
    %v8127 = vpop.permute.xlu0 %8126
    %8128 = vrot.lane.b32.xlu0 %v6744, 64
    %v8129 = vpop.permute.xlu0 %8128
    %8130 = vrot.lane.b32.xlu0 %v6761, 64
    %v8131 = vpop.permute.xlu0 %8130
    %8132 = vrot.lane.b32.xlu0 %v6769, 64
    %v8133 = vpop.permute.xlu0 %8132
    %8134 = vrot.lane.b32.xlu0 %v6786, 64
    %v8135 = vpop.permute.xlu0 %8134
    %8136 = vrot.lane.b32.xlu0 %v6794, 64
    %v8137 = vpop.permute.xlu0 %8136
    %8138 = vrot.lane.b32.xlu0 %v6811, 64
    %v8139 = vpop.permute.xlu0 %8138
    %8140 = vrot.lane.b32.xlu0 %v6819, 64
    %v8141 = vpop.permute.xlu0 %8140
    %8142 = vrot.lane.b32.xlu0 %v6836, 64
    %v8143 = vpop.permute.xlu0 %8142
    %8144 = vrot.lane.b32.xlu0 %v6844, 64
    %v8145 = vpop.permute.xlu0 %8144
    %8146 = vrot.lane.b32.xlu0 %v6861, 64
    %v8147 = vpop.permute.xlu0 %8146
    %8148 = vrot.lane.b32.xlu0 %v6869, 64
    %v8149 = vpop.permute.xlu0 %8148
    %8150 = vrot.lane.b32.xlu0 %v6886, 64
    %v8151 = vpop.permute.xlu0 %8150
    %8152 = vrot.lane.b32.xlu0 %v6894, 64
    %v8153 = vpop.permute.xlu0 %8152
    %8154 = vrot.lane.b32.xlu0 %v6911, 64
    %v8155 = vpop.permute.xlu0 %8154
    %8156 = vrot.lane.b32.xlu0 %v6919, 64
    %v8157 = vpop.permute.xlu0 %8156
    %8158 = vrot.lane.b32.xlu0 %v6936, 64
    %v8159 = vpop.permute.xlu0 %8158
    %8160 = vrot.lane.b32.xlu0 %v6944, 64
    %v8161 = vpop.permute.xlu0 %8160
    %8162 = vrot.lane.b32.xlu0 %v6961, 64
    %v8163 = vpop.permute.xlu0 %8162
    %8164 = vrot.lane.b32.xlu0 %v6969, 64
    %v8165 = vpop.permute.xlu0 %8164
    %8166 = vrot.lane.b32.xlu0 %v7515, 64
    %v8167 = vpop.permute.xlu0 %8166
    %8168 = vrot.lane.b32.xlu0 %v7523, 64
    %v8169 = vpop.permute.xlu0 %8168
    %8170 = vrot.lane.b32.xlu0 %v8069, 64
    %v8171 = vpop.permute.xlu0 %8170
    %8172 = vrot.lane.b32.xlu0 %v8077, 64
    %v8173 = vpop.permute.xlu0 %8172
    %v8222 = vsel %vm1749, %v5330, %v6227
    %v8223 = vsel %vm1749, %v5338, %v6229
    %v8224 = vsel %vm1749, %v5355, %v6231
    %v8225 = vsel %vm1749, %v5363, %v6233
    %v8226 = vsel %vm1749, %v5380, %v6235
    %v8227 = vsel %vm1749, %v5388, %v6237
    %v8228 = vsel %vm1749, %v5405, %v6239
    %v8229 = vsel %vm1749, %v5413, %v6241
    %v8230 = vsel %vm1749, %v5430, %v6243
    %v8231 = vsel %vm1749, %v5438, %v6245
    %v8232 = vsel %vm1749, %v5455, %v6247
    %v8233 = vsel %vm1749, %v5463, %v6249
    %v8234 = vsel %vm1749, %v5480, %v6251
    %v8235 = vsel %vm1749, %v5488, %v6253
    %v8236 = vsel %vm1749, %v5505, %v6255
    %v8237 = vsel %vm1749, %v5513, %v6257
    %v8238 = vsel %vm1749, %v5530, %v6259
    %v8239 = vsel %vm1749, %v5538, %v6261
    %v8240 = vsel %vm1749, %v5555, %v6263
    %v8241 = vsel %vm1749, %v5563, %v6265
    %v8242 = vsel %vm1749, %v5580, %v6267
    %v8243 = vsel %vm1749, %v5588, %v6269
    %v8244 = vsel %vm1749, %v5605, %v6271
    %v8245 = vsel %vm1749, %v5613, %v6273
    %v8246 = vsel %vm1749, %v5630, %v6275
    %v8247 = vsel %vm1749, %v5638, %v6277
    %v8248 = vsel %vm1749, %v5655, %v6279
    %v8249 = vsel %vm1749, %v5663, %v6281
    %v8250 = vsel %vm1749, %v5680, %v6283
    %v8251 = vsel %vm1749, %v5688, %v6285
    %v8252 = vsel %vm1749, %v5705, %v6287
    %v8253 = vsel %vm1749, %v5713, %v6289
    %v8254 = vsel %vm1749, %v5730, %v6291
    %v8255 = vsel %vm1749, %v5738, %v6293
    %v8256 = vsel %vm1749, %v5755, %v6295
    %v8257 = vsel %vm1749, %v5763, %v6297
    %v8258 = vsel %vm1749, %v5780, %v6299
    %v8259 = vsel %vm1749, %v5788, %v6301
    %v8260 = vsel %vm1749, %v5805, %v6303
    %v8261 = vsel %vm1749, %v5813, %v6305
    %v8262 = vsel %vm1749, %v5830, %v6307
    %v8263 = vsel %vm1749, %v5838, %v6309
    %v8264 = vsel %vm1749, %v5855, %v6311
    %v8265 = vsel %vm1749, %v5863, %v6313
    %v8266 = vsel %vm1749, %v5880, %v6315
    %v8267 = vsel %vm1749, %v5888, %v6317
    %v8268 = vsel %vm1749, %v5905, %v6319
    %v8269 = vsel %vm1749, %v5913, %v6321
    %v8270 = vsel %vm1863, %v8222, %v6971
    %v8271 = vsel %vm1863, %v8223, %v6973
    %v8272 = vsel %vm1863, %v8224, %v6975
    %v8273 = vsel %vm1863, %v8225, %v6977
    %v8274 = vsel %vm1863, %v8226, %v6979
    %v8275 = vsel %vm1863, %v8227, %v6981
    %v8276 = vsel %vm1863, %v8228, %v6983
    %v8277 = vsel %vm1863, %v8229, %v6985
    %v8278 = vsel %vm1863, %v8230, %v6987
    %v8279 = vsel %vm1863, %v8231, %v6989
    %v8280 = vsel %vm1863, %v8232, %v6991
    %v8281 = vsel %vm1863, %v8233, %v6993
    %v8282 = vsel %vm1863, %v8234, %v6995
    %v8283 = vsel %vm1863, %v8235, %v6997
    %v8284 = vsel %vm1863, %v8236, %v6999
    %v8285 = vsel %vm1863, %v8237, %v7001
    %v8286 = vsel %vm1863, %v8238, %v7003
    %v8287 = vsel %vm1863, %v8239, %v7005
    %v8288 = vsel %vm1863, %v8240, %v7007
    %v8289 = vsel %vm1863, %v8241, %v7009
    %v8290 = vsel %vm1863, %v8242, %v7011
    %v8291 = vsel %vm1863, %v8243, %v7013
    %v8292 = vsel %vm1863, %v8244, %v7015
    %v8293 = vsel %vm1863, %v8245, %v7017
    %v8294 = vsel %vm1863, %v8246, %v7019
    %v8295 = vsel %vm1863, %v8247, %v7021
    %v8296 = vsel %vm1863, %v8248, %v7023
    %v8297 = vsel %vm1863, %v8249, %v7025
    %v8298 = vsel %vm1863, %v8250, %v7027
    %v8299 = vsel %vm1863, %v8251, %v7029
    %v8300 = vsel %vm1863, %v8252, %v7031
    %v8301 = vsel %vm1863, %v8253, %v7033
    %v8302 = vsel %vm1863, %v8254, %v7035
    %v8303 = vsel %vm1863, %v8255, %v7037
    %v8304 = vsel %vm1863, %v8256, %v7039
    %v8305 = vsel %vm1863, %v8257, %v7041
    %v8306 = vsel %vm1863, %v8258, %v7043
    %v8307 = vsel %vm1863, %v8259, %v7045
    %v8308 = vsel %vm1863, %v8260, %v7047
    %v8309 = vsel %vm1863, %v8261, %v7049
    %v8310 = vsel %vm1863, %v8262, %v7051
    %v8311 = vsel %vm1863, %v8263, %v7053
    %v8312 = vsel %vm1863, %v8264, %v7055
    %v8313 = vsel %vm1863, %v8265, %v7057
    %v8314 = vsel %vm1863, %v8266, %v7059
    %v8315 = vsel %vm1863, %v8267, %v7061
    %v8316 = vsel %vm1863, %v8268, %v7063
    %v8317 = vsel %vm1863, %v8269, %v7065
    %v8318 = vsel %vm1977, %v8270, %v7165
    %v8319 = vsel %vm1977, %v8271, %v7167
    %v8320 = vsel %vm1977, %v8272, %v7169
    %v8321 = vsel %vm1977, %v8273, %v7171
    %v8322 = vsel %vm1977, %v8274, %v7173
    %v8323 = vsel %vm1977, %v8275, %v7175
    %v8324 = vsel %vm1977, %v8276, %v7177
    %v8325 = vsel %vm1977, %v8277, %v7179
    %v8326 = vsel %vm1977, %v8278, %v7181
    %v8327 = vsel %vm1977, %v8279, %v7183
    %v8328 = vsel %vm1977, %v8280, %v7185
    %v8329 = vsel %vm1977, %v8281, %v7187
    %v8330 = vsel %vm1977, %v8282, %v7189
    %v8331 = vsel %vm1977, %v8283, %v7191
    %v8332 = vsel %vm1977, %v8284, %v7193
    %v8333 = vsel %vm1977, %v8285, %v7195
    %v8334 = vsel %vm1977, %v8286, %v7197
    %v8335 = vsel %vm1977, %v8287, %v7199
    %v8336 = vsel %vm1977, %v8288, %v7201
    %v8337 = vsel %vm1977, %v8289, %v7203
    %v8338 = vsel %vm1977, %v8290, %v7205
    %v8339 = vsel %vm1977, %v8291, %v7207
    %v8340 = vsel %vm1977, %v8292, %v7209
    %v8341 = vsel %vm1977, %v8293, %v7211
    %v8342 = vsel %vm1977, %v8294, %v7213
    %v8343 = vsel %vm1977, %v8295, %v7215
    %v8344 = vsel %vm1977, %v8296, %v7217
    %v8345 = vsel %vm1977, %v8297, %v7219
    %v8346 = vsel %vm1977, %v8298, %v7221
    %v8347 = vsel %vm1977, %v8299, %v7223
    %v8348 = vsel %vm1977, %v8300, %v7225
    %v8349 = vsel %vm1977, %v8301, %v7227
    %v8350 = vsel %vm1977, %v8302, %v7229
    %v8351 = vsel %vm1977, %v8303, %v7231
    %v8352 = vsel %vm1977, %v8304, %v7233
    %v8353 = vsel %vm1977, %v8305, %v7235
    %v8354 = vsel %vm1977, %v8306, %v7237
    %v8355 = vsel %vm1977, %v8307, %v7239
    %v8356 = vsel %vm1977, %v8308, %v7241
    %v8357 = vsel %vm1977, %v8309, %v7243
    %v8358 = vsel %vm1977, %v8310, %v7245
    %v8359 = vsel %vm1977, %v8311, %v7247
    %v8360 = vsel %vm1977, %v8312, %v7249
    %v8361 = vsel %vm1977, %v8313, %v7251
    %v8362 = vsel %vm1977, %v8314, %v7253
    %v8363 = vsel %vm1977, %v8315, %v7255
    %v8364 = vsel %vm1977, %v8316, %v7257
    %v8365 = vsel %vm1977, %v8317, %v7259
    %v8366 = vsel %vm2091, %v8318, %v7331
    %v8367 = vsel %vm2091, %v8319, %v7333
    %v8368 = vsel %vm2091, %v8320, %v7335
    %v8369 = vsel %vm2091, %v8321, %v7337
    %v8370 = vsel %vm2091, %v8322, %v7339
    %v8371 = vsel %vm2091, %v8323, %v7341
    %v8372 = vsel %vm2091, %v8324, %v7343
    %v8373 = vsel %vm2091, %v8325, %v7345
    %v8374 = vsel %vm2091, %v8326, %v7347
    %v8375 = vsel %vm2091, %v8327, %v7349
    %v8376 = vsel %vm2091, %v8328, %v7351
    %v8377 = vsel %vm2091, %v8329, %v7353
    %v8378 = vsel %vm2091, %v8330, %v7355
    %v8379 = vsel %vm2091, %v8331, %v7357
    %v8380 = vsel %vm2091, %v8332, %v7359
    %v8381 = vsel %vm2091, %v8333, %v7361
    %v8382 = vsel %vm2091, %v8334, %v7363
    %v8383 = vsel %vm2091, %v8335, %v7365
    %v8384 = vsel %vm2091, %v8336, %v7367
    %v8385 = vsel %vm2091, %v8337, %v7369
    %v8386 = vsel %vm2091, %v8338, %v7371
    %v8387 = vsel %vm2091, %v8339, %v7373
    %v8388 = vsel %vm2091, %v8340, %v7375
    %v8389 = vsel %vm2091, %v8341, %v7377
    %v8390 = vsel %vm2091, %v8342, %v7379
    %v8391 = vsel %vm2091, %v8343, %v7381
    %v8392 = vsel %vm2091, %v8344, %v7383
    %v8393 = vsel %vm2091, %v8345, %v7385
    %v8394 = vsel %vm2091, %v8346, %v7387
    %v8395 = vsel %vm2091, %v8347, %v7389
    %v8396 = vsel %vm2091, %v8348, %v7391
    %v8397 = vsel %vm2091, %v8349, %v7393
    %v8398 = vsel %vm2091, %v8350, %v7395
    %v8399 = vsel %vm2091, %v8351, %v7397
    %v8400 = vsel %vm2091, %v8352, %v7399
    %v8401 = vsel %vm2091, %v8353, %v7401
    %v8402 = vsel %vm2091, %v8354, %v7403
    %v8403 = vsel %vm2091, %v8355, %v7405
    %v8404 = vsel %vm2091, %v8356, %v7407
    %v8405 = vsel %vm2091, %v8357, %v7409
    %v8406 = vsel %vm2091, %v8358, %v7411
    %v8407 = vsel %vm2091, %v8359, %v7413
    %v8408 = vsel %vm2091, %v8360, %v7415
    %v8409 = vsel %vm2091, %v8361, %v7417
    %v8410 = vsel %vm2091, %v8362, %v7419
    %v8411 = vsel %vm2091, %v8363, %v7421
    %v8412 = vsel %vm2091, %v8364, %v7423
    %v8413 = vsel %vm2091, %v8365, %v7425
    %vm8414 = vcmask 326656
    %v8415 = vsel %vm8414, %v8366, %v7525
    %v8416 = vsel %vm8414, %v8367, %v7527
    %v8417 = vsel %vm8414, %v8368, %v7529
    %v8418 = vsel %vm8414, %v8369, %v7531
    %v8419 = vsel %vm8414, %v8370, %v7533
    %v8420 = vsel %vm8414, %v8371, %v7535
    %v8421 = vsel %vm8414, %v8372, %v7537
    %v8422 = vsel %vm8414, %v8373, %v7539
    %v8423 = vsel %vm8414, %v8374, %v7541
    %v8424 = vsel %vm8414, %v8375, %v7543
    %v8425 = vsel %vm8414, %v8376, %v7545
    %v8426 = vsel %vm8414, %v8377, %v7547
    %v8427 = vsel %vm8414, %v8378, %v7549
    %v8428 = vsel %vm8414, %v8379, %v7551
    %v8429 = vsel %vm8414, %v8380, %v7553
    %v8430 = vsel %vm8414, %v8381, %v7555
    %v8431 = vsel %vm8414, %v8382, %v7557
    %v8432 = vsel %vm8414, %v8383, %v7559
    %v8433 = vsel %vm8414, %v8384, %v7561
    %v8434 = vsel %vm8414, %v8385, %v7563
    %v8435 = vsel %vm8414, %v8386, %v7565
    %v8436 = vsel %vm8414, %v8387, %v7567
    %v8437 = vsel %vm8414, %v8388, %v7569
    %v8438 = vsel %vm8414, %v8389, %v7571
    %v8439 = vsel %vm8414, %v8390, %v7573
    %v8440 = vsel %vm8414, %v8391, %v7575
    %v8441 = vsel %vm8414, %v8392, %v7577
    %v8442 = vsel %vm8414, %v8393, %v7579
    %v8443 = vsel %vm8414, %v8394, %v7581
    %v8444 = vsel %vm8414, %v8395, %v7583
    %v8445 = vsel %vm8414, %v8396, %v7585
    %v8446 = vsel %vm8414, %v8397, %v7587
    %v8447 = vsel %vm8414, %v8398, %v7589
    %v8448 = vsel %vm8414, %v8399, %v7591
    %v8449 = vsel %vm8414, %v8400, %v7593
    %v8450 = vsel %vm8414, %v8401, %v7595
    %v8451 = vsel %vm8414, %v8402, %v7597
    %v8452 = vsel %vm8414, %v8403, %v7599
    %v8453 = vsel %vm8414, %v8404, %v7601
    %v8454 = vsel %vm8414, %v8405, %v7603
    %v8455 = vsel %vm8414, %v8406, %v7605
    %v8456 = vsel %vm8414, %v8407, %v7607
    %v8457 = vsel %vm8414, %v8408, %v7609
    %v8458 = vsel %vm8414, %v8409, %v7611
    %v8459 = vsel %vm8414, %v8410, %v7613
    %v8460 = vsel %vm8414, %v8411, %v7615
    %v8461 = vsel %vm8414, %v8412, %v7617
    %v8462 = vsel %vm8414, %v8413, %v7619
    %vm8463 = vcmask 392192
    %v8464 = vsel %vm8463, %v8415, %v7719
    %v8465 = vsel %vm8463, %v8416, %v7721
    %v8466 = vsel %vm8463, %v8417, %v7723
    %v8467 = vsel %vm8463, %v8418, %v7725
    %v8468 = vsel %vm8463, %v8419, %v7727
    %v8469 = vsel %vm8463, %v8420, %v7729
    %v8470 = vsel %vm8463, %v8421, %v7731
    %v8471 = vsel %vm8463, %v8422, %v7733
    %v8472 = vsel %vm8463, %v8423, %v7735
    %v8473 = vsel %vm8463, %v8424, %v7737
    %v8474 = vsel %vm8463, %v8425, %v7739
    %v8475 = vsel %vm8463, %v8426, %v7741
    %v8476 = vsel %vm8463, %v8427, %v7743
    %v8477 = vsel %vm8463, %v8428, %v7745
    %v8478 = vsel %vm8463, %v8429, %v7747
    %v8479 = vsel %vm8463, %v8430, %v7749
    %v8480 = vsel %vm8463, %v8431, %v7751
    %v8481 = vsel %vm8463, %v8432, %v7753
    %v8482 = vsel %vm8463, %v8433, %v7755
    %v8483 = vsel %vm8463, %v8434, %v7757
    %v8484 = vsel %vm8463, %v8435, %v7759
    %v8485 = vsel %vm8463, %v8436, %v7761
    %v8486 = vsel %vm8463, %v8437, %v7763
    %v8487 = vsel %vm8463, %v8438, %v7765
    %v8488 = vsel %vm8463, %v8439, %v7767
    %v8489 = vsel %vm8463, %v8440, %v7769
    %v8490 = vsel %vm8463, %v8441, %v7771
    %v8491 = vsel %vm8463, %v8442, %v7773
    %v8492 = vsel %vm8463, %v8443, %v7775
    %v8493 = vsel %vm8463, %v8444, %v7777
    %v8494 = vsel %vm8463, %v8445, %v7779
    %v8495 = vsel %vm8463, %v8446, %v7781
    %v8496 = vsel %vm8463, %v8447, %v7783
    %v8497 = vsel %vm8463, %v8448, %v7785
    %v8498 = vsel %vm8463, %v8449, %v7787
    %v8499 = vsel %vm8463, %v8450, %v7789
    %v8500 = vsel %vm8463, %v8451, %v7791
    %v8501 = vsel %vm8463, %v8452, %v7793
    %v8502 = vsel %vm8463, %v8453, %v7795
    %v8503 = vsel %vm8463, %v8454, %v7797
    %v8504 = vsel %vm8463, %v8455, %v7799
    %v8505 = vsel %vm8463, %v8456, %v7801
    %v8506 = vsel %vm8463, %v8457, %v7803
    %v8507 = vsel %vm8463, %v8458, %v7805
    %v8508 = vsel %vm8463, %v8459, %v7807
    %v8509 = vsel %vm8463, %v8460, %v7809
    %v8510 = vsel %vm8463, %v8461, %v7811
    %v8511 = vsel %vm8463, %v8462, %v7813
    %vm8512 = vcmask 457728
    %v8513 = vsel %vm8512, %v8464, %v7885
    %v8514 = vsel %vm8512, %v8465, %v7887
    %v8515 = vsel %vm8512, %v8466, %v7889
    %v8516 = vsel %vm8512, %v8467, %v7891
    %v8517 = vsel %vm8512, %v8468, %v7893
    %v8518 = vsel %vm8512, %v8469, %v7895
    %v8519 = vsel %vm8512, %v8470, %v7897
    %v8520 = vsel %vm8512, %v8471, %v7899
    %v8521 = vsel %vm8512, %v8472, %v7901
    %v8522 = vsel %vm8512, %v8473, %v7903
    %v8523 = vsel %vm8512, %v8474, %v7905
    %v8524 = vsel %vm8512, %v8475, %v7907
    %v8525 = vsel %vm8512, %v8476, %v7909
    %v8526 = vsel %vm8512, %v8477, %v7911
    %v8527 = vsel %vm8512, %v8478, %v7913
    %v8528 = vsel %vm8512, %v8479, %v7915
    %v8529 = vsel %vm8512, %v8480, %v7917
    %v8530 = vsel %vm8512, %v8481, %v7919
    %v8531 = vsel %vm8512, %v8482, %v7921
    %v8532 = vsel %vm8512, %v8483, %v7923
    %v8533 = vsel %vm8512, %v8484, %v7925
    %v8534 = vsel %vm8512, %v8485, %v7927
    %v8535 = vsel %vm8512, %v8486, %v7929
    %v8536 = vsel %vm8512, %v8487, %v7931
    %v8537 = vsel %vm8512, %v8488, %v7933
    %v8538 = vsel %vm8512, %v8489, %v7935
    %v8539 = vsel %vm8512, %v8490, %v7937
    %v8540 = vsel %vm8512, %v8491, %v7939
    %v8541 = vsel %vm8512, %v8492, %v7941
    %v8542 = vsel %vm8512, %v8493, %v7943
    %v8543 = vsel %vm8512, %v8494, %v7945
    %v8544 = vsel %vm8512, %v8495, %v7947
    %v8545 = vsel %vm8512, %v8496, %v7949
    %v8546 = vsel %vm8512, %v8497, %v7951
    %v8547 = vsel %vm8512, %v8498, %v7953
    %v8548 = vsel %vm8512, %v8499, %v7955
    %v8549 = vsel %vm8512, %v8500, %v7957
    %v8550 = vsel %vm8512, %v8501, %v7959
    %v8551 = vsel %vm8512, %v8502, %v7961
    %v8552 = vsel %vm8512, %v8503, %v7963
    %v8553 = vsel %vm8512, %v8504, %v7965
    %v8554 = vsel %vm8512, %v8505, %v7967
    %v8555 = vsel %vm8512, %v8506, %v7969
    %v8556 = vsel %vm8512, %v8507, %v7971
    %v8557 = vsel %vm8512, %v8508, %v7973
    %v8558 = vsel %vm8512, %v8509, %v7975
    %v8559 = vsel %vm8512, %v8510, %v7977
    %v8560 = vsel %vm8512, %v8511, %v7979
    %vm8561 = vcmask 523264
    %v8562 = vsel %vm8561, %v8513, %v8079
    %v8563 = vsel %vm8561, %v8514, %v8081
    %v8564 = vsel %vm8561, %v8515, %v8083
    %v8565 = vsel %vm8561, %v8516, %v8085
    %v8566 = vsel %vm8561, %v8517, %v8087
    %v8567 = vsel %vm8561, %v8518, %v8089
    %v8568 = vsel %vm8561, %v8519, %v8091
    %v8569 = vsel %vm8561, %v8520, %v8093
    %v8570 = vsel %vm8561, %v8521, %v8095
    %v8571 = vsel %vm8561, %v8522, %v8097
    %v8572 = vsel %vm8561, %v8523, %v8099
    %v8573 = vsel %vm8561, %v8524, %v8101
    %v8574 = vsel %vm8561, %v8525, %v8103
    %v8575 = vsel %vm8561, %v8526, %v8105
    %v8576 = vsel %vm8561, %v8527, %v8107
    %v8577 = vsel %vm8561, %v8528, %v8109
    %v8578 = vsel %vm8561, %v8529, %v8111
    %v8579 = vsel %vm8561, %v8530, %v8113
    %v8580 = vsel %vm8561, %v8531, %v8115
    %v8581 = vsel %vm8561, %v8532, %v8117
    %v8582 = vsel %vm8561, %v8533, %v8119
    %v8583 = vsel %vm8561, %v8534, %v8121
    %v8584 = vsel %vm8561, %v8535, %v8123
    %v8585 = vsel %vm8561, %v8536, %v8125
    %v8586 = vsel %vm8561, %v8537, %v8127
    %v8587 = vsel %vm8561, %v8538, %v8129
    %v8588 = vsel %vm8561, %v8539, %v8131
    %v8589 = vsel %vm8561, %v8540, %v8133
    %v8590 = vsel %vm8561, %v8541, %v8135
    %v8591 = vsel %vm8561, %v8542, %v8137
    %v8592 = vsel %vm8561, %v8543, %v8139
    %v8593 = vsel %vm8561, %v8544, %v8141
    %v8594 = vsel %vm8561, %v8545, %v8143
    %v8595 = vsel %vm8561, %v8546, %v8145
    %v8596 = vsel %vm8561, %v8547, %v8147
    %v8597 = vsel %vm8561, %v8548, %v8149
    %v8598 = vsel %vm8561, %v8549, %v8151
    %v8599 = vsel %vm8561, %v8550, %v8153
    %v8600 = vsel %vm8561, %v8551, %v8155
    %v8601 = vsel %vm8561, %v8552, %v8157
    %v8602 = vsel %vm8561, %v8553, %v8159
    %v8603 = vsel %vm8561, %v8554, %v8161
    %v8604 = vsel %vm8561, %v8555, %v8163
    %v8605 = vsel %vm8561, %v8556, %v8165
    %v8606 = vsel %vm8561, %v8557, %v8167
    %v8607 = vsel %vm8561, %v8558, %v8169
    %v8608 = vsel %vm8561, %v8559, %v8171
    %v8609 = vsel %vm8561, %v8560, %v8173
    %v8658 = vcombine.high %v8562, %v8562
    %v8659 = vcombine.high %v8564, %v8564
    %v8660 = vcombine.high %v8566, %v8566
    %v8661 = vcombine.high %v8568, %v8568
    %v8662 = vcombine.high %v8570, %v8570
    %v8663 = vcombine.high %v8572, %v8572
    %v8664 = vcombine.high %v8574, %v8574
    %v8665 = vcombine.high %v8576, %v8576
    %v8666 = vcombine.high %v8578, %v8578
    %v8667 = vcombine.high %v8580, %v8580
    %v8668 = vcombine.high %v8582, %v8582
    %v8669 = vcombine.high %v8584, %v8584
    %v8670 = vcombine.high %v8586, %v8586
    %v8671 = vcombine.high %v8588, %v8588
    %v8672 = vcombine.high %v8590, %v8590
    %v8673 = vcombine.high %v8592, %v8592
    %v8674 = vcombine.high %v8594, %v8594
    %v8675 = vcombine.high %v8596, %v8596
    %v8676 = vcombine.high %v8598, %v8598
    %v8677 = vcombine.high %v8600, %v8600
    %v8678 = vcombine.high %v8602, %v8602
    %v8679 = vcombine.high %v8604, %v8604
    %v8680 = vcombine.high %v8606, %v8606
    %v8681 = vcombine.high %v8608, %v8608
    %v8682 = vld [vmem:[%s2] sm:$0xff]
    %v8683 = vld [vmem:[%s2 + $0x8] sm:$0xff]
    %v8684 = vld [vmem:[%s2 + $0x10] sm:$0xff]
    %v8685 = vld [vmem:[%s2 + $0x18] sm:$0xff]
    %v8686 = vld [vmem:[%s2 + $0x20] sm:$0xff]
    %v8687 = vld [vmem:[%s2 + $0x28] sm:$0xff]
    %v8688 = vld [vmem:[%s2 + $0x30] sm:$0xff]
    %v8689 = vld [vmem:[%s2 + $0x38] sm:$0xff]
    %v8690 = vld [vmem:[%s2 + $0x40] sm:$0xff]
    %v8691 = vlaneseq
    %v8692 = vshrl.u32 %v8691, 7
    %v8693 = vsub.s32 1, %v8692
    %v8694 = vrot.slane %v89, %v8693
    %v8695 = vcombine.low %v8562, %v8658
    %v8696 = vcombine.low %v8563, %v8564
    %v8697 = vcombine.low %v8659, %v8565
    %v8698 = vcombine.low %v8566, %v8660
    %v8699 = vcombine.low %v8567, %v8568
    %v8700 = vcombine.low %v8661, %v8569
    %v8701 = vcombine.low %v8570, %v8662
    %v8702 = vcombine.low %v8571, %v8572
    %v8703 = vcombine.low %v8663, %v8573
    %v8704 = vcombine.low %v8574, %v8664
    %v8705 = vcombine.low %v8575, %v8576
    %v8706 = vcombine.low %v8665, %v8577
    %v8707 = vcombine.low %v8578, %v8666
    %v8708 = vcombine.low %v8579, %v8580
    %v8709 = vcombine.low %v8667, %v8581
    %v8710 = vcombine.low %v8582, %v8668
    %v8711 = vcombine.low %v8583, %v8584
    %v8712 = vcombine.low %v8669, %v8585
    %v8713 = vcombine.low %v8586, %v8670
    %v8714 = vcombine.low %v8587, %v8588
    %v8715 = vcombine.low %v8671, %v8589
    %v8716 = vcombine.low %v8590, %v8672
    %v8717 = vcombine.low %v8591, %v8592
    %v8718 = vcombine.low %v8673, %v8593
    %v8719 = vcombine.low %v8594, %v8674
    %v8720 = vcombine.low %v8595, %v8596
    %v8721 = vcombine.low %v8675, %v8597
    %v8722 = vcombine.low %v8598, %v8676
    %v8723 = vcombine.low %v8599, %v8600
    %v8724 = vcombine.low %v8677, %v8601
    %v8725 = vcombine.low %v8602, %v8678
    %v8726 = vcombine.low %v8603, %v8604
    %v8727 = vcombine.low %v8679, %v8605
    %v8728 = vcombine.low %v8606, %v8680
    %v8729 = vcombine.low %v8607, %v8608
    %v8730 = vcombine.low %v8681, %v8609
    %vm8731 = vcmask 588800
    %v8732 = vsel %vm8731, %v8695, 0
    %v8734 = vsel %vm8731, %v8696, 0
    %v8736 = vsel %vm8731, %v8697, 0
    %v8738 = vsel %vm8731, %v8698, 0
    %v8740 = vsel %vm8731, %v8699, 0
    %v8742 = vsel %vm8731, %v8700, 0
    %v8744 = vsel %vm8731, %v8701, 0
    %v8746 = vsel %vm8731, %v8702, 0
    %v8748 = vsel %vm8731, %v8703, 0
    %v8750 = vsel %vm8731, %v8704, 0
    %v8752 = vsel %vm8731, %v8705, 0
    %v8754 = vsel %vm8731, %v8706, 0
    %v8756 = vsel %vm8731, %v8707, 0
    %v8758 = vsel %vm8731, %v8708, 0
    %v8760 = vsel %vm8731, %v8709, 0
    %v8762 = vsel %vm8731, %v8710, 0
    %v8764 = vsel %vm8731, %v8711, 0
    %v8766 = vsel %vm8731, %v8712, 0
    %v8768 = vsel %vm8731, %v8713, 0
    %v8770 = vsel %vm8731, %v8714, 0
    %v8772 = vsel %vm8731, %v8715, 0
    %v8774 = vsel %vm8731, %v8716, 0
    %v8776 = vsel %vm8731, %v8717, 0
    %v8778 = vsel %vm8731, %v8718, 0
    %v8780 = vsel %vm8731, %v8719, 0
    %v8782 = vsel %vm8731, %v8720, 0
    %v8784 = vsel %vm8731, %v8721, 0
    %v8786 = vsel %vm8731, %v8722, 0
    %v8788 = vsel %vm8731, %v8723, 0
    %v8790 = vsel %vm8731, %v8724, 0
    %v8792 = vsel %vm8731, %v8725, 0
    %v8794 = vsel %vm8731, %v8726, 0
    %v8796 = vsel %vm8731, %v8727, 0
    %v8798 = vsel %vm8731, %v8728, 0
    %v8800 = vsel %vm8731, %v8729, 0
    %v8802 = vsel %vm8731, %v8730, 0
    %8804 = vmatprep.subr.mxu0 0.0
    %8805 = vmatpush1.msra.mxu0 %v8682
    %8806 = vmatprep.subr.mxu0 0.0
    %8807 = vmatpush1.msra.mxu0 %v8683
    %8808 = vmatprep.subr.mxu0 0.0
    %8809 = vmatpush1.msra.mxu0 %v8684
    %8810 = vmatprep.subr.mxu0 0.0
    %8811 = vmatpush1.msra.mxu0 %v8685
    %8812 = vmatprep.subr.mxu0 0.0
    %8813 = vmatpush1.msra.mxu0 %v8686
    %8814 = vmatprep.subr.mxu0 0.0
    %8815 = vmatpush1.msra.mxu0 %v8687
    %8816 = vmatprep.subr.mxu0 0.0
    %8817 = vmatpush1.msra.mxu0 %v8688
    %8818 = vmatprep.subr.mxu0 0.0
    %8819 = vmatpush1.msra.mxu0 %v8689
    %8820 = vmatprep.subr.mxu0 0.0
    %8821 = vmatpush1.msra.mxu0 %v8690
    %8822 = vmatprep.subr.mxu0 0.0
    %8823 = vmatpush1.msra.mxu0 0.0
    %8824 = vmatprep.subr.mxu0 0.0
    %8825 = vmatpush1.msra.mxu0 0.0
    %8826 = vmatprep.subr.mxu0 0.0
    %8827 = vmatpush1.msra.mxu0 0.0
    %8828 = vmatprep.subr.mxu0 0.0
    %8829 = vmatpush1.msra.mxu0 0.0
    %8830 = vmatprep.subr.mxu0 0.0
    %8831 = vmatpush1.msra.mxu0 0.0
    %8832 = vmatprep.subr.mxu0 0.0
    %8833 = vmatpush1.msra.mxu0 0.0
    %8834 = vmatprep.subr.mxu0 0.0
    %8835 = vmatpush1.msra.mxu0 0.0
    %8836 = vmatprep.subr.mxu0 0.0
    %8837 = vmatpush1.msra.mxu0 0.0
    %8838 = vmatprep.subr.mxu0 0.0
    %8839 = vmatpush1.msra.mxu0 0.0
    %8840 = vmatprep.subr.mxu0 0.0
    %8841 = vmatpush1.msra.mxu0 0.0
    %8842 = vmatprep.subr.mxu0 0.0
    %8843 = vmatpush1.msra.mxu0 0.0
    %8844 = vmatprep.subr.mxu0 0.0
    %8845 = vmatpush1.msra.mxu0 0.0
    %8846 = vmatprep.subr.mxu0 0.0
    %8847 = vmatpush1.msra.mxu0 0.0
    %8848 = vmatprep.subr.mxu0 0.0
    %8849 = vmatpush1.msra.mxu0 0.0
    %8850 = vmatprep.subr.mxu0 0.0
    %8851 = vmatpush1.msra.mxu0 0.0
    %8852 = vmatprep.subr.mxu0 0.0
    %8853 = vmatpush1.msra.mxu0 0.0
    %8854 = vmatprep.subr.mxu0 0.0
    %8855 = vmatpush1.msra.mxu0 0.0
    %8856 = vmatprep.subr.mxu0 0.0
    %8857 = vmatpush1.msra.mxu0 0.0
    %8858 = vmatprep.subr.mxu0 0.0
    %8859 = vmatpush1.msra.mxu0 0.0
    %8860 = vmatprep.subr.mxu0 0.0
    %8861 = vmatpush1.msra.mxu0 0.0
    %8862 = vmatprep.subr.mxu0 0.0
    %8863 = vmatpush1.msra.mxu0 0.0
    %8864 = vmatprep.subr.mxu0 0.0
    %8865 = vmatpush1.msra.mxu0 0.0
    %8866 = vmatprep.subr.mxu0 0.0
    %8867 = vmatpush1.msra.mxu0 0.0
    %8868 = vmatprep.mubr.f32.mxu0 0.0
    %8869 = vmatmul.mubr.f32.gmra.mrb[0].mxu0 %v8732
    %v8870 = vpop.f32.mrb[0].mxu0
    %v8871 = vadd.f32 %v8694, %v8870
    %v8872 = vpop.f32.mrb[0].mxu0
    %8873 = vmatprep.mubr.f32.mxu0 0.0
    %8874 = vmatmul.mubr.f32.gmra.mrb[0].mxu0 %v8734
    %v8875 = vpop.f32.mrb[0].mxu0
    %v8876 = vadd.f32 %v8694, %v8875
    %v8877 = vpop.f32.mrb[0].mxu0
    %8878 = vmatprep.mubr.f32.mxu0 0.0
    %8879 = vmatmul.mubr.f32.gmra.mrb[0].mxu0 %v8736
    %v8880 = vpop.f32.mrb[0].mxu0
    %v8881 = vadd.f32 %v8694, %v8880
    %v8882 = vpop.f32.mrb[0].mxu0
    %8883 = vmatprep.mubr.f32.mxu0 0.0
    %8884 = vmatmul.mubr.f32.gmra.mrb[0].mxu0 %v8738
    %v8885 = vpop.f32.mrb[0].mxu0
    %v8886 = vadd.f32 %v8694, %v8885
    %v8887 = vpop.f32.mrb[0].mxu0
    %8888 = vmatprep.mubr.f32.mxu0 0.0
    %8889 = vmatmul.mubr.f32.gmra.mrb[0].mxu0 %v8740
    %v8890 = vpop.f32.mrb[0].mxu0
    %v8891 = vadd.f32 %v8694, %v8890
    %v8892 = vpop.f32.mrb[0].mxu0
    %8893 = vmatprep.mubr.f32.mxu0 0.0
    %8894 = vmatmul.mubr.f32.gmra.mrb[0].mxu0 %v8742
    %v8895 = vpop.f32.mrb[0].mxu0
    %v8896 = vadd.f32 %v8694, %v8895
    %v8897 = vpop.f32.mrb[0].mxu0
    %8898 = vmatprep.mubr.f32.mxu0 0.0
    %8899 = vmatmul.mubr.f32.gmra.mrb[0].mxu0 %v8744
    %v8900 = vpop.f32.mrb[0].mxu0
    %v8901 = vadd.f32 %v8694, %v8900
    %v8902 = vpop.f32.mrb[0].mxu0
    %8903 = vmatprep.mubr.f32.mxu0 0.0
    %8904 = vmatmul.mubr.f32.gmra.mrb[0].mxu0 %v8746
    %v8905 = vpop.f32.mrb[0].mxu0
    %v8906 = vadd.f32 %v8694, %v8905
    %v8907 = vpop.f32.mrb[0].mxu0
    %8908 = vmatprep.mubr.f32.mxu0 0.0
    %8909 = vmatmul.mubr.f32.gmra.mrb[0].mxu0 %v8748
    %v8910 = vpop.f32.mrb[0].mxu0
    %v8911 = vadd.f32 %v8694, %v8910
    %v8912 = vpop.f32.mrb[0].mxu0
    %8913 = vmatprep.mubr.f32.mxu0 0.0
    %8914 = vmatmul.mubr.f32.gmra.mrb[0].mxu0 %v8750
    %v8915 = vpop.f32.mrb[0].mxu0
    %v8916 = vadd.f32 %v8694, %v8915
    %v8917 = vpop.f32.mrb[0].mxu0
    %8918 = vmatprep.mubr.f32.mxu0 0.0
    %8919 = vmatmul.mubr.f32.gmra.mrb[0].mxu0 %v8752
    %v8920 = vpop.f32.mrb[0].mxu0
    %v8921 = vadd.f32 %v8694, %v8920
    %v8922 = vpop.f32.mrb[0].mxu0
    %8923 = vmatprep.mubr.f32.mxu0 0.0
    %8924 = vmatmul.mubr.f32.gmra.mrb[0].mxu0 %v8754
    %v8925 = vpop.f32.mrb[0].mxu0
    %v8926 = vadd.f32 %v8694, %v8925
    %v8927 = vpop.f32.mrb[0].mxu0
    %8928 = vmatprep.mubr.f32.mxu0 0.0
    %8929 = vmatmul.mubr.f32.gmra.mrb[0].mxu0 %v8756
    %v8930 = vpop.f32.mrb[0].mxu0
    %v8931 = vadd.f32 %v8694, %v8930
    %v8932 = vpop.f32.mrb[0].mxu0
    %8933 = vmatprep.mubr.f32.mxu0 0.0
    %8934 = vmatmul.mubr.f32.gmra.mrb[0].mxu0 %v8758
    %v8935 = vpop.f32.mrb[0].mxu0
    %v8936 = vadd.f32 %v8694, %v8935
    %v8937 = vpop.f32.mrb[0].mxu0
    %8938 = vmatprep.mubr.f32.mxu0 0.0
    %8939 = vmatmul.mubr.f32.gmra.mrb[0].mxu0 %v8760
    %v8940 = vpop.f32.mrb[0].mxu0
    %v8941 = vadd.f32 %v8694, %v8940
    %v8942 = vpop.f32.mrb[0].mxu0
    %8943 = vmatprep.mubr.f32.mxu0 0.0
    %8944 = vmatmul.mubr.f32.gmra.mrb[0].mxu0 %v8762
    %v8945 = vpop.f32.mrb[0].mxu0
    %v8946 = vadd.f32 %v8694, %v8945
    %v8947 = vpop.f32.mrb[0].mxu0
    %8948 = vmatprep.mubr.f32.mxu0 0.0
    %8949 = vmatmul.mubr.f32.gmra.mrb[0].mxu0 %v8764
    %v8950 = vpop.f32.mrb[0].mxu0
    %v8951 = vadd.f32 %v8694, %v8950
    %v8952 = vpop.f32.mrb[0].mxu0
    %8953 = vmatprep.mubr.f32.mxu0 0.0
    %8954 = vmatmul.mubr.f32.gmra.mrb[0].mxu0 %v8766
    %v8955 = vpop.f32.mrb[0].mxu0
    %v8956 = vadd.f32 %v8694, %v8955
    %v8957 = vpop.f32.mrb[0].mxu0
    %8958 = vmatprep.mubr.f32.mxu0 0.0
    %8959 = vmatmul.mubr.f32.gmra.mrb[0].mxu0 %v8768
    %v8960 = vpop.f32.mrb[0].mxu0
    %v8961 = vadd.f32 %v8694, %v8960
    %v8962 = vpop.f32.mrb[0].mxu0
    %8963 = vmatprep.mubr.f32.mxu0 0.0
    %8964 = vmatmul.mubr.f32.gmra.mrb[0].mxu0 %v8770
    %v8965 = vpop.f32.mrb[0].mxu0
    %v8966 = vadd.f32 %v8694, %v8965
    %v8967 = vpop.f32.mrb[0].mxu0
    %8968 = vmatprep.mubr.f32.mxu0 0.0
    %8969 = vmatmul.mubr.f32.gmra.mrb[0].mxu0 %v8772
    %v8970 = vpop.f32.mrb[0].mxu0
    %v8971 = vadd.f32 %v8694, %v8970
    %v8972 = vpop.f32.mrb[0].mxu0
    %8973 = vmatprep.mubr.f32.mxu0 0.0
    %8974 = vmatmul.mubr.f32.gmra.mrb[0].mxu0 %v8774
    %v8975 = vpop.f32.mrb[0].mxu0
    %v8976 = vadd.f32 %v8694, %v8975
    %v8977 = vpop.f32.mrb[0].mxu0
    %8978 = vmatprep.mubr.f32.mxu0 0.0
    %8979 = vmatmul.mubr.f32.gmra.mrb[0].mxu0 %v8776
    %v8980 = vpop.f32.mrb[0].mxu0
    %v8981 = vadd.f32 %v8694, %v8980
    %v8982 = vpop.f32.mrb[0].mxu0
    %8983 = vmatprep.mubr.f32.mxu0 0.0
    %8984 = vmatmul.mubr.f32.gmra.mrb[0].mxu0 %v8778
    %v8985 = vpop.f32.mrb[0].mxu0
    %v8986 = vadd.f32 %v8694, %v8985
    %v8987 = vpop.f32.mrb[0].mxu0
    %8988 = vmatprep.mubr.f32.mxu0 0.0
    %8989 = vmatmul.mubr.f32.gmra.mrb[0].mxu0 %v8780
    %v8990 = vpop.f32.mrb[0].mxu0
    %v8991 = vadd.f32 %v8694, %v8990
    %v8992 = vpop.f32.mrb[0].mxu0
    %8993 = vmatprep.mubr.f32.mxu0 0.0
    %8994 = vmatmul.mubr.f32.gmra.mrb[0].mxu0 %v8782
    %v8995 = vpop.f32.mrb[0].mxu0
    %v8996 = vadd.f32 %v8694, %v8995
    %v8997 = vpop.f32.mrb[0].mxu0
    %8998 = vmatprep.mubr.f32.mxu0 0.0
    %8999 = vmatmul.mubr.f32.gmra.mrb[0].mxu0 %v8784
    %v9000 = vpop.f32.mrb[0].mxu0
    %v9001 = vadd.f32 %v8694, %v9000
    %v9002 = vpop.f32.mrb[0].mxu0
    %9003 = vmatprep.mubr.f32.mxu0 0.0
    %9004 = vmatmul.mubr.f32.gmra.mrb[0].mxu0 %v8786
    %v9005 = vpop.f32.mrb[0].mxu0
    %v9006 = vadd.f32 %v8694, %v9005
    %v9007 = vpop.f32.mrb[0].mxu0
    %9008 = vmatprep.mubr.f32.mxu0 0.0
    %9009 = vmatmul.mubr.f32.gmra.mrb[0].mxu0 %v8788
    %v9010 = vpop.f32.mrb[0].mxu0
    %v9011 = vadd.f32 %v8694, %v9010
    %v9012 = vpop.f32.mrb[0].mxu0
    %9013 = vmatprep.mubr.f32.mxu0 0.0
    %9014 = vmatmul.mubr.f32.gmra.mrb[0].mxu0 %v8790
    %v9015 = vpop.f32.mrb[0].mxu0
    %v9016 = vadd.f32 %v8694, %v9015
    %v9017 = vpop.f32.mrb[0].mxu0
    %9018 = vmatprep.mubr.f32.mxu0 0.0
    %9019 = vmatmul.mubr.f32.gmra.mrb[0].mxu0 %v8792
    %v9020 = vpop.f32.mrb[0].mxu0
    %v9021 = vadd.f32 %v8694, %v9020
    %v9022 = vpop.f32.mrb[0].mxu0
    %9023 = vmatprep.mubr.f32.mxu0 0.0
    %9024 = vmatmul.mubr.f32.gmra.mrb[0].mxu0 %v8794
    %v9025 = vpop.f32.mrb[0].mxu0
    %v9026 = vadd.f32 %v8694, %v9025
    %v9027 = vpop.f32.mrb[0].mxu0
    %9028 = vmatprep.mubr.f32.mxu0 0.0
    %9029 = vmatmul.mubr.f32.gmra.mrb[0].mxu0 %v8796
    %v9030 = vpop.f32.mrb[0].mxu0
    %v9031 = vadd.f32 %v8694, %v9030
    %v9032 = vpop.f32.mrb[0].mxu0
    %9033 = vmatprep.mubr.f32.mxu0 0.0
    %9034 = vmatmul.mubr.f32.gmra.mrb[0].mxu0 %v8798
    %v9035 = vpop.f32.mrb[0].mxu0
    %v9036 = vadd.f32 %v8694, %v9035
    %v9037 = vpop.f32.mrb[0].mxu0
    %9038 = vmatprep.mubr.f32.mxu0 0.0
    %9039 = vmatmul.mubr.f32.gmra.mrb[0].mxu0 %v8800
    %v9040 = vpop.f32.mrb[0].mxu0
    %v9041 = vadd.f32 %v8694, %v9040
    %v9042 = vpop.f32.mrb[0].mxu0
    %9043 = vmatprep.mubr.f32.mxu0 0.0
    %9044 = vmatmul.mubr.f32.gmra.mrb[0].mxu0 %v8802
    %v9045 = vpop.f32.mrb[0].mxu0
    %v9046 = vadd.f32 %v8694, %v9045
    %v9047 = vpop.f32.mrb[0].mxu0
    %9048 = vdwg.mxu0
    %v9049 = vmax.f32 %v8871, 0.0
    %v9050 = vmax.f32 %v8876, 0.0
    %v9051 = vmax.f32 %v8881, 0.0
    %v9052 = vmax.f32 %v8886, 0.0
    %v9053 = vmax.f32 %v8891, 0.0
    %v9054 = vmax.f32 %v8896, 0.0
    %v9055 = vmax.f32 %v8901, 0.0
    %v9056 = vmax.f32 %v8906, 0.0
    %v9057 = vmax.f32 %v8911, 0.0
    %v9058 = vmax.f32 %v8916, 0.0
    %v9059 = vmax.f32 %v8921, 0.0
    %v9060 = vmax.f32 %v8926, 0.0
    %v9061 = vmax.f32 %v8931, 0.0
    %v9062 = vmax.f32 %v8936, 0.0
    %v9063 = vmax.f32 %v8941, 0.0
    %v9064 = vmax.f32 %v8946, 0.0
    %v9065 = vmax.f32 %v8951, 0.0
    %v9066 = vmax.f32 %v8956, 0.0
    %v9067 = vmax.f32 %v8961, 0.0
    %v9068 = vmax.f32 %v8966, 0.0
    %v9069 = vmax.f32 %v8971, 0.0
    %v9070 = vmax.f32 %v8976, 0.0
    %v9071 = vmax.f32 %v8981, 0.0
    %v9072 = vmax.f32 %v8986, 0.0
    %v9073 = vmax.f32 %v8991, 0.0
    %v9074 = vmax.f32 %v8996, 0.0
    %v9075 = vmax.f32 %v9001, 0.0
    %v9076 = vmax.f32 %v9006, 0.0
    %v9077 = vmax.f32 %v9011, 0.0
    %v9078 = vmax.f32 %v9016, 0.0
    %v9079 = vmax.f32 %v9021, 0.0
    %v9080 = vmax.f32 %v9026, 0.0
    %v9081 = vmax.f32 %v9031, 0.0
    %v9082 = vmax.f32 %v9036, 0.0
    %v9083 = vmax.f32 %v9041, 0.0
    %v9084 = vmax.f32 %v9046, 0.0
    %v9085 = vsel %vm1863, %v9049, 0.0
    %v9086 = vsel %vm1863, %v9050, 0.0
    %v9087 = vadd.f32 %v9085, %v9086
    %v9088 = vsel %vm1863, %v9051, 0.0
    %v9089 = vadd.f32 %v9087, %v9088
    %v9090 = vsel %vm1863, %v9052, 0.0
    %v9091 = vadd.f32 %v9089, %v9090
    %v9092 = vsel %vm1863, %v9053, 0.0
    %v9093 = vadd.f32 %v9091, %v9092
    %v9094 = vsel %vm1863, %v9054, 0.0
    %v9095 = vadd.f32 %v9093, %v9094
    %v9096 = vsel %vm1863, %v9055, 0.0
    %v9097 = vadd.f32 %v9095, %v9096
    %v9098 = vsel %vm1863, %v9056, 0.0
    %v9099 = vadd.f32 %v9097, %v9098
    %v9100 = vsel %vm1863, %v9057, 0.0
    %v9101 = vadd.f32 %v9099, %v9100
    %v9102 = vsel %vm1863, %v9058, 0.0
    %v9103 = vadd.f32 %v9101, %v9102
    %v9104 = vsel %vm1863, %v9059, 0.0
    %v9105 = vadd.f32 %v9103, %v9104
    %v9106 = vsel %vm1863, %v9060, 0.0
    %v9107 = vadd.f32 %v9105, %v9106
    %v9108 = vsel %vm1863, %v9061, 0.0
    %v9109 = vadd.f32 %v9107, %v9108
    %v9110 = vsel %vm1863, %v9062, 0.0
    %v9111 = vadd.f32 %v9109, %v9110
    %v9112 = vsel %vm1863, %v9063, 0.0
    %v9113 = vadd.f32 %v9111, %v9112
    %v9114 = vsel %vm1863, %v9064, 0.0
    %v9115 = vadd.f32 %v9113, %v9114
    %v9116 = vsel %vm1863, %v9065, 0.0
    %v9117 = vadd.f32 %v9115, %v9116
    %v9118 = vsel %vm1863, %v9066, 0.0
    %v9119 = vadd.f32 %v9117, %v9118
    %v9120 = vsel %vm1863, %v9067, 0.0
    %v9121 = vadd.f32 %v9119, %v9120
    %v9122 = vsel %vm1863, %v9068, 0.0
    %v9123 = vadd.f32 %v9121, %v9122
    %v9124 = vsel %vm1863, %v9069, 0.0
    %v9125 = vadd.f32 %v9123, %v9124
    %v9126 = vsel %vm1863, %v9070, 0.0
    %v9127 = vadd.f32 %v9125, %v9126
    %v9128 = vsel %vm1863, %v9071, 0.0
    %v9129 = vadd.f32 %v9127, %v9128
    %v9130 = vsel %vm1863, %v9072, 0.0
    %v9131 = vadd.f32 %v9129, %v9130
    %v9132 = vsel %vm1863, %v9073, 0.0
    %v9133 = vadd.f32 %v9131, %v9132
    %v9134 = vsel %vm1863, %v9074, 0.0
    %v9135 = vadd.f32 %v9133, %v9134
    %v9136 = vsel %vm1863, %v9075, 0.0
    %v9137 = vadd.f32 %v9135, %v9136
    %v9138 = vsel %vm1863, %v9076, 0.0
    %v9139 = vadd.f32 %v9137, %v9138
    %v9140 = vsel %vm1863, %v9077, 0.0
    %v9141 = vadd.f32 %v9139, %v9140
    %v9142 = vsel %vm1863, %v9078, 0.0
    %v9143 = vadd.f32 %v9141, %v9142
    %v9144 = vsel %vm1863, %v9079, 0.0
    %v9145 = vadd.f32 %v9143, %v9144
    %v9146 = vsel %vm1863, %v9080, 0.0
    %v9147 = vadd.f32 %v9145, %v9146
    %v9148 = vsel %vm1863, %v9081, 0.0
    %v9149 = vadd.f32 %v9147, %v9148
    %v9150 = vsel %vm1863, %v9082, 0.0
    %v9151 = vadd.f32 %v9149, %v9150
    %v9152 = vsel %vm1863, %v9083, 0.0
    %v9153 = vadd.f32 %v9151, %v9152
    %v9154 = vsel %vm1863, %v9084, 0.0
    %v9155 = vadd.f32 %v9153, %v9154
    %v9156 = vrot.slane %v9155, 4
    %v9157 = vadd.f32 %v9155, %v9156
    %v9158 = vrot.slane %v9157, 2
    %v9159 = vadd.f32 %v9157, %v9158
    %v9160 = vrot.slane %v9159, 1
    %v9161 = vadd.f32 %v9159, %v9160
    %v9162 = vrcp.pop 288.0
    %v9163 = vmul.f32 %v9161, %v9162
    %v9164 = vsub.f32 %v9049, %v9163
    %v9165 = vsub.f32 %v9050, %v9163
    %v9166 = vsub.f32 %v9051, %v9163
    %v9167 = vsub.f32 %v9052, %v9163
    %v9168 = vsub.f32 %v9053, %v9163
    %v9169 = vsub.f32 %v9054, %v9163
    %v9170 = vsub.f32 %v9055, %v9163
    %v9171 = vsub.f32 %v9056, %v9163
    %v9172 = vsub.f32 %v9057, %v9163
    %v9173 = vsub.f32 %v9058, %v9163
    %v9174 = vsub.f32 %v9059, %v9163
    %v9175 = vsub.f32 %v9060, %v9163
    %v9176 = vsub.f32 %v9061, %v9163
    %v9177 = vsub.f32 %v9062, %v9163
    %v9178 = vsub.f32 %v9063, %v9163
    %v9179 = vsub.f32 %v9064, %v9163
    %v9180 = vsub.f32 %v9065, %v9163
    %v9181 = vsub.f32 %v9066, %v9163
    %v9182 = vsub.f32 %v9067, %v9163
    %v9183 = vsub.f32 %v9068, %v9163
    %v9184 = vsub.f32 %v9069, %v9163
    %v9185 = vsub.f32 %v9070, %v9163
    %v9186 = vsub.f32 %v9071, %v9163
    %v9187 = vsub.f32 %v9072, %v9163
    %v9188 = vsub.f32 %v9073, %v9163
    %v9189 = vsub.f32 %v9074, %v9163
    %v9190 = vsub.f32 %v9075, %v9163
    %v9191 = vsub.f32 %v9076, %v9163
    %v9192 = vsub.f32 %v9077, %v9163
    %v9193 = vsub.f32 %v9078, %v9163
    %v9194 = vsub.f32 %v9079, %v9163
    %v9195 = vsub.f32 %v9080, %v9163
    %v9196 = vsub.f32 %v9081, %v9163
    %v9197 = vsub.f32 %v9082, %v9163
    %v9198 = vsub.f32 %v9083, %v9163
    %v9199 = vsub.f32 %v9084, %v9163
    %v9200 = vmul.f32 %v9164, %v9164
    %v9201 = vmul.f32 %v9165, %v9165
    %v9202 = vmul.f32 %v9166, %v9166
    %v9203 = vmul.f32 %v9167, %v9167
    %v9204 = vmul.f32 %v9168, %v9168
    %v9205 = vmul.f32 %v9169, %v9169
    %v9206 = vmul.f32 %v9170, %v9170
    %v9207 = vmul.f32 %v9171, %v9171
    %v9208 = vmul.f32 %v9172, %v9172
    %v9209 = vmul.f32 %v9173, %v9173
    %v9210 = vmul.f32 %v9174, %v9174
    %v9211 = vmul.f32 %v9175, %v9175
    %v9212 = vmul.f32 %v9176, %v9176
    %v9213 = vmul.f32 %v9177, %v9177
    %v9214 = vmul.f32 %v9178, %v9178
    %v9215 = vmul.f32 %v9179, %v9179
    %v9216 = vmul.f32 %v9180, %v9180
    %v9217 = vmul.f32 %v9181, %v9181
    %v9218 = vmul.f32 %v9182, %v9182
    %v9219 = vmul.f32 %v9183, %v9183
    %v9220 = vmul.f32 %v9184, %v9184
    %v9221 = vmul.f32 %v9185, %v9185
    %v9222 = vmul.f32 %v9186, %v9186
    %v9223 = vmul.f32 %v9187, %v9187
    %v9224 = vmul.f32 %v9188, %v9188
    %v9225 = vmul.f32 %v9189, %v9189
    %v9226 = vmul.f32 %v9190, %v9190
    %v9227 = vmul.f32 %v9191, %v9191
    %v9228 = vmul.f32 %v9192, %v9192
    %v9229 = vmul.f32 %v9193, %v9193
    %v9230 = vmul.f32 %v9194, %v9194
    %v9231 = vmul.f32 %v9195, %v9195
    %v9232 = vmul.f32 %v9196, %v9196
    %v9233 = vmul.f32 %v9197, %v9197
    %v9234 = vmul.f32 %v9198, %v9198
    %v9235 = vmul.f32 %v9199, %v9199
    %v9236 = vsel %vm1863, %v9200, 0.0
    %v9237 = vsel %vm1863, %v9201, 0.0
    %v9238 = vadd.f32 %v9236, %v9237
    %v9239 = vsel %vm1863, %v9202, 0.0
    %v9240 = vadd.f32 %v9238, %v9239
    %v9241 = vsel %vm1863, %v9203, 0.0
    %v9242 = vadd.f32 %v9240, %v9241
    %v9243 = vsel %vm1863, %v9204, 0.0
    %v9244 = vadd.f32 %v9242, %v9243
    %v9245 = vsel %vm1863, %v9205, 0.0
    %v9246 = vadd.f32 %v9244, %v9245
    %v9247 = vsel %vm1863, %v9206, 0.0
    %v9248 = vadd.f32 %v9246, %v9247
    %v9249 = vsel %vm1863, %v9207, 0.0
    %v9250 = vadd.f32 %v9248, %v9249
    %v9251 = vsel %vm1863, %v9208, 0.0
    %v9252 = vadd.f32 %v9250, %v9251
    %v9253 = vsel %vm1863, %v9209, 0.0
    %v9254 = vadd.f32 %v9252, %v9253
    %v9255 = vsel %vm1863, %v9210, 0.0
    %v9256 = vadd.f32 %v9254, %v9255
    %v9257 = vsel %vm1863, %v9211, 0.0
    %v9258 = vadd.f32 %v9256, %v9257
    %v9259 = vsel %vm1863, %v9212, 0.0
    %v9260 = vadd.f32 %v9258, %v9259
    %v9261 = vsel %vm1863, %v9213, 0.0
    %v9262 = vadd.f32 %v9260, %v9261
    %v9263 = vsel %vm1863, %v9214, 0.0
    %v9264 = vadd.f32 %v9262, %v9263
    %v9265 = vsel %vm1863, %v9215, 0.0
    %v9266 = vadd.f32 %v9264, %v9265
    %v9267 = vsel %vm1863, %v9216, 0.0
    %v9268 = vadd.f32 %v9266, %v9267
    %v9269 = vsel %vm1863, %v9217, 0.0
    %v9270 = vadd.f32 %v9268, %v9269
    %v9271 = vsel %vm1863, %v9218, 0.0
    %v9272 = vadd.f32 %v9270, %v9271
    %v9273 = vsel %vm1863, %v9219, 0.0
    %v9274 = vadd.f32 %v9272, %v9273
    %v9275 = vsel %vm1863, %v9220, 0.0
    %v9276 = vadd.f32 %v9274, %v9275
    %v9277 = vsel %vm1863, %v9221, 0.0
    %v9278 = vadd.f32 %v9276, %v9277
    %v9279 = vsel %vm1863, %v9222, 0.0
    %v9280 = vadd.f32 %v9278, %v9279
    %v9281 = vsel %vm1863, %v9223, 0.0
    %v9282 = vadd.f32 %v9280, %v9281
    %v9283 = vsel %vm1863, %v9224, 0.0
    %v9284 = vadd.f32 %v9282, %v9283
    %v9285 = vsel %vm1863, %v9225, 0.0
    %v9286 = vadd.f32 %v9284, %v9285
    %v9287 = vsel %vm1863, %v9226, 0.0
    %v9288 = vadd.f32 %v9286, %v9287
    %v9289 = vsel %vm1863, %v9227, 0.0
    %v9290 = vadd.f32 %v9288, %v9289
    %v9291 = vsel %vm1863, %v9228, 0.0
    %v9292 = vadd.f32 %v9290, %v9291
    %v9293 = vsel %vm1863, %v9229, 0.0
    %v9294 = vadd.f32 %v9292, %v9293
    %v9295 = vsel %vm1863, %v9230, 0.0
    %v9296 = vadd.f32 %v9294, %v9295
    %v9297 = vsel %vm1863, %v9231, 0.0
    %v9298 = vadd.f32 %v9296, %v9297
    %v9299 = vsel %vm1863, %v9232, 0.0
    %v9300 = vadd.f32 %v9298, %v9299
    %v9301 = vsel %vm1863, %v9233, 0.0
    %v9302 = vadd.f32 %v9300, %v9301
    %v9303 = vsel %vm1863, %v9234, 0.0
    %v9304 = vadd.f32 %v9302, %v9303
    %v9305 = vsel %vm1863, %v9235, 0.0
    %v9306 = vadd.f32 %v9304, %v9305
    %v9307 = vrot.slane %v9306, 4
    %v9308 = vadd.f32 %v9306, %v9307
    %v9309 = vrot.slane %v9308, 2
    %v9310 = vadd.f32 %v9308, %v9309
    %v9311 = vrot.slane %v9310, 1
    %v9312 = vadd.f32 %v9310, %v9311
    %v9313 = vmul.f32 %v9312, %v9162
    %v9314 = vadd.f32 %v9313, 1e-05
    %v9315 = vrsqrt.pop %v9314
    %v9316 = vmul.f32 %v9164, %v9315
    %v9317 = vmul.f32 %v9165, %v9315
    %v9318 = vmul.f32 %v9166, %v9315
    %v9319 = vmul.f32 %v9167, %v9315
    %v9320 = vmul.f32 %v9168, %v9315
    %v9321 = vmul.f32 %v9169, %v9315
    %v9322 = vmul.f32 %v9170, %v9315
    %v9323 = vmul.f32 %v9171, %v9315
    %v9324 = vmul.f32 %v9172, %v9315
    %v9325 = vmul.f32 %v9173, %v9315
    %v9326 = vmul.f32 %v9174, %v9315
    %v9327 = vmul.f32 %v9175, %v9315
    %v9328 = vmul.f32 %v9176, %v9315
    %v9329 = vmul.f32 %v9177, %v9315
    %v9330 = vmul.f32 %v9178, %v9315
    %v9331 = vmul.f32 %v9179, %v9315
    %v9332 = vmul.f32 %v9180, %v9315
    %v9333 = vmul.f32 %v9181, %v9315
    %v9334 = vmul.f32 %v9182, %v9315
    %v9335 = vmul.f32 %v9183, %v9315
    %v9336 = vmul.f32 %v9184, %v9315
    %v9337 = vmul.f32 %v9185, %v9315
    %v9338 = vmul.f32 %v9186, %v9315
    %v9339 = vmul.f32 %v9187, %v9315
    %v9340 = vmul.f32 %v9188, %v9315
    %v9341 = vmul.f32 %v9189, %v9315
    %v9342 = vmul.f32 %v9190, %v9315
    %v9343 = vmul.f32 %v9191, %v9315
    %v9344 = vmul.f32 %v9192, %v9315
    %v9345 = vmul.f32 %v9193, %v9315
    %v9346 = vmul.f32 %v9194, %v9315
    %v9347 = vmul.f32 %v9195, %v9315
    %v9348 = vmul.f32 %v9196, %v9315
    %v9349 = vmul.f32 %v9197, %v9315
    %v9350 = vmul.f32 %v9198, %v9315
    %v9351 = vmul.f32 %v9199, %v9315
    %v9352 = vlaneseq
    %v9353 = vshrl.u32 %v9352, 7
    %v9354 = vsub.s32 2, %v9353
    %v9355 = vrot.slane %v89, %v9354
    %v9356 = vmul.f32 %v9316, %v9355
    %v9357 = vmul.f32 %v9317, %v9355
    %v9358 = vmul.f32 %v9318, %v9355
    %v9359 = vmul.f32 %v9319, %v9355
    %v9360 = vmul.f32 %v9320, %v9355
    %v9361 = vmul.f32 %v9321, %v9355
    %v9362 = vmul.f32 %v9322, %v9355
    %v9363 = vmul.f32 %v9323, %v9355
    %v9364 = vmul.f32 %v9324, %v9355
    %v9365 = vmul.f32 %v9325, %v9355
    %v9366 = vmul.f32 %v9326, %v9355
    %v9367 = vmul.f32 %v9327, %v9355
    %v9368 = vmul.f32 %v9328, %v9355
    %v9369 = vmul.f32 %v9329, %v9355
    %v9370 = vmul.f32 %v9330, %v9355
    %v9371 = vmul.f32 %v9331, %v9355
    %v9372 = vmul.f32 %v9332, %v9355
    %v9373 = vmul.f32 %v9333, %v9355
    %v9374 = vmul.f32 %v9334, %v9355
    %v9375 = vmul.f32 %v9335, %v9355
    %v9376 = vmul.f32 %v9336, %v9355
    %v9377 = vmul.f32 %v9337, %v9355
    %v9378 = vmul.f32 %v9338, %v9355
    %v9379 = vmul.f32 %v9339, %v9355
    %v9380 = vmul.f32 %v9340, %v9355
    %v9381 = vmul.f32 %v9341, %v9355
    %v9382 = vmul.f32 %v9342, %v9355
    %v9383 = vmul.f32 %v9343, %v9355
    %v9384 = vmul.f32 %v9344, %v9355
    %v9385 = vmul.f32 %v9345, %v9355
    %v9386 = vmul.f32 %v9346, %v9355
    %v9387 = vmul.f32 %v9347, %v9355
    %v9388 = vmul.f32 %v9348, %v9355
    %v9389 = vmul.f32 %v9349, %v9355
    %v9390 = vmul.f32 %v9350, %v9355
    %v9391 = vmul.f32 %v9351, %v9355
    %v9392 = vlaneseq
    %v9393 = vshrl.u32 %v9392, 7
    %v9394 = vsub.s32 3, %v9393
    %v9395 = vrot.slane %v89, %v9394
    %v9396 = vadd.f32 %v9356, %v9395
    %v9397 = vadd.f32 %v9357, %v9395
    %v9398 = vadd.f32 %v9358, %v9395
    %v9399 = vadd.f32 %v9359, %v9395
    %v9400 = vadd.f32 %v9360, %v9395
    %v9401 = vadd.f32 %v9361, %v9395
    %v9402 = vadd.f32 %v9362, %v9395
    %v9403 = vadd.f32 %v9363, %v9395
    %v9404 = vadd.f32 %v9364, %v9395
    %v9405 = vadd.f32 %v9365, %v9395
    %v9406 = vadd.f32 %v9366, %v9395
    %v9407 = vadd.f32 %v9367, %v9395
    %v9408 = vadd.f32 %v9368, %v9395
    %v9409 = vadd.f32 %v9369, %v9395
    %v9410 = vadd.f32 %v9370, %v9395
    %v9411 = vadd.f32 %v9371, %v9395
    %v9412 = vadd.f32 %v9372, %v9395
    %v9413 = vadd.f32 %v9373, %v9395
    %v9414 = vadd.f32 %v9374, %v9395
    %v9415 = vadd.f32 %v9375, %v9395
    %v9416 = vadd.f32 %v9376, %v9395
    %v9417 = vadd.f32 %v9377, %v9395
    %v9418 = vadd.f32 %v9378, %v9395
    %v9419 = vadd.f32 %v9379, %v9395
    %v9420 = vadd.f32 %v9380, %v9395
    %v9421 = vadd.f32 %v9381, %v9395
    %v9422 = vadd.f32 %v9382, %v9395
    %v9423 = vadd.f32 %v9383, %v9395
    %v9424 = vadd.f32 %v9384, %v9395
    %v9425 = vadd.f32 %v9385, %v9395
    %v9426 = vadd.f32 %v9386, %v9395
    %v9427 = vadd.f32 %v9387, %v9395
    %v9428 = vadd.f32 %v9388, %v9395
    %v9429 = vadd.f32 %v9389, %v9395
    %v9430 = vadd.f32 %v9390, %v9395
    %v9431 = vadd.f32 %v9391, %v9395
    %9432 = vxpose.xlu0.b32.start [1/16] %v9396, 128
    %9433 = vxpose.xlu0.b32.cont [2/16] %v9397, 128
    %9434 = vxpose.xlu0.b32.cont [3/16] %v9398, 128
    %9435 = vxpose.xlu0.b32.cont [4/16] %v9399, 128
    %9436 = vxpose.xlu0.b32.cont [5/16] %v9400, 128
    %9437 = vxpose.xlu0.b32.cont [6/16] %v9401, 128
    %9438 = vxpose.xlu0.b32.cont [7/16] %v9402, 128
    %9439 = vxpose.xlu0.b32.cont [8/16] %v9403, 128
    %9440 = vxpose.xlu0.b32.cont [9/16] %v9404, 128
    %9441 = vxpose.xlu0.b32.cont [10/16] %v9405, 128
    %9442 = vxpose.xlu0.b32.cont [11/16] %v9406, 128
    %9443 = vxpose.xlu0.b32.cont [12/16] %v9407, 128
    %9444 = vxpose.xlu0.b32.cont [13/16] %v9408, 128
    %9445 = vxpose.xlu0.b32.cont [14/16] %v9409, 128
    %9446 = vxpose.xlu0.b32.cont [15/16] %v9410, 128
    %9447 = vxpose.xlu0.b32.end [16/16] %v9411, 128
    %v9448 = vpop.trf.xlu0
    %v9449 = vpop.trf.xlu0
    %v9450 = vpop.trf.xlu0
    %v9451 = vpop.trf.xlu0
    %v9452 = vpop.trf.xlu0
    %v9453 = vpop.trf.xlu0
    %v9454 = vpop.trf.xlu0
    %v9455 = vpop.trf.xlu0
    %v9456 = vpop.trf.xlu0
    %v9457 = vpop.trf.xlu0
    %v9458 = vpop.trf.xlu0
    %v9459 = vpop.trf.xlu0
    %v9460 = vpop.trf.xlu0
    %v9461 = vpop.trf.xlu0
    %v9462 = vpop.trf.xlu0
    %v9463 = vpop.trf.xlu0
    %9464 = vxpose.xlu0.b32.start [1/16] %v9412, 128
    %9465 = vxpose.xlu0.b32.cont [2/16] %v9413, 128
    %9466 = vxpose.xlu0.b32.cont [3/16] 0.0, 128
    %9467 = vxpose.xlu0.b32.cont [4/16] 0.0, 128
    %9468 = vxpose.xlu0.b32.cont [5/16] 0.0, 128
    %9469 = vxpose.xlu0.b32.cont [6/16] 0.0, 128
    %9470 = vxpose.xlu0.b32.cont [7/16] 0.0, 128
    %9471 = vxpose.xlu0.b32.cont [8/16] 0.0, 128
    %9472 = vxpose.xlu0.b32.cont [9/16] 0.0, 128
    %9473 = vxpose.xlu0.b32.cont [10/16] 0.0, 128
    %9474 = vxpose.xlu0.b32.cont [11/16] 0.0, 128
    %9475 = vxpose.xlu0.b32.cont [12/16] 0.0, 128
    %9476 = vxpose.xlu0.b32.cont [13/16] 0.0, 128
    %9477 = vxpose.xlu0.b32.cont [14/16] 0.0, 128
    %9478 = vxpose.xlu0.b32.cont [15/16] 0.0, 128
    %9479 = vxpose.xlu0.b32.end [16/16] 0.0, 128
    %v9480 = vpop.trf.xlu0
    %v9481 = vpop.trf.xlu0
    %v9482 = vpop.trf.xlu0
    %v9483 = vpop.trf.xlu0
    %v9484 = vpop.trf.xlu0
    %v9485 = vpop.trf.xlu0
    %v9486 = vpop.trf.xlu0
    %v9487 = vpop.trf.xlu0
    %v9488 = vpop.trf.xlu0
    %v9489 = vpop.trf.xlu0
    %v9490 = vpop.trf.xlu0
    %v9491 = vpop.trf.xlu0
    %v9492 = vpop.trf.xlu0
    %v9493 = vpop.trf.xlu0
    %v9494 = vpop.trf.xlu0
    %v9495 = vpop.trf.xlu0
    %v9498 = vrot.slane %v9448, 1
    %v9499 = vrot.slane %v9480, 1
    %9500 = vrot.lane.b32.xlu0 %v9498, 16
    %v9501 = vpop.permute.xlu0 %9500
    %9502 = vrot.lane.b32.xlu0 %v9499, 16
    %v9503 = vpop.permute.xlu0 %9502
    %v9504 = vsel %vm1863, %v9501, %v9503
    %v9507 = vrot.slane %v9448, 2
    %v9508 = vrot.slane %v9480, 2
    %9509 = vrot.lane.b32.xlu0 %v9507, 32
    %v9510 = vpop.permute.xlu0 %9509
    %9511 = vrot.lane.b32.xlu0 %v9508, 32
    %v9512 = vpop.permute.xlu0 %9511
    %v9513 = vsel %vm2091, %v9510, %v9512
    %v9516 = vrot.slane %v9448, 3
    %v9517 = vrot.slane %v9480, 3
    %9518 = vrot.lane.b32.xlu0 %v9516, 48
    %v9519 = vpop.permute.xlu0 %9518
    %9520 = vrot.lane.b32.xlu0 %v9517, 48
    %v9521 = vpop.permute.xlu0 %9520
    %v9522 = vsel %vm8463, %v9519, %v9521
    %v9525 = vrot.slane %v9448, 4
    %v9526 = vrot.slane %v9480, 4
    %9527 = vrot.lane.b32.xlu0 %v9525, 64
    %v9528 = vpop.permute.xlu0 %9527
    %9529 = vrot.lane.b32.xlu0 %v9526, 64
    %v9530 = vpop.permute.xlu0 %9529
    %v9531 = vsel %vm8561, %v9528, %v9530
    %v9534 = vrot.slane %v9448, 5
    %v9535 = vrot.slane %v9480, 5
    %9536 = vrot.lane.b32.xlu0 %v9534, 80
    %v9537 = vpop.permute.xlu0 %9536
    %9538 = vrot.lane.b32.xlu0 %v9535, 80
    %v9539 = vpop.permute.xlu0 %9538
    %vm9540 = vcmask 654336
    %v9541 = vsel %vm9540, %v9537, %v9539
    %v9544 = vrot.slane %v9448, 6
    %v9545 = vrot.slane %v9480, 6
    %9546 = vrot.lane.b32.xlu0 %v9544, 96
    %v9547 = vpop.permute.xlu0 %9546
    %9548 = vrot.lane.b32.xlu0 %v9545, 96
    %v9549 = vpop.permute.xlu0 %9548
    %vm9550 = vcmask 785408
    %v9551 = vsel %vm9550, %v9547, %v9549
    %v9554 = vrot.slane %v9448, 7
    %v9555 = vrot.slane %v9480, 7
    %9556 = vrot.lane.b32.xlu0 %v9554, 112
    %v9557 = vpop.permute.xlu0 %9556
    %9558 = vrot.lane.b32.xlu0 %v9555, 112
    %v9559 = vpop.permute.xlu0 %9558
    %vm9560 = vcmask 916480
    %v9561 = vsel %vm9560, %v9557, %v9559
    %v9566 = vrot.slane %v9449, 1
    %v9567 = vrot.slane %v9481, 1
    %9568 = vrot.lane.b32.xlu0 %v9566, 16
    %v9569 = vpop.permute.xlu0 %9568
    %9570 = vrot.lane.b32.xlu0 %v9567, 16
    %v9571 = vpop.permute.xlu0 %9570
    %v9572 = vsel %vm1863, %v9569, %v9571
    %v9575 = vrot.slane %v9449, 2
    %v9576 = vrot.slane %v9481, 2
    %9577 = vrot.lane.b32.xlu0 %v9575, 32
    %v9578 = vpop.permute.xlu0 %9577
    %9579 = vrot.lane.b32.xlu0 %v9576, 32
    %v9580 = vpop.permute.xlu0 %9579
    %v9581 = vsel %vm2091, %v9578, %v9580
    %v9584 = vrot.slane %v9449, 3
    %v9585 = vrot.slane %v9481, 3
    %9586 = vrot.lane.b32.xlu0 %v9584, 48
    %v9587 = vpop.permute.xlu0 %9586
    %9588 = vrot.lane.b32.xlu0 %v9585, 48
    %v9589 = vpop.permute.xlu0 %9588
    %v9590 = vsel %vm8463, %v9587, %v9589
    %v9593 = vrot.slane %v9449, 4
    %v9594 = vrot.slane %v9481, 4
    %9595 = vrot.lane.b32.xlu0 %v9593, 64
    %v9596 = vpop.permute.xlu0 %9595
    %9597 = vrot.lane.b32.xlu0 %v9594, 64
    %v9598 = vpop.permute.xlu0 %9597
    %v9599 = vsel %vm8561, %v9596, %v9598
    %v9602 = vrot.slane %v9449, 5
    %v9603 = vrot.slane %v9481, 5
    %9604 = vrot.lane.b32.xlu0 %v9602, 80
    %v9605 = vpop.permute.xlu0 %9604
    %9606 = vrot.lane.b32.xlu0 %v9603, 80
    %v9607 = vpop.permute.xlu0 %9606
    %v9608 = vsel %vm9540, %v9605, %v9607
    %v9611 = vrot.slane %v9449, 6
    %v9612 = vrot.slane %v9481, 6
    %9613 = vrot.lane.b32.xlu0 %v9611, 96
    %v9614 = vpop.permute.xlu0 %9613
    %9615 = vrot.lane.b32.xlu0 %v9612, 96
    %v9616 = vpop.permute.xlu0 %9615
    %v9617 = vsel %vm9550, %v9614, %v9616
    %v9620 = vrot.slane %v9449, 7
    %v9621 = vrot.slane %v9481, 7
    %9622 = vrot.lane.b32.xlu0 %v9620, 112
    %v9623 = vpop.permute.xlu0 %9622
    %9624 = vrot.lane.b32.xlu0 %v9621, 112
    %v9625 = vpop.permute.xlu0 %9624
    %v9626 = vsel %vm9560, %v9623, %v9625
    %v9629 = vsel %vm1863, %v9480, %v9501
    %v9630 = vsel %vm2091, %v9504, %v9510
    %v9631 = vsel %vm8463, %v9513, %v9519
    %v9632 = vsel %vm8561, %v9522, %v9528
    %v9633 = vsel %vm9540, %v9531, %v9537
    %v9634 = vsel %vm9550, %v9541, %v9547
    %v9635 = vsel %vm9560, %v9551, %v9557
    %v9636 = vsel %vm1863, %v9481, %v9569
    %v9637 = vsel %vm2091, %v9572, %v9578
    %v9638 = vsel %vm8463, %v9581, %v9587
    %v9639 = vsel %vm8561, %v9590, %v9596
    %v9640 = vsel %vm9540, %v9599, %v9605
    %v9641 = vsel %vm9550, %v9608, %v9614
    %v9642 = vsel %vm9560, %v9617, %v9623
    %9643 = vxpose.xlu0.b32.start [1/16] %v9414, 128
    %9644 = vxpose.xlu0.b32.cont [2/16] %v9415, 128
    %9645 = vxpose.xlu0.b32.cont [3/16] %v9416, 128
    %9646 = vxpose.xlu0.b32.cont [4/16] %v9417, 128
    %9647 = vxpose.xlu0.b32.cont [5/16] %v9418, 128
    %9648 = vxpose.xlu0.b32.cont [6/16] %v9419, 128
    %9649 = vxpose.xlu0.b32.cont [7/16] %v9420, 128
    %9650 = vxpose.xlu0.b32.cont [8/16] %v9421, 128
    %9651 = vxpose.xlu0.b32.cont [9/16] %v9422, 128
    %9652 = vxpose.xlu0.b32.cont [10/16] %v9423, 128
    %9653 = vxpose.xlu0.b32.cont [11/16] %v9424, 128
    %9654 = vxpose.xlu0.b32.cont [12/16] %v9425, 128
    %9655 = vxpose.xlu0.b32.cont [13/16] %v9426, 128
    %9656 = vxpose.xlu0.b32.cont [14/16] %v9427, 128
    %9657 = vxpose.xlu0.b32.cont [15/16] %v9428, 128
    %9658 = vxpose.xlu0.b32.end [16/16] %v9429, 128
    %v9659 = vpop.trf.xlu0
    %v9660 = vpop.trf.xlu0
    %v9661 = vpop.trf.xlu0
    %v9662 = vpop.trf.xlu0
    %v9663 = vpop.trf.xlu0
    %v9664 = vpop.trf.xlu0
    %v9665 = vpop.trf.xlu0
    %v9666 = vpop.trf.xlu0
    %v9667 = vpop.trf.xlu0
    %v9668 = vpop.trf.xlu0
    %v9669 = vpop.trf.xlu0
    %v9670 = vpop.trf.xlu0
    %v9671 = vpop.trf.xlu0
    %v9672 = vpop.trf.xlu0
    %v9673 = vpop.trf.xlu0
    %v9674 = vpop.trf.xlu0
    %9675 = vxpose.xlu0.b32.start [1/16] %v9430, 128
    %9676 = vxpose.xlu0.b32.cont [2/16] %v9431, 128
    %9677 = vxpose.xlu0.b32.cont [3/16] 0.0, 128
    %9678 = vxpose.xlu0.b32.cont [4/16] 0.0, 128
    %9679 = vxpose.xlu0.b32.cont [5/16] 0.0, 128
    %9680 = vxpose.xlu0.b32.cont [6/16] 0.0, 128
    %9681 = vxpose.xlu0.b32.cont [7/16] 0.0, 128
    %9682 = vxpose.xlu0.b32.cont [8/16] 0.0, 128
    %9683 = vxpose.xlu0.b32.cont [9/16] 0.0, 128
    %9684 = vxpose.xlu0.b32.cont [10/16] 0.0, 128
    %9685 = vxpose.xlu0.b32.cont [11/16] 0.0, 128
    %9686 = vxpose.xlu0.b32.cont [12/16] 0.0, 128
    %9687 = vxpose.xlu0.b32.cont [13/16] 0.0, 128
    %9688 = vxpose.xlu0.b32.cont [14/16] 0.0, 128
    %9689 = vxpose.xlu0.b32.cont [15/16] 0.0, 128
    %9690 = vxpose.xlu0.b32.end [16/16] 0.0, 128
    %v9691 = vpop.trf.xlu0
    %v9692 = vpop.trf.xlu0
    %v9693 = vpop.trf.xlu0
    %v9694 = vpop.trf.xlu0
    %v9695 = vpop.trf.xlu0
    %v9696 = vpop.trf.xlu0
    %v9697 = vpop.trf.xlu0
    %v9698 = vpop.trf.xlu0
    %v9699 = vpop.trf.xlu0
    %v9700 = vpop.trf.xlu0
    %v9701 = vpop.trf.xlu0
    %v9702 = vpop.trf.xlu0
    %v9703 = vpop.trf.xlu0
    %v9704 = vpop.trf.xlu0
    %v9705 = vpop.trf.xlu0
    %v9706 = vpop.trf.xlu0
    %v9709 = vrot.slane %v9659, 1
    %v9710 = vrot.slane %v9691, 1
    %9711 = vrot.lane.b32.xlu0 %v9709, 16
    %v9712 = vpop.permute.xlu0 %9711
    %9713 = vrot.lane.b32.xlu0 %v9710, 16
    %v9714 = vpop.permute.xlu0 %9713
    %v9715 = vsel %vm1863, %v9712, %v9714
    %v9718 = vrot.slane %v9659, 2
    %v9719 = vrot.slane %v9691, 2
    %9720 = vrot.lane.b32.xlu0 %v9718, 32
    %v9721 = vpop.permute.xlu0 %9720
    %9722 = vrot.lane.b32.xlu0 %v9719, 32
    %v9723 = vpop.permute.xlu0 %9722
    %v9724 = vsel %vm2091, %v9721, %v9723
    %v9727 = vrot.slane %v9659, 3
    %v9728 = vrot.slane %v9691, 3
    %9729 = vrot.lane.b32.xlu0 %v9727, 48
    %v9730 = vpop.permute.xlu0 %9729
    %9731 = vrot.lane.b32.xlu0 %v9728, 48
    %v9732 = vpop.permute.xlu0 %9731
    %v9733 = vsel %vm8463, %v9730, %v9732
    %v9736 = vrot.slane %v9659, 4
    %v9737 = vrot.slane %v9691, 4
    %9738 = vrot.lane.b32.xlu0 %v9736, 64
    %v9739 = vpop.permute.xlu0 %9738
    %9740 = vrot.lane.b32.xlu0 %v9737, 64
    %v9741 = vpop.permute.xlu0 %9740
    %v9742 = vsel %vm8561, %v9739, %v9741
    %v9745 = vrot.slane %v9659, 5
    %v9746 = vrot.slane %v9691, 5
    %9747 = vrot.lane.b32.xlu0 %v9745, 80
    %v9748 = vpop.permute.xlu0 %9747
    %9749 = vrot.lane.b32.xlu0 %v9746, 80
    %v9750 = vpop.permute.xlu0 %9749
    %v9751 = vsel %vm9540, %v9748, %v9750
    %v9754 = vrot.slane %v9659, 6
    %v9755 = vrot.slane %v9691, 6
    %9756 = vrot.lane.b32.xlu0 %v9754, 96
    %v9757 = vpop.permute.xlu0 %9756
    %9758 = vrot.lane.b32.xlu0 %v9755, 96
    %v9759 = vpop.permute.xlu0 %9758
    %v9760 = vsel %vm9550, %v9757, %v9759
    %v9763 = vrot.slane %v9659, 7
    %v9764 = vrot.slane %v9691, 7
    %9765 = vrot.lane.b32.xlu0 %v9763, 112
    %v9766 = vpop.permute.xlu0 %9765
    %9767 = vrot.lane.b32.xlu0 %v9764, 112
    %v9768 = vpop.permute.xlu0 %9767
    %v9769 = vsel %vm9560, %v9766, %v9768
    %v9773 = vrot.slane %v9660, 1
    %v9774 = vrot.slane %v9692, 1
    %9775 = vrot.lane.b32.xlu0 %v9773, 16
    %v9776 = vpop.permute.xlu0 %9775
    %9777 = vrot.lane.b32.xlu0 %v9774, 16
    %v9778 = vpop.permute.xlu0 %9777
    %v9779 = vsel %vm1863, %v9776, %v9778
    %v9782 = vrot.slane %v9660, 2
    %v9783 = vrot.slane %v9692, 2
    %9784 = vrot.lane.b32.xlu0 %v9782, 32
    %v9785 = vpop.permute.xlu0 %9784
    %9786 = vrot.lane.b32.xlu0 %v9783, 32
    %v9787 = vpop.permute.xlu0 %9786
    %v9788 = vsel %vm2091, %v9785, %v9787
    %v9791 = vrot.slane %v9660, 3
    %v9792 = vrot.slane %v9692, 3
    %9793 = vrot.lane.b32.xlu0 %v9791, 48
    %v9794 = vpop.permute.xlu0 %9793
    %9795 = vrot.lane.b32.xlu0 %v9792, 48
    %v9796 = vpop.permute.xlu0 %9795
    %v9797 = vsel %vm8463, %v9794, %v9796
    %v9800 = vrot.slane %v9660, 4
    %v9801 = vrot.slane %v9692, 4
    %9802 = vrot.lane.b32.xlu0 %v9800, 64
    %v9803 = vpop.permute.xlu0 %9802
    %9804 = vrot.lane.b32.xlu0 %v9801, 64
    %v9805 = vpop.permute.xlu0 %9804
    %v9806 = vsel %vm8561, %v9803, %v9805
    %v9809 = vrot.slane %v9660, 5
    %v9810 = vrot.slane %v9692, 5
    %9811 = vrot.lane.b32.xlu0 %v9809, 80
    %v9812 = vpop.permute.xlu0 %9811
    %9813 = vrot.lane.b32.xlu0 %v9810, 80
    %v9814 = vpop.permute.xlu0 %9813
    %v9815 = vsel %vm9540, %v9812, %v9814
    %v9818 = vrot.slane %v9660, 6
    %v9819 = vrot.slane %v9692, 6
    %9820 = vrot.lane.b32.xlu0 %v9818, 96
    %v9821 = vpop.permute.xlu0 %9820
    %9822 = vrot.lane.b32.xlu0 %v9819, 96
    %v9823 = vpop.permute.xlu0 %9822
    %v9824 = vsel %vm9550, %v9821, %v9823
    %v9827 = vrot.slane %v9660, 7
    %v9828 = vrot.slane %v9692, 7
    %9829 = vrot.lane.b32.xlu0 %v9827, 112
    %v9830 = vpop.permute.xlu0 %9829
    %9831 = vrot.lane.b32.xlu0 %v9828, 112
    %v9832 = vpop.permute.xlu0 %9831
    %v9833 = vsel %vm9560, %v9830, %v9832
    %v9835 = vsel %vm1863, %v9691, %v9712
    %v9836 = vsel %vm2091, %v9715, %v9721
    %v9837 = vsel %vm8463, %v9724, %v9730
    %v9838 = vsel %vm8561, %v9733, %v9739
    %v9839 = vsel %vm9540, %v9742, %v9748
    %v9840 = vsel %vm9550, %v9751, %v9757
    %v9841 = vsel %vm9560, %v9760, %v9766
    %v9842 = vsel %vm1863, %v9692, %v9776
    %v9843 = vsel %vm2091, %v9779, %v9785
    %v9844 = vsel %vm8463, %v9788, %v9794
    %v9845 = vsel %vm8561, %v9797, %v9803
    %v9846 = vsel %vm9540, %v9806, %v9812
    %v9847 = vsel %vm9550, %v9815, %v9821
    %v9848 = vsel %vm9560, %v9824, %v9830
    %v9863 = vrot.slane %v9835, 7
    %v9864 = vrot.slane %v9836, 7
    %v9865 = vrot.slane %v9837, 7
    %v9866 = vrot.slane %v9838, 7
    %v9867 = vrot.slane %v9839, 7
    %v9868 = vrot.slane %v9840, 7
    %v9869 = vrot.slane %v9841, 7
    %v9870 = vrot.slane %v9769, 7
    %v9871 = vrot.slane %v9842, 7
    %v9872 = vrot.slane %v9843, 7
    %v9873 = vrot.slane %v9844, 7
    %v9874 = vrot.slane %v9845, 7
    %v9875 = vrot.slane %v9846, 7
    %v9876 = vrot.slane %v9847, 7
    %v9877 = vrot.slane %v9848, 7
    %v9878 = vrot.slane %v9833, 7
    %vm9897 = vcmask 1040384
    %v9898 = vsel %vm9897, %v9448, %v9763
    %v9899 = vsel %vm9897, %v9629, %v9863
    %v9900 = vsel %vm9897, %v9630, %v9864
    %v9901 = vsel %vm9897, %v9631, %v9865
    %v9902 = vsel %vm9897, %v9632, %v9866
    %v9903 = vsel %vm9897, %v9633, %v9867
    %v9904 = vsel %vm9897, %v9634, %v9868
    %v9905 = vsel %vm9897, %v9635, %v9869
    %v9906 = vsel %vm9897, %v9561, %v9870
    %v9907 = vsel %vm9897, %v9449, %v9827
    %v9908 = vsel %vm9897, %v9636, %v9871
    %v9909 = vsel %vm9897, %v9637, %v9872
    %v9910 = vsel %vm9897, %v9638, %v9873
    %v9911 = vsel %vm9897, %v9639, %v9874
    %v9912 = vsel %vm9897, %v9640, %v9875
    %v9913 = vsel %vm9897, %v9641, %v9876
    %v9914 = vsel %vm9897, %v9642, %v9877
    %v9915 = vsel %vm9897, %v9626, %v9878
    %v9916 = vpack.c.bf16 %v9898, %v9898
    %v9917 = vpack.c.bf16 %v9899, %v9899
    %v9918 = vpack.c.bf16 %v9900, %v9900
    %v9919 = vpack.c.bf16 %v9901, %v9901
    %v9920 = vpack.c.bf16 %v9902, %v9902
    %v9921 = vpack.c.bf16 %v9903, %v9903
    %v9922 = vpack.c.bf16 %v9904, %v9904
    %v9923 = vpack.c.bf16 %v9905, %v9905
    %v9924 = vpack.c.bf16 %v9906, %v9906
    %v9925 = vpack.c.bf16 %v9907, %v9907
    %v9926 = vpack.c.bf16 %v9908, %v9908
    %v9927 = vpack.c.bf16 %v9909, %v9909
    %v9928 = vpack.c.bf16 %v9910, %v9910
    %v9929 = vpack.c.bf16 %v9911, %v9911
    %v9930 = vpack.c.bf16 %v9912, %v9912
    %v9931 = vpack.c.bf16 %v9913, %v9913
    %v9932 = vpack.c.bf16 %v9914, %v9914
    %v9933 = vpack.c.bf16 %v9915, %v9915
    %v9934 = vld [vmem:[%s3] sm:$0xf]
    %v9935 = vld [vmem:[%s3 + $0x4] sm:$0xf]
    %v9936 = vld [vmem:[%s3 + $0x8] sm:$0xf]
    %v9937 = vld [vmem:[%s3 + $0xc] sm:$0xf]
    %v9938 = vld [vmem:[%s3 + $0x10] sm:$0xf]
    %v9939 = vld [vmem:[%s3 + $0x14] sm:$0xf]
    %v9940 = vld [vmem:[%s3 + $0x18] sm:$0xf]
    %v9941 = vld [vmem:[%s3 + $0x1c] sm:$0xf]
    %v9942 = vld [vmem:[%s3 + $0x20] sm:$0xf]
    %v9943 = vld [vmem:[%s3 + $0x24] sm:$0xf]
    %v9944 = vld [vmem:[%s3 + $0x28] sm:$0xf]
    %v9945 = vld [vmem:[%s3 + $0x2c] sm:$0xf]
    %v9946 = vld [vmem:[%s3 + $0x30] sm:$0xf]
    %v9947 = vld [vmem:[%s3 + $0x34] sm:$0xf]
    %v9948 = vld [vmem:[%s3 + $0x38] sm:$0xf]
    %v9949 = vld [vmem:[%s3 + $0x3c] sm:$0xf]
    %v9950 = vld [vmem:[%s3 + $0x40] sm:$0xf]
    %v9951 = vld [vmem:[%s3 + $0x44] sm:$0xf]
    %v9952 = vld [vmem:[%s3 + $0x48] sm:$0xf]
    %v9953 = vld [vmem:[%s3 + $0x4c] sm:$0xf]
    %v9954 = vld [vmem:[%s3 + $0x50] sm:$0xf]
    %v9955 = vld [vmem:[%s3 + $0x54] sm:$0xf]
    %v9956 = vld [vmem:[%s3 + $0x58] sm:$0xf]
    %v9957 = vld [vmem:[%s3 + $0x5c] sm:$0xf]
    %v9958 = vld [vmem:[%s3 + $0x60] sm:$0xf]
    %v9959 = vld [vmem:[%s3 + $0x64] sm:$0xf]
    %v9960 = vld [vmem:[%s3 + $0x68] sm:$0xf]
    %v9961 = vld [vmem:[%s3 + $0x6c] sm:$0xf]
    %v9962 = vld [vmem:[%s3 + $0x70] sm:$0xf]
    %v9963 = vld [vmem:[%s3 + $0x74] sm:$0xf]
    %v9964 = vld [vmem:[%s3 + $0x78] sm:$0xf]
    %v9965 = vld [vmem:[%s3 + $0x7c] sm:$0xf]
    %v9966 = vld [vmem:[%s3 + $0x80] sm:$0xf]
    %v9967 = vld [vmem:[%s3 + $0x84] sm:$0xf]
    %v9968 = vld [vmem:[%s3 + $0x88] sm:$0xf]
    %v9969 = vld [vmem:[%s3 + $0x8c] sm:$0xf]
    %v9970 = vld [vmem:[%s3 + $0x90] sm:$0xf]
    %v9971 = vld [vmem:[%s3 + $0x94] sm:$0xf]
    %v9972 = vld [vmem:[%s3 + $0x98] sm:$0xf]
    %v9973 = vld [vmem:[%s3 + $0x9c] sm:$0xf]
    %v9974 = vld [vmem:[%s3 + $0xa0] sm:$0xf]
    %v9975 = vld [vmem:[%s3 + $0xa4] sm:$0xf]
    %v9976 = vld [vmem:[%s3 + $0xa8] sm:$0xf]
    %v9977 = vld [vmem:[%s3 + $0xac] sm:$0xf]
    %v9978 = vld [vmem:[%s3 + $0xb0] sm:$0xf]
    %v9979 = vld [vmem:[%s3 + $0xb4] sm:$0xf]
    %v9980 = vld [vmem:[%s3 + $0xb8] sm:$0xf]
    %v9981 = vld [vmem:[%s3 + $0xbc] sm:$0xf]
    %v9982 = vld [vmem:[%s3 + $0xc0] sm:$0xf]
    %v9983 = vld [vmem:[%s3 + $0xc4] sm:$0xf]
    %v9984 = vld [vmem:[%s3 + $0xc8] sm:$0xf]
    %v9985 = vld [vmem:[%s3 + $0xcc] sm:$0xf]
    %v9986 = vld [vmem:[%s3 + $0xd0] sm:$0xf]
    %v9987 = vld [vmem:[%s3 + $0xd4] sm:$0xf]
    %v9988 = vld [vmem:[%s3 + $0xd8] sm:$0xf]
    %v9989 = vld [vmem:[%s3 + $0xdc] sm:$0xf]
    %v9990 = vld [vmem:[%s3 + $0xe0] sm:$0xf]
    %v9991 = vld [vmem:[%s3 + $0xe4] sm:$0xf]
    %v9992 = vld [vmem:[%s3 + $0xe8] sm:$0xf]
    %v9993 = vld [vmem:[%s3 + $0xec] sm:$0xf]
    %v9994 = vld [vmem:[%s3 + $0xf0] sm:$0xf]
    %v9995 = vld [vmem:[%s3 + $0xf4] sm:$0xf]
    %v9996 = vld [vmem:[%s3 + $0xf8] sm:$0xf]
    %v9997 = vld [vmem:[%s3 + $0xfc] sm:$0xf]
    %v9998 = vld [vmem:[%s3 + $0x100] sm:$0xf]
    %v9999 = vld [vmem:[%s3 + $0x104] sm:$0xf]
    %v10000 = vld [vmem:[%s3 + $0x108] sm:$0xf]
    %v10001 = vld [vmem:[%s3 + $0x10c] sm:$0xf]
    %v10002 = vld [vmem:[%s3 + $0x110] sm:$0xf]
    %v10003 = vld [vmem:[%s3 + $0x114] sm:$0xf]
    %v10004 = vld [vmem:[%s3 + $0x118] sm:$0xf]
    %v10005 = vld [vmem:[%s3 + $0x11c] sm:$0xf]
    %v10006 = vld [vmem:[%s3 + $0x120] sm:$0xf]
    %v10007 = vld [vmem:[%s3 + $0x124] sm:$0xf]
    %v10008 = vld [vmem:[%s3 + $0x128] sm:$0xf]
    %v10009 = vld [vmem:[%s3 + $0x12c] sm:$0xf]
    %v10010 = vld [vmem:[%s3 + $0x130] sm:$0xf]
    %v10011 = vld [vmem:[%s3 + $0x134] sm:$0xf]
    %v10012 = vld [vmem:[%s3 + $0x138] sm:$0xf]
    %v10013 = vld [vmem:[%s3 + $0x13c] sm:$0xf]
    %v10014 = vld [vmem:[%s3 + $0x140] sm:$0xf]
    %v10015 = vld [vmem:[%s3 + $0x144] sm:$0xf]
    %v10016 = vld [vmem:[%s3 + $0x148] sm:$0xf]
    %v10017 = vld [vmem:[%s3 + $0x14c] sm:$0xf]
    %v10018 = vld [vmem:[%s3 + $0x150] sm:$0xf]
    %v10019 = vld [vmem:[%s3 + $0x154] sm:$0xf]
    %v10020 = vld [vmem:[%s3 + $0x158] sm:$0xf]
    %v10021 = vld [vmem:[%s3 + $0x15c] sm:$0xf]
    %v10022 = vld [vmem:[%s3 + $0x160] sm:$0xf]
    %v10023 = vld [vmem:[%s3 + $0x164] sm:$0xf]
    %v10024 = vld [vmem:[%s3 + $0x168] sm:$0xf]
    %v10025 = vld [vmem:[%s3 + $0x16c] sm:$0xf]
    %v10026 = vld [vmem:[%s3 + $0x170] sm:$0xf]
    %v10027 = vld [vmem:[%s3 + $0x174] sm:$0xf]
    %v10028 = vld [vmem:[%s3 + $0x178] sm:$0xf]
    %v10029 = vld [vmem:[%s3 + $0x17c] sm:$0xf]
    %v10030 = vld [vmem:[%s3 + $0x180] sm:$0xf]
    %v10031 = vld [vmem:[%s3 + $0x184] sm:$0xf]
    %v10032 = vld [vmem:[%s3 + $0x188] sm:$0xf]
    %v10033 = vld [vmem:[%s3 + $0x18c] sm:$0xf]
    %v10034 = vld [vmem:[%s3 + $0x190] sm:$0xf]
    %v10035 = vld [vmem:[%s3 + $0x194] sm:$0xf]
    %v10036 = vld [vmem:[%s3 + $0x198] sm:$0xf]
    %v10037 = vld [vmem:[%s3 + $0x19c] sm:$0xf]
    %v10038 = vld [vmem:[%s3 + $0x1a0] sm:$0xf]
    %v10039 = vld [vmem:[%s3 + $0x1a4] sm:$0xf]
    %v10040 = vld [vmem:[%s3 + $0x1a8] sm:$0xf]
    %v10041 = vld [vmem:[%s3 + $0x1ac] sm:$0xf]
    %v10042 = vld [vmem:[%s3 + $0x1b0] sm:$0xf]
    %v10043 = vld [vmem:[%s3 + $0x1b4] sm:$0xf]
    %v10044 = vld [vmem:[%s3 + $0x1b8] sm:$0xf]
    %v10045 = vld [vmem:[%s3 + $0x1bc] sm:$0xf]
    %v10046 = vld [vmem:[%s3 + $0x1c0] sm:$0xf]
    %v10047 = vld [vmem:[%s3 + $0x1c4] sm:$0xf]
    %v10048 = vld [vmem:[%s3 + $0x1c8] sm:$0xf]
    %v10049 = vld [vmem:[%s3 + $0x1cc] sm:$0xf]
    %v10050 = vld [vmem:[%s3 + $0x1d0] sm:$0xf]
    %v10051 = vld [vmem:[%s3 + $0x1d4] sm:$0xf]
    %v10052 = vld [vmem:[%s3 + $0x1d8] sm:$0xf]
    %v10053 = vld [vmem:[%s3 + $0x1dc] sm:$0xf]
    %v10054 = vld [vmem:[%s3 + $0x1e0] sm:$0xf]
    %v10055 = vld [vmem:[%s3 + $0x1e4] sm:$0xf]
    %v10056 = vld [vmem:[%s3 + $0x1e8] sm:$0xf]
    %v10057 = vld [vmem:[%s3 + $0x1ec] sm:$0xf]
    %v10058 = vld [vmem:[%s3 + $0x1f0] sm:$0xf]
    %v10059 = vld [vmem:[%s3 + $0x1f4] sm:$0xf]
    %v10060 = vld [vmem:[%s3 + $0x1f8] sm:$0xf]
    %v10061 = vld [vmem:[%s3 + $0x1fc] sm:$0xf]
    %v10062 = vld [vmem:[%s3 + $0x200] sm:$0xf]
    %v10063 = vld [vmem:[%s3 + $0x204] sm:$0xf]
    %v10064 = vld [vmem:[%s3 + $0x208] sm:$0xf]
    %v10065 = vld [vmem:[%s3 + $0x20c] sm:$0xf]
    %v10066 = vld [vmem:[%s3 + $0x210] sm:$0xf]
    %v10067 = vld [vmem:[%s3 + $0x214] sm:$0xf]
    %v10068 = vld [vmem:[%s3 + $0x218] sm:$0xf]
    %v10069 = vld [vmem:[%s3 + $0x21c] sm:$0xf]
    %v10070 = vld [vmem:[%s3 + $0x220] sm:$0xf]
    %v10071 = vld [vmem:[%s3 + $0x224] sm:$0xf]
    %v10072 = vld [vmem:[%s3 + $0x228] sm:$0xf]
    %v10073 = vld [vmem:[%s3 + $0x22c] sm:$0xf]
    %v10074 = vld [vmem:[%s3 + $0x230] sm:$0xf]
    %v10075 = vld [vmem:[%s3 + $0x234] sm:$0xf]
    %v10076 = vld [vmem:[%s3 + $0x238] sm:$0xf]
    %v10077 = vld [vmem:[%s3 + $0x23c] sm:$0xf]
    %v10078 = vld [vmem:[%s3 + $0x240] sm:$0xf]
    %v10079 = vld [vmem:[%s3 + $0x244] sm:$0xf]
    %v10080 = vld [vmem:[%s3 + $0x248] sm:$0xf]
    %v10081 = vld [vmem:[%s3 + $0x24c] sm:$0xf]
    %v10082 = vld [vmem:[%s3 + $0x250] sm:$0xf]
    %v10083 = vld [vmem:[%s3 + $0x254] sm:$0xf]
    %v10084 = vld [vmem:[%s3 + $0x258] sm:$0xf]
    %v10085 = vld [vmem:[%s3 + $0x25c] sm:$0xf]
    %v10086 = vld [vmem:[%s3 + $0x260] sm:$0xf]
    %v10087 = vld [vmem:[%s3 + $0x264] sm:$0xf]
    %v10088 = vld [vmem:[%s3 + $0x268] sm:$0xf]
    %v10089 = vld [vmem:[%s3 + $0x26c] sm:$0xf]
    %v10090 = vld [vmem:[%s3 + $0x270] sm:$0xf]
    %v10091 = vld [vmem:[%s3 + $0x274] sm:$0xf]
    %v10092 = vld [vmem:[%s3 + $0x278] sm:$0xf]
    %v10093 = vld [vmem:[%s3 + $0x27c] sm:$0xf]
    %v10094 = vld [vmem:[%s3 + $0x280] sm:$0xf]
    %v10095 = vld [vmem:[%s3 + $0x284] sm:$0xf]
    %v10096 = vld [vmem:[%s3 + $0x288] sm:$0xf]
    %v10097 = vld [vmem:[%s3 + $0x28c] sm:$0xf]
    %v10098 = vld [vmem:[%s3 + $0x290] sm:$0xf]
    %v10099 = vld [vmem:[%s3 + $0x294] sm:$0xf]
    %v10100 = vld [vmem:[%s3 + $0x298] sm:$0xf]
    %v10101 = vld [vmem:[%s3 + $0x29c] sm:$0xf]
    %v10102 = vld [vmem:[%s3 + $0x2a0] sm:$0xf]
    %v10103 = vld [vmem:[%s3 + $0x2a4] sm:$0xf]
    %v10104 = vld [vmem:[%s3 + $0x2a8] sm:$0xf]
    %v10105 = vld [vmem:[%s3 + $0x2ac] sm:$0xf]
    %v10106 = vld [vmem:[%s3 + $0x2b0] sm:$0xf]
    %v10107 = vld [vmem:[%s3 + $0x2b4] sm:$0xf]
    %v10108 = vld [vmem:[%s3 + $0x2b8] sm:$0xf]
    %v10109 = vld [vmem:[%s3 + $0x2bc] sm:$0xf]
    %v10110 = vld [vmem:[%s3 + $0x2c0] sm:$0xf]
    %v10111 = vld [vmem:[%s3 + $0x2c4] sm:$0xf]
    %v10112 = vld [vmem:[%s3 + $0x2c8] sm:$0xf]
    %v10113 = vld [vmem:[%s3 + $0x2cc] sm:$0xf]
    %v10114 = vld [vmem:[%s3 + $0x2d0] sm:$0xf]
    %v10115 = vld [vmem:[%s3 + $0x2d4] sm:$0xf]
    %v10116 = vld [vmem:[%s3 + $0x2d8] sm:$0xf]
    %v10117 = vld [vmem:[%s3 + $0x2dc] sm:$0xf]
    %v10118 = vld [vmem:[%s3 + $0x2e0] sm:$0xf]
    %v10119 = vld [vmem:[%s3 + $0x2e4] sm:$0xf]
    %v10120 = vld [vmem:[%s3 + $0x2e8] sm:$0xf]
    %v10121 = vld [vmem:[%s3 + $0x2ec] sm:$0xf]
    %v10122 = vld [vmem:[%s3 + $0x2f0] sm:$0xf]
    %v10123 = vld [vmem:[%s3 + $0x2f4] sm:$0xf]
    %v10124 = vld [vmem:[%s3 + $0x2f8] sm:$0xf]
    %v10125 = vld [vmem:[%s3 + $0x2fc] sm:$0xf]
    %v10126 = vld [vmem:[%s3 + $0x300] sm:$0xf]
    %v10127 = vld [vmem:[%s3 + $0x304] sm:$0xf]
    %v10128 = vld [vmem:[%s3 + $0x308] sm:$0xf]
    %v10129 = vld [vmem:[%s3 + $0x30c] sm:$0xf]
    %v10130 = vld [vmem:[%s3 + $0x310] sm:$0xf]
    %v10131 = vld [vmem:[%s3 + $0x314] sm:$0xf]
    %v10132 = vld [vmem:[%s3 + $0x318] sm:$0xf]
    %v10133 = vld [vmem:[%s3 + $0x31c] sm:$0xf]
    %v10134 = vld [vmem:[%s3 + $0x320] sm:$0xf]
    %v10135 = vld [vmem:[%s3 + $0x324] sm:$0xf]
    %v10136 = vld [vmem:[%s3 + $0x328] sm:$0xf]
    %v10137 = vld [vmem:[%s3 + $0x32c] sm:$0xf]
    %v10138 = vld [vmem:[%s3 + $0x330] sm:$0xf]
    %v10139 = vld [vmem:[%s3 + $0x334] sm:$0xf]
    %v10140 = vld [vmem:[%s3 + $0x338] sm:$0xf]
    %v10141 = vld [vmem:[%s3 + $0x33c] sm:$0xf]
    %v10142 = vld [vmem:[%s3 + $0x340] sm:$0xf]
    %v10143 = vld [vmem:[%s3 + $0x344] sm:$0xf]
    %v10144 = vld [vmem:[%s3 + $0x348] sm:$0xf]
    %v10145 = vld [vmem:[%s3 + $0x34c] sm:$0xf]
    %v10146 = vld [vmem:[%s3 + $0x350] sm:$0xf]
    %v10147 = vld [vmem:[%s3 + $0x354] sm:$0xf]
    %v10148 = vld [vmem:[%s3 + $0x358] sm:$0xf]
    %v10149 = vld [vmem:[%s3 + $0x35c] sm:$0xf]
    %v10150 = vld [vmem:[%s3 + $0x360] sm:$0xf]
    %v10151 = vld [vmem:[%s3 + $0x364] sm:$0xf]
    %v10152 = vld [vmem:[%s3 + $0x368] sm:$0xf]
    %v10153 = vld [vmem:[%s3 + $0x36c] sm:$0xf]
    %v10154 = vld [vmem:[%s3 + $0x370] sm:$0xf]
    %v10155 = vld [vmem:[%s3 + $0x374] sm:$0xf]
    %v10156 = vld [vmem:[%s3 + $0x378] sm:$0xf]
    %v10157 = vld [vmem:[%s3 + $0x37c] sm:$0xf]
    %v10158 = vld [vmem:[%s3 + $0x380] sm:$0xf]
    %v10159 = vld [vmem:[%s3 + $0x384] sm:$0xf]
    %v10160 = vld [vmem:[%s3 + $0x388] sm:$0xf]
    %v10161 = vld [vmem:[%s3 + $0x38c] sm:$0xf]
    %v10162 = vld [vmem:[%s3 + $0x390] sm:$0xf]
    %v10163 = vld [vmem:[%s3 + $0x394] sm:$0xf]
    %v10164 = vld [vmem:[%s3 + $0x398] sm:$0xf]
    %v10165 = vld [vmem:[%s3 + $0x39c] sm:$0xf]
    %v10166 = vld [vmem:[%s3 + $0x3a0] sm:$0xf]
    %v10167 = vld [vmem:[%s3 + $0x3a4] sm:$0xf]
    %v10168 = vld [vmem:[%s3 + $0x3a8] sm:$0xf]
    %v10169 = vld [vmem:[%s3 + $0x3ac] sm:$0xf]
    %v10170 = vld [vmem:[%s3 + $0x3b0] sm:$0xf]
    %v10171 = vld [vmem:[%s3 + $0x3b4] sm:$0xf]
    %v10172 = vld [vmem:[%s3 + $0x3b8] sm:$0xf]
    %v10173 = vld [vmem:[%s3 + $0x3bc] sm:$0xf]
    %v10174 = vld [vmem:[%s3 + $0x3c0] sm:$0xf]
    %v10175 = vld [vmem:[%s3 + $0x3c4] sm:$0xf]
    %v10176 = vld [vmem:[%s3 + $0x3c8] sm:$0xf]
    %v10177 = vld [vmem:[%s3 + $0x3cc] sm:$0xf]
    %v10178 = vld [vmem:[%s3 + $0x3d0] sm:$0xf]
    %v10179 = vld [vmem:[%s3 + $0x3d4] sm:$0xf]
    %v10180 = vld [vmem:[%s3 + $0x3d8] sm:$0xf]
    %v10181 = vld [vmem:[%s3 + $0x3dc] sm:$0xf]
    %v10182 = vld [vmem:[%s3 + $0x3e0] sm:$0xf]
    %v10183 = vld [vmem:[%s3 + $0x3e4] sm:$0xf]
    %v10184 = vld [vmem:[%s3 + $0x3e8] sm:$0xf]
    %v10185 = vld [vmem:[%s3 + $0x3ec] sm:$0xf]
    %v10186 = vld [vmem:[%s3 + $0x3f0] sm:$0xf]
    %v10187 = vld [vmem:[%s3 + $0x3f4] sm:$0xf]
    %v10188 = vld [vmem:[%s3 + $0x3f8] sm:$0xf]
    %v10189 = vld [vmem:[%s3 + $0x3fc] sm:$0xf]
    %v10190 = vld [vmem:[%s3 + $0x400] sm:$0xf]
    %v10191 = vld [vmem:[%s3 + $0x404] sm:$0xf]
    %v10192 = vld [vmem:[%s3 + $0x408] sm:$0xf]
    %v10193 = vld [vmem:[%s3 + $0x40c] sm:$0xf]
    %v10194 = vld [vmem:[%s3 + $0x410] sm:$0xf]
    %v10195 = vld [vmem:[%s3 + $0x414] sm:$0xf]
    %v10196 = vld [vmem:[%s3 + $0x418] sm:$0xf]
    %v10197 = vld [vmem:[%s3 + $0x41c] sm:$0xf]
    %v10198 = vld [vmem:[%s3 + $0x420] sm:$0xf]
    %v10199 = vld [vmem:[%s3 + $0x424] sm:$0xf]
    %v10200 = vld [vmem:[%s3 + $0x428] sm:$0xf]
    %v10201 = vld [vmem:[%s3 + $0x42c] sm:$0xf]
    %v10202 = vld [vmem:[%s3 + $0x430] sm:$0xf]
    %v10203 = vld [vmem:[%s3 + $0x434] sm:$0xf]
    %v10204 = vld [vmem:[%s3 + $0x438] sm:$0xf]
    %v10205 = vld [vmem:[%s3 + $0x43c] sm:$0xf]
    %v10206 = vld [vmem:[%s3 + $0x440] sm:$0xf]
    %v10207 = vld [vmem:[%s3 + $0x444] sm:$0xf]
    %v10208 = vld [vmem:[%s3 + $0x448] sm:$0xf]
    %v10209 = vld [vmem:[%s3 + $0x44c] sm:$0xf]
    %v10210 = vld [vmem:[%s3 + $0x450] sm:$0xf]
    %v10211 = vld [vmem:[%s3 + $0x454] sm:$0xf]
    %v10212 = vld [vmem:[%s3 + $0x458] sm:$0xf]
    %v10213 = vld [vmem:[%s3 + $0x45c] sm:$0xf]
    %v10214 = vld [vmem:[%s3 + $0x460] sm:$0xf]
    %v10215 = vld [vmem:[%s3 + $0x464] sm:$0xf]
    %v10216 = vld [vmem:[%s3 + $0x468] sm:$0xf]
    %v10217 = vld [vmem:[%s3 + $0x46c] sm:$0xf]
    %v10218 = vld [vmem:[%s3 + $0x470] sm:$0xf]
    %v10219 = vld [vmem:[%s3 + $0x474] sm:$0xf]
    %v10220 = vld [vmem:[%s3 + $0x478] sm:$0xf]
    %v10221 = vld [vmem:[%s3 + $0x47c] sm:$0xf]
    %v10222 = vlaneseq
    %v10223 = vshrl.u32 %v10222, 7
    %v10224 = vsub.s32 4, %v10223
    %v10225 = vrot.slane %v89, %v10224
    %v10514 = vunpack.c.l.b16 %v9934
    %v10515 = vunpack.c.l.b16 %v9935
    %v10516 = vunpack.c.l.b16 %v9936
    %v10517 = vunpack.c.l.b16 %v9937
    %v10518 = vunpack.c.l.b16 %v9938
    %v10519 = vunpack.c.l.b16 %v9939
    %v10520 = vunpack.c.l.b16 %v9940
    %v10521 = vunpack.c.l.b16 %v9941
    %v10522 = vunpack.c.l.b16 %v9942
    %v10523 = vunpack.c.l.b16 %v9943
    %v10524 = vunpack.c.l.b16 %v9944
    %v10525 = vunpack.c.l.b16 %v9945
    %v10526 = vunpack.c.l.b16 %v9946
    %v10527 = vunpack.c.l.b16 %v9947
    %v10528 = vunpack.c.l.b16 %v9948
    %v10529 = vunpack.c.l.b16 %v9949
    %v10530 = vunpack.c.l.b16 %v9950
    %v10531 = vunpack.c.l.b16 %v9951
    %v10532 = vunpack.c.l.b16 %v9952
    %v10533 = vunpack.c.l.b16 %v9953
    %v10534 = vunpack.c.l.b16 %v9954
    %v10535 = vunpack.c.l.b16 %v9955
    %v10536 = vunpack.c.l.b16 %v9956
    %v10537 = vunpack.c.l.b16 %v9957
    %v10538 = vunpack.c.l.b16 %v9958
    %v10539 = vunpack.c.l.b16 %v9959
    %v10540 = vunpack.c.l.b16 %v9960
    %v10541 = vunpack.c.l.b16 %v9961
    %v10542 = vunpack.c.l.b16 %v9962
    %v10543 = vunpack.c.l.b16 %v9963
    %v10544 = vunpack.c.l.b16 %v9964
    %v10545 = vunpack.c.l.b16 %v9965
    %v10546 = vunpack.c.l.b16 %v9966
    %v10547 = vunpack.c.l.b16 %v9967
    %v10548 = vunpack.c.l.b16 %v9968
    %v10549 = vunpack.c.l.b16 %v9969
    %v10550 = vunpack.c.l.b16 %v9970
    %v10551 = vunpack.c.l.b16 %v9971
    %v10552 = vunpack.c.l.b16 %v9972
    %v10553 = vunpack.c.l.b16 %v9973
    %v10554 = vunpack.c.l.b16 %v9974
    %v10555 = vunpack.c.l.b16 %v9975
    %v10556 = vunpack.c.l.b16 %v9976
    %v10557 = vunpack.c.l.b16 %v9977
    %v10558 = vunpack.c.l.b16 %v9978
    %v10559 = vunpack.c.l.b16 %v9979
    %v10560 = vunpack.c.l.b16 %v9980
    %v10561 = vunpack.c.l.b16 %v9981
    %v10562 = vunpack.c.l.b16 %v9982
    %v10563 = vunpack.c.l.b16 %v9983
    %v10564 = vunpack.c.l.b16 %v9984
    %v10565 = vunpack.c.l.b16 %v9985
    %v10566 = vunpack.c.l.b16 %v9986
    %v10567 = vunpack.c.l.b16 %v9987
    %v10568 = vunpack.c.l.b16 %v9988
    %v10569 = vunpack.c.l.b16 %v9989
    %v10570 = vunpack.c.l.b16 %v9990
    %v10571 = vunpack.c.l.b16 %v9991
    %v10572 = vunpack.c.l.b16 %v9992
    %v10573 = vunpack.c.l.b16 %v9993
    %v10574 = vunpack.c.l.b16 %v9994
    %v10575 = vunpack.c.l.b16 %v9995
    %v10576 = vunpack.c.l.b16 %v9996
    %v10577 = vunpack.c.l.b16 %v9997
    %v10578 = vunpack.c.l.b16 %v9998
    %v10579 = vunpack.c.l.b16 %v9999
    %v10580 = vunpack.c.l.b16 %v10000
    %v10581 = vunpack.c.l.b16 %v10001
    %v10582 = vunpack.c.l.b16 %v10002
    %v10583 = vunpack.c.l.b16 %v10003
    %v10584 = vunpack.c.l.b16 %v10004
    %v10585 = vunpack.c.l.b16 %v10005
    %v10586 = vunpack.c.l.b16 %v10006
    %v10587 = vunpack.c.l.b16 %v10007
    %v10588 = vunpack.c.l.b16 %v10008
    %v10589 = vunpack.c.l.b16 %v10009
    %v10590 = vunpack.c.l.b16 %v10010
    %v10591 = vunpack.c.l.b16 %v10011
    %v10592 = vunpack.c.l.b16 %v10012
    %v10593 = vunpack.c.l.b16 %v10013
    %v10594 = vunpack.c.l.b16 %v10014
    %v10595 = vunpack.c.l.b16 %v10015
    %v10596 = vunpack.c.l.b16 %v10016
    %v10597 = vunpack.c.l.b16 %v10017
    %v10598 = vunpack.c.l.b16 %v10018
    %v10599 = vunpack.c.l.b16 %v10019
    %v10600 = vunpack.c.l.b16 %v10020
    %v10601 = vunpack.c.l.b16 %v10021
    %v10602 = vunpack.c.l.b16 %v10022
    %v10603 = vunpack.c.l.b16 %v10023
    %v10604 = vunpack.c.l.b16 %v10024
    %v10605 = vunpack.c.l.b16 %v10025
    %v10606 = vunpack.c.l.b16 %v10026
    %v10607 = vunpack.c.l.b16 %v10027
    %v10608 = vunpack.c.l.b16 %v10028
    %v10609 = vunpack.c.l.b16 %v10029
    %v10610 = vunpack.c.l.b16 %v10030
    %v10611 = vunpack.c.l.b16 %v10031
    %v10612 = vunpack.c.l.b16 %v10032
    %v10613 = vunpack.c.l.b16 %v10033
    %v10614 = vunpack.c.l.b16 %v10034
    %v10615 = vunpack.c.l.b16 %v10035
    %v10616 = vunpack.c.l.b16 %v10036
    %v10617 = vunpack.c.l.b16 %v10037
    %v10618 = vunpack.c.l.b16 %v10038
    %v10619 = vunpack.c.l.b16 %v10039
    %v10620 = vunpack.c.l.b16 %v10040
    %v10621 = vunpack.c.l.b16 %v10041
    %v10622 = vunpack.c.l.b16 %v10042
    %v10623 = vunpack.c.l.b16 %v10043
    %v10624 = vunpack.c.l.b16 %v10044
    %v10625 = vunpack.c.l.b16 %v10045
    %v10626 = vunpack.c.l.b16 %v10046
    %v10627 = vunpack.c.l.b16 %v10047
    %v10628 = vunpack.c.l.b16 %v10048
    %v10629 = vunpack.c.l.b16 %v10049
    %v10630 = vunpack.c.l.b16 %v10050
    %v10631 = vunpack.c.l.b16 %v10051
    %v10632 = vunpack.c.l.b16 %v10052
    %v10633 = vunpack.c.l.b16 %v10053
    %v10634 = vunpack.c.l.b16 %v10054
    %v10635 = vunpack.c.l.b16 %v10055
    %v10636 = vunpack.c.l.b16 %v10056
    %v10637 = vunpack.c.l.b16 %v10057
    %v10638 = vunpack.c.l.b16 %v10058
    %v10639 = vunpack.c.l.b16 %v10059
    %v10640 = vunpack.c.l.b16 %v10060
    %v10641 = vunpack.c.l.b16 %v10061
    %v10642 = vunpack.c.l.b16 %v10062
    %v10643 = vunpack.c.l.b16 %v10063
    %v10644 = vunpack.c.l.b16 %v10064
    %v10645 = vunpack.c.l.b16 %v10065
    %v10646 = vunpack.c.l.b16 %v10066
    %v10647 = vunpack.c.l.b16 %v10067
    %v10648 = vunpack.c.l.b16 %v10068
    %v10649 = vunpack.c.l.b16 %v10069
    %v10650 = vunpack.c.l.b16 %v10070
    %v10651 = vunpack.c.l.b16 %v10071
    %v10652 = vunpack.c.l.b16 %v10072
    %v10653 = vunpack.c.l.b16 %v10073
    %v10654 = vunpack.c.l.b16 %v10074
    %v10655 = vunpack.c.l.b16 %v10075
    %v10656 = vunpack.c.l.b16 %v10076
    %v10657 = vunpack.c.l.b16 %v10077
    %v10658 = vunpack.c.l.b16 %v10078
    %v10659 = vunpack.c.l.b16 %v10079
    %v10660 = vunpack.c.l.b16 %v10080
    %v10661 = vunpack.c.l.b16 %v10081
    %v10662 = vunpack.c.l.b16 %v10082
    %v10663 = vunpack.c.l.b16 %v10083
    %v10664 = vunpack.c.l.b16 %v10084
    %v10665 = vunpack.c.l.b16 %v10085
    %v10666 = vunpack.c.l.b16 %v10086
    %v10667 = vunpack.c.l.b16 %v10087
    %v10668 = vunpack.c.l.b16 %v10088
    %v10669 = vunpack.c.l.b16 %v10089
    %v10670 = vunpack.c.l.b16 %v10090
    %v10671 = vunpack.c.l.b16 %v10091
    %v10672 = vunpack.c.l.b16 %v10092
    %v10673 = vunpack.c.l.b16 %v10093
    %v10674 = vunpack.c.l.b16 %v10094
    %v10675 = vunpack.c.l.b16 %v10095
    %v10676 = vunpack.c.l.b16 %v10096
    %v10677 = vunpack.c.l.b16 %v10097
    %v10678 = vunpack.c.l.b16 %v10098
    %v10679 = vunpack.c.l.b16 %v10099
    %v10680 = vunpack.c.l.b16 %v10100
    %v10681 = vunpack.c.l.b16 %v10101
    %v10682 = vunpack.c.l.b16 %v10102
    %v10683 = vunpack.c.l.b16 %v10103
    %v10684 = vunpack.c.l.b16 %v10104
    %v10685 = vunpack.c.l.b16 %v10105
    %v10686 = vunpack.c.l.b16 %v10106
    %v10687 = vunpack.c.l.b16 %v10107
    %v10688 = vunpack.c.l.b16 %v10108
    %v10689 = vunpack.c.l.b16 %v10109
    %v10690 = vunpack.c.l.b16 %v10110
    %v10691 = vunpack.c.l.b16 %v10111
    %v10692 = vunpack.c.l.b16 %v10112
    %v10693 = vunpack.c.l.b16 %v10113
    %v10694 = vunpack.c.l.b16 %v10114
    %v10695 = vunpack.c.l.b16 %v10115
    %v10696 = vunpack.c.l.b16 %v10116
    %v10697 = vunpack.c.l.b16 %v10117
    %v10698 = vunpack.c.l.b16 %v10118
    %v10699 = vunpack.c.l.b16 %v10119
    %v10700 = vunpack.c.l.b16 %v10120
    %v10701 = vunpack.c.l.b16 %v10121
    %v10702 = vunpack.c.l.b16 %v10122
    %v10703 = vunpack.c.l.b16 %v10123
    %v10704 = vunpack.c.l.b16 %v10124
    %v10705 = vunpack.c.l.b16 %v10125
    %v10706 = vunpack.c.l.b16 %v10126
    %v10707 = vunpack.c.l.b16 %v10127
    %v10708 = vunpack.c.l.b16 %v10128
    %v10709 = vunpack.c.l.b16 %v10129
    %v10710 = vunpack.c.l.b16 %v10130
    %v10711 = vunpack.c.l.b16 %v10131
    %v10712 = vunpack.c.l.b16 %v10132
    %v10713 = vunpack.c.l.b16 %v10133
    %v10714 = vunpack.c.l.b16 %v10134
    %v10715 = vunpack.c.l.b16 %v10135
    %v10716 = vunpack.c.l.b16 %v10136
    %v10717 = vunpack.c.l.b16 %v10137
    %v10718 = vunpack.c.l.b16 %v10138
    %v10719 = vunpack.c.l.b16 %v10139
    %v10720 = vunpack.c.l.b16 %v10140
    %v10721 = vunpack.c.l.b16 %v10141
    %v10722 = vunpack.c.l.b16 %v10142
    %v10723 = vunpack.c.l.b16 %v10143
    %v10724 = vunpack.c.l.b16 %v10144
    %v10725 = vunpack.c.l.b16 %v10145
    %v10726 = vunpack.c.l.b16 %v10146
    %v10727 = vunpack.c.l.b16 %v10147
    %v10728 = vunpack.c.l.b16 %v10148
    %v10729 = vunpack.c.l.b16 %v10149
    %v10730 = vunpack.c.l.b16 %v10150
    %v10731 = vunpack.c.l.b16 %v10151
    %v10732 = vunpack.c.l.b16 %v10152
    %v10733 = vunpack.c.l.b16 %v10153
    %v10734 = vunpack.c.l.b16 %v10154
    %v10735 = vunpack.c.l.b16 %v10155
    %v10736 = vunpack.c.l.b16 %v10156
    %v10737 = vunpack.c.l.b16 %v10157
    %v10738 = vunpack.c.l.b16 %v10158
    %v10739 = vunpack.c.l.b16 %v10159
    %v10740 = vunpack.c.l.b16 %v10160
    %v10741 = vunpack.c.l.b16 %v10161
    %v10742 = vunpack.c.l.b16 %v10162
    %v10743 = vunpack.c.l.b16 %v10163
    %v10744 = vunpack.c.l.b16 %v10164
    %v10745 = vunpack.c.l.b16 %v10165
    %v10746 = vunpack.c.l.b16 %v10166
    %v10747 = vunpack.c.l.b16 %v10167
    %v10748 = vunpack.c.l.b16 %v10168
    %v10749 = vunpack.c.l.b16 %v10169
    %v10750 = vunpack.c.l.b16 %v10170
    %v10751 = vunpack.c.l.b16 %v10171
    %v10752 = vunpack.c.l.b16 %v10172
    %v10753 = vunpack.c.l.b16 %v10173
    %v10754 = vunpack.c.l.b16 %v10174
    %v10755 = vunpack.c.l.b16 %v10175
    %v10756 = vunpack.c.l.b16 %v10176
    %v10757 = vunpack.c.l.b16 %v10177
    %v10758 = vunpack.c.l.b16 %v10178
    %v10759 = vunpack.c.l.b16 %v10179
    %v10760 = vunpack.c.l.b16 %v10180
    %v10761 = vunpack.c.l.b16 %v10181
    %v10762 = vunpack.c.l.b16 %v10182
    %v10763 = vunpack.c.l.b16 %v10183
    %v10764 = vunpack.c.l.b16 %v10184
    %v10765 = vunpack.c.l.b16 %v10185
    %v10766 = vunpack.c.l.b16 %v10186
    %v10767 = vunpack.c.l.b16 %v10187
    %v10768 = vunpack.c.l.b16 %v10188
    %v10769 = vunpack.c.l.b16 %v10189
    %v10770 = vunpack.c.l.b16 %v10190
    %v10771 = vunpack.c.l.b16 %v10191
    %v10772 = vunpack.c.l.b16 %v10192
    %v10773 = vunpack.c.l.b16 %v10193
    %v10774 = vunpack.c.l.b16 %v10194
    %v10775 = vunpack.c.l.b16 %v10195
    %v10776 = vunpack.c.l.b16 %v10196
    %v10777 = vunpack.c.l.b16 %v10197
    %v10778 = vunpack.c.l.b16 %v10198
    %v10779 = vunpack.c.l.b16 %v10199
    %v10780 = vunpack.c.l.b16 %v10200
    %v10781 = vunpack.c.l.b16 %v10201
    %v10782 = vunpack.c.l.b16 %v10202
    %v10783 = vunpack.c.l.b16 %v10203
    %v10784 = vunpack.c.l.b16 %v10204
    %v10785 = vunpack.c.l.b16 %v10205
    %v10786 = vunpack.c.l.b16 %v10206
    %v10787 = vunpack.c.l.b16 %v10207
    %v10788 = vunpack.c.l.b16 %v10208
    %v10789 = vunpack.c.l.b16 %v10209
    %v10790 = vunpack.c.l.b16 %v10210
    %v10791 = vunpack.c.l.b16 %v10211
    %v10792 = vunpack.c.l.b16 %v10212
    %v10793 = vunpack.c.l.b16 %v10213
    %v10794 = vunpack.c.l.b16 %v10214
    %v10795 = vunpack.c.l.b16 %v10215
    %v10796 = vunpack.c.l.b16 %v10216
    %v10797 = vunpack.c.l.b16 %v10217
    %v10798 = vunpack.c.l.b16 %v10218
    %v10799 = vunpack.c.l.b16 %v10219
    %v10800 = vunpack.c.l.b16 %v10220
    %v10801 = vunpack.c.l.b16 %v10221
    %v10802 = vpack.c.b16 %v10515, %v10514
    %v10803 = vpack.c.b16 %v10517, %v10516
    %v10804 = vpack.c.b16 %v10519, %v10518
    %v10805 = vpack.c.b16 %v10521, %v10520
    %v10806 = vpack.c.b16 %v10523, %v10522
    %v10807 = vpack.c.b16 %v10525, %v10524
    %v10808 = vpack.c.b16 %v10527, %v10526
    %v10809 = vpack.c.b16 %v10529, %v10528
    %v10810 = vpack.c.b16 %v10531, %v10530
    %v10811 = vpack.c.b16 %v10533, %v10532
    %v10812 = vpack.c.b16 %v10535, %v10534
    %v10813 = vpack.c.b16 %v10537, %v10536
    %v10814 = vpack.c.b16 %v10539, %v10538
    %v10815 = vpack.c.b16 %v10541, %v10540
    %v10816 = vpack.c.b16 %v10543, %v10542
    %v10817 = vpack.c.b16 %v10545, %v10544
    %v10818 = vpack.c.b16 %v10547, %v10546
    %v10819 = vpack.c.b16 %v10549, %v10548
    %v10820 = vpack.c.b16 %v10551, %v10550
    %v10821 = vpack.c.b16 %v10553, %v10552
    %v10822 = vpack.c.b16 %v10555, %v10554
    %v10823 = vpack.c.b16 %v10557, %v10556
    %v10824 = vpack.c.b16 %v10559, %v10558
    %v10825 = vpack.c.b16 %v10561, %v10560
    %v10826 = vpack.c.b16 %v10563, %v10562
    %v10827 = vpack.c.b16 %v10565, %v10564
    %v10828 = vpack.c.b16 %v10567, %v10566
    %v10829 = vpack.c.b16 %v10569, %v10568
    %v10830 = vpack.c.b16 %v10571, %v10570
    %v10831 = vpack.c.b16 %v10573, %v10572
    %v10832 = vpack.c.b16 %v10575, %v10574
    %v10833 = vpack.c.b16 %v10577, %v10576
    %v10834 = vpack.c.b16 %v10579, %v10578
    %v10835 = vpack.c.b16 %v10581, %v10580
    %v10836 = vpack.c.b16 %v10583, %v10582
    %v10837 = vpack.c.b16 %v10585, %v10584
    %v10838 = vpack.c.b16 %v10587, %v10586
    %v10839 = vpack.c.b16 %v10589, %v10588
    %v10840 = vpack.c.b16 %v10591, %v10590
    %v10841 = vpack.c.b16 %v10593, %v10592
    %v10842 = vpack.c.b16 %v10595, %v10594
    %v10843 = vpack.c.b16 %v10597, %v10596
    %v10844 = vpack.c.b16 %v10599, %v10598
    %v10845 = vpack.c.b16 %v10601, %v10600
    %v10846 = vpack.c.b16 %v10603, %v10602
    %v10847 = vpack.c.b16 %v10605, %v10604
    %v10848 = vpack.c.b16 %v10607, %v10606
    %v10849 = vpack.c.b16 %v10609, %v10608
    %v10850 = vpack.c.b16 %v10611, %v10610
    %v10851 = vpack.c.b16 %v10613, %v10612
    %v10852 = vpack.c.b16 %v10615, %v10614
    %v10853 = vpack.c.b16 %v10617, %v10616
    %v10854 = vpack.c.b16 %v10619, %v10618
    %v10855 = vpack.c.b16 %v10621, %v10620
    %v10856 = vpack.c.b16 %v10623, %v10622
    %v10857 = vpack.c.b16 %v10625, %v10624
    %v10858 = vpack.c.b16 %v10627, %v10626
    %v10859 = vpack.c.b16 %v10629, %v10628
    %v10860 = vpack.c.b16 %v10631, %v10630
    %v10861 = vpack.c.b16 %v10633, %v10632
    %v10862 = vpack.c.b16 %v10635, %v10634
    %v10863 = vpack.c.b16 %v10637, %v10636
    %v10864 = vpack.c.b16 %v10639, %v10638
    %v10865 = vpack.c.b16 %v10641, %v10640
    %v10866 = vpack.c.b16 %v10643, %v10642
    %v10867 = vpack.c.b16 %v10645, %v10644
    %v10868 = vpack.c.b16 %v10647, %v10646
    %v10869 = vpack.c.b16 %v10649, %v10648
    %v10870 = vpack.c.b16 %v10651, %v10650
    %v10871 = vpack.c.b16 %v10653, %v10652
    %v10872 = vpack.c.b16 %v10655, %v10654
    %v10873 = vpack.c.b16 %v10657, %v10656
    %v10874 = vpack.c.b16 %v10659, %v10658
    %v10875 = vpack.c.b16 %v10661, %v10660
    %v10876 = vpack.c.b16 %v10663, %v10662
    %v10877 = vpack.c.b16 %v10665, %v10664
    %v10878 = vpack.c.b16 %v10667, %v10666
    %v10879 = vpack.c.b16 %v10669, %v10668
    %v10880 = vpack.c.b16 %v10671, %v10670
    %v10881 = vpack.c.b16 %v10673, %v10672
    %v10882 = vpack.c.b16 %v10675, %v10674
    %v10883 = vpack.c.b16 %v10677, %v10676
    %v10884 = vpack.c.b16 %v10679, %v10678
    %v10885 = vpack.c.b16 %v10681, %v10680
    %v10886 = vpack.c.b16 %v10683, %v10682
    %v10887 = vpack.c.b16 %v10685, %v10684
    %v10888 = vpack.c.b16 %v10687, %v10686
    %v10889 = vpack.c.b16 %v10689, %v10688
    %v10890 = vpack.c.b16 %v10691, %v10690
    %v10891 = vpack.c.b16 %v10693, %v10692
    %v10892 = vpack.c.b16 %v10695, %v10694
    %v10893 = vpack.c.b16 %v10697, %v10696
    %v10894 = vpack.c.b16 %v10699, %v10698
    %v10895 = vpack.c.b16 %v10701, %v10700
    %v10896 = vpack.c.b16 %v10703, %v10702
    %v10897 = vpack.c.b16 %v10705, %v10704
    %v10898 = vpack.c.b16 %v10707, %v10706
    %v10899 = vpack.c.b16 %v10709, %v10708
    %v10900 = vpack.c.b16 %v10711, %v10710
    %v10901 = vpack.c.b16 %v10713, %v10712
    %v10902 = vpack.c.b16 %v10715, %v10714
    %v10903 = vpack.c.b16 %v10717, %v10716
    %v10904 = vpack.c.b16 %v10719, %v10718
    %v10905 = vpack.c.b16 %v10721, %v10720
    %v10906 = vpack.c.b16 %v10723, %v10722
    %v10907 = vpack.c.b16 %v10725, %v10724
    %v10908 = vpack.c.b16 %v10727, %v10726
    %v10909 = vpack.c.b16 %v10729, %v10728
    %v10910 = vpack.c.b16 %v10731, %v10730
    %v10911 = vpack.c.b16 %v10733, %v10732
    %v10912 = vpack.c.b16 %v10735, %v10734
    %v10913 = vpack.c.b16 %v10737, %v10736
    %v10914 = vpack.c.b16 %v10739, %v10738
    %v10915 = vpack.c.b16 %v10741, %v10740
    %v10916 = vpack.c.b16 %v10743, %v10742
    %v10917 = vpack.c.b16 %v10745, %v10744
    %v10918 = vpack.c.b16 %v10747, %v10746
    %v10919 = vpack.c.b16 %v10749, %v10748
    %v10920 = vpack.c.b16 %v10751, %v10750
    %v10921 = vpack.c.b16 %v10753, %v10752
    %v10922 = vpack.c.b16 %v10755, %v10754
    %v10923 = vpack.c.b16 %v10757, %v10756
    %v10924 = vpack.c.b16 %v10759, %v10758
    %v10925 = vpack.c.b16 %v10761, %v10760
    %v10926 = vpack.c.b16 %v10763, %v10762
    %v10927 = vpack.c.b16 %v10765, %v10764
    %v10928 = vpack.c.b16 %v10767, %v10766
    %v10929 = vpack.c.b16 %v10769, %v10768
    %v10930 = vpack.c.b16 %v10771, %v10770
    %v10931 = vpack.c.b16 %v10773, %v10772
    %v10932 = vpack.c.b16 %v10775, %v10774
    %v10933 = vpack.c.b16 %v10777, %v10776
    %v10934 = vpack.c.b16 %v10779, %v10778
    %v10935 = vpack.c.b16 %v10781, %v10780
    %v10936 = vpack.c.b16 %v10783, %v10782
    %v10937 = vpack.c.b16 %v10785, %v10784
    %v10938 = vpack.c.b16 %v10787, %v10786
    %v10939 = vpack.c.b16 %v10789, %v10788
    %v10940 = vpack.c.b16 %v10791, %v10790
    %v10941 = vpack.c.b16 %v10793, %v10792
    %v10942 = vpack.c.b16 %v10795, %v10794
    %v10943 = vpack.c.b16 %v10797, %v10796
    %v10944 = vpack.c.b16 %v10799, %v10798
    %v10945 = vpack.c.b16 %v10801, %v10800
    %11090 = vmatprep.subr.bf16.mxu0 0
    %11091 = vmatpush1.bf16.msra.mxu0 %v10802
    %11092 = vmatprep.subr.bf16.mxu0 0
    %11093 = vmatpush1.bf16.msra.mxu0 %v10803
    %11094 = vmatprep.subr.bf16.mxu0 0
    %11095 = vmatpush1.bf16.msra.mxu0 %v10804
    %11096 = vmatprep.subr.bf16.mxu0 0
    %11097 = vmatpush1.bf16.msra.mxu0 %v10805
    %11098 = vmatprep.subr.bf16.mxu0 0
    %11099 = vmatpush1.bf16.msra.mxu0 %v10806
    %11100 = vmatprep.subr.bf16.mxu0 0
    %11101 = vmatpush1.bf16.msra.mxu0 %v10807
    %11102 = vmatprep.subr.bf16.mxu0 0
    %11103 = vmatpush1.bf16.msra.mxu0 %v10808
    %11104 = vmatprep.subr.bf16.mxu0 0
    %11105 = vmatpush1.bf16.msra.mxu0 %v10809
    %11106 = vmatprep.subr.bf16.mxu0 0
    %11107 = vmatpush1.bf16.msra.mxu0 %v10810
    %11108 = vmatprep.subr.bf16.mxu0 0
    %11109 = vmatpush1.bf16.msra.mxu0 %v10811
    %11110 = vmatprep.subr.bf16.mxu0 0
    %11111 = vmatpush1.bf16.msra.mxu0 %v10812
    %11112 = vmatprep.subr.bf16.mxu0 0
    %11113 = vmatpush1.bf16.msra.mxu0 %v10813
    %11114 = vmatprep.subr.bf16.mxu0 0
    %11115 = vmatpush1.bf16.msra.mxu0 %v10814
    %11116 = vmatprep.subr.bf16.mxu0 0
    %11117 = vmatpush1.bf16.msra.mxu0 %v10815
    %11118 = vmatprep.subr.bf16.mxu0 0
    %11119 = vmatpush1.bf16.msra.mxu0 %v10816
    %11120 = vmatprep.subr.bf16.mxu0 0
    %11121 = vmatpush1.bf16.msra.mxu0 %v10817
    %11122 = vmatprep.mubr.bf16.mxu0 %v9917
    %11123 = vmatmul.mubr.bf16.gmra.mrb[0].mxu0 %v9916
    %v11124 = vpop.f32.mrb[0].mxu0
    %v11125 = vadd.f32 %v10225, %v11124
    %v11126 = vpop.f32.mrb[0].mxu0
    %v11127 = vpop.f32.mrb[0].mxu0
    %v11128 = vpop.f32.mrb[0].mxu0
    %11129 = vdwg.mxu0
    %11130 = vmatprep.subr.bf16.mxu0 0
    %11131 = vmatpush1.bf16.msra.mxu0 %v10818
    %11132 = vmatprep.subr.bf16.mxu0 0
    %11133 = vmatpush1.bf16.msra.mxu0 %v10819
    %11134 = vmatprep.subr.bf16.mxu0 0
    %11135 = vmatpush1.bf16.msra.mxu0 %v10820
    %11136 = vmatprep.subr.bf16.mxu0 0
    %11137 = vmatpush1.bf16.msra.mxu0 %v10821
    %11138 = vmatprep.subr.bf16.mxu0 0
    %11139 = vmatpush1.bf16.msra.mxu0 %v10822
    %11140 = vmatprep.subr.bf16.mxu0 0
    %11141 = vmatpush1.bf16.msra.mxu0 %v10823
    %11142 = vmatprep.subr.bf16.mxu0 0
    %11143 = vmatpush1.bf16.msra.mxu0 %v10824
    %11144 = vmatprep.subr.bf16.mxu0 0
    %11145 = vmatpush1.bf16.msra.mxu0 %v10825
    %11146 = vmatprep.subr.bf16.mxu0 0
    %11147 = vmatpush1.bf16.msra.mxu0 %v10826
    %11148 = vmatprep.subr.bf16.mxu0 0
    %11149 = vmatpush1.bf16.msra.mxu0 %v10827
    %11150 = vmatprep.subr.bf16.mxu0 0
    %11151 = vmatpush1.bf16.msra.mxu0 %v10828
    %11152 = vmatprep.subr.bf16.mxu0 0
    %11153 = vmatpush1.bf16.msra.mxu0 %v10829
    %11154 = vmatprep.subr.bf16.mxu0 0
    %11155 = vmatpush1.bf16.msra.mxu0 %v10830
    %11156 = vmatprep.subr.bf16.mxu0 0
    %11157 = vmatpush1.bf16.msra.mxu0 %v10831
    %11158 = vmatprep.subr.bf16.mxu0 0
    %11159 = vmatpush1.bf16.msra.mxu0 %v10832
    %11160 = vmatprep.subr.bf16.mxu0 0
    %11161 = vmatpush1.bf16.msra.mxu0 %v10833
    %11162 = vmatprep.mubr.bf16.mxu0 %v9919
    %11163 = vmatmul.mubr.bf16.gmra.mrb[0].mxu0 %v9918
    %v11164 = vpop.f32.mrb[0].mxu0
    %v11165 = vadd.f32 %v11125, %v11164
    %v11166 = vpop.f32.mrb[0].mxu0
    %v11167 = vpop.f32.mrb[0].mxu0
    %v11168 = vpop.f32.mrb[0].mxu0
    %11169 = vdwg.mxu0
    %11170 = vmatprep.subr.bf16.mxu0 0
    %11171 = vmatpush1.bf16.msra.mxu0 %v10834
    %11172 = vmatprep.subr.bf16.mxu0 0
    %11173 = vmatpush1.bf16.msra.mxu0 %v10835
    %11174 = vmatprep.subr.bf16.mxu0 0
    %11175 = vmatpush1.bf16.msra.mxu0 %v10836
    %11176 = vmatprep.subr.bf16.mxu0 0
    %11177 = vmatpush1.bf16.msra.mxu0 %v10837
    %11178 = vmatprep.subr.bf16.mxu0 0
    %11179 = vmatpush1.bf16.msra.mxu0 %v10838
    %11180 = vmatprep.subr.bf16.mxu0 0
    %11181 = vmatpush1.bf16.msra.mxu0 %v10839
    %11182 = vmatprep.subr.bf16.mxu0 0
    %11183 = vmatpush1.bf16.msra.mxu0 %v10840
    %11184 = vmatprep.subr.bf16.mxu0 0
    %11185 = vmatpush1.bf16.msra.mxu0 %v10841
    %11186 = vmatprep.subr.bf16.mxu0 0
    %11187 = vmatpush1.bf16.msra.mxu0 %v10842
    %11188 = vmatprep.subr.bf16.mxu0 0
    %11189 = vmatpush1.bf16.msra.mxu0 %v10843
    %11190 = vmatprep.subr.bf16.mxu0 0
    %11191 = vmatpush1.bf16.msra.mxu0 %v10844
    %11192 = vmatprep.subr.bf16.mxu0 0
    %11193 = vmatpush1.bf16.msra.mxu0 %v10845
    %11194 = vmatprep.subr.bf16.mxu0 0
    %11195 = vmatpush1.bf16.msra.mxu0 %v10846
    %11196 = vmatprep.subr.bf16.mxu0 0
    %11197 = vmatpush1.bf16.msra.mxu0 %v10847
    %11198 = vmatprep.subr.bf16.mxu0 0
    %11199 = vmatpush1.bf16.msra.mxu0 %v10848
    %11200 = vmatprep.subr.bf16.mxu0 0
    %11201 = vmatpush1.bf16.msra.mxu0 %v10849
    %11202 = vmatprep.mubr.bf16.mxu0 %v9921
    %11203 = vmatmul.mubr.bf16.gmra.mrb[0].mxu0 %v9920
    %v11204 = vpop.f32.mrb[0].mxu0
    %v11205 = vadd.f32 %v11165, %v11204
    %v11206 = vpop.f32.mrb[0].mxu0
    %v11207 = vpop.f32.mrb[0].mxu0
    %v11208 = vpop.f32.mrb[0].mxu0
    %11209 = vdwg.mxu0
    %11210 = vmatprep.subr.bf16.mxu0 0
    %11211 = vmatpush1.bf16.msra.mxu0 %v10850
    %11212 = vmatprep.subr.bf16.mxu0 0
    %11213 = vmatpush1.bf16.msra.mxu0 %v10851
    %11214 = vmatprep.subr.bf16.mxu0 0
    %11215 = vmatpush1.bf16.msra.mxu0 %v10852
    %11216 = vmatprep.subr.bf16.mxu0 0
    %11217 = vmatpush1.bf16.msra.mxu0 %v10853
    %11218 = vmatprep.subr.bf16.mxu0 0
    %11219 = vmatpush1.bf16.msra.mxu0 %v10854
    %11220 = vmatprep.subr.bf16.mxu0 0
    %11221 = vmatpush1.bf16.msra.mxu0 %v10855
    %11222 = vmatprep.subr.bf16.mxu0 0
    %11223 = vmatpush1.bf16.msra.mxu0 %v10856
    %11224 = vmatprep.subr.bf16.mxu0 0
    %11225 = vmatpush1.bf16.msra.mxu0 %v10857
    %11226 = vmatprep.subr.bf16.mxu0 0
    %11227 = vmatpush1.bf16.msra.mxu0 %v10858
    %11228 = vmatprep.subr.bf16.mxu0 0
    %11229 = vmatpush1.bf16.msra.mxu0 %v10859
    %11230 = vmatprep.subr.bf16.mxu0 0
    %11231 = vmatpush1.bf16.msra.mxu0 %v10860
    %11232 = vmatprep.subr.bf16.mxu0 0
    %11233 = vmatpush1.bf16.msra.mxu0 %v10861
    %11234 = vmatprep.subr.bf16.mxu0 0
    %11235 = vmatpush1.bf16.msra.mxu0 %v10862
    %11236 = vmatprep.subr.bf16.mxu0 0
    %11237 = vmatpush1.bf16.msra.mxu0 %v10863
    %11238 = vmatprep.subr.bf16.mxu0 0
    %11239 = vmatpush1.bf16.msra.mxu0 %v10864
    %11240 = vmatprep.subr.bf16.mxu0 0
    %11241 = vmatpush1.bf16.msra.mxu0 %v10865
    %11242 = vmatprep.mubr.bf16.mxu0 %v9923
    %11243 = vmatmul.mubr.bf16.gmra.mrb[0].mxu0 %v9922
    %v11244 = vpop.f32.mrb[0].mxu0
    %v11245 = vadd.f32 %v11205, %v11244
    %v11246 = vpop.f32.mrb[0].mxu0
    %v11247 = vpop.f32.mrb[0].mxu0
    %v11248 = vpop.f32.mrb[0].mxu0
    %11249 = vdwg.mxu0
    %11250 = vmatprep.subr.bf16.mxu0 0
    %11251 = vmatpush1.bf16.msra.mxu0 %v10866
    %11252 = vmatprep.subr.bf16.mxu0 0
    %11253 = vmatpush1.bf16.msra.mxu0 %v10867
    %11254 = vmatprep.subr.bf16.mxu0 0
    %11255 = vmatpush1.bf16.msra.mxu0 %v10868
    %11256 = vmatprep.subr.bf16.mxu0 0
    %11257 = vmatpush1.bf16.msra.mxu0 %v10869
    %11258 = vmatprep.subr.bf16.mxu0 0
    %11259 = vmatpush1.bf16.msra.mxu0 %v10870
    %11260 = vmatprep.subr.bf16.mxu0 0
    %11261 = vmatpush1.bf16.msra.mxu0 %v10871
    %11262 = vmatprep.subr.bf16.mxu0 0
    %11263 = vmatpush1.bf16.msra.mxu0 %v10872
    %11264 = vmatprep.subr.bf16.mxu0 0
    %11265 = vmatpush1.bf16.msra.mxu0 %v10873
    %11266 = vmatprep.subr.bf16.mxu0 0
    %11267 = vmatpush1.bf16.msra.mxu0 %v10874
    %11268 = vmatprep.subr.bf16.mxu0 0
    %11269 = vmatpush1.bf16.msra.mxu0 %v10875
    %11270 = vmatprep.subr.bf16.mxu0 0
    %11271 = vmatpush1.bf16.msra.mxu0 %v10876
    %11272 = vmatprep.subr.bf16.mxu0 0
    %11273 = vmatpush1.bf16.msra.mxu0 %v10877
    %11274 = vmatprep.subr.bf16.mxu0 0
    %11275 = vmatpush1.bf16.msra.mxu0 %v10878
    %11276 = vmatprep.subr.bf16.mxu0 0
    %11277 = vmatpush1.bf16.msra.mxu0 %v10879
    %11278 = vmatprep.subr.bf16.mxu0 0
    %11279 = vmatpush1.bf16.msra.mxu0 %v10880
    %11280 = vmatprep.subr.bf16.mxu0 0
    %11281 = vmatpush1.bf16.msra.mxu0 %v10881
    %11282 = vmatprep.mubr.bf16.mxu0 %v9925
    %11283 = vmatmul.mubr.bf16.gmra.mrb[0].mxu0 %v9924
    %v11284 = vpop.f32.mrb[0].mxu0
    %v11285 = vadd.f32 %v11245, %v11284
    %v11286 = vpop.f32.mrb[0].mxu0
    %v11287 = vpop.f32.mrb[0].mxu0
    %v11288 = vpop.f32.mrb[0].mxu0
    %11289 = vdwg.mxu0
    %11290 = vmatprep.subr.bf16.mxu0 0
    %11291 = vmatpush1.bf16.msra.mxu0 %v10882
    %11292 = vmatprep.subr.bf16.mxu0 0
    %11293 = vmatpush1.bf16.msra.mxu0 %v10883
    %11294 = vmatprep.subr.bf16.mxu0 0
    %11295 = vmatpush1.bf16.msra.mxu0 %v10884
    %11296 = vmatprep.subr.bf16.mxu0 0
    %11297 = vmatpush1.bf16.msra.mxu0 %v10885
    %11298 = vmatprep.subr.bf16.mxu0 0
    %11299 = vmatpush1.bf16.msra.mxu0 %v10886
    %11300 = vmatprep.subr.bf16.mxu0 0
    %11301 = vmatpush1.bf16.msra.mxu0 %v10887
    %11302 = vmatprep.subr.bf16.mxu0 0
    %11303 = vmatpush1.bf16.msra.mxu0 %v10888
    %11304 = vmatprep.subr.bf16.mxu0 0
    %11305 = vmatpush1.bf16.msra.mxu0 %v10889
    %11306 = vmatprep.subr.bf16.mxu0 0
    %11307 = vmatpush1.bf16.msra.mxu0 %v10890
    %11308 = vmatprep.subr.bf16.mxu0 0
    %11309 = vmatpush1.bf16.msra.mxu0 %v10891
    %11310 = vmatprep.subr.bf16.mxu0 0
    %11311 = vmatpush1.bf16.msra.mxu0 %v10892
    %11312 = vmatprep.subr.bf16.mxu0 0
    %11313 = vmatpush1.bf16.msra.mxu0 %v10893
    %11314 = vmatprep.subr.bf16.mxu0 0
    %11315 = vmatpush1.bf16.msra.mxu0 %v10894
    %11316 = vmatprep.subr.bf16.mxu0 0
    %11317 = vmatpush1.bf16.msra.mxu0 %v10895
    %11318 = vmatprep.subr.bf16.mxu0 0
    %11319 = vmatpush1.bf16.msra.mxu0 %v10896
    %11320 = vmatprep.subr.bf16.mxu0 0
    %11321 = vmatpush1.bf16.msra.mxu0 %v10897
    %11322 = vmatprep.mubr.bf16.mxu0 %v9927
    %11323 = vmatmul.mubr.bf16.gmra.mrb[0].mxu0 %v9926
    %v11324 = vpop.f32.mrb[0].mxu0
    %v11325 = vadd.f32 %v11285, %v11324
    %v11326 = vpop.f32.mrb[0].mxu0
    %v11327 = vpop.f32.mrb[0].mxu0
    %v11328 = vpop.f32.mrb[0].mxu0
    %11329 = vdwg.mxu0
    %11330 = vmatprep.subr.bf16.mxu0 0
    %11331 = vmatpush1.bf16.msra.mxu0 %v10898
    %11332 = vmatprep.subr.bf16.mxu0 0
    %11333 = vmatpush1.bf16.msra.mxu0 %v10899
    %11334 = vmatprep.subr.bf16.mxu0 0
    %11335 = vmatpush1.bf16.msra.mxu0 %v10900
    %11336 = vmatprep.subr.bf16.mxu0 0
    %11337 = vmatpush1.bf16.msra.mxu0 %v10901
    %11338 = vmatprep.subr.bf16.mxu0 0
    %11339 = vmatpush1.bf16.msra.mxu0 %v10902
    %11340 = vmatprep.subr.bf16.mxu0 0
    %11341 = vmatpush1.bf16.msra.mxu0 %v10903
    %11342 = vmatprep.subr.bf16.mxu0 0
    %11343 = vmatpush1.bf16.msra.mxu0 %v10904
    %11344 = vmatprep.subr.bf16.mxu0 0
    %11345 = vmatpush1.bf16.msra.mxu0 %v10905
    %11346 = vmatprep.subr.bf16.mxu0 0
    %11347 = vmatpush1.bf16.msra.mxu0 %v10906
    %11348 = vmatprep.subr.bf16.mxu0 0
    %11349 = vmatpush1.bf16.msra.mxu0 %v10907
    %11350 = vmatprep.subr.bf16.mxu0 0
    %11351 = vmatpush1.bf16.msra.mxu0 %v10908
    %11352 = vmatprep.subr.bf16.mxu0 0
    %11353 = vmatpush1.bf16.msra.mxu0 %v10909
    %11354 = vmatprep.subr.bf16.mxu0 0
    %11355 = vmatpush1.bf16.msra.mxu0 %v10910
    %11356 = vmatprep.subr.bf16.mxu0 0
    %11357 = vmatpush1.bf16.msra.mxu0 %v10911
    %11358 = vmatprep.subr.bf16.mxu0 0
    %11359 = vmatpush1.bf16.msra.mxu0 %v10912
    %11360 = vmatprep.subr.bf16.mxu0 0
    %11361 = vmatpush1.bf16.msra.mxu0 %v10913
    %11362 = vmatprep.mubr.bf16.mxu0 %v9929
    %11363 = vmatmul.mubr.bf16.gmra.mrb[0].mxu0 %v9928
    %v11364 = vpop.f32.mrb[0].mxu0
    %v11365 = vadd.f32 %v11325, %v11364
    %v11366 = vpop.f32.mrb[0].mxu0
    %v11367 = vpop.f32.mrb[0].mxu0
    %v11368 = vpop.f32.mrb[0].mxu0
    %11369 = vdwg.mxu0
    %11370 = vmatprep.subr.bf16.mxu0 0
    %11371 = vmatpush1.bf16.msra.mxu0 %v10914
    %11372 = vmatprep.subr.bf16.mxu0 0
    %11373 = vmatpush1.bf16.msra.mxu0 %v10915
    %11374 = vmatprep.subr.bf16.mxu0 0
    %11375 = vmatpush1.bf16.msra.mxu0 %v10916
    %11376 = vmatprep.subr.bf16.mxu0 0
    %11377 = vmatpush1.bf16.msra.mxu0 %v10917
    %11378 = vmatprep.subr.bf16.mxu0 0
    %11379 = vmatpush1.bf16.msra.mxu0 %v10918
    %11380 = vmatprep.subr.bf16.mxu0 0
    %11381 = vmatpush1.bf16.msra.mxu0 %v10919
    %11382 = vmatprep.subr.bf16.mxu0 0
    %11383 = vmatpush1.bf16.msra.mxu0 %v10920
    %11384 = vmatprep.subr.bf16.mxu0 0
    %11385 = vmatpush1.bf16.msra.mxu0 %v10921
    %11386 = vmatprep.subr.bf16.mxu0 0
    %11387 = vmatpush1.bf16.msra.mxu0 %v10922
    %11388 = vmatprep.subr.bf16.mxu0 0
    %11389 = vmatpush1.bf16.msra.mxu0 %v10923
    %11390 = vmatprep.subr.bf16.mxu0 0
    %11391 = vmatpush1.bf16.msra.mxu0 %v10924
    %11392 = vmatprep.subr.bf16.mxu0 0
    %11393 = vmatpush1.bf16.msra.mxu0 %v10925
    %11394 = vmatprep.subr.bf16.mxu0 0
    %11395 = vmatpush1.bf16.msra.mxu0 %v10926
    %11396 = vmatprep.subr.bf16.mxu0 0
    %11397 = vmatpush1.bf16.msra.mxu0 %v10927
    %11398 = vmatprep.subr.bf16.mxu0 0
    %11399 = vmatpush1.bf16.msra.mxu0 %v10928
    %11400 = vmatprep.subr.bf16.mxu0 0
    %11401 = vmatpush1.bf16.msra.mxu0 %v10929
    %11402 = vmatprep.mubr.bf16.mxu0 %v9931
    %11403 = vmatmul.mubr.bf16.gmra.mrb[0].mxu0 %v9930
    %v11404 = vpop.f32.mrb[0].mxu0
    %v11405 = vadd.f32 %v11365, %v11404
    %v11406 = vpop.f32.mrb[0].mxu0
    %v11407 = vpop.f32.mrb[0].mxu0
    %v11408 = vpop.f32.mrb[0].mxu0
    %11409 = vdwg.mxu0
    %11410 = vmatprep.subr.bf16.mxu0 0
    %11411 = vmatpush1.bf16.msra.mxu0 %v10930
    %11412 = vmatprep.subr.bf16.mxu0 0
    %11413 = vmatpush1.bf16.msra.mxu0 %v10931
    %11414 = vmatprep.subr.bf16.mxu0 0
    %11415 = vmatpush1.bf16.msra.mxu0 %v10932
    %11416 = vmatprep.subr.bf16.mxu0 0
    %11417 = vmatpush1.bf16.msra.mxu0 %v10933
    %11418 = vmatprep.subr.bf16.mxu0 0
    %11419 = vmatpush1.bf16.msra.mxu0 %v10934
    %11420 = vmatprep.subr.bf16.mxu0 0
    %11421 = vmatpush1.bf16.msra.mxu0 %v10935
    %11422 = vmatprep.subr.bf16.mxu0 0
    %11423 = vmatpush1.bf16.msra.mxu0 %v10936
    %11424 = vmatprep.subr.bf16.mxu0 0
    %11425 = vmatpush1.bf16.msra.mxu0 %v10937
    %11426 = vmatprep.subr.bf16.mxu0 0
    %11427 = vmatpush1.bf16.msra.mxu0 %v10938
    %11428 = vmatprep.subr.bf16.mxu0 0
    %11429 = vmatpush1.bf16.msra.mxu0 %v10939
    %11430 = vmatprep.subr.bf16.mxu0 0
    %11431 = vmatpush1.bf16.msra.mxu0 %v10940
    %11432 = vmatprep.subr.bf16.mxu0 0
    %11433 = vmatpush1.bf16.msra.mxu0 %v10941
    %11434 = vmatprep.subr.bf16.mxu0 0
    %11435 = vmatpush1.bf16.msra.mxu0 %v10942
    %11436 = vmatprep.subr.bf16.mxu0 0
    %11437 = vmatpush1.bf16.msra.mxu0 %v10943
    %11438 = vmatprep.subr.bf16.mxu0 0
    %11439 = vmatpush1.bf16.msra.mxu0 %v10944
    %11440 = vmatprep.subr.bf16.mxu0 0
    %11441 = vmatpush1.bf16.msra.mxu0 %v10945
    %11442 = vmatprep.mubr.bf16.mxu0 %v9933
    %11443 = vmatmul.mubr.bf16.gmra.mrb[0].mxu0 %v9932
    %v11444 = vpop.f32.mrb[0].mxu0
    %v11445 = vadd.f32 %v11405, %v11444
    %v11446 = vpop.f32.mrb[0].mxu0
    %v11447 = vpop.f32.mrb[0].mxu0
    %v11448 = vpop.f32.mrb[0].mxu0
    %11449 = vdwg.mxu0
    %v11450 = vmax.f32 %v11445, 0.0
    %v11451 = vld [vmem:[%s4] sm:$0xff]
    %v11452 = vld [vmem:[%s4 + $0x8] sm:$0xff]
    %v11453 = vld [vmem:[%s4 + $0x10] sm:$0xff]
    %v11454 = vld [vmem:[%s4 + $0x18] sm:$0xff]
    %v11455 = vlaneseq
    %v11456 = vshrl.u32 %v11455, 7
    %v11457 = vsub.s32 5, %v11456
    %v11458 = vrot.slane %v89, %v11457
    %v11460 = vsel %vm2091, %v11450, 0
    %11462 = vmatprep.subr.mxu0 0.0
    %11463 = vmatpush1.msra.mxu0 %v11451
    %11464 = vmatprep.subr.mxu0 0.0
    %11465 = vmatpush1.msra.mxu0 %v11452
    %11466 = vmatprep.subr.mxu0 0.0
    %11467 = vmatpush1.msra.mxu0 %v11453
    %11468 = vmatprep.subr.mxu0 0.0
    %11469 = vmatpush1.msra.mxu0 %v11454
    %11470 = vmatprep.subr.mxu0 0.0
    %11471 = vmatpush1.msra.mxu0 0.0
    %11472 = vmatprep.subr.mxu0 0.0
    %11473 = vmatpush1.msra.mxu0 0.0
    %11474 = vmatprep.subr.mxu0 0.0
    %11475 = vmatpush1.msra.mxu0 0.0
    %11476 = vmatprep.subr.mxu0 0.0
    %11477 = vmatpush1.msra.mxu0 0.0
    %11478 = vmatprep.subr.mxu0 0.0
    %11479 = vmatpush1.msra.mxu0 0.0
    %11480 = vmatprep.subr.mxu0 0.0
    %11481 = vmatpush1.msra.mxu0 0.0
    %11482 = vmatprep.subr.mxu0 0.0
    %11483 = vmatpush1.msra.mxu0 0.0
    %11484 = vmatprep.subr.mxu0 0.0
    %11485 = vmatpush1.msra.mxu0 0.0
    %11486 = vmatprep.subr.mxu0 0.0
    %11487 = vmatpush1.msra.mxu0 0.0
    %11488 = vmatprep.subr.mxu0 0.0
    %11489 = vmatpush1.msra.mxu0 0.0
    %11490 = vmatprep.subr.mxu0 0.0
    %11491 = vmatpush1.msra.mxu0 0.0
    %11492 = vmatprep.subr.mxu0 0.0
    %11493 = vmatpush1.msra.mxu0 0.0
    %11494 = vmatprep.subr.mxu0 0.0
    %11495 = vmatpush1.msra.mxu0 0.0
    %11496 = vmatprep.subr.mxu0 0.0
    %11497 = vmatpush1.msra.mxu0 0.0
    %11498 = vmatprep.subr.mxu0 0.0
    %11499 = vmatpush1.msra.mxu0 0.0
    %11500 = vmatprep.subr.mxu0 0.0
    %11501 = vmatpush1.msra.mxu0 0.0
    %11502 = vmatprep.subr.mxu0 0.0
    %11503 = vmatpush1.msra.mxu0 0.0
    %11504 = vmatprep.subr.mxu0 0.0
    %11505 = vmatpush1.msra.mxu0 0.0
    %11506 = vmatprep.subr.mxu0 0.0
    %11507 = vmatpush1.msra.mxu0 0.0
    %11508 = vmatprep.subr.mxu0 0.0
    %11509 = vmatpush1.msra.mxu0 0.0
    %11510 = vmatprep.subr.mxu0 0.0
    %11511 = vmatpush1.msra.mxu0 0.0
    %11512 = vmatprep.subr.mxu0 0.0
    %11513 = vmatpush1.msra.mxu0 0.0
    %11514 = vmatprep.subr.mxu0 0.0
    %11515 = vmatpush1.msra.mxu0 0.0
    %11516 = vmatprep.subr.mxu0 0.0
    %11517 = vmatpush1.msra.mxu0 0.0
    %11518 = vmatprep.subr.mxu0 0.0
    %11519 = vmatpush1.msra.mxu0 0.0
    %11520 = vmatprep.subr.mxu0 0.0
    %11521 = vmatpush1.msra.mxu0 0.0
    %11522 = vmatprep.subr.mxu0 0.0
    %11523 = vmatpush1.msra.mxu0 0.0
    %11524 = vmatprep.subr.mxu0 0.0
    %11525 = vmatpush1.msra.mxu0 0.0
    %11526 = vmatprep.mubr.f32.mxu0 0.0
    %11527 = vmatmul.mubr.f32.gmra.mrb[0].mxu0 %v11460
    %v11528 = vpop.f32.mrb[0].mxu0
    %v11529 = vadd.f32 %v11458, %v11528
    %v11530 = vpop.f32.mrb[0].mxu0
    %11531 = vdwg.mxu0
    %11532 = vst [vmem:[#allocation2] sm:$0x3] %v11529
    // Predicated region
    $region26: #{convnet_forward.1} parent=1 // pred_check
      _
    $region27: #{convnet_forward.1} parent=1 // pred_check_branch
      %11534 = sbr.rel (0) target = $region29
    $region28: #{convnet_forward.1} parent=1 // pred_region
      %s11536 = ssub.s32 32, 32
      %11537 = vsyncadd [#allocation3], %s11536
      %s11539 = sshll.u32 [#allocation2], 4
      %s11540 = int_to_ptr.vmem [resolvable:$true] %s11539
      %11542 = dma.vmem_to_hbm [thread:$0]  %s11540, 32, %s6, [#allocation3]
    $region29: #{convnet_forward.1} parent=1 // pred_fallthru
      _
    // Predicated region
    $region30: #{convnet_forward.1} parent=1 // pred_check
      _
    $region31: #{convnet_forward.1} parent=1 // pred_check_branch
      %11544 = sbr.rel (0) target = $region33
    $region32: #{convnet_forward.1} parent=1 // pred_region
      %11545 = dma.done [#allocation3], 32
    $region33: #{convnet_forward.1} parent=1 // pred_fallthru
      _
    %11546 = vsyncpa [#allocation3], 1

</llo_original>
